<compile_context>
chip_gen: v7x
topology: tpu7x:2x2x1
jax: 0.10.0
libtpu: 0.0.40
codegen_flags: <defaults>
</compile_context>

<pallas_src>
import numpy as np

import jax
import jax.numpy as jnp
from jax.experimental import pallas as pl
from jax.experimental.pallas import tpu as pltpu

H = W = 28
C1 = 12
C2 = 24
HID = 256
NCLS = 10
NCLS_PAD = 128      # lane-dense logits store, sliced to 10 outside the kernel
LIN = 128           # conv1 input lanes   (28        -> 128)
L1 = 384            # conv1 output lanes  (28*12=336 -> 384)
L2 = 768            # conv2 output lanes  (28*24=672 -> 768)
PH = PW = 14        # pooled spatial dims


# ----------------------------------------------------------------------------
# Single fused kernel
# ----------------------------------------------------------------------------
def net_kernel(x_ref, w1_ref, b1_ref, w2_ref, b2_ref,
               wd1_hbm, bd1_ref, wd2_ref, bd2_ref,
               out_ref, wd1_vmem, wd1_sem):
    f32 = jnp.float32
    bf16 = jnp.bfloat16
    rows = x_ref.shape[0]          # 28 * B, row index = y * B + b
    bsz = rows // H

    # Hide the ~5.25 MiB dense-1 weight HBM->VMEM transfer behind the convs.
    wd1_cp = pltpu.make_async_copy(wd1_hbm, wd1_vmem, wd1_sem)
    wd1_cp.start()

    def vshift(h, dy):
        """Rows r of result = h[r + dy*B] with zero fill (vertical zero pad)."""
        zeros = jnp.zeros((bsz, h.shape[1]), h.dtype)
        if dy > 0:
            return jnp.concatenate([h[bsz:], zeros], axis=0)
        return jnp.concatenate([zeros, h[:-bsz]], axis=0)

    def conv3x3_relu(h, wf_ref, b_ref):
        """h: [28B, K] bf16, rows=(y,b), lanes=(x,cin), K % 128 == 0.

        The three vertical taps are lane-concatenated (128-aligned boundaries,
        so the concat is free) and contracted in ONE MXU matmul against a
        [3K, N] banded weight that folds the horizontal taps + horizontal zero
        padding.  f32 accumulation, bias, ReLU, then a single cast to bf16.
        """
        x3 = jnp.concatenate([vshift(h, -1), h, vshift(h, 1)], axis=1)
        acc = jnp.dot(x3, wf_ref[...], preferred_element_type=f32)
        return jnp.maximum(acc + b_ref[...], 0.0).astype(bf16)

    # ---- conv block (everything stays in VMEM) ------------------------------
    h1 = conv3x3_relu(x_ref[...], w1_ref, b1_ref)   # [28B, 384] lane = x*12 + c
    h2 = conv3x3_relu(h1, w2_ref, b2_ref)           # [28B, 768] lane = x*24 + c

    # ---- fused 2x2 / stride-2 max pool --------------------------------------
    p = jnp.maximum(h2, vshift(h2, 1))              # max over (y, y+1)
    hsh = jnp.concatenate(                          # lane l -> p[:, l + C2]
        [p[:, C2:], jnp.zeros((rows, C2), p.dtype)], axis=1)
    q = jnp.maximum(p, hsh)                         # max over (x, x+1)

    # ---- dense head ----------------------------------------------------------
    wd1_cp.wait()
    # Even-x selection + NCHW-flatten permutation are folded into wd1 blocks;
    # each even-y row block (y = 2*yo) is a contiguous [B, 768] slice.
    acc = jnp.zeros((bsz, HID), f32)
    for yo in range(PH):
        blk = q[2 * yo * bsz:(2 * yo + 1) * bsz, :]
        acc = acc + jnp.dot(blk, wd1_vmem[yo], preferred_element_type=f32)
    h3 = jnp.maximum(acc + bd1_ref[...], 0.0).astype(jnp.bfloat16)
    # TODO(synk): Dropout(p=0.5) is identity here (eval-mode semantics); a
    # training forward would need pltpu.prng_seed/prng_random_bits masking.
    logits = jnp.dot(h3, wd2_ref[...], preferred_element_type=f32) + bd2_ref[...]
    out_ref[...] = logits.astype(out_ref.dtype)     # [B, 128] lane-dense store


# ----------------------------------------------------------------------------
# Wrapper
# ----------------------------------------------------------------------------
def net_forward(params, x_nchw):
    """Eval-mode forward equivalent to Net.forward.  x: [B, 1, 28, 28] NCHW."""
    bsz = x_nchw.shape[0]
    # -> rows=(y,b), lanes=x zero-padded to 128, pre-cast to bf16 (no in-kernel
    # cast round trips, half the input DMA).
    x = x_nchw.astype(jnp.bfloat16).reshape(bsz, H, W)
    x = jnp.transpose(x, (1, 0, 2)).reshape(H * bsz, W)
    x = jnp.pad(x, ((0, 0), (0, LIN - W)))

    args = (x, params["w1"], params["b1"], params["w2"], params["b2"],
            params["wd1"], params["bd1"], params["wd2"], params["bd2"])
    in_specs = [
        pl.BlockSpec(x.shape, lambda i: (0, 0)),
        pl.BlockSpec(params["w1"].shape, lambda i: (0, 0)),
        pl.BlockSpec(params["b1"].shape, lambda i: (0, 0)),
        pl.BlockSpec(params["w2"].shape, lambda i: (0, 0)),
        pl.BlockSpec(params["b2"].shape, lambda i: (0, 0)),
        pl.BlockSpec(memory_space=pl.ANY),     # wd1 stays in HBM; manual DMA
        pl.BlockSpec(params["bd1"].shape, lambda i: (0, 0)),
        pl.BlockSpec(params["wd2"].shape, lambda i: (0, 0)),
        pl.BlockSpec(params["bd2"].shape, lambda i: (0, 0)),
    ]
    out = pl.pallas_call(
        net_kernel,
        out_shape=jax.ShapeDtypeStruct((bsz, NCLS_PAD), jnp.float32),
        grid=(1,),
        in_specs=in_specs,
        out_specs=pl.BlockSpec((bsz, NCLS_PAD), lambda i: (0, 0)),
        scratch_shapes=[
            pltpu.VMEM((PH, L2, HID), jnp.bfloat16),   # dense-1 weight buffer
            pltpu.SemaphoreType.DMA,
        ],
        compiler_params=pltpu.CompilerParams(
            dimension_semantics=("arbitrary",),
            # Actual per-call VMEM use is ~11 MiB; keep headroom while staying
            # well inside v7x's 64 MiB part (also raises v5e's 16 MiB default).
            vmem_limit_bytes=24 * 1024 * 1024,
        ),
    )(*args)
    return out[:, :NCLS]


# ----------------------------------------------------------------------------
# Parameter construction (PyTorch layouts) + conversion to the kernel layouts
# ----------------------------------------------------------------------------
def init_torch_style_params(key):
    """Deterministic synthetic weights in the layouts torch.nn uses."""
    ks = jax.random.split(key, 8)

    def unif(k, shape, fan_in):
        bound = 1.0 / np.sqrt(fan_in)
        return jax.random.uniform(k, shape, jnp.float32, -bound, bound)

    return {
        "conv1_w": unif(ks[0], (C1, 1, 3, 3), 9),            # [cout, cin, kh, kw]
        "conv1_b": unif(ks[1], (C1,), 9),
        "conv2_w": unif(ks[2], (C2, C1, 3, 3), 9 * C1),
        "conv2_b": unif(ks[3], (C2,), 9 * C1),
        "dense1_w": unif(ks[4], (HID, PH * PW * C2), PH * PW * C2),   # [out, in]
        "dense1_b": unif(ks[5], (HID,), PH * PW * C2),
        "dense2_w": unif(ks[6], (NCLS, HID), HID),
        "dense2_b": unif(ks[7], (NCLS,), HID),
    }


def prepare_params(tp):
    """One-time (init) conversion of PyTorch-layout weights to kernel layouts."""
    w1 = np.asarray(tp["conv1_w"], np.float32)
    b1 = np.asarray(tp["conv1_b"], np.float32)
    w2 = np.asarray(tp["conv2_w"], np.float32)
    b2 = np.asarray(tp["conv2_b"], np.float32)
    wd1 = np.asarray(tp["dense1_w"], np.float32)
    bd1 = np.asarray(tp["dense1_b"], np.float32)
    wd2 = np.asarray(tp["dense2_w"], np.float32)
    bd2 = np.asarray(tp["dense2_b"], np.float32)

    def banded_fused(w_oihw, lanes_in, lanes_out):
        """[3*lanes_in, lanes_out] weight folding all 9 taps of a 3x3 conv.

        Row = ky*lanes_in + x_in*cin + ci  (layout of the lane-concatenated
        vertical-tap copies); column = x_out*cout + c.  Horizontal zero padding
        is implicit (bands clipped at the x edges); padding lanes stay zero.
        """
        cout, cin, _, _ = w_oihw.shape
        m = np.zeros((3 * lanes_in, lanes_out), np.float32)
        for ky in range(3):
            for x_out in range(W):
                for kx in range(3):
                    x_in = x_out + kx - 1
                    if 0 <= x_in < W:
                        m[ky * lanes_in + x_in * cin:
                          ky * lanes_in + (x_in + 1) * cin,
                          x_out * cout:(x_out + 1) * cout] = w_oihw[:, :, ky, kx].T
        return m

    def bias_row(b, lanes_out):
        cout = b.shape[0]
        r = np.zeros((1, lanes_out), np.float32)
        r[0, :W * cout] = np.tile(b, W)            # lane x*cout + c -> b[c]
        return r

    # dense-1: fold the even-x pool selection and the torch NCHW flatten
    # (idx = c*196 + yo*14 + xo) into per-yo blocks consumed directly from the
    # pooled activations (lane = x*24 + c; zero rows at odd x / padding lanes).
    wd1_r = wd1.reshape(HID, C2, PH, PW).transpose(2, 3, 1, 0)    # [yo, xo, c, o]
    wd1_blk = np.zeros((PH, W, C2, HID), np.float32)
    wd1_blk[:, 0::2, :, :] = wd1_r                                # even x only
    wd1_blk = wd1_blk.reshape(PH, W * C2, HID)                    # [14, 672, 256]
    wd1_pad = np.zeros((PH, L2, HID), np.float32)                 # [14, 768, 256]
    wd1_pad[:, :W * C2, :] = wd1_blk

    wd2_p = np.zeros((HID, NCLS_PAD), np.float32)
    wd2_p[:, :NCLS] = wd2.T
    bd2_p = np.zeros((1, NCLS_PAD), np.float32)
    bd2_p[0, :NCLS] = bd2

    return {
        "w1": jnp.asarray(banded_fused(w1, LIN, L1), jnp.bfloat16),   # [384, 384]
        "b1": jnp.asarray(bias_row(b1, L1), jnp.float32),             # [1, 384]
        "w2": jnp.asarray(banded_fused(w2, L1, L2), jnp.bfloat16),    # [1152, 768]
        "b2": jnp.asarray(bias_row(b2, L2), jnp.float32),             # [1, 768]
        "wd1": jnp.asarray(wd1_pad, jnp.bfloat16),                    # [14, 768, 256]
        "bd1": jnp.asarray(bd1[None, :], jnp.float32),                # [1, 256]
        "wd2": jnp.asarray(wd2_p, jnp.bfloat16),                      # [256, 128]
        "bd2": jnp.asarray(bd2_p, jnp.float32),                       # [1, 128]
    }


if __name__ == "__main__":
    key = jax.random.PRNGKey(0)
    k_param, k_input = jax.random.split(key)

    params = prepare_params(init_torch_style_params(k_param))
    # Batch=2, MNIST-like input (Linear(14*14*24, ...) forces 28x28 spatial).
    x = jax.random.normal(k_input, (2, 1, 28, 28), jnp.float32)

    out = jax.jit(net_forward)(params, x)
    out = jax.block_until_ready(out)

    assert out.shape == (2, NCLS), out.shape
    assert out.dtype == jnp.float32
    print("KERNEL_OK")
</pallas_src>

<mosaic_0001>
module attributes {stable_mosaic.version = 11 : i64} {
  func.func @net_kernel(%arg0: i32, %arg1: memref<56x128xbf16, #tpu.memory_space<vmem>>, %arg2: memref<384x384xbf16, #tpu.memory_space<vmem>>, %arg3: memref<1x384xf32, #tpu.memory_space<vmem>>, %arg4: memref<1152x768xbf16, #tpu.memory_space<vmem>>, %arg5: memref<1x768xf32, #tpu.memory_space<vmem>>, %arg6: memref<14x768x256xbf16, #tpu.memory_space<any>>, %arg7: memref<1x256xf32, #tpu.memory_space<vmem>>, %arg8: memref<256x128xbf16, #tpu.memory_space<vmem>>, %arg9: memref<1x128xf32, #tpu.memory_space<vmem>>, %arg10: memref<2x128xf32, #tpu.memory_space<vmem>>, %arg11: memref<14x768x256xbf16, #tpu.memory_space<vmem>>, %arg12: memref<!tpu.dma_semaphore, #tpu.memory_space<semaphore_mem>>) attributes {dimension_semantics = [#tpu.dimension_semantics<arbitrary>], iteration_bounds = array<i64: 1>, scalar_prefetch = 0 : i64, scratch_operands = 2 : i64, tpu.core_type = #tpu.core_type<tc>, window_params = [{pipeline_mode = #tpu.pipeline_mode<synchronous>, transform_indices = @transform_0, window_bounds = array<i64: 56, 128>}, {pipeline_mode = #tpu.pipeline_mode<synchronous>, transform_indices = @transform_1, window_bounds = array<i64: 384, 384>}, {pipeline_mode = #tpu.pipeline_mode<synchronous>, transform_indices = @transform_2, window_bounds = array<i64: 1, 384>}, {pipeline_mode = #tpu.pipeline_mode<synchronous>, transform_indices = @transform_3, window_bounds = array<i64: 1152, 768>}, {pipeline_mode = #tpu.pipeline_mode<synchronous>, transform_indices = @transform_4, window_bounds = array<i64: 1, 768>}, {}, {pipeline_mode = #tpu.pipeline_mode<synchronous>, transform_indices = @transform_6, window_bounds = array<i64: 1, 256>}, {pipeline_mode = #tpu.pipeline_mode<synchronous>, transform_indices = @transform_7, window_bounds = array<i64: 256, 128>}, {pipeline_mode = #tpu.pipeline_mode<synchronous>, transform_indices = @transform_8, window_bounds = array<i64: 1, 128>}, {pipeline_mode = #tpu.pipeline_mode<synchronous>, transform_indices = @transform_9, window_bounds = array<i64: 2, 128>}]} {
    tpu.enqueue_dma source(%arg6 : memref<14x768x256xbf16, #tpu.memory_space<any>>) target(%arg11 : memref<14x768x256xbf16, #tpu.memory_space<vmem>>) target_semaphore(%arg12 : memref<!tpu.dma_semaphore, #tpu.memory_space<semaphore_mem>>)
    %c0 = arith.constant 0 : index
    %c0_0 = arith.constant 0 : index
    %0 = vector.load %arg1[%c0, %c0_0] : memref<56x128xbf16, #tpu.memory_space<vmem>>, vector<56x128xbf16>
    %cst = arith.constant 0.000000e+00 : bf16
    %1 = vector.broadcast %cst : bf16 to vector<2x128xbf16>
    %2 = vector.extract_strided_slice %0 {offsets = [0, 0], sizes = [54, 128], strides = [1, 1]} : vector<56x128xbf16> to vector<54x128xbf16>
    %3 = tpu.concatenate %1, %2 in 0 : vector<2x128xbf16>, vector<54x128xbf16> -> vector<56x128xbf16>
    %cst_1 = arith.constant 0.000000e+00 : bf16
    %4 = vector.broadcast %cst_1 : bf16 to vector<2x128xbf16>
    %5 = vector.extract_strided_slice %0 {offsets = [2, 0], sizes = [54, 128], strides = [1, 1]} : vector<56x128xbf16> to vector<54x128xbf16>
    %6 = tpu.concatenate %5, %4 in 0 : vector<54x128xbf16>, vector<2x128xbf16> -> vector<56x128xbf16>
    %7 = tpu.concatenate %3, %0, %6 in 1 : vector<56x128xbf16>, vector<56x128xbf16>, vector<56x128xbf16> -> vector<56x384xbf16>
    %c0_2 = arith.constant 0 : index
    %c0_3 = arith.constant 0 : index
    %8 = vector.load %arg2[%c0_2, %c0_3] : memref<384x384xbf16, #tpu.memory_space<vmem>>, vector<384x384xbf16>
    %cst_4 = arith.constant dense<0.000000e+00> : vector<56x384xf32>
    %9 = tpu.matmul %7, %8, %cst_4 {dimension_numbers = #tpu.dot_dimension_numbers<[1], [0], [0], [1], [0, 0, 1, 1], [], []>} : vector<56x384xbf16>, vector<384x384xbf16>, vector<56x384xf32> -> vector<56x384xf32>
    %c0_5 = arith.constant 0 : index
    %c0_6 = arith.constant 0 : index
    %10 = vector.load %arg3[%c0_5, %c0_6] : memref<1x384xf32, #tpu.memory_space<vmem>>, vector<1x384xf32>
    %11 = vector.broadcast %10 : vector<1x384xf32> to vector<56x384xf32>
    %12 = arith.addf %9, %11 : vector<56x384xf32>
    %cst_7 = arith.constant 0.000000e+00 : f32
    %13 = vector.broadcast %cst_7 : f32 to vector<56x384xf32>
    %14 = arith.maximumf %12, %13 : vector<56x384xf32>
    %15 = arith.truncf %14 : vector<56x384xf32> to vector<56x384xbf16>
    %cst_8 = arith.constant 0.000000e+00 : bf16
    %16 = vector.broadcast %cst_8 : bf16 to vector<2x384xbf16>
    %17 = vector.extract_strided_slice %15 {offsets = [0, 0], sizes = [54, 384], strides = [1, 1]} : vector<56x384xbf16> to vector<54x384xbf16>
    %18 = tpu.concatenate %16, %17 in 0 : vector<2x384xbf16>, vector<54x384xbf16> -> vector<56x384xbf16>
    %cst_9 = arith.constant 0.000000e+00 : bf16
    %19 = vector.broadcast %cst_9 : bf16 to vector<2x384xbf16>
    %20 = vector.extract_strided_slice %15 {offsets = [2, 0], sizes = [54, 384], strides = [1, 1]} : vector<56x384xbf16> to vector<54x384xbf16>
    %21 = tpu.concatenate %20, %19 in 0 : vector<54x384xbf16>, vector<2x384xbf16> -> vector<56x384xbf16>
    %22 = tpu.concatenate %18, %15, %21 in 1 : vector<56x384xbf16>, vector<56x384xbf16>, vector<56x384xbf16> -> vector<56x1152xbf16>
    %c0_10 = arith.constant 0 : index
    %c0_11 = arith.constant 0 : index
    %23 = vector.load %arg4[%c0_10, %c0_11] : memref<1152x768xbf16, #tpu.memory_space<vmem>>, vector<1152x768xbf16>
    %cst_12 = arith.constant dense<0.000000e+00> : vector<56x768xf32>
    %24 = tpu.matmul %22, %23, %cst_12 {dimension_numbers = #tpu.dot_dimension_numbers<[1], [0], [0], [1], [0, 0, 1, 1], [], []>} : vector<56x1152xbf16>, vector<1152x768xbf16>, vector<56x768xf32> -> vector<56x768xf32>
    %c0_13 = arith.constant 0 : index
    %c0_14 = arith.constant 0 : index
    %25 = vector.load %arg5[%c0_13, %c0_14] : memref<1x768xf32, #tpu.memory_space<vmem>>, vector<1x768xf32>
    %26 = vector.broadcast %25 : vector<1x768xf32> to vector<56x768xf32>
    %27 = arith.addf %24, %26 : vector<56x768xf32>
    %cst_15 = arith.constant 0.000000e+00 : f32
    %28 = vector.broadcast %cst_15 : f32 to vector<56x768xf32>
    %29 = arith.maximumf %27, %28 : vector<56x768xf32>
    %30 = arith.truncf %29 : vector<56x768xf32> to vector<56x768xbf16>
    %cst_16 = arith.constant 0.000000e+00 : bf16
    %31 = vector.broadcast %cst_16 : bf16 to vector<2x768xbf16>
    %32 = vector.extract_strided_slice %30 {offsets = [2, 0], sizes = [54, 768], strides = [1, 1]} : vector<56x768xbf16> to vector<54x768xbf16>
    %33 = tpu.concatenate %32, %31 in 0 : vector<54x768xbf16>, vector<2x768xbf16> -> vector<56x768xbf16>
    %34 = arith.maximumf %30, %33 : vector<56x768xbf16>
    %35 = vector.extract_strided_slice %34 {offsets = [0, 24], sizes = [56, 744], strides = [1, 1]} : vector<56x768xbf16> to vector<56x744xbf16>
    %cst_17 = arith.constant 0.000000e+00 : bf16
    %36 = vector.broadcast %cst_17 : bf16 to vector<56x24xbf16>
    %37 = tpu.concatenate %35, %36 in 1 : vector<56x744xbf16>, vector<56x24xbf16> -> vector<56x768xbf16>
    %38 = arith.maximumf %34, %37 : vector<56x768xbf16>
    tpu.wait_dma2 semaphore(%arg12 : memref<!tpu.dma_semaphore, #tpu.memory_space<semaphore_mem>>) src(%arg6 : memref<14x768x256xbf16, #tpu.memory_space<any>>) dst(%arg11 : memref<14x768x256xbf16, #tpu.memory_space<vmem>>)
    %cst_18 = arith.constant 0.000000e+00 : f32
    %39 = vector.broadcast %cst_18 : f32 to vector<2x256xf32>
    %40 = vector.extract_strided_slice %38 {offsets = [0, 0], sizes = [2, 768], strides = [1, 1]} : vector<56x768xbf16> to vector<2x768xbf16>
    %c0_19 = arith.constant 0 : index
    %c0_20 = arith.constant 0 : index
    %c0_21 = arith.constant 0 : index
    %41 = vector.load %arg11[%c0_19, %c0_20, %c0_21] : memref<14x768x256xbf16, #tpu.memory_space<vmem>>, vector<1x768x256xbf16>
    %42 = vector.shape_cast %41 : vector<1x768x256xbf16> to vector<768x256xbf16>
    %cst_22 = arith.constant dense<0.000000e+00> : vector<2x256xf32>
    %43 = tpu.matmul %40, %42, %cst_22 {dimension_numbers = #tpu.dot_dimension_numbers<[1], [0], [0], [1], [0, 0, 1, 1], [], []>} : vector<2x768xbf16>, vector<768x256xbf16>, vector<2x256xf32> -> vector<2x256xf32>
    %44 = arith.addf %39, %43 : vector<2x256xf32>
    %45 = vector.extract_strided_slice %38 {offsets = [4, 0], sizes = [2, 768], strides = [1, 1]} : vector<56x768xbf16> to vector<2x768xbf16>
    %c1 = arith.constant 1 : index
    %c0_23 = arith.constant 0 : index
    %c0_24 = arith.constant 0 : index
    %46 = vector.load %arg11[%c1, %c0_23, %c0_24] : memref<14x768x256xbf16, #tpu.memory_space<vmem>>, vector<1x768x256xbf16>
    %47 = vector.shape_cast %46 : vector<1x768x256xbf16> to vector<768x256xbf16>
    %cst_25 = arith.constant dense<0.000000e+00> : vector<2x256xf32>
    %48 = tpu.matmul %45, %47, %cst_25 {dimension_numbers = #tpu.dot_dimension_numbers<[1], [0], [0], [1], [0, 0, 1, 1], [], []>} : vector<2x768xbf16>, vector<768x256xbf16>, vector<2x256xf32> -> vector<2x256xf32>
    %49 = arith.addf %44, %48 : vector<2x256xf32>
    %50 = vector.extract_strided_slice %38 {offsets = [8, 0], sizes = [2, 768], strides = [1, 1]} : vector<56x768xbf16> to vector<2x768xbf16>
    %c2 = arith.constant 2 : index
    %c0_26 = arith.constant 0 : index
    %c0_27 = arith.constant 0 : index
    %51 = vector.load %arg11[%c2, %c0_26, %c0_27] : memref<14x768x256xbf16, #tpu.memory_space<vmem>>, vector<1x768x256xbf16>
    %52 = vector.shape_cast %51 : vector<1x768x256xbf16> to vector<768x256xbf16>
    %cst_28 = arith.constant dense<0.000000e+00> : vector<2x256xf32>
    %53 = tpu.matmul %50, %52, %cst_28 {dimension_numbers = #tpu.dot_dimension_numbers<[1], [0], [0], [1], [0, 0, 1, 1], [], []>} : vector<2x768xbf16>, vector<768x256xbf16>, vector<2x256xf32> -> vector<2x256xf32>
    %54 = arith.addf %49, %53 : vector<2x256xf32>
    %55 = vector.extract_strided_slice %38 {offsets = [12, 0], sizes = [2, 768], strides = [1, 1]} : vector<56x768xbf16> to vector<2x768xbf16>
    %c3 = arith.constant 3 : index
    %c0_29 = arith.constant 0 : index
    %c0_30 = arith.constant 0 : index
    %56 = vector.load %arg11[%c3, %c0_29, %c0_30] : memref<14x768x256xbf16, #tpu.memory_space<vmem>>, vector<1x768x256xbf16>
    %57 = vector.shape_cast %56 : vector<1x768x256xbf16> to vector<768x256xbf16>
    %cst_31 = arith.constant dense<0.000000e+00> : vector<2x256xf32>
    %58 = tpu.matmul %55, %57, %cst_31 {dimension_numbers = #tpu.dot_dimension_numbers<[1], [0], [0], [1], [0, 0, 1, 1], [], []>} : vector<2x768xbf16>, vector<768x256xbf16>, vector<2x256xf32> -> vector<2x256xf32>
    %59 = arith.addf %54, %58 : vector<2x256xf32>
    %60 = vector.extract_strided_slice %38 {offsets = [16, 0], sizes = [2, 768], strides = [1, 1]} : vector<56x768xbf16> to vector<2x768xbf16>
    %c4 = arith.constant 4 : index
    %c0_32 = arith.constant 0 : index
    %c0_33 = arith.constant 0 : index
    %61 = vector.load %arg11[%c4, %c0_32, %c0_33] : memref<14x768x256xbf16, #tpu.memory_space<vmem>>, vector<1x768x256xbf16>
    %62 = vector.shape_cast %61 : vector<1x768x256xbf16> to vector<768x256xbf16>
    %cst_34 = arith.constant dense<0.000000e+00> : vector<2x256xf32>
    %63 = tpu.matmul %60, %62, %cst_34 {dimension_numbers = #tpu.dot_dimension_numbers<[1], [0], [0], [1], [0, 0, 1, 1], [], []>} : vector<2x768xbf16>, vector<768x256xbf16>, vector<2x256xf32> -> vector<2x256xf32>
    %64 = arith.addf %59, %63 : vector<2x256xf32>
    %65 = vector.extract_strided_slice %38 {offsets = [20, 0], sizes = [2, 768], strides = [1, 1]} : vector<56x768xbf16> to vector<2x768xbf16>
    %c5 = arith.constant 5 : index
    %c0_35 = arith.constant 0 : index
    %c0_36 = arith.constant 0 : index
    %66 = vector.load %arg11[%c5, %c0_35, %c0_36] : memref<14x768x256xbf16, #tpu.memory_space<vmem>>, vector<1x768x256xbf16>
    %67 = vector.shape_cast %66 : vector<1x768x256xbf16> to vector<768x256xbf16>
    %cst_37 = arith.constant dense<0.000000e+00> : vector<2x256xf32>
    %68 = tpu.matmul %65, %67, %cst_37 {dimension_numbers = #tpu.dot_dimension_numbers<[1], [0], [0], [1], [0, 0, 1, 1], [], []>} : vector<2x768xbf16>, vector<768x256xbf16>, vector<2x256xf32> -> vector<2x256xf32>
    %69 = arith.addf %64, %68 : vector<2x256xf32>
    %70 = vector.extract_strided_slice %38 {offsets = [24, 0], sizes = [2, 768], strides = [1, 1]} : vector<56x768xbf16> to vector<2x768xbf16>
    %c6 = arith.constant 6 : index
    %c0_38 = arith.constant 0 : index
    %c0_39 = arith.constant 0 : index
    %71 = vector.load %arg11[%c6, %c0_38, %c0_39] : memref<14x768x256xbf16, #tpu.memory_space<vmem>>, vector<1x768x256xbf16>
    %72 = vector.shape_cast %71 : vector<1x768x256xbf16> to vector<768x256xbf16>
    %cst_40 = arith.constant dense<0.000000e+00> : vector<2x256xf32>
    %73 = tpu.matmul %70, %72, %cst_40 {dimension_numbers = #tpu.dot_dimension_numbers<[1], [0], [0], [1], [0, 0, 1, 1], [], []>} : vector<2x768xbf16>, vector<768x256xbf16>, vector<2x256xf32> -> vector<2x256xf32>
    %74 = arith.addf %69, %73 : vector<2x256xf32>
    %75 = vector.extract_strided_slice %38 {offsets = [28, 0], sizes = [2, 768], strides = [1, 1]} : vector<56x768xbf16> to vector<2x768xbf16>
    %c7 = arith.constant 7 : index
    %c0_41 = arith.constant 0 : index
    %c0_42 = arith.constant 0 : index
    %76 = vector.load %arg11[%c7, %c0_41, %c0_42] : memref<14x768x256xbf16, #tpu.memory_space<vmem>>, vector<1x768x256xbf16>
    %77 = vector.shape_cast %76 : vector<1x768x256xbf16> to vector<768x256xbf16>
    %cst_43 = arith.constant dense<0.000000e+00> : vector<2x256xf32>
    %78 = tpu.matmul %75, %77, %cst_43 {dimension_numbers = #tpu.dot_dimension_numbers<[1], [0], [0], [1], [0, 0, 1, 1], [], []>} : vector<2x768xbf16>, vector<768x256xbf16>, vector<2x256xf32> -> vector<2x256xf32>
    %79 = arith.addf %74, %78 : vector<2x256xf32>
    %80 = vector.extract_strided_slice %38 {offsets = [32, 0], sizes = [2, 768], strides = [1, 1]} : vector<56x768xbf16> to vector<2x768xbf16>
    %c8 = arith.constant 8 : index
    %c0_44 = arith.constant 0 : index
    %c0_45 = arith.constant 0 : index
    %81 = vector.load %arg11[%c8, %c0_44, %c0_45] : memref<14x768x256xbf16, #tpu.memory_space<vmem>>, vector<1x768x256xbf16>
    %82 = vector.shape_cast %81 : vector<1x768x256xbf16> to vector<768x256xbf16>
    %cst_46 = arith.constant dense<0.000000e+00> : vector<2x256xf32>
    %83 = tpu.matmul %80, %82, %cst_46 {dimension_numbers = #tpu.dot_dimension_numbers<[1], [0], [0], [1], [0, 0, 1, 1], [], []>} : vector<2x768xbf16>, vector<768x256xbf16>, vector<2x256xf32> -> vector<2x256xf32>
    %84 = arith.addf %79, %83 : vector<2x256xf32>
    %85 = vector.extract_strided_slice %38 {offsets = [36, 0], sizes = [2, 768], strides = [1, 1]} : vector<56x768xbf16> to vector<2x768xbf16>
    %c9 = arith.constant 9 : index
    %c0_47 = arith.constant 0 : index
    %c0_48 = arith.constant 0 : index
    %86 = vector.load %arg11[%c9, %c0_47, %c0_48] : memref<14x768x256xbf16, #tpu.memory_space<vmem>>, vector<1x768x256xbf16>
    %87 = vector.shape_cast %86 : vector<1x768x256xbf16> to vector<768x256xbf16>
    %cst_49 = arith.constant dense<0.000000e+00> : vector<2x256xf32>
    %88 = tpu.matmul %85, %87, %cst_49 {dimension_numbers = #tpu.dot_dimension_numbers<[1], [0], [0], [1], [0, 0, 1, 1], [], []>} : vector<2x768xbf16>, vector<768x256xbf16>, vector<2x256xf32> -> vector<2x256xf32>
    %89 = arith.addf %84, %88 : vector<2x256xf32>
    %90 = vector.extract_strided_slice %38 {offsets = [40, 0], sizes = [2, 768], strides = [1, 1]} : vector<56x768xbf16> to vector<2x768xbf16>
    %c10 = arith.constant 10 : index
    %c0_50 = arith.constant 0 : index
    %c0_51 = arith.constant 0 : index
    %91 = vector.load %arg11[%c10, %c0_50, %c0_51] : memref<14x768x256xbf16, #tpu.memory_space<vmem>>, vector<1x768x256xbf16>
    %92 = vector.shape_cast %91 : vector<1x768x256xbf16> to vector<768x256xbf16>
    %cst_52 = arith.constant dense<0.000000e+00> : vector<2x256xf32>
    %93 = tpu.matmul %90, %92, %cst_52 {dimension_numbers = #tpu.dot_dimension_numbers<[1], [0], [0], [1], [0, 0, 1, 1], [], []>} : vector<2x768xbf16>, vector<768x256xbf16>, vector<2x256xf32> -> vector<2x256xf32>
    %94 = arith.addf %89, %93 : vector<2x256xf32>
    %95 = vector.extract_strided_slice %38 {offsets = [44, 0], sizes = [2, 768], strides = [1, 1]} : vector<56x768xbf16> to vector<2x768xbf16>
    %c11 = arith.constant 11 : index
    %c0_53 = arith.constant 0 : index
    %c0_54 = arith.constant 0 : index
    %96 = vector.load %arg11[%c11, %c0_53, %c0_54] : memref<14x768x256xbf16, #tpu.memory_space<vmem>>, vector<1x768x256xbf16>
    %97 = vector.shape_cast %96 : vector<1x768x256xbf16> to vector<768x256xbf16>
    %cst_55 = arith.constant dense<0.000000e+00> : vector<2x256xf32>
    %98 = tpu.matmul %95, %97, %cst_55 {dimension_numbers = #tpu.dot_dimension_numbers<[1], [0], [0], [1], [0, 0, 1, 1], [], []>} : vector<2x768xbf16>, vector<768x256xbf16>, vector<2x256xf32> -> vector<2x256xf32>
    %99 = arith.addf %94, %98 : vector<2x256xf32>
    %100 = vector.extract_strided_slice %38 {offsets = [48, 0], sizes = [2, 768], strides = [1, 1]} : vector<56x768xbf16> to vector<2x768xbf16>
    %c12 = arith.constant 12 : index
    %c0_56 = arith.constant 0 : index
    %c0_57 = arith.constant 0 : index
    %101 = vector.load %arg11[%c12, %c0_56, %c0_57] : memref<14x768x256xbf16, #tpu.memory_space<vmem>>, vector<1x768x256xbf16>
    %102 = vector.shape_cast %101 : vector<1x768x256xbf16> to vector<768x256xbf16>
    %cst_58 = arith.constant dense<0.000000e+00> : vector<2x256xf32>
    %103 = tpu.matmul %100, %102, %cst_58 {dimension_numbers = #tpu.dot_dimension_numbers<[1], [0], [0], [1], [0, 0, 1, 1], [], []>} : vector<2x768xbf16>, vector<768x256xbf16>, vector<2x256xf32> -> vector<2x256xf32>
    %104 = arith.addf %99, %103 : vector<2x256xf32>
    %105 = vector.extract_strided_slice %38 {offsets = [52, 0], sizes = [2, 768], strides = [1, 1]} : vector<56x768xbf16> to vector<2x768xbf16>
    %c13 = arith.constant 13 : index
    %c0_59 = arith.constant 0 : index
    %c0_60 = arith.constant 0 : index
    %106 = vector.load %arg11[%c13, %c0_59, %c0_60] : memref<14x768x256xbf16, #tpu.memory_space<vmem>>, vector<1x768x256xbf16>
    %107 = vector.shape_cast %106 : vector<1x768x256xbf16> to vector<768x256xbf16>
    %cst_61 = arith.constant dense<0.000000e+00> : vector<2x256xf32>
    %108 = tpu.matmul %105, %107, %cst_61 {dimension_numbers = #tpu.dot_dimension_numbers<[1], [0], [0], [1], [0, 0, 1, 1], [], []>} : vector<2x768xbf16>, vector<768x256xbf16>, vector<2x256xf32> -> vector<2x256xf32>
    %109 = arith.addf %104, %108 : vector<2x256xf32>
    %c0_62 = arith.constant 0 : index
    %c0_63 = arith.constant 0 : index
    %110 = vector.load %arg7[%c0_62, %c0_63] : memref<1x256xf32, #tpu.memory_space<vmem>>, vector<1x256xf32>
    %111 = vector.broadcast %110 : vector<1x256xf32> to vector<2x256xf32>
    %112 = arith.addf %109, %111 : vector<2x256xf32>
    %cst_64 = arith.constant 0.000000e+00 : f32
    %113 = vector.broadcast %cst_64 : f32 to vector<2x256xf32>
    %114 = arith.maximumf %112, %113 : vector<2x256xf32>
    %115 = arith.truncf %114 : vector<2x256xf32> to vector<2x256xbf16>
    %c0_65 = arith.constant 0 : index
    %c0_66 = arith.constant 0 : index
    %116 = vector.load %arg8[%c0_65, %c0_66] : memref<256x128xbf16, #tpu.memory_space<vmem>>, vector<256x128xbf16>
    %cst_67 = arith.constant dense<0.000000e+00> : vector<2x128xf32>
    %117 = tpu.matmul %115, %116, %cst_67 {dimension_numbers = #tpu.dot_dimension_numbers<[1], [0], [0], [1], [0, 0, 1, 1], [], []>} : vector<2x256xbf16>, vector<256x128xbf16>, vector<2x128xf32> -> vector<2x128xf32>
    %c0_68 = arith.constant 0 : index
    %c0_69 = arith.constant 0 : index
    %118 = vector.load %arg9[%c0_68, %c0_69] : memref<1x128xf32, #tpu.memory_space<vmem>>, vector<1x128xf32>
    %119 = vector.broadcast %118 : vector<1x128xf32> to vector<2x128xf32>
    %120 = arith.addf %117, %119 : vector<2x128xf32>
    %c0_70 = arith.constant 0 : index
    %c0_71 = arith.constant 0 : index
    %121 = vector.load %arg10[%c0_70, %c0_71] : memref<2x128xf32, #tpu.memory_space<vmem>>, vector<2x128xf32>
    tpu.vector_store %arg10[%c0_70, %c0_71], %120 {strides = array<i32>} : memref<2x128xf32, #tpu.memory_space<vmem>>, vector<2x128xf32>,
    return
  }
  func.func @transform_0(%arg0: i32) -> (i32, i32) {
    %c0_i32 = arith.constant 0 : i32
    %c0_i32_0 = arith.constant 0 : i32
    %c0_i32_1 = arith.constant 0 : i32
    return %c0_i32, %c0_i32_0 : i32, i32
  }
  func.func @transform_1(%arg0: i32) -> (i32, i32) {
    %c0_i32 = arith.constant 0 : i32
    %c0_i32_0 = arith.constant 0 : i32
    %c0_i32_1 = arith.constant 0 : i32
    return %c0_i32, %c0_i32_0 : i32, i32
  }
  func.func @transform_2(%arg0: i32) -> (i32, i32) {
    %c0_i32 = arith.constant 0 : i32
    %c0_i32_0 = arith.constant 0 : i32
    %c0_i32_1 = arith.constant 0 : i32
    return %c0_i32, %c0_i32_0 : i32, i32
  }
  func.func @transform_3(%arg0: i32) -> (i32, i32) {
    %c0_i32 = arith.constant 0 : i32
    %c0_i32_0 = arith.constant 0 : i32
    %c0_i32_1 = arith.constant 0 : i32
    return %c0_i32, %c0_i32_0 : i32, i32
  }
  func.func @transform_4(%arg0: i32) -> (i32, i32) {
    %c0_i32 = arith.constant 0 : i32
    %c0_i32_0 = arith.constant 0 : i32
    %c0_i32_1 = arith.constant 0 : i32
    return %c0_i32, %c0_i32_0 : i32, i32
  }
  func.func @transform_6(%arg0: i32) -> (i32, i32) {
    %c0_i32 = arith.constant 0 : i32
    %c0_i32_0 = arith.constant 0 : i32
    %c0_i32_1 = arith.constant 0 : i32
    return %c0_i32, %c0_i32_0 : i32, i32
  }
  func.func @transform_7(%arg0: i32) -> (i32, i32) {
    %c0_i32 = arith.constant 0 : i32
    %c0_i32_0 = arith.constant 0 : i32
    %c0_i32_1 = arith.constant 0 : i32
    return %c0_i32, %c0_i32_0 : i32, i32
  }
  func.func @transform_8(%arg0: i32) -> (i32, i32) {
    %c0_i32 = arith.constant 0 : i32
    %c0_i32_0 = arith.constant 0 : i32
    %c0_i32_1 = arith.constant 0 : i32
    return %c0_i32, %c0_i32_0 : i32, i32
  }
  func.func @transform_9(%arg0: i32) -> (i32, i32) {
    %c0_i32 = arith.constant 0 : i32
    %c0_i32_0 = arith.constant 0 : i32
    %c0_i32_1 = arith.constant 0 : i32
    return %c0_i32, %c0_i32_0 : i32, i32
  }
}

</mosaic_0001>

<llo_original>
// kernel: net_forward.1
$region0: #{net_forward.1}
  #allocation0 [shape = 'u32[]', space=smem, size = 0x4, offset = 0x4, fixed_abs, tag = 'smem constant byte address 0x4 - core index']
  #allocation1 [shape = 'u32[144,128]{1,0:T(1,128)}', space=vmem, size = 0x12000, scoped, tag = 'internal scratch']
  #allocation2 [shape = 'bf16[14,768,256]{2,1,0:T(16,128)(2,1)}', space=vmem, size = 0x540000, scoped, tag = 'scratch operand']
  #allocation3 [shape = 's32[1]{0}', space=sflag, size = 0x4, scoped, tag = 'scratch operand']
  #allocation17 [shape = 's32[]', space=sflag, size = 0x4, offset = 0, fixed_abs, tag = 'sflag constant byte address 0x0 - dummy sync flag']
  %s0 = inlined_call_operand.vmem [shape: bf16[56,128], index: 0, kind: input, shape index: {}]
  %s1 = inlined_call_operand.hbm [shape: bf16[384,384], index: 1, kind: input, shape index: {}]
  %s2 = inlined_call_operand.hbm [shape: f32[1,384], index: 2, kind: input, shape index: {}]
  %s3 = inlined_call_operand.hbm [shape: bf16[1152,768], index: 3, kind: input, shape index: {}]
  %s4 = inlined_call_operand.hbm [shape: f32[1,768], index: 4, kind: input, shape index: {}]
  %s5 = inlined_call_operand.hbm [shape: bf16[14,768,256], index: 5, kind: input, shape index: {}]
  %s6 = inlined_call_operand.hbm [shape: f32[1,256], index: 6, kind: input, shape index: {}]
  %s7 = inlined_call_operand.hbm [shape: bf16[256,128], index: 7, kind: input, shape index: {}]
  %s8 = inlined_call_operand.hbm [shape: f32[1,128], index: 8, kind: input, shape index: {}]
  %s9 = inlined_call_operand.hbm [shape: f32[2,128], index: 9, kind: output, shape index: {}]
  %s10 = sld [smem:[#allocation0]]
  $region70: #{net_forward.1} parent=0
    _
  %s12 = ssub.s32 1, %s10
  %s13 = scalar_select 0, %s12, %s10
  $region1: #{net_forward.1} parent=0
    #allocation4 [shape = 'u8[294912]{0}', space=vmem, size = 0x48000, scoped, tag = 'input window, operand 1, single buffered']
    #allocation5 [shape = 's32[1]{0}', space=sflag, size = 0x4, scoped, tag = 'scoped memory for net_forward.1']
    #allocation6 [shape = 's32[1]{0}', space=sflag, size = 0x4, scoped, tag = 'scoped memory for net_forward.1']
    #allocation7 [shape = 'u8[1536]{0}', space=vmem, size = 0x800, scoped, tag = 'input window, operand 2, single buffered']
    #allocation8 [shape = 's32[1]{0}', space=sflag, size = 0x4, scoped, tag = 'scoped memory for net_forward.1']
    #allocation9 [shape = 'u8[1769472]{0}', space=vmem, size = 0x1b0000, scoped, tag = 'input window, operand 3, single buffered']
    #allocation10 [shape = 'u8[3072]{0}', space=vmem, size = 0xc00, scoped, tag = 'input window, operand 4, single buffered']
    #allocation11 [shape = 's32[1]{0}', space=sflag, size = 0x4, scoped, tag = 'scoped memory for net_forward.1']
    #allocation12 [shape = 'u8[1024]{0}', space=vmem, size = 0x400, scoped, tag = 'input window, operand 6, single buffered']
    #allocation13 [shape = 'u8[65536]{0}', space=vmem, size = 0x10000, scoped, tag = 'input window, operand 7, single buffered']
    #allocation14 [shape = 's32[1]{0}', space=sflag, size = 0x4, scoped, tag = 'scoped memory for net_forward.1']
    #allocation15 [shape = 'u8[512]{0}', space=vmem, size = 0x400, scoped, tag = 'input window, operand 8, single buffered']
    #allocation16 [shape = 'u8[1024]{0}', space=vmem, size = 0x400, scoped, tag = 'output window, operand 0, single buffered']
    #allocation18 [shape = 'u32[9]{0}', space=smem, size = 0x24, scoped, tag = 'DMA stride descriptor']
    %14 = vsyncpa [#allocation5], 0
    %15 = vsyncpa [#allocation8], 0
    %16 = vsyncpa [#allocation11], 0
    %17 = vsyncpa [#allocation14], 0
    %18 = vsyncpa [#allocation6], 0
    // Predicated region
    $region2: #{net_forward.1} parent=1 // pred_check
      _
    $region3: #{net_forward.1} parent=1 // pred_check_branch
      %20 = sbr.rel (0) target = $region5
    $region4: #{net_forward.1} parent=1 // pred_region
      _
    $region5: #{net_forward.1} parent=1 // pred_fallthru
      _
    // Predicated region
    $region6: #{net_forward.1} parent=1 // pred_check
      _
    $region7: #{net_forward.1} parent=1 // pred_check_branch
      %22 = sbr.rel (0) target = $region9
    $region8: #{net_forward.1} parent=1 // pred_region
      %s24 = ssub.s32 9216, 9216
      %25 = vsyncadd [#allocation5], %s24
      %s26 = sshll.u32 [#allocation4], 4
      %s27 = int_to_ptr.vmem [resolvable:$true] %s26
      %32 = dma.hbm_to_vmem [thread:$0]  %s1, 9216, %s27, [#allocation5], 192, 192, 12
    $region9: #{net_forward.1} parent=1 // pred_fallthru
      _
    // Predicated region
    $region10: #{net_forward.1} parent=1 // pred_check
      _
    $region11: #{net_forward.1} parent=1 // pred_check_branch
      %34 = sbr.rel (0) target = $region13
    $region12: #{net_forward.1} parent=1 // pred_region
      %s36 = ssub.s32 48, 48
      %37 = vsyncadd [#allocation8], %s36
      %s39 = sshll.u32 [#allocation7], 4
      %s40 = int_to_ptr.vmem [resolvable:$true] %s39
      %42 = dma.hbm_to_vmem [thread:$0]  %s2, 48, %s40, [#allocation8]
    $region13: #{net_forward.1} parent=1 // pred_fallthru
      _
    // Predicated region
    $region14: #{net_forward.1} parent=1 // pred_check
      _
    $region15: #{net_forward.1} parent=1 // pred_check_branch
      %44 = sbr.rel (0) target = $region17
    $region16: #{net_forward.1} parent=1 // pred_region
      %s46 = ssub.s32 55296, 55296
      %47 = vsyncadd [#allocation8], %s46
      %s48 = sshll.u32 [#allocation9], 4
      %s49 = int_to_ptr.vmem [resolvable:$true] %s48
      %54 = dma.hbm_to_vmem [thread:$0]  %s3, 55296, %s49, [#allocation8], 384, 384, 24
    $region17: #{net_forward.1} parent=1 // pred_fallthru
      _
    // Predicated region
    $region18: #{net_forward.1} parent=1 // pred_check
      _
    $region19: #{net_forward.1} parent=1 // pred_check_branch
      %56 = sbr.rel (0) target = $region21
    $region20: #{net_forward.1} parent=1 // pred_region
      %s58 = ssub.s32 96, 96
      %59 = vsyncadd [#allocation11], %s58
      %s61 = sshll.u32 [#allocation10], 4
      %s62 = int_to_ptr.vmem [resolvable:$true] %s61
      %64 = dma.hbm_to_vmem [thread:$0]  %s4, 96, %s62, [#allocation11]
    $region21: #{net_forward.1} parent=1 // pred_fallthru
      _
    // Predicated region
    $region22: #{net_forward.1} parent=1 // pred_check
      _
    $region23: #{net_forward.1} parent=1 // pred_check_branch
      %66 = sbr.rel (0) target = $region25
    $region24: #{net_forward.1} parent=1 // pred_region
      %s68 = ssub.s32 32, 32
      %69 = vsyncadd [#allocation11], %s68
      %s71 = sshll.u32 [#allocation12], 4
      %s72 = int_to_ptr.vmem [resolvable:$true] %s71
      %74 = dma.hbm_to_vmem [thread:$0]  %s6, 32, %s72, [#allocation11]
    $region25: #{net_forward.1} parent=1 // pred_fallthru
      _
    // Predicated region
    $region26: #{net_forward.1} parent=1 // pred_check
      _
    $region27: #{net_forward.1} parent=1 // pred_check_branch
      %76 = sbr.rel (0) target = $region29
    $region28: #{net_forward.1} parent=1 // pred_region
      %s78 = ssub.s32 2048, 2048
      %79 = vsyncadd [#allocation14], %s78
      %s80 = sshll.u32 [#allocation13], 4
      %s81 = int_to_ptr.vmem [resolvable:$true] %s80
      %86 = dma.hbm_to_vmem [thread:$0]  %s7, 2048, %s81, [#allocation14], 64, 64, 4
    $region29: #{net_forward.1} parent=1 // pred_fallthru
      _
    // Predicated region
    $region30: #{net_forward.1} parent=1 // pred_check
      _
    $region31: #{net_forward.1} parent=1 // pred_check_branch
      %88 = sbr.rel (0) target = $region33
    $region32: #{net_forward.1} parent=1 // pred_region
      %s90 = ssub.s32 16, 16
      %91 = vsyncadd [#allocation14], %s90
      %s93 = sshll.u32 [#allocation15], 4
      %s94 = int_to_ptr.vmem [resolvable:$true] %s93
      %96 = dma.hbm_to_vmem [thread:$0]  %s8, 16, %s94, [#allocation14]
    $region33: #{net_forward.1} parent=1 // pred_fallthru
      _
    // Predicated region
    $region34: #{net_forward.1} parent=1 // pred_check
      _
    $region35: #{net_forward.1} parent=1 // pred_check_branch
      %98 = sbr.rel (0) target = $region37
    $region36: #{net_forward.1} parent=1 // pred_region
      %99 = dma.done [#allocation5], 9216
    $region37: #{net_forward.1} parent=1 // pred_fallthru
      _
    // Predicated region
    $region38: #{net_forward.1} parent=1 // pred_check
      _
    $region39: #{net_forward.1} parent=1 // pred_check_branch
      %101 = sbr.rel (0) target = $region41
    $region40: #{net_forward.1} parent=1 // pred_region
      %102 = dma.done [#allocation8], 48
    $region41: #{net_forward.1} parent=1 // pred_fallthru
      _
    // Predicated region
    $region42: #{net_forward.1} parent=1 // pred_check
      _
    $region43: #{net_forward.1} parent=1 // pred_check_branch
      %104 = sbr.rel (0) target = $region45
    $region44: #{net_forward.1} parent=1 // pred_region
      %105 = dma.done [#allocation8], 55296
    $region45: #{net_forward.1} parent=1 // pred_fallthru
      _
    // Predicated region
    $region46: #{net_forward.1} parent=1 // pred_check
      _
    $region47: #{net_forward.1} parent=1 // pred_check_branch
      %107 = sbr.rel (0) target = $region49
    $region48: #{net_forward.1} parent=1 // pred_region
      %108 = dma.done [#allocation11], 96
    $region49: #{net_forward.1} parent=1 // pred_fallthru
      _
    // Predicated region
    $region50: #{net_forward.1} parent=1 // pred_check
      _
    $region51: #{net_forward.1} parent=1 // pred_check_branch
      %110 = sbr.rel (0) target = $region53
    $region52: #{net_forward.1} parent=1 // pred_region
      %111 = dma.done [#allocation11], 32
    $region53: #{net_forward.1} parent=1 // pred_fallthru
      _
    // Predicated region
    $region54: #{net_forward.1} parent=1 // pred_check
      _
    $region55: #{net_forward.1} parent=1 // pred_check_branch
      %113 = sbr.rel (0) target = $region57
    $region56: #{net_forward.1} parent=1 // pred_region
      %114 = dma.done [#allocation14], 2048
    $region57: #{net_forward.1} parent=1 // pred_fallthru
      _
    // Predicated region
    $region58: #{net_forward.1} parent=1 // pred_check
      _
    $region59: #{net_forward.1} parent=1 // pred_check_branch
      %116 = sbr.rel (0) target = $region61
    $region60: #{net_forward.1} parent=1 // pred_region
      %117 = dma.done [#allocation14], 16
    $region61: #{net_forward.1} parent=1 // pred_fallthru
      _
    %s120 = sshll.u32 1, 14
    %s121 = sxor.u32 4294967295, %s120
    %s123 = sld [smem:[#allocation0]]
    %s124 = sadd.s32 2, %s123
    %s126 = sshll.u32 7, 26
    %s127 = sxor.u32 4294967295, %s126
    %s128 = sand.u32 0, %s127
    %s129 = sshll.u32 %s124, 26
    %s130 = sor.u32 %s128, %s129
    %s131 = sshll.u32 [#allocation2], 4
    %s132 = int_to_ptr.vmem [resolvable:$true] %s131
    %135 = sst [smem:[#allocation18]] 256
    %s136 = scalar_lea.smem [#allocation18], 1
    %137 = sst [smem:[%s136]] 256
    %s138 = scalar_lea.smem [#allocation18], 2
    %139 = sst [smem:[%s138]] 2
    %s140 = scalar_lea.smem [#allocation18], 3
    %141 = sst [smem:[%s140]] 64
    %s142 = scalar_lea.smem [#allocation18], 4
    %143 = sst [smem:[%s142]] 128
    %s144 = scalar_lea.smem [#allocation18], 5
    %145 = sst [smem:[%s144]] 2
    %s146 = scalar_lea.smem [#allocation18], 6
    %147 = sst [smem:[%s146]] 128
    %s148 = scalar_lea.smem [#allocation18], 7
    %149 = sst [smem:[%s148]] 64
    %s150 = scalar_lea.smem [#allocation18], 8
    %151 = sst [smem:[%s150]] 4
    %153 = dma.general %s5, 172032, %s132, [#allocation3], [#allocation17], [#allocation18], %s130, 0
    %v154 = vld [vmem:[%s0] sm:$0xf]
    %v155 = vld [vmem:[%s0 + $0x4] sm:$0xf]
    %v156 = vld [vmem:[%s0 + $0x8] sm:$0xf]
    %v157 = vld [vmem:[%s0 + $0xc] sm:$0xf]
    %v158 = vld [vmem:[%s0 + $0x10] sm:$0xf]
    %v159 = vld [vmem:[%s0 + $0x14] sm:$0xf]
    %v160 = vld [vmem:[%s0 + $0x18] sm:$0xf]
    %v168 = vunpack.c.l.b16 %v154
    %v169 = vunpack.c.l.b16 %v155
    %v170 = vunpack.c.l.b16 %v156
    %v171 = vunpack.c.l.b16 %v157
    %v172 = vunpack.c.l.b16 %v158
    %v173 = vunpack.c.l.b16 %v159
    %v174 = vunpack.c.l.b16 %v160
    %v175 = vpack.c.b16 %v169, %v168
    %v176 = vpack.c.b16 %v171, %v170
    %v177 = vpack.c.b16 %v173, %v172
    %v178 = vpack.c.b16 %v174, %v174
    %vm179 = vcmask 1040384
    %v180 = vrot.slane %v175, 7
    %v181 = vrot.slane %v176, 7
    %v182 = vsel %vm179, %v180, %v181
    %v183 = vrot.slane %v177, 7
    %v184 = vsel %vm179, %v181, %v183
    %v185 = vrot.slane %v178, 7
    %v186 = vsel %vm179, %v183, %v185
    %vm190 = vcmask 1040384
    %v193 = vsel %vm190, 0, %v180
    %vm195 = vcmask 1046528
    %v196 = vrot.slane %v175, 1
    %v197 = vrot.slane %v176, 1
    %v198 = vsel %vm195, %v196, %v197
    %v199 = vrot.slane %v177, 1
    %v200 = vsel %vm195, %v197, %v199
    %v201 = vrot.slane %v178, 1
    %v202 = vsel %vm195, %v199, %v201
    %vm206 = vcmask 1042432
    %v208 = vsel %vm206, %v201, 0
    %v214 = vld [vmem:[#allocation4] sm:$0xff]
    %v215 = vld [vmem:[#allocation4 + $0x8] sm:$0xf]
    %v216 = vld [vmem:[#allocation4 + $0xc] sm:$0xff]
    %v217 = vld [vmem:[#allocation4 + $0x14] sm:$0xf]
    %v218 = vld [vmem:[#allocation4 + $0x18] sm:$0xff]
    %v219 = vld [vmem:[#allocation4 + $0x20] sm:$0xf]
    %v220 = vld [vmem:[#allocation4 + $0x24] sm:$0xff]
    %v221 = vld [vmem:[#allocation4 + $0x2c] sm:$0xf]
    %v222 = vld [vmem:[#allocation4 + $0x30] sm:$0xff]
    %v223 = vld [vmem:[#allocation4 + $0x38] sm:$0xf]
    %v224 = vld [vmem:[#allocation4 + $0x3c] sm:$0xff]
    %v225 = vld [vmem:[#allocation4 + $0x44] sm:$0xf]
    %v226 = vld [vmem:[#allocation4 + $0x48] sm:$0xff]
    %v227 = vld [vmem:[#allocation4 + $0x50] sm:$0xf]
    %v228 = vld [vmem:[#allocation4 + $0x54] sm:$0xff]
    %v229 = vld [vmem:[#allocation4 + $0x5c] sm:$0xf]
    %v230 = vld [vmem:[#allocation4 + $0x60] sm:$0xff]
    %v231 = vld [vmem:[#allocation4 + $0x68] sm:$0xf]
    %v232 = vld [vmem:[#allocation4 + $0x6c] sm:$0xff]
    %v233 = vld [vmem:[#allocation4 + $0x74] sm:$0xf]
    %v234 = vld [vmem:[#allocation4 + $0x78] sm:$0xff]
    %v235 = vld [vmem:[#allocation4 + $0x80] sm:$0xf]
    %v236 = vld [vmem:[#allocation4 + $0x84] sm:$0xff]
    %v237 = vld [vmem:[#allocation4 + $0x8c] sm:$0xf]
    %v238 = vld [vmem:[#allocation4 + $0x90] sm:$0xff]
    %v239 = vld [vmem:[#allocation4 + $0x98] sm:$0xf]
    %v240 = vld [vmem:[#allocation4 + $0x9c] sm:$0xff]
    %v241 = vld [vmem:[#allocation4 + $0xa4] sm:$0xf]
    %v242 = vld [vmem:[#allocation4 + $0xa8] sm:$0xff]
    %v243 = vld [vmem:[#allocation4 + $0xb0] sm:$0xf]
    %v244 = vld [vmem:[#allocation4 + $0xb4] sm:$0xff]
    %v245 = vld [vmem:[#allocation4 + $0xbc] sm:$0xf]
    %v246 = vld [vmem:[#allocation4 + $0xc0] sm:$0xff]
    %v247 = vld [vmem:[#allocation4 + $0xc8] sm:$0xf]
    %v248 = vld [vmem:[#allocation4 + $0xcc] sm:$0xff]
    %v249 = vld [vmem:[#allocation4 + $0xd4] sm:$0xf]
    %v250 = vld [vmem:[#allocation4 + $0xd8] sm:$0xff]
    %v251 = vld [vmem:[#allocation4 + $0xe0] sm:$0xf]
    %v252 = vld [vmem:[#allocation4 + $0xe4] sm:$0xff]
    %v253 = vld [vmem:[#allocation4 + $0xec] sm:$0xf]
    %v254 = vld [vmem:[#allocation4 + $0xf0] sm:$0xff]
    %v255 = vld [vmem:[#allocation4 + $0xf8] sm:$0xf]
    %v256 = vld [vmem:[#allocation4 + $0xfc] sm:$0xff]
    %v257 = vld [vmem:[#allocation4 + $0x104] sm:$0xf]
    %v258 = vld [vmem:[#allocation4 + $0x108] sm:$0xff]
    %v259 = vld [vmem:[#allocation4 + $0x110] sm:$0xf]
    %v260 = vld [vmem:[#allocation4 + $0x114] sm:$0xff]
    %v261 = vld [vmem:[#allocation4 + $0x11c] sm:$0xf]
    %v262 = vld [vmem:[#allocation4 + $0x120] sm:$0xff]
    %v263 = vld [vmem:[#allocation4 + $0x128] sm:$0xf]
    %v264 = vld [vmem:[#allocation4 + $0x12c] sm:$0xff]
    %v265 = vld [vmem:[#allocation4 + $0x134] sm:$0xf]
    %v266 = vld [vmem:[#allocation4 + $0x138] sm:$0xff]
    %v267 = vld [vmem:[#allocation4 + $0x140] sm:$0xf]
    %v268 = vld [vmem:[#allocation4 + $0x144] sm:$0xff]
    %v269 = vld [vmem:[#allocation4 + $0x14c] sm:$0xf]
    %v270 = vld [vmem:[#allocation4 + $0x150] sm:$0xff]
    %v271 = vld [vmem:[#allocation4 + $0x158] sm:$0xf]
    %v272 = vld [vmem:[#allocation4 + $0x15c] sm:$0xff]
    %v273 = vld [vmem:[#allocation4 + $0x164] sm:$0xf]
    %v274 = vld [vmem:[#allocation4 + $0x168] sm:$0xff]
    %v275 = vld [vmem:[#allocation4 + $0x170] sm:$0xf]
    %v276 = vld [vmem:[#allocation4 + $0x174] sm:$0xff]
    %v277 = vld [vmem:[#allocation4 + $0x17c] sm:$0xf]
    %v278 = vld [vmem:[#allocation4 + $0x180] sm:$0xff]
    %v279 = vld [vmem:[#allocation4 + $0x188] sm:$0xf]
    %v280 = vld [vmem:[#allocation4 + $0x18c] sm:$0xff]
    %v281 = vld [vmem:[#allocation4 + $0x194] sm:$0xf]
    %v282 = vld [vmem:[#allocation4 + $0x198] sm:$0xff]
    %v283 = vld [vmem:[#allocation4 + $0x1a0] sm:$0xf]
    %v284 = vld [vmem:[#allocation4 + $0x1a4] sm:$0xff]
    %v285 = vld [vmem:[#allocation4 + $0x1ac] sm:$0xf]
    %v286 = vld [vmem:[#allocation4 + $0x1b0] sm:$0xff]
    %v287 = vld [vmem:[#allocation4 + $0x1b8] sm:$0xf]
    %v288 = vld [vmem:[#allocation4 + $0x1bc] sm:$0xff]
    %v289 = vld [vmem:[#allocation4 + $0x1c4] sm:$0xf]
    %v290 = vld [vmem:[#allocation4 + $0x1c8] sm:$0xff]
    %v291 = vld [vmem:[#allocation4 + $0x1d0] sm:$0xf]
    %v292 = vld [vmem:[#allocation4 + $0x1d4] sm:$0xff]
    %v293 = vld [vmem:[#allocation4 + $0x1dc] sm:$0xf]
    %v294 = vld [vmem:[#allocation4 + $0x1e0] sm:$0xff]
    %v295 = vld [vmem:[#allocation4 + $0x1e8] sm:$0xf]
    %v296 = vld [vmem:[#allocation4 + $0x1ec] sm:$0xff]
    %v297 = vld [vmem:[#allocation4 + $0x1f4] sm:$0xf]
    %v298 = vld [vmem:[#allocation4 + $0x1f8] sm:$0xff]
    %v299 = vld [vmem:[#allocation4 + $0x200] sm:$0xf]
    %v300 = vld [vmem:[#allocation4 + $0x204] sm:$0xff]
    %v301 = vld [vmem:[#allocation4 + $0x20c] sm:$0xf]
    %v302 = vld [vmem:[#allocation4 + $0x210] sm:$0xff]
    %v303 = vld [vmem:[#allocation4 + $0x218] sm:$0xf]
    %v304 = vld [vmem:[#allocation4 + $0x21c] sm:$0xff]
    %v305 = vld [vmem:[#allocation4 + $0x224] sm:$0xf]
    %v306 = vld [vmem:[#allocation4 + $0x228] sm:$0xff]
    %v307 = vld [vmem:[#allocation4 + $0x230] sm:$0xf]
    %v308 = vld [vmem:[#allocation4 + $0x234] sm:$0xff]
    %v309 = vld [vmem:[#allocation4 + $0x23c] sm:$0xf]
    %v310 = vld [vmem:[#allocation7] sm:$0x7]
    %v312 = vlaneseq
    %v313 = vshrl.u32 %v312, 7
    %v314 = vsub.s32 0, %v313
    %v315 = vrot.slane %v310, %v314
    %v316 = vlaneseq
    %v317 = vshrl.u32 %v316, 7
    %v318 = vsub.s32 1, %v317
    %v319 = vrot.slane %v310, %v318
    %v320 = vlaneseq
    %v321 = vshrl.u32 %v320, 7
    %v322 = vsub.s32 2, %v321
    %v323 = vrot.slane %v310, %v322
    %v423 = vunpack.c.l.b16 %v214
    %v424 = vunpack.c.h.b16 %v214
    %v425 = vunpack.c.l.b16 %v215
    %v426 = vunpack.c.l.b16 %v216
    %v427 = vunpack.c.h.b16 %v216
    %v428 = vunpack.c.l.b16 %v217
    %v429 = vunpack.c.l.b16 %v218
    %v430 = vunpack.c.h.b16 %v218
    %v431 = vunpack.c.l.b16 %v219
    %v432 = vunpack.c.l.b16 %v220
    %v433 = vunpack.c.h.b16 %v220
    %v434 = vunpack.c.l.b16 %v221
    %v435 = vunpack.c.l.b16 %v222
    %v436 = vunpack.c.h.b16 %v222
    %v437 = vunpack.c.l.b16 %v223
    %v438 = vunpack.c.l.b16 %v224
    %v439 = vunpack.c.h.b16 %v224
    %v440 = vunpack.c.l.b16 %v225
    %v441 = vunpack.c.l.b16 %v226
    %v442 = vunpack.c.h.b16 %v226
    %v443 = vunpack.c.l.b16 %v227
    %v444 = vunpack.c.l.b16 %v228
    %v445 = vunpack.c.h.b16 %v228
    %v446 = vunpack.c.l.b16 %v229
    %v447 = vunpack.c.l.b16 %v230
    %v448 = vunpack.c.h.b16 %v230
    %v449 = vunpack.c.l.b16 %v231
    %v450 = vunpack.c.l.b16 %v232
    %v451 = vunpack.c.h.b16 %v232
    %v452 = vunpack.c.l.b16 %v233
    %v453 = vunpack.c.l.b16 %v234
    %v454 = vunpack.c.h.b16 %v234
    %v455 = vunpack.c.l.b16 %v235
    %v456 = vunpack.c.l.b16 %v236
    %v457 = vunpack.c.h.b16 %v236
    %v458 = vunpack.c.l.b16 %v237
    %v459 = vunpack.c.l.b16 %v238
    %v460 = vunpack.c.h.b16 %v238
    %v461 = vunpack.c.l.b16 %v239
    %v462 = vunpack.c.l.b16 %v240
    %v463 = vunpack.c.h.b16 %v240
    %v464 = vunpack.c.l.b16 %v241
    %v465 = vunpack.c.l.b16 %v242
    %v466 = vunpack.c.h.b16 %v242
    %v467 = vunpack.c.l.b16 %v243
    %v468 = vunpack.c.l.b16 %v244
    %v469 = vunpack.c.h.b16 %v244
    %v470 = vunpack.c.l.b16 %v245
    %v471 = vunpack.c.l.b16 %v246
    %v472 = vunpack.c.h.b16 %v246
    %v473 = vunpack.c.l.b16 %v247
    %v474 = vunpack.c.l.b16 %v248
    %v475 = vunpack.c.h.b16 %v248
    %v476 = vunpack.c.l.b16 %v249
    %v477 = vunpack.c.l.b16 %v250
    %v478 = vunpack.c.h.b16 %v250
    %v479 = vunpack.c.l.b16 %v251
    %v480 = vunpack.c.l.b16 %v252
    %v481 = vunpack.c.h.b16 %v252
    %v482 = vunpack.c.l.b16 %v253
    %v483 = vunpack.c.l.b16 %v254
    %v484 = vunpack.c.h.b16 %v254
    %v485 = vunpack.c.l.b16 %v255
    %v486 = vunpack.c.l.b16 %v256
    %v487 = vunpack.c.h.b16 %v256
    %v488 = vunpack.c.l.b16 %v257
    %v489 = vunpack.c.l.b16 %v258
    %v490 = vunpack.c.h.b16 %v258
    %v491 = vunpack.c.l.b16 %v259
    %v492 = vunpack.c.l.b16 %v260
    %v493 = vunpack.c.h.b16 %v260
    %v494 = vunpack.c.l.b16 %v261
    %v495 = vunpack.c.l.b16 %v262
    %v496 = vunpack.c.h.b16 %v262
    %v497 = vunpack.c.l.b16 %v263
    %v498 = vunpack.c.l.b16 %v264
    %v499 = vunpack.c.h.b16 %v264
    %v500 = vunpack.c.l.b16 %v265
    %v501 = vunpack.c.l.b16 %v266
    %v502 = vunpack.c.h.b16 %v266
    %v503 = vunpack.c.l.b16 %v267
    %v504 = vunpack.c.l.b16 %v268
    %v505 = vunpack.c.h.b16 %v268
    %v506 = vunpack.c.l.b16 %v269
    %v507 = vunpack.c.l.b16 %v270
    %v508 = vunpack.c.h.b16 %v270
    %v509 = vunpack.c.l.b16 %v271
    %v510 = vunpack.c.l.b16 %v272
    %v511 = vunpack.c.h.b16 %v272
    %v512 = vunpack.c.l.b16 %v273
    %v513 = vunpack.c.l.b16 %v274
    %v514 = vunpack.c.h.b16 %v274
    %v515 = vunpack.c.l.b16 %v275
    %v516 = vunpack.c.l.b16 %v276
    %v517 = vunpack.c.h.b16 %v276
    %v518 = vunpack.c.l.b16 %v277
    %v519 = vunpack.c.l.b16 %v278
    %v520 = vunpack.c.h.b16 %v278
    %v521 = vunpack.c.l.b16 %v279
    %v522 = vunpack.c.l.b16 %v280
    %v523 = vunpack.c.h.b16 %v280
    %v524 = vunpack.c.l.b16 %v281
    %v525 = vunpack.c.l.b16 %v282
    %v526 = vunpack.c.h.b16 %v282
    %v527 = vunpack.c.l.b16 %v283
    %v528 = vunpack.c.l.b16 %v284
    %v529 = vunpack.c.h.b16 %v284
    %v530 = vunpack.c.l.b16 %v285
    %v531 = vunpack.c.l.b16 %v286
    %v532 = vunpack.c.h.b16 %v286
    %v533 = vunpack.c.l.b16 %v287
    %v534 = vunpack.c.l.b16 %v288
    %v535 = vunpack.c.h.b16 %v288
    %v536 = vunpack.c.l.b16 %v289
    %v537 = vunpack.c.l.b16 %v290
    %v538 = vunpack.c.h.b16 %v290
    %v539 = vunpack.c.l.b16 %v291
    %v540 = vunpack.c.l.b16 %v292
    %v541 = vunpack.c.h.b16 %v292
    %v542 = vunpack.c.l.b16 %v293
    %v543 = vunpack.c.l.b16 %v294
    %v544 = vunpack.c.h.b16 %v294
    %v545 = vunpack.c.l.b16 %v295
    %v546 = vunpack.c.l.b16 %v296
    %v547 = vunpack.c.h.b16 %v296
    %v548 = vunpack.c.l.b16 %v297
    %v549 = vunpack.c.l.b16 %v298
    %v550 = vunpack.c.h.b16 %v298
    %v551 = vunpack.c.l.b16 %v299
    %v552 = vunpack.c.l.b16 %v300
    %v553 = vunpack.c.h.b16 %v300
    %v554 = vunpack.c.l.b16 %v301
    %v555 = vunpack.c.l.b16 %v302
    %v556 = vunpack.c.h.b16 %v302
    %v557 = vunpack.c.l.b16 %v303
    %v558 = vunpack.c.l.b16 %v304
    %v559 = vunpack.c.h.b16 %v304
    %v560 = vunpack.c.l.b16 %v305
    %v561 = vunpack.c.l.b16 %v306
    %v562 = vunpack.c.h.b16 %v306
    %v563 = vunpack.c.l.b16 %v307
    %v564 = vunpack.c.l.b16 %v308
    %v565 = vunpack.c.h.b16 %v308
    %v566 = vunpack.c.l.b16 %v309
    %v567 = vpack.c.b16 %v426, %v423
    %v568 = vpack.c.b16 %v427, %v424
    %v569 = vpack.c.b16 %v428, %v425
    %v570 = vpack.c.b16 %v432, %v429
    %v571 = vpack.c.b16 %v433, %v430
    %v572 = vpack.c.b16 %v434, %v431
    %v573 = vpack.c.b16 %v438, %v435
    %v574 = vpack.c.b16 %v439, %v436
    %v575 = vpack.c.b16 %v440, %v437
    %v576 = vpack.c.b16 %v444, %v441
    %v577 = vpack.c.b16 %v445, %v442
    %v578 = vpack.c.b16 %v446, %v443
    %v579 = vpack.c.b16 %v450, %v447
    %v580 = vpack.c.b16 %v451, %v448
    %v581 = vpack.c.b16 %v452, %v449
    %v582 = vpack.c.b16 %v456, %v453
    %v583 = vpack.c.b16 %v457, %v454
    %v584 = vpack.c.b16 %v458, %v455
    %v585 = vpack.c.b16 %v462, %v459
    %v586 = vpack.c.b16 %v463, %v460
    %v587 = vpack.c.b16 %v464, %v461
    %v588 = vpack.c.b16 %v468, %v465
    %v589 = vpack.c.b16 %v469, %v466
    %v590 = vpack.c.b16 %v470, %v467
    %v591 = vpack.c.b16 %v474, %v471
    %v592 = vpack.c.b16 %v475, %v472
    %v593 = vpack.c.b16 %v476, %v473
    %v594 = vpack.c.b16 %v480, %v477
    %v595 = vpack.c.b16 %v481, %v478
    %v596 = vpack.c.b16 %v482, %v479
    %v597 = vpack.c.b16 %v486, %v483
    %v598 = vpack.c.b16 %v487, %v484
    %v599 = vpack.c.b16 %v488, %v485
    %v600 = vpack.c.b16 %v492, %v489
    %v601 = vpack.c.b16 %v493, %v490
    %v602 = vpack.c.b16 %v494, %v491
    %v603 = vpack.c.b16 %v498, %v495
    %v604 = vpack.c.b16 %v499, %v496
    %v605 = vpack.c.b16 %v500, %v497
    %v606 = vpack.c.b16 %v504, %v501
    %v607 = vpack.c.b16 %v505, %v502
    %v608 = vpack.c.b16 %v506, %v503
    %v609 = vpack.c.b16 %v510, %v507
    %v610 = vpack.c.b16 %v511, %v508
    %v611 = vpack.c.b16 %v512, %v509
    %v612 = vpack.c.b16 %v516, %v513
    %v613 = vpack.c.b16 %v517, %v514
    %v614 = vpack.c.b16 %v518, %v515
    %v615 = vpack.c.b16 %v522, %v519
    %v616 = vpack.c.b16 %v523, %v520
    %v617 = vpack.c.b16 %v524, %v521
    %v618 = vpack.c.b16 %v528, %v525
    %v619 = vpack.c.b16 %v529, %v526
    %v620 = vpack.c.b16 %v530, %v527
    %v621 = vpack.c.b16 %v534, %v531
    %v622 = vpack.c.b16 %v535, %v532
    %v623 = vpack.c.b16 %v536, %v533
    %v624 = vpack.c.b16 %v540, %v537
    %v625 = vpack.c.b16 %v541, %v538
    %v626 = vpack.c.b16 %v542, %v539
    %v627 = vpack.c.b16 %v546, %v543
    %v628 = vpack.c.b16 %v547, %v544
    %v629 = vpack.c.b16 %v548, %v545
    %v630 = vpack.c.b16 %v552, %v549
    %v631 = vpack.c.b16 %v553, %v550
    %v632 = vpack.c.b16 %v554, %v551
    %v633 = vpack.c.b16 %v558, %v555
    %v634 = vpack.c.b16 %v559, %v556
    %v635 = vpack.c.b16 %v560, %v557
    %v636 = vpack.c.b16 %v564, %v561
    %v637 = vpack.c.b16 %v565, %v562
    %v638 = vpack.c.b16 %v566, %v563
    %711 = vmatprep.subr.bf16.mxu0 %v568
    %712 = vmatpush1.bf16.msra.mxu0 %v567
    %713 = vmatprep.subr.bf16.mxu0 %v571
    %714 = vmatpush1.bf16.msra.mxu0 %v570
    %715 = vmatprep.subr.bf16.mxu0 %v574
    %716 = vmatpush1.bf16.msra.mxu0 %v573
    %717 = vmatprep.subr.bf16.mxu0 %v577
    %718 = vmatpush1.bf16.msra.mxu0 %v576
    %719 = vmatprep.subr.bf16.mxu0 %v580
    %720 = vmatpush1.bf16.msra.mxu0 %v579
    %721 = vmatprep.subr.bf16.mxu0 %v583
    %722 = vmatpush1.bf16.msra.mxu0 %v582
    %723 = vmatprep.subr.bf16.mxu0 %v586
    %724 = vmatpush1.bf16.msra.mxu0 %v585
    %725 = vmatprep.subr.bf16.mxu0 %v589
    %726 = vmatpush1.bf16.msra.mxu0 %v588
    %727 = vmatprep.subr.bf16.mxu0 %v592
    %728 = vmatpush1.bf16.msra.mxu0 %v591
    %729 = vmatprep.subr.bf16.mxu0 %v595
    %730 = vmatpush1.bf16.msra.mxu0 %v594
    %731 = vmatprep.subr.bf16.mxu0 %v598
    %732 = vmatpush1.bf16.msra.mxu0 %v597
    %733 = vmatprep.subr.bf16.mxu0 %v601
    %734 = vmatpush1.bf16.msra.mxu0 %v600
    %735 = vmatprep.subr.bf16.mxu0 %v604
    %736 = vmatpush1.bf16.msra.mxu0 %v603
    %737 = vmatprep.subr.bf16.mxu0 %v607
    %738 = vmatpush1.bf16.msra.mxu0 %v606
    %739 = vmatprep.subr.bf16.mxu0 %v610
    %740 = vmatpush1.bf16.msra.mxu0 %v609
    %741 = vmatprep.subr.bf16.mxu0 %v613
    %742 = vmatpush1.bf16.msra.mxu0 %v612
    %743 = vmatprep.mubr.bf16.mxu0 %v175
    %744 = vmatmul.mubr.bf16.gmra.mrb[0].mxu0 %v193
    %v745 = vpop.f32.mrb[0].mxu0
    %v746 = vadd.f32 %v315, %v745
    %v747 = vpop.f32.mrb[0].mxu0
    %v748 = vadd.f32 %v319, %v747
    %v749 = vpop.f32.mrb[0].mxu0
    %v750 = vadd.f32 %v315, %v749
    %v751 = vpop.f32.mrb[0].mxu0
    %v752 = vadd.f32 %v319, %v751
    %753 = vmatprep.mubr.bf16.mxu0 %v176
    %754 = vmatmul.mubr.bf16.gmra.mrb[0].mxu0 %v182
    %v755 = vpop.f32.mrb[0].mxu0
    %v756 = vadd.f32 %v315, %v755
    %v757 = vpop.f32.mrb[0].mxu0
    %v758 = vadd.f32 %v319, %v757
    %v759 = vpop.f32.mrb[0].mxu0
    %v760 = vadd.f32 %v315, %v759
    %v761 = vpop.f32.mrb[0].mxu0
    %v762 = vadd.f32 %v319, %v761
    %763 = vmatprep.mubr.bf16.mxu0 %v177
    %764 = vmatmul.mubr.bf16.gmra.mrb[0].mxu0 %v184
    %v765 = vpop.f32.mrb[0].mxu0
    %v766 = vadd.f32 %v315, %v765
    %v767 = vpop.f32.mrb[0].mxu0
    %v768 = vadd.f32 %v319, %v767
    %v769 = vpop.f32.mrb[0].mxu0
    %v770 = vadd.f32 %v315, %v769
    %v771 = vpop.f32.mrb[0].mxu0
    %v772 = vadd.f32 %v319, %v771
    %773 = vmatprep.mubr.bf16.mxu0 %v178
    %774 = vmatmul.mubr.bf16.gmra.mrb[0].mxu0 %v186
    %v775 = vpop.f32.mrb[0].mxu0
    %v776 = vadd.f32 %v315, %v775
    %v777 = vpop.f32.mrb[0].mxu0
    %v778 = vadd.f32 %v319, %v777
    %v779 = vpop.f32.mrb[0].mxu0
    %v780 = vpop.f32.mrb[0].mxu0
    %781 = vdwg.mxu0
    %782 = vmatprep.subr.bf16.mxu0 %v616
    %783 = vmatpush1.bf16.msra.mxu0 %v615
    %784 = vmatprep.subr.bf16.mxu0 %v619
    %785 = vmatpush1.bf16.msra.mxu0 %v618
    %786 = vmatprep.subr.bf16.mxu0 %v622
    %787 = vmatpush1.bf16.msra.mxu0 %v621
    %788 = vmatprep.subr.bf16.mxu0 %v625
    %789 = vmatpush1.bf16.msra.mxu0 %v624
    %790 = vmatprep.subr.bf16.mxu0 %v628
    %791 = vmatpush1.bf16.msra.mxu0 %v627
    %792 = vmatprep.subr.bf16.mxu0 %v631
    %793 = vmatpush1.bf16.msra.mxu0 %v630
    %794 = vmatprep.subr.bf16.mxu0 %v634
    %795 = vmatpush1.bf16.msra.mxu0 %v633
    %796 = vmatprep.subr.bf16.mxu0 %v637
    %797 = vmatpush1.bf16.msra.mxu0 %v636
    %798 = vmatprep.subr.bf16.mxu0 0
    %799 = vmatpush1.bf16.msra.mxu0 0
    %800 = vmatprep.subr.bf16.mxu0 0
    %801 = vmatpush1.bf16.msra.mxu0 0
    %802 = vmatprep.subr.bf16.mxu0 0
    %803 = vmatpush1.bf16.msra.mxu0 0
    %804 = vmatprep.subr.bf16.mxu0 0
    %805 = vmatpush1.bf16.msra.mxu0 0
    %806 = vmatprep.subr.bf16.mxu0 0
    %807 = vmatpush1.bf16.msra.mxu0 0
    %808 = vmatprep.subr.bf16.mxu0 0
    %809 = vmatpush1.bf16.msra.mxu0 0
    %810 = vmatprep.subr.bf16.mxu0 0
    %811 = vmatpush1.bf16.msra.mxu0 0
    %812 = vmatprep.subr.bf16.mxu0 0
    %813 = vmatpush1.bf16.msra.mxu0 0
    %814 = vmatprep.mubr.bf16.mxu0 0
    %815 = vmatmul.mubr.bf16.gmra.mrb[0].mxu0 %v198
    %v816 = vpop.f32.mrb[0].mxu0
    %v817 = vadd.f32 %v746, %v816
    %v818 = vpop.f32.mrb[0].mxu0
    %v819 = vadd.f32 %v748, %v818
    %v820 = vpop.f32.mrb[0].mxu0
    %v821 = vadd.f32 %v750, %v820
    %v822 = vpop.f32.mrb[0].mxu0
    %v823 = vadd.f32 %v752, %v822
    %824 = vmatprep.mubr.bf16.mxu0 0
    %825 = vmatmul.mubr.bf16.gmra.mrb[0].mxu0 %v200
    %v826 = vpop.f32.mrb[0].mxu0
    %v827 = vadd.f32 %v756, %v826
    %v828 = vpop.f32.mrb[0].mxu0
    %v829 = vadd.f32 %v758, %v828
    %v830 = vpop.f32.mrb[0].mxu0
    %v831 = vadd.f32 %v760, %v830
    %v832 = vpop.f32.mrb[0].mxu0
    %v833 = vadd.f32 %v762, %v832
    %834 = vmatprep.mubr.bf16.mxu0 0
    %835 = vmatmul.mubr.bf16.gmra.mrb[0].mxu0 %v202
    %v836 = vpop.f32.mrb[0].mxu0
    %v837 = vadd.f32 %v766, %v836
    %v838 = vpop.f32.mrb[0].mxu0
    %v839 = vadd.f32 %v768, %v838
    %v840 = vpop.f32.mrb[0].mxu0
    %v841 = vadd.f32 %v770, %v840
    %v842 = vpop.f32.mrb[0].mxu0
    %v843 = vadd.f32 %v772, %v842
    %844 = vmatprep.mubr.bf16.mxu0 0
    %845 = vmatmul.mubr.bf16.gmra.mrb[0].mxu0 %v208
    %v846 = vpop.f32.mrb[0].mxu0
    %v847 = vadd.f32 %v776, %v846
    %v848 = vpop.f32.mrb[0].mxu0
    %v849 = vadd.f32 %v778, %v848
    %v850 = vpop.f32.mrb[0].mxu0
    %v851 = vpop.f32.mrb[0].mxu0
    %852 = vdwg.mxu0
    %853 = vmatprep.subr.bf16.mxu0 0
    %854 = vmatpush1.bf16.msra.mxu0 %v569
    %855 = vmatprep.subr.bf16.mxu0 0
    %856 = vmatpush1.bf16.msra.mxu0 %v572
    %857 = vmatprep.subr.bf16.mxu0 0
    %858 = vmatpush1.bf16.msra.mxu0 %v575
    %859 = vmatprep.subr.bf16.mxu0 0
    %860 = vmatpush1.bf16.msra.mxu0 %v578
    %861 = vmatprep.subr.bf16.mxu0 0
    %862 = vmatpush1.bf16.msra.mxu0 %v581
    %863 = vmatprep.subr.bf16.mxu0 0
    %864 = vmatpush1.bf16.msra.mxu0 %v584
    %865 = vmatprep.subr.bf16.mxu0 0
    %866 = vmatpush1.bf16.msra.mxu0 %v587
    %867 = vmatprep.subr.bf16.mxu0 0
    %868 = vmatpush1.bf16.msra.mxu0 %v590
    %869 = vmatprep.subr.bf16.mxu0 0
    %870 = vmatpush1.bf16.msra.mxu0 %v593
    %871 = vmatprep.subr.bf16.mxu0 0
    %872 = vmatpush1.bf16.msra.mxu0 %v596
    %873 = vmatprep.subr.bf16.mxu0 0
    %874 = vmatpush1.bf16.msra.mxu0 %v599
    %875 = vmatprep.subr.bf16.mxu0 0
    %876 = vmatpush1.bf16.msra.mxu0 %v602
    %877 = vmatprep.subr.bf16.mxu0 0
    %878 = vmatpush1.bf16.msra.mxu0 %v605
    %879 = vmatprep.subr.bf16.mxu0 0
    %880 = vmatpush1.bf16.msra.mxu0 %v608
    %881 = vmatprep.subr.bf16.mxu0 0
    %882 = vmatpush1.bf16.msra.mxu0 %v611
    %883 = vmatprep.subr.bf16.mxu0 0
    %884 = vmatpush1.bf16.msra.mxu0 %v614
    %885 = vmatprep.mubr.bf16.mxu0 %v175
    %886 = vmatmul.mubr.bf16.gmra.mrb[0].mxu0 %v193
    %v887 = vpop.f32.mrb[0].mxu0
    %v888 = vadd.f32 %v323, %v887
    %v889 = vpop.f32.mrb[0].mxu0
    %v890 = vpop.f32.mrb[0].mxu0
    %v891 = vadd.f32 %v323, %v890
    %v892 = vpop.f32.mrb[0].mxu0
    %893 = vmatprep.mubr.bf16.mxu0 %v176
    %894 = vmatmul.mubr.bf16.gmra.mrb[0].mxu0 %v182
    %v895 = vpop.f32.mrb[0].mxu0
    %v896 = vadd.f32 %v323, %v895
    %v897 = vpop.f32.mrb[0].mxu0
    %v898 = vpop.f32.mrb[0].mxu0
    %v899 = vadd.f32 %v323, %v898
    %v900 = vpop.f32.mrb[0].mxu0
    %901 = vmatprep.mubr.bf16.mxu0 %v177
    %902 = vmatmul.mubr.bf16.gmra.mrb[0].mxu0 %v184
    %v903 = vpop.f32.mrb[0].mxu0
    %v904 = vadd.f32 %v323, %v903
    %v905 = vpop.f32.mrb[0].mxu0
    %v906 = vpop.f32.mrb[0].mxu0
    %v907 = vadd.f32 %v323, %v906
    %v908 = vpop.f32.mrb[0].mxu0
    %909 = vmatprep.mubr.bf16.mxu0 %v178
    %910 = vmatmul.mubr.bf16.gmra.mrb[0].mxu0 %v186
    %v911 = vpop.f32.mrb[0].mxu0
    %v912 = vadd.f32 %v323, %v911
    %v913 = vpop.f32.mrb[0].mxu0
    %v914 = vpop.f32.mrb[0].mxu0
    %v915 = vpop.f32.mrb[0].mxu0
    %916 = vdwg.mxu0
    %917 = vmatprep.subr.bf16.mxu0 0
    %918 = vmatpush1.bf16.msra.mxu0 %v617
    %919 = vmatprep.subr.bf16.mxu0 0
    %920 = vmatpush1.bf16.msra.mxu0 %v620
    %921 = vmatprep.subr.bf16.mxu0 0
    %922 = vmatpush1.bf16.msra.mxu0 %v623
    %923 = vmatprep.subr.bf16.mxu0 0
    %924 = vmatpush1.bf16.msra.mxu0 %v626
    %925 = vmatprep.subr.bf16.mxu0 0
    %926 = vmatpush1.bf16.msra.mxu0 %v629
    %927 = vmatprep.subr.bf16.mxu0 0
    %928 = vmatpush1.bf16.msra.mxu0 %v632
    %929 = vmatprep.subr.bf16.mxu0 0
    %930 = vmatpush1.bf16.msra.mxu0 %v635
    %931 = vmatprep.subr.bf16.mxu0 0
    %932 = vmatpush1.bf16.msra.mxu0 %v638
    %933 = vmatprep.subr.bf16.mxu0 0
    %934 = vmatpush1.bf16.msra.mxu0 0
    %935 = vmatprep.subr.bf16.mxu0 0
    %936 = vmatpush1.bf16.msra.mxu0 0
    %937 = vmatprep.subr.bf16.mxu0 0
    %938 = vmatpush1.bf16.msra.mxu0 0
    %939 = vmatprep.subr.bf16.mxu0 0
    %940 = vmatpush1.bf16.msra.mxu0 0
    %941 = vmatprep.subr.bf16.mxu0 0
    %942 = vmatpush1.bf16.msra.mxu0 0
    %943 = vmatprep.subr.bf16.mxu0 0
    %944 = vmatpush1.bf16.msra.mxu0 0
    %945 = vmatprep.subr.bf16.mxu0 0
    %946 = vmatpush1.bf16.msra.mxu0 0
    %947 = vmatprep.subr.bf16.mxu0 0
    %948 = vmatpush1.bf16.msra.mxu0 0
    %949 = vmatprep.mubr.bf16.mxu0 0
    %950 = vmatmul.mubr.bf16.gmra.mrb[0].mxu0 %v198
    %v951 = vpop.f32.mrb[0].mxu0
    %v952 = vadd.f32 %v888, %v951
    %v953 = vpop.f32.mrb[0].mxu0
    %v954 = vpop.f32.mrb[0].mxu0
    %v955 = vadd.f32 %v891, %v954
    %v956 = vpop.f32.mrb[0].mxu0
    %957 = vmatprep.mubr.bf16.mxu0 0
    %958 = vmatmul.mubr.bf16.gmra.mrb[0].mxu0 %v200
    %v959 = vpop.f32.mrb[0].mxu0
    %v960 = vadd.f32 %v896, %v959
    %v961 = vpop.f32.mrb[0].mxu0
    %v962 = vpop.f32.mrb[0].mxu0
    %v963 = vadd.f32 %v899, %v962
    %v964 = vpop.f32.mrb[0].mxu0
    %965 = vmatprep.mubr.bf16.mxu0 0
    %966 = vmatmul.mubr.bf16.gmra.mrb[0].mxu0 %v202
    %v967 = vpop.f32.mrb[0].mxu0
    %v968 = vadd.f32 %v904, %v967
    %v969 = vpop.f32.mrb[0].mxu0
    %v970 = vpop.f32.mrb[0].mxu0
    %v971 = vadd.f32 %v907, %v970
    %v972 = vpop.f32.mrb[0].mxu0
    %973 = vmatprep.mubr.bf16.mxu0 0
    %974 = vmatmul.mubr.bf16.gmra.mrb[0].mxu0 %v208
    %v975 = vpop.f32.mrb[0].mxu0
    %v976 = vadd.f32 %v912, %v975
    %v977 = vpop.f32.mrb[0].mxu0
    %v978 = vpop.f32.mrb[0].mxu0
    %v979 = vpop.f32.mrb[0].mxu0
    %980 = vdwg.mxu0
    %v981 = vmax.f32 %v817, 0.0
    %v982 = vmax.f32 %v819, 0.0
    %v983 = vmax.f32 %v952, 0.0
    %v984 = vmax.f32 %v821, 0.0
    %v985 = vmax.f32 %v823, 0.0
    %v986 = vmax.f32 %v955, 0.0
    %v987 = vmax.f32 %v827, 0.0
    %v988 = vmax.f32 %v829, 0.0
    %v989 = vmax.f32 %v960, 0.0
    %v990 = vmax.f32 %v831, 0.0
    %v991 = vmax.f32 %v833, 0.0
    %v992 = vmax.f32 %v963, 0.0
    %v993 = vmax.f32 %v837, 0.0
    %v994 = vmax.f32 %v839, 0.0
    %v995 = vmax.f32 %v968, 0.0
    %v996 = vmax.f32 %v841, 0.0
    %v997 = vmax.f32 %v843, 0.0
    %v998 = vmax.f32 %v971, 0.0
    %v999 = vmax.f32 %v847, 0.0
    %v1000 = vmax.f32 %v849, 0.0
    %v1001 = vmax.f32 %v976, 0.0
    %v1002 = vpack.c.bf16 %v984, %v981
    %v1003 = vpack.c.bf16 %v985, %v982
    %v1004 = vpack.c.bf16 %v986, %v983
    %v1005 = vpack.c.bf16 %v990, %v987
    %v1006 = vpack.c.bf16 %v991, %v988
    %v1007 = vpack.c.bf16 %v992, %v989
    %v1008 = vpack.c.bf16 %v996, %v993
    %v1009 = vpack.c.bf16 %v997, %v994
    %v1010 = vpack.c.bf16 %v998, %v995
    %v1011 = vpack.c.bf16 %v999, %v999
    %v1012 = vpack.c.bf16 %v1000, %v1000
    %v1013 = vpack.c.bf16 %v1001, %v1001
    %v1026 = vrot.slane %v1002, 7
    %v1027 = vrot.slane %v1003, 7
    %v1028 = vrot.slane %v1004, 7
    %v1029 = vrot.slane %v1005, 7
    %v1030 = vsel %vm179, %v1026, %v1029
    %v1031 = vrot.slane %v1006, 7
    %v1032 = vsel %vm179, %v1027, %v1031
    %v1033 = vrot.slane %v1007, 7
    %v1034 = vsel %vm179, %v1028, %v1033
    %v1035 = vrot.slane %v1008, 7
    %v1036 = vsel %vm179, %v1029, %v1035
    %v1037 = vrot.slane %v1009, 7
    %v1038 = vsel %vm179, %v1031, %v1037
    %v1039 = vrot.slane %v1010, 7
    %v1040 = vsel %vm179, %v1033, %v1039
    %v1041 = vrot.slane %v1011, 7
    %v1042 = vsel %vm179, %v1035, %v1041
    %v1043 = vrot.slane %v1012, 7
    %v1044 = vsel %vm179, %v1037, %v1043
    %v1045 = vrot.slane %v1013, 7
    %v1046 = vsel %vm179, %v1039, %v1045
    %v1057 = vsel %vm190, 0, %v1026
    %v1060 = vsel %vm190, 0, %v1027
    %v1063 = vsel %vm190, 0, %v1028
    %v1065 = vrot.slane %v1002, 1
    %v1066 = vrot.slane %v1005, 1
    %v1067 = vsel %vm195, %v1065, %v1066
    %v1068 = vrot.slane %v1003, 1
    %v1069 = vrot.slane %v1006, 1
    %v1070 = vsel %vm195, %v1068, %v1069
    %v1071 = vrot.slane %v1004, 1
    %v1072 = vrot.slane %v1007, 1
    %v1073 = vsel %vm195, %v1071, %v1072
    %v1074 = vrot.slane %v1008, 1
    %v1075 = vsel %vm195, %v1066, %v1074
    %v1076 = vrot.slane %v1009, 1
    %v1077 = vsel %vm195, %v1069, %v1076
    %v1078 = vrot.slane %v1010, 1
    %v1079 = vsel %vm195, %v1072, %v1078
    %v1080 = vrot.slane %v1011, 1
    %v1081 = vsel %vm195, %v1074, %v1080
    %v1082 = vrot.slane %v1012, 1
    %v1083 = vsel %vm195, %v1076, %v1082
    %v1084 = vrot.slane %v1013, 1
    %v1085 = vsel %vm195, %v1078, %v1084
    %v1096 = vsel %vm206, %v1080, 0
    %v1099 = vsel %vm206, %v1082, 0
    %v1102 = vsel %vm206, %v1084, 0
    %v1104 = vld [vmem:[#allocation9] sm:$0xff]
    %v1105 = vld [vmem:[#allocation9 + $0x8] sm:$0xff]
    %v1106 = vld [vmem:[#allocation9 + $0x10] sm:$0xff]
    %v1107 = vld [vmem:[#allocation9 + $0x18] sm:$0xff]
    %v1108 = vld [vmem:[#allocation9 + $0x20] sm:$0xff]
    %v1109 = vld [vmem:[#allocation9 + $0x28] sm:$0xff]
    %v1110 = vld [vmem:[#allocation9 + $0x30] sm:$0xff]
    %v1111 = vld [vmem:[#allocation9 + $0x38] sm:$0xff]
    %v1112 = vld [vmem:[#allocation9 + $0x40] sm:$0xff]
    %v1113 = vld [vmem:[#allocation9 + $0x48] sm:$0xff]
    %v1114 = vld [vmem:[#allocation9 + $0x50] sm:$0xff]
    %v1115 = vld [vmem:[#allocation9 + $0x58] sm:$0xff]
    %v1116 = vld [vmem:[#allocation9 + $0x60] sm:$0xff]
    %v1117 = vld [vmem:[#allocation9 + $0x68] sm:$0xff]
    %v1118 = vld [vmem:[#allocation9 + $0x70] sm:$0xff]
    %v1119 = vld [vmem:[#allocation9 + $0x78] sm:$0xff]
    %v1120 = vld [vmem:[#allocation9 + $0x80] sm:$0xff]
    %v1121 = vld [vmem:[#allocation9 + $0x88] sm:$0xff]
    %v1122 = vld [vmem:[#allocation9 + $0x90] sm:$0xff]
    %v1123 = vld [vmem:[#allocation9 + $0x98] sm:$0xff]
    %v1124 = vld [vmem:[#allocation9 + $0xa0] sm:$0xff]
    %v1125 = vld [vmem:[#allocation9 + $0xa8] sm:$0xff]
    %v1126 = vld [vmem:[#allocation9 + $0xb0] sm:$0xff]
    %v1127 = vld [vmem:[#allocation9 + $0xb8] sm:$0xff]
    %v1128 = vld [vmem:[#allocation9 + $0xc0] sm:$0xff]
    %v1129 = vld [vmem:[#allocation9 + $0xc8] sm:$0xff]
    %v1130 = vld [vmem:[#allocation9 + $0xd0] sm:$0xff]
    %v1131 = vld [vmem:[#allocation9 + $0xd8] sm:$0xff]
    %v1132 = vld [vmem:[#allocation9 + $0xe0] sm:$0xff]
    %v1133 = vld [vmem:[#allocation9 + $0xe8] sm:$0xff]
    %v1134 = vld [vmem:[#allocation9 + $0xf0] sm:$0xff]
    %v1135 = vld [vmem:[#allocation9 + $0xf8] sm:$0xff]
    %v1136 = vld [vmem:[#allocation9 + $0x100] sm:$0xff]
    %v1137 = vld [vmem:[#allocation9 + $0x108] sm:$0xff]
    %v1138 = vld [vmem:[#allocation9 + $0x110] sm:$0xff]
    %v1139 = vld [vmem:[#allocation9 + $0x118] sm:$0xff]
    %v1140 = vld [vmem:[#allocation9 + $0x120] sm:$0xff]
    %v1141 = vld [vmem:[#allocation9 + $0x128] sm:$0xff]
    %v1142 = vld [vmem:[#allocation9 + $0x130] sm:$0xff]
    %v1143 = vld [vmem:[#allocation9 + $0x138] sm:$0xff]
    %v1144 = vld [vmem:[#allocation9 + $0x140] sm:$0xff]
    %v1145 = vld [vmem:[#allocation9 + $0x148] sm:$0xff]
    %v1146 = vld [vmem:[#allocation9 + $0x150] sm:$0xff]
    %v1147 = vld [vmem:[#allocation9 + $0x158] sm:$0xff]
    %v1148 = vld [vmem:[#allocation9 + $0x160] sm:$0xff]
    %v1149 = vld [vmem:[#allocation9 + $0x168] sm:$0xff]
    %v1150 = vld [vmem:[#allocation9 + $0x170] sm:$0xff]
    %v1151 = vld [vmem:[#allocation9 + $0x178] sm:$0xff]
    %v1152 = vld [vmem:[#allocation9 + $0x180] sm:$0xff]
    %v1153 = vld [vmem:[#allocation9 + $0x188] sm:$0xff]
    %v1154 = vld [vmem:[#allocation9 + $0x190] sm:$0xff]
    %v1155 = vld [vmem:[#allocation9 + $0x198] sm:$0xff]
    %v1156 = vld [vmem:[#allocation9 + $0x1a0] sm:$0xff]
    %v1157 = vld [vmem:[#allocation9 + $0x1a8] sm:$0xff]
    %v1158 = vld [vmem:[#allocation9 + $0x1b0] sm:$0xff]
    %v1159 = vld [vmem:[#allocation9 + $0x1b8] sm:$0xff]
    %v1160 = vld [vmem:[#allocation9 + $0x1c0] sm:$0xff]
    %v1161 = vld [vmem:[#allocation9 + $0x1c8] sm:$0xff]
    %v1162 = vld [vmem:[#allocation9 + $0x1d0] sm:$0xff]
    %v1163 = vld [vmem:[#allocation9 + $0x1d8] sm:$0xff]
    %v1164 = vld [vmem:[#allocation9 + $0x1e0] sm:$0xff]
    %v1165 = vld [vmem:[#allocation9 + $0x1e8] sm:$0xff]
    %v1166 = vld [vmem:[#allocation9 + $0x1f0] sm:$0xff]
    %v1167 = vld [vmem:[#allocation9 + $0x1f8] sm:$0xff]
    %v1168 = vld [vmem:[#allocation9 + $0x200] sm:$0xff]
    %v1169 = vld [vmem:[#allocation9 + $0x208] sm:$0xff]
    %v1170 = vld [vmem:[#allocation9 + $0x210] sm:$0xff]
    %v1171 = vld [vmem:[#allocation9 + $0x218] sm:$0xff]
    %v1172 = vld [vmem:[#allocation9 + $0x220] sm:$0xff]
    %v1173 = vld [vmem:[#allocation9 + $0x228] sm:$0xff]
    %v1174 = vld [vmem:[#allocation9 + $0x230] sm:$0xff]
    %v1175 = vld [vmem:[#allocation9 + $0x238] sm:$0xff]
    %v1176 = vld [vmem:[#allocation9 + $0x240] sm:$0xff]
    %v1177 = vld [vmem:[#allocation9 + $0x248] sm:$0xff]
    %v1178 = vld [vmem:[#allocation9 + $0x250] sm:$0xff]
    %v1179 = vld [vmem:[#allocation9 + $0x258] sm:$0xff]
    %v1180 = vld [vmem:[#allocation9 + $0x260] sm:$0xff]
    %v1181 = vld [vmem:[#allocation9 + $0x268] sm:$0xff]
    %v1182 = vld [vmem:[#allocation9 + $0x270] sm:$0xff]
    %v1183 = vld [vmem:[#allocation9 + $0x278] sm:$0xff]
    %v1184 = vld [vmem:[#allocation9 + $0x280] sm:$0xff]
    %v1185 = vld [vmem:[#allocation9 + $0x288] sm:$0xff]
    %v1186 = vld [vmem:[#allocation9 + $0x290] sm:$0xff]
    %v1187 = vld [vmem:[#allocation9 + $0x298] sm:$0xff]
    %v1188 = vld [vmem:[#allocation9 + $0x2a0] sm:$0xff]
    %v1189 = vld [vmem:[#allocation9 + $0x2a8] sm:$0xff]
    %v1190 = vld [vmem:[#allocation9 + $0x2b0] sm:$0xff]
    %v1191 = vld [vmem:[#allocation9 + $0x2b8] sm:$0xff]
    %v1192 = vld [vmem:[#allocation9 + $0x2c0] sm:$0xff]
    %v1193 = vld [vmem:[#allocation9 + $0x2c8] sm:$0xff]
    %v1194 = vld [vmem:[#allocation9 + $0x2d0] sm:$0xff]
    %v1195 = vld [vmem:[#allocation9 + $0x2d8] sm:$0xff]
    %v1196 = vld [vmem:[#allocation9 + $0x2e0] sm:$0xff]
    %v1197 = vld [vmem:[#allocation9 + $0x2e8] sm:$0xff]
    %v1198 = vld [vmem:[#allocation9 + $0x2f0] sm:$0xff]
    %v1199 = vld [vmem:[#allocation9 + $0x2f8] sm:$0xff]
    %v1200 = vld [vmem:[#allocation9 + $0x300] sm:$0xff]
    %v1201 = vld [vmem:[#allocation9 + $0x308] sm:$0xff]
    %v1202 = vld [vmem:[#allocation9 + $0x310] sm:$0xff]
    %v1203 = vld [vmem:[#allocation9 + $0x318] sm:$0xff]
    %v1204 = vld [vmem:[#allocation9 + $0x320] sm:$0xff]
    %v1205 = vld [vmem:[#allocation9 + $0x328] sm:$0xff]
    %v1206 = vld [vmem:[#allocation9 + $0x330] sm:$0xff]
    %v1207 = vld [vmem:[#allocation9 + $0x338] sm:$0xff]
    %v1208 = vld [vmem:[#allocation9 + $0x340] sm:$0xff]
    %v1209 = vld [vmem:[#allocation9 + $0x348] sm:$0xff]
    %v1210 = vld [vmem:[#allocation9 + $0x350] sm:$0xff]
    %v1211 = vld [vmem:[#allocation9 + $0x358] sm:$0xff]
    %v1212 = vld [vmem:[#allocation9 + $0x360] sm:$0xff]
    %v1213 = vld [vmem:[#allocation9 + $0x368] sm:$0xff]
    %v1214 = vld [vmem:[#allocation9 + $0x370] sm:$0xff]
    %v1215 = vld [vmem:[#allocation9 + $0x378] sm:$0xff]
    %v1216 = vld [vmem:[#allocation9 + $0x380] sm:$0xff]
    %v1217 = vld [vmem:[#allocation9 + $0x388] sm:$0xff]
    %v1218 = vld [vmem:[#allocation9 + $0x390] sm:$0xff]
    %v1219 = vld [vmem:[#allocation9 + $0x398] sm:$0xff]
    %v1220 = vld [vmem:[#allocation9 + $0x3a0] sm:$0xff]
    %v1221 = vld [vmem:[#allocation9 + $0x3a8] sm:$0xff]
    %v1222 = vld [vmem:[#allocation9 + $0x3b0] sm:$0xff]
    %v1223 = vld [vmem:[#allocation9 + $0x3b8] sm:$0xff]
    %v1224 = vld [vmem:[#allocation9 + $0x3c0] sm:$0xff]
    %v1225 = vld [vmem:[#allocation9 + $0x3c8] sm:$0xff]
    %v1226 = vld [vmem:[#allocation9 + $0x3d0] sm:$0xff]
    %v1227 = vld [vmem:[#allocation9 + $0x3d8] sm:$0xff]
    %v1228 = vld [vmem:[#allocation9 + $0x3e0] sm:$0xff]
    %v1229 = vld [vmem:[#allocation9 + $0x3e8] sm:$0xff]
    %v1230 = vld [vmem:[#allocation9 + $0x3f0] sm:$0xff]
    %v1231 = vld [vmem:[#allocation9 + $0x3f8] sm:$0xff]
    %v1232 = vld [vmem:[#allocation9 + $0x400] sm:$0xff]
    %v1233 = vld [vmem:[#allocation9 + $0x408] sm:$0xff]
    %v1234 = vld [vmem:[#allocation9 + $0x410] sm:$0xff]
    %v1235 = vld [vmem:[#allocation9 + $0x418] sm:$0xff]
    %v1236 = vld [vmem:[#allocation9 + $0x420] sm:$0xff]
    %v1237 = vld [vmem:[#allocation9 + $0x428] sm:$0xff]
    %v1238 = vld [vmem:[#allocation9 + $0x430] sm:$0xff]
    %v1239 = vld [vmem:[#allocation9 + $0x438] sm:$0xff]
    %v1240 = vld [vmem:[#allocation9 + $0x440] sm:$0xff]
    %v1241 = vld [vmem:[#allocation9 + $0x448] sm:$0xff]
    %v1242 = vld [vmem:[#allocation9 + $0x450] sm:$0xff]
    %v1243 = vld [vmem:[#allocation9 + $0x458] sm:$0xff]
    %v1244 = vld [vmem:[#allocation9 + $0x460] sm:$0xff]
    %v1245 = vld [vmem:[#allocation9 + $0x468] sm:$0xff]
    %v1246 = vld [vmem:[#allocation9 + $0x470] sm:$0xff]
    %v1247 = vld [vmem:[#allocation9 + $0x478] sm:$0xff]
    %v1248 = vld [vmem:[#allocation9 + $0x480] sm:$0xff]
    %v1249 = vld [vmem:[#allocation9 + $0x488] sm:$0xff]
    %v1250 = vld [vmem:[#allocation9 + $0x490] sm:$0xff]
    %v1251 = vld [vmem:[#allocation9 + $0x498] sm:$0xff]
    %v1252 = vld [vmem:[#allocation9 + $0x4a0] sm:$0xff]
    %v1253 = vld [vmem:[#allocation9 + $0x4a8] sm:$0xff]
    %v1254 = vld [vmem:[#allocation9 + $0x4b0] sm:$0xff]
    %v1255 = vld [vmem:[#allocation9 + $0x4b8] sm:$0xff]
    %v1256 = vld [vmem:[#allocation9 + $0x4c0] sm:$0xff]
    %v1257 = vld [vmem:[#allocation9 + $0x4c8] sm:$0xff]
    %v1258 = vld [vmem:[#allocation9 + $0x4d0] sm:$0xff]
    %v1259 = vld [vmem:[#allocation9 + $0x4d8] sm:$0xff]
    %v1260 = vld [vmem:[#allocation9 + $0x4e0] sm:$0xff]
    %v1261 = vld [vmem:[#allocation9 + $0x4e8] sm:$0xff]
    %v1262 = vld [vmem:[#allocation9 + $0x4f0] sm:$0xff]
    %v1263 = vld [vmem:[#allocation9 + $0x4f8] sm:$0xff]
    %v1264 = vld [vmem:[#allocation9 + $0x500] sm:$0xff]
    %v1265 = vld [vmem:[#allocation9 + $0x508] sm:$0xff]
    %v1266 = vld [vmem:[#allocation9 + $0x510] sm:$0xff]
    %v1267 = vld [vmem:[#allocation9 + $0x518] sm:$0xff]
    %v1268 = vld [vmem:[#allocation9 + $0x520] sm:$0xff]
    %v1269 = vld [vmem:[#allocation9 + $0x528] sm:$0xff]
    %v1270 = vld [vmem:[#allocation9 + $0x530] sm:$0xff]
    %v1271 = vld [vmem:[#allocation9 + $0x538] sm:$0xff]
    %v1272 = vld [vmem:[#allocation9 + $0x540] sm:$0xff]
    %v1273 = vld [vmem:[#allocation9 + $0x548] sm:$0xff]
    %v1274 = vld [vmem:[#allocation9 + $0x550] sm:$0xff]
    %v1275 = vld [vmem:[#allocation9 + $0x558] sm:$0xff]
    %v1276 = vld [vmem:[#allocation9 + $0x560] sm:$0xff]
    %v1277 = vld [vmem:[#allocation9 + $0x568] sm:$0xff]
    %v1278 = vld [vmem:[#allocation9 + $0x570] sm:$0xff]
    %v1279 = vld [vmem:[#allocation9 + $0x578] sm:$0xff]
    %v1280 = vld [vmem:[#allocation9 + $0x580] sm:$0xff]
    %v1281 = vld [vmem:[#allocation9 + $0x588] sm:$0xff]
    %v1282 = vld [vmem:[#allocation9 + $0x590] sm:$0xff]
    %v1283 = vld [vmem:[#allocation9 + $0x598] sm:$0xff]
    %v1284 = vld [vmem:[#allocation9 + $0x5a0] sm:$0xff]
    %v1285 = vld [vmem:[#allocation9 + $0x5a8] sm:$0xff]
    %v1286 = vld [vmem:[#allocation9 + $0x5b0] sm:$0xff]
    %v1287 = vld [vmem:[#allocation9 + $0x5b8] sm:$0xff]
    %v1288 = vld [vmem:[#allocation9 + $0x5c0] sm:$0xff]
    %v1289 = vld [vmem:[#allocation9 + $0x5c8] sm:$0xff]
    %v1290 = vld [vmem:[#allocation9 + $0x5d0] sm:$0xff]
    %v1291 = vld [vmem:[#allocation9 + $0x5d8] sm:$0xff]
    %v1292 = vld [vmem:[#allocation9 + $0x5e0] sm:$0xff]
    %v1293 = vld [vmem:[#allocation9 + $0x5e8] sm:$0xff]
    %v1294 = vld [vmem:[#allocation9 + $0x5f0] sm:$0xff]
    %v1295 = vld [vmem:[#allocation9 + $0x5f8] sm:$0xff]
    %v1296 = vld [vmem:[#allocation9 + $0x600] sm:$0xff]
    %v1297 = vld [vmem:[#allocation9 + $0x608] sm:$0xff]
    %v1298 = vld [vmem:[#allocation9 + $0x610] sm:$0xff]
    %v1299 = vld [vmem:[#allocation9 + $0x618] sm:$0xff]
    %v1300 = vld [vmem:[#allocation9 + $0x620] sm:$0xff]
    %v1301 = vld [vmem:[#allocation9 + $0x628] sm:$0xff]
    %v1302 = vld [vmem:[#allocation9 + $0x630] sm:$0xff]
    %v1303 = vld [vmem:[#allocation9 + $0x638] sm:$0xff]
    %v1304 = vld [vmem:[#allocation9 + $0x640] sm:$0xff]
    %v1305 = vld [vmem:[#allocation9 + $0x648] sm:$0xff]
    %v1306 = vld [vmem:[#allocation9 + $0x650] sm:$0xff]
    %v1307 = vld [vmem:[#allocation9 + $0x658] sm:$0xff]
    %v1308 = vld [vmem:[#allocation9 + $0x660] sm:$0xff]
    %v1309 = vld [vmem:[#allocation9 + $0x668] sm:$0xff]
    %v1310 = vld [vmem:[#allocation9 + $0x670] sm:$0xff]
    %v1311 = vld [vmem:[#allocation9 + $0x678] sm:$0xff]
    %v1312 = vld [vmem:[#allocation9 + $0x680] sm:$0xff]
    %v1313 = vld [vmem:[#allocation9 + $0x688] sm:$0xff]
    %v1314 = vld [vmem:[#allocation9 + $0x690] sm:$0xff]
    %v1315 = vld [vmem:[#allocation9 + $0x698] sm:$0xff]
    %v1316 = vld [vmem:[#allocation9 + $0x6a0] sm:$0xff]
    %v1317 = vld [vmem:[#allocation9 + $0x6a8] sm:$0xff]
    %v1318 = vld [vmem:[#allocation9 + $0x6b0] sm:$0xff]
    %v1319 = vld [vmem:[#allocation9 + $0x6b8] sm:$0xff]
    %v1320 = vld [vmem:[#allocation9 + $0x6c0] sm:$0xff]
    %v1321 = vld [vmem:[#allocation9 + $0x6c8] sm:$0xff]
    %v1322 = vld [vmem:[#allocation9 + $0x6d0] sm:$0xff]
    %v1323 = vld [vmem:[#allocation9 + $0x6d8] sm:$0xff]
    %v1324 = vld [vmem:[#allocation9 + $0x6e0] sm:$0xff]
    %v1325 = vld [vmem:[#allocation9 + $0x6e8] sm:$0xff]
    %v1326 = vld [vmem:[#allocation9 + $0x6f0] sm:$0xff]
    %v1327 = vld [vmem:[#allocation9 + $0x6f8] sm:$0xff]
    %v1328 = vld [vmem:[#allocation9 + $0x700] sm:$0xff]
    %v1329 = vld [vmem:[#allocation9 + $0x708] sm:$0xff]
    %v1330 = vld [vmem:[#allocation9 + $0x710] sm:$0xff]
    %v1331 = vld [vmem:[#allocation9 + $0x718] sm:$0xff]
    %v1332 = vld [vmem:[#allocation9 + $0x720] sm:$0xff]
    %v1333 = vld [vmem:[#allocation9 + $0x728] sm:$0xff]
    %v1334 = vld [vmem:[#allocation9 + $0x730] sm:$0xff]
    %v1335 = vld [vmem:[#allocation9 + $0x738] sm:$0xff]
    %v1336 = vld [vmem:[#allocation9 + $0x740] sm:$0xff]
    %v1337 = vld [vmem:[#allocation9 + $0x748] sm:$0xff]
    %v1338 = vld [vmem:[#allocation9 + $0x750] sm:$0xff]
    %v1339 = vld [vmem:[#allocation9 + $0x758] sm:$0xff]
    %v1340 = vld [vmem:[#allocation9 + $0x760] sm:$0xff]
    %v1341 = vld [vmem:[#allocation9 + $0x768] sm:$0xff]
    %v1342 = vld [vmem:[#allocation9 + $0x770] sm:$0xff]
    %v1343 = vld [vmem:[#allocation9 + $0x778] sm:$0xff]
    %v1344 = vld [vmem:[#allocation9 + $0x780] sm:$0xff]
    %v1345 = vld [vmem:[#allocation9 + $0x788] sm:$0xff]
    %v1346 = vld [vmem:[#allocation9 + $0x790] sm:$0xff]
    %v1347 = vld [vmem:[#allocation9 + $0x798] sm:$0xff]
    %v1348 = vld [vmem:[#allocation9 + $0x7a0] sm:$0xff]
    %v1349 = vld [vmem:[#allocation9 + $0x7a8] sm:$0xff]
    %v1350 = vld [vmem:[#allocation9 + $0x7b0] sm:$0xff]
    %v1351 = vld [vmem:[#allocation9 + $0x7b8] sm:$0xff]
    %v1352 = vld [vmem:[#allocation9 + $0x7c0] sm:$0xff]
    %v1353 = vld [vmem:[#allocation9 + $0x7c8] sm:$0xff]
    %v1354 = vld [vmem:[#allocation9 + $0x7d0] sm:$0xff]
    %v1355 = vld [vmem:[#allocation9 + $0x7d8] sm:$0xff]
    %v1356 = vld [vmem:[#allocation9 + $0x7e0] sm:$0xff]
    %v1357 = vld [vmem:[#allocation9 + $0x7e8] sm:$0xff]
    %v1358 = vld [vmem:[#allocation9 + $0x7f0] sm:$0xff]
    %v1359 = vld [vmem:[#allocation9 + $0x7f8] sm:$0xff]
    %v1360 = vld [vmem:[#allocation9 + $0x800] sm:$0xff]
    %v1361 = vld [vmem:[#allocation9 + $0x808] sm:$0xff]
    %v1362 = vld [vmem:[#allocation9 + $0x810] sm:$0xff]
    %v1363 = vld [vmem:[#allocation9 + $0x818] sm:$0xff]
    %v1364 = vld [vmem:[#allocation9 + $0x820] sm:$0xff]
    %v1365 = vld [vmem:[#allocation9 + $0x828] sm:$0xff]
    %v1366 = vld [vmem:[#allocation9 + $0x830] sm:$0xff]
    %v1367 = vld [vmem:[#allocation9 + $0x838] sm:$0xff]
    %v1368 = vld [vmem:[#allocation9 + $0x840] sm:$0xff]
    %v1369 = vld [vmem:[#allocation9 + $0x848] sm:$0xff]
    %v1370 = vld [vmem:[#allocation9 + $0x850] sm:$0xff]
    %v1371 = vld [vmem:[#allocation9 + $0x858] sm:$0xff]
    %v1372 = vld [vmem:[#allocation9 + $0x860] sm:$0xff]
    %v1373 = vld [vmem:[#allocation9 + $0x868] sm:$0xff]
    %v1374 = vld [vmem:[#allocation9 + $0x870] sm:$0xff]
    %v1375 = vld [vmem:[#allocation9 + $0x878] sm:$0xff]
    %v1376 = vld [vmem:[#allocation9 + $0x880] sm:$0xff]
    %v1377 = vld [vmem:[#allocation9 + $0x888] sm:$0xff]
    %v1378 = vld [vmem:[#allocation9 + $0x890] sm:$0xff]
    %v1379 = vld [vmem:[#allocation9 + $0x898] sm:$0xff]
    %v1380 = vld [vmem:[#allocation9 + $0x8a0] sm:$0xff]
    %v1381 = vld [vmem:[#allocation9 + $0x8a8] sm:$0xff]
    %v1382 = vld [vmem:[#allocation9 + $0x8b0] sm:$0xff]
    %v1383 = vld [vmem:[#allocation9 + $0x8b8] sm:$0xff]
    %v1384 = vld [vmem:[#allocation9 + $0x8c0] sm:$0xff]
    %v1385 = vld [vmem:[#allocation9 + $0x8c8] sm:$0xff]
    %v1386 = vld [vmem:[#allocation9 + $0x8d0] sm:$0xff]
    %v1387 = vld [vmem:[#allocation9 + $0x8d8] sm:$0xff]
    %v1388 = vld [vmem:[#allocation9 + $0x8e0] sm:$0xff]
    %v1389 = vld [vmem:[#allocation9 + $0x8e8] sm:$0xff]
    %v1390 = vld [vmem:[#allocation9 + $0x8f0] sm:$0xff]
    %v1391 = vld [vmem:[#allocation9 + $0x8f8] sm:$0xff]
    %v1392 = vld [vmem:[#allocation9 + $0x900] sm:$0xff]
    %v1393 = vld [vmem:[#allocation9 + $0x908] sm:$0xff]
    %v1394 = vld [vmem:[#allocation9 + $0x910] sm:$0xff]
    %v1395 = vld [vmem:[#allocation9 + $0x918] sm:$0xff]
    %v1396 = vld [vmem:[#allocation9 + $0x920] sm:$0xff]
    %v1397 = vld [vmem:[#allocation9 + $0x928] sm:$0xff]
    %v1398 = vld [vmem:[#allocation9 + $0x930] sm:$0xff]
    %v1399 = vld [vmem:[#allocation9 + $0x938] sm:$0xff]
    %v1400 = vld [vmem:[#allocation9 + $0x940] sm:$0xff]
    %v1401 = vld [vmem:[#allocation9 + $0x948] sm:$0xff]
    %v1402 = vld [vmem:[#allocation9 + $0x950] sm:$0xff]
    %v1403 = vld [vmem:[#allocation9 + $0x958] sm:$0xff]
    %v1404 = vld [vmem:[#allocation9 + $0x960] sm:$0xff]
    %v1405 = vld [vmem:[#allocation9 + $0x968] sm:$0xff]
    %v1406 = vld [vmem:[#allocation9 + $0x970] sm:$0xff]
    %v1407 = vld [vmem:[#allocation9 + $0x978] sm:$0xff]
    %v1408 = vld [vmem:[#allocation9 + $0x980] sm:$0xff]
    %v1409 = vld [vmem:[#allocation9 + $0x988] sm:$0xff]
    %v1410 = vld [vmem:[#allocation9 + $0x990] sm:$0xff]
    %v1411 = vld [vmem:[#allocation9 + $0x998] sm:$0xff]
    %v1412 = vld [vmem:[#allocation9 + $0x9a0] sm:$0xff]
    %v1413 = vld [vmem:[#allocation9 + $0x9a8] sm:$0xff]
    %v1414 = vld [vmem:[#allocation9 + $0x9b0] sm:$0xff]
    %v1415 = vld [vmem:[#allocation9 + $0x9b8] sm:$0xff]
    %v1416 = vld [vmem:[#allocation9 + $0x9c0] sm:$0xff]
    %v1417 = vld [vmem:[#allocation9 + $0x9c8] sm:$0xff]
    %v1418 = vld [vmem:[#allocation9 + $0x9d0] sm:$0xff]
    %v1419 = vld [vmem:[#allocation9 + $0x9d8] sm:$0xff]
    %v1420 = vld [vmem:[#allocation9 + $0x9e0] sm:$0xff]
    %v1421 = vld [vmem:[#allocation9 + $0x9e8] sm:$0xff]
    %v1422 = vld [vmem:[#allocation9 + $0x9f0] sm:$0xff]
    %v1423 = vld [vmem:[#allocation9 + $0x9f8] sm:$0xff]
    %v1424 = vld [vmem:[#allocation9 + $0xa00] sm:$0xff]
    %v1425 = vld [vmem:[#allocation9 + $0xa08] sm:$0xff]
    %v1426 = vld [vmem:[#allocation9 + $0xa10] sm:$0xff]
    %v1427 = vld [vmem:[#allocation9 + $0xa18] sm:$0xff]
    %v1428 = vld [vmem:[#allocation9 + $0xa20] sm:$0xff]
    %v1429 = vld [vmem:[#allocation9 + $0xa28] sm:$0xff]
    %v1430 = vld [vmem:[#allocation9 + $0xa30] sm:$0xff]
    %v1431 = vld [vmem:[#allocation9 + $0xa38] sm:$0xff]
    %v1432 = vld [vmem:[#allocation9 + $0xa40] sm:$0xff]
    %v1433 = vld [vmem:[#allocation9 + $0xa48] sm:$0xff]
    %v1434 = vld [vmem:[#allocation9 + $0xa50] sm:$0xff]
    %v1435 = vld [vmem:[#allocation9 + $0xa58] sm:$0xff]
    %v1436 = vld [vmem:[#allocation9 + $0xa60] sm:$0xff]
    %v1437 = vld [vmem:[#allocation9 + $0xa68] sm:$0xff]
    %v1438 = vld [vmem:[#allocation9 + $0xa70] sm:$0xff]
    %v1439 = vld [vmem:[#allocation9 + $0xa78] sm:$0xff]
    %v1440 = vld [vmem:[#allocation9 + $0xa80] sm:$0xff]
    %v1441 = vld [vmem:[#allocation9 + $0xa88] sm:$0xff]
    %v1442 = vld [vmem:[#allocation9 + $0xa90] sm:$0xff]
    %v1443 = vld [vmem:[#allocation9 + $0xa98] sm:$0xff]
    %v1444 = vld [vmem:[#allocation9 + $0xaa0] sm:$0xff]
    %v1445 = vld [vmem:[#allocation9 + $0xaa8] sm:$0xff]
    %v1446 = vld [vmem:[#allocation9 + $0xab0] sm:$0xff]
    %v1447 = vld [vmem:[#allocation9 + $0xab8] sm:$0xff]
    %v1448 = vld [vmem:[#allocation9 + $0xac0] sm:$0xff]
    %v1449 = vld [vmem:[#allocation9 + $0xac8] sm:$0xff]
    %v1450 = vld [vmem:[#allocation9 + $0xad0] sm:$0xff]
    %v1451 = vld [vmem:[#allocation9 + $0xad8] sm:$0xff]
    %v1452 = vld [vmem:[#allocation9 + $0xae0] sm:$0xff]
    %v1453 = vld [vmem:[#allocation9 + $0xae8] sm:$0xff]
    %v1454 = vld [vmem:[#allocation9 + $0xaf0] sm:$0xff]
    %v1455 = vld [vmem:[#allocation9 + $0xaf8] sm:$0xff]
    %v1456 = vld [vmem:[#allocation9 + $0xb00] sm:$0xff]
    %v1457 = vld [vmem:[#allocation9 + $0xb08] sm:$0xff]
    %v1458 = vld [vmem:[#allocation9 + $0xb10] sm:$0xff]
    %v1459 = vld [vmem:[#allocation9 + $0xb18] sm:$0xff]
    %v1460 = vld [vmem:[#allocation9 + $0xb20] sm:$0xff]
    %v1461 = vld [vmem:[#allocation9 + $0xb28] sm:$0xff]
    %v1462 = vld [vmem:[#allocation9 + $0xb30] sm:$0xff]
    %v1463 = vld [vmem:[#allocation9 + $0xb38] sm:$0xff]
    %v1464 = vld [vmem:[#allocation9 + $0xb40] sm:$0xff]
    %v1465 = vld [vmem:[#allocation9 + $0xb48] sm:$0xff]
    %v1466 = vld [vmem:[#allocation9 + $0xb50] sm:$0xff]
    %v1467 = vld [vmem:[#allocation9 + $0xb58] sm:$0xff]
    %v1468 = vld [vmem:[#allocation9 + $0xb60] sm:$0xff]
    %v1469 = vld [vmem:[#allocation9 + $0xb68] sm:$0xff]
    %v1470 = vld [vmem:[#allocation9 + $0xb70] sm:$0xff]
    %v1471 = vld [vmem:[#allocation9 + $0xb78] sm:$0xff]
    %v1472 = vld [vmem:[#allocation9 + $0xb80] sm:$0xff]
    %v1473 = vld [vmem:[#allocation9 + $0xb88] sm:$0xff]
    %v1474 = vld [vmem:[#allocation9 + $0xb90] sm:$0xff]
    %v1475 = vld [vmem:[#allocation9 + $0xb98] sm:$0xff]
    %v1476 = vld [vmem:[#allocation9 + $0xba0] sm:$0xff]
    %v1477 = vld [vmem:[#allocation9 + $0xba8] sm:$0xff]
    %v1478 = vld [vmem:[#allocation9 + $0xbb0] sm:$0xff]
    %v1479 = vld [vmem:[#allocation9 + $0xbb8] sm:$0xff]
    %v1480 = vld [vmem:[#allocation9 + $0xbc0] sm:$0xff]
    %v1481 = vld [vmem:[#allocation9 + $0xbc8] sm:$0xff]
    %v1482 = vld [vmem:[#allocation9 + $0xbd0] sm:$0xff]
    %v1483 = vld [vmem:[#allocation9 + $0xbd8] sm:$0xff]
    %v1484 = vld [vmem:[#allocation9 + $0xbe0] sm:$0xff]
    %v1485 = vld [vmem:[#allocation9 + $0xbe8] sm:$0xff]
    %v1486 = vld [vmem:[#allocation9 + $0xbf0] sm:$0xff]
    %v1487 = vld [vmem:[#allocation9 + $0xbf8] sm:$0xff]
    %v1488 = vld [vmem:[#allocation9 + $0xc00] sm:$0xff]
    %v1489 = vld [vmem:[#allocation9 + $0xc08] sm:$0xff]
    %v1490 = vld [vmem:[#allocation9 + $0xc10] sm:$0xff]
    %v1491 = vld [vmem:[#allocation9 + $0xc18] sm:$0xff]
    %v1492 = vld [vmem:[#allocation9 + $0xc20] sm:$0xff]
    %v1493 = vld [vmem:[#allocation9 + $0xc28] sm:$0xff]
    %v1494 = vld [vmem:[#allocation9 + $0xc30] sm:$0xff]
    %v1495 = vld [vmem:[#allocation9 + $0xc38] sm:$0xff]
    %v1496 = vld [vmem:[#allocation9 + $0xc40] sm:$0xff]
    %v1497 = vld [vmem:[#allocation9 + $0xc48] sm:$0xff]
    %v1498 = vld [vmem:[#allocation9 + $0xc50] sm:$0xff]
    %v1499 = vld [vmem:[#allocation9 + $0xc58] sm:$0xff]
    %v1500 = vld [vmem:[#allocation9 + $0xc60] sm:$0xff]
    %v1501 = vld [vmem:[#allocation9 + $0xc68] sm:$0xff]
    %v1502 = vld [vmem:[#allocation9 + $0xc70] sm:$0xff]
    %v1503 = vld [vmem:[#allocation9 + $0xc78] sm:$0xff]
    %v1504 = vld [vmem:[#allocation9 + $0xc80] sm:$0xff]
    %v1505 = vld [vmem:[#allocation9 + $0xc88] sm:$0xff]
    %v1506 = vld [vmem:[#allocation9 + $0xc90] sm:$0xff]
    %v1507 = vld [vmem:[#allocation9 + $0xc98] sm:$0xff]
    %v1508 = vld [vmem:[#allocation9 + $0xca0] sm:$0xff]
    %v1509 = vld [vmem:[#allocation9 + $0xca8] sm:$0xff]
    %v1510 = vld [vmem:[#allocation9 + $0xcb0] sm:$0xff]
    %v1511 = vld [vmem:[#allocation9 + $0xcb8] sm:$0xff]
    %v1512 = vld [vmem:[#allocation9 + $0xcc0] sm:$0xff]
    %v1513 = vld [vmem:[#allocation9 + $0xcc8] sm:$0xff]
    %v1514 = vld [vmem:[#allocation9 + $0xcd0] sm:$0xff]
    %v1515 = vld [vmem:[#allocation9 + $0xcd8] sm:$0xff]
    %v1516 = vld [vmem:[#allocation9 + $0xce0] sm:$0xff]
    %v1517 = vld [vmem:[#allocation9 + $0xce8] sm:$0xff]
    %v1518 = vld [vmem:[#allocation9 + $0xcf0] sm:$0xff]
    %v1519 = vld [vmem:[#allocation9 + $0xcf8] sm:$0xff]
    %v1520 = vld [vmem:[#allocation9 + $0xd00] sm:$0xff]
    %v1521 = vld [vmem:[#allocation9 + $0xd08] sm:$0xff]
    %v1522 = vld [vmem:[#allocation9 + $0xd10] sm:$0xff]
    %v1523 = vld [vmem:[#allocation9 + $0xd18] sm:$0xff]
    %v1524 = vld [vmem:[#allocation9 + $0xd20] sm:$0xff]
    %v1525 = vld [vmem:[#allocation9 + $0xd28] sm:$0xff]
    %v1526 = vld [vmem:[#allocation9 + $0xd30] sm:$0xff]
    %v1527 = vld [vmem:[#allocation9 + $0xd38] sm:$0xff]
    %v1528 = vld [vmem:[#allocation9 + $0xd40] sm:$0xff]
    %v1529 = vld [vmem:[#allocation9 + $0xd48] sm:$0xff]
    %v1530 = vld [vmem:[#allocation9 + $0xd50] sm:$0xff]
    %v1531 = vld [vmem:[#allocation9 + $0xd58] sm:$0xff]
    %v1532 = vld [vmem:[#allocation9 + $0xd60] sm:$0xff]
    %v1533 = vld [vmem:[#allocation9 + $0xd68] sm:$0xff]
    %v1534 = vld [vmem:[#allocation9 + $0xd70] sm:$0xff]
    %v1535 = vld [vmem:[#allocation9 + $0xd78] sm:$0xff]
    %v1536 = vld [vmem:[#allocation10] sm:$0x3f]
    %v1538 = vlaneseq
    %v1539 = vshrl.u32 %v1538, 7
    %v1540 = vsub.s32 0, %v1539
    %v1541 = vrot.slane %v1536, %v1540
    %v1542 = vlaneseq
    %v1543 = vshrl.u32 %v1542, 7
    %v1544 = vsub.s32 1, %v1543
    %v1545 = vrot.slane %v1536, %v1544
    %v1546 = vlaneseq
    %v1547 = vshrl.u32 %v1546, 7
    %v1548 = vsub.s32 2, %v1547
    %v1549 = vrot.slane %v1536, %v1548
    %v1550 = vlaneseq
    %v1551 = vshrl.u32 %v1550, 7
    %v1552 = vsub.s32 3, %v1551
    %v1553 = vrot.slane %v1536, %v1552
    %v1554 = vlaneseq
    %v1555 = vshrl.u32 %v1554, 7
    %v1556 = vsub.s32 4, %v1555
    %v1557 = vrot.slane %v1536, %v1556
    %v1558 = vlaneseq
    %v1559 = vshrl.u32 %v1558, 7
    %v1560 = vsub.s32 5, %v1559
    %v1561 = vrot.slane %v1536, %v1560
    %v2000 = vunpack.c.l.b16 %v1104
    %v2001 = vunpack.c.h.b16 %v1104
    %v2002 = vunpack.c.l.b16 %v1105
    %v2003 = vunpack.c.h.b16 %v1105
    %v2004 = vunpack.c.l.b16 %v1106
    %v2005 = vunpack.c.h.b16 %v1106
    %v2006 = vunpack.c.l.b16 %v1107
    %v2007 = vunpack.c.h.b16 %v1107
    %v2008 = vunpack.c.l.b16 %v1108
    %v2009 = vunpack.c.h.b16 %v1108
    %v2010 = vunpack.c.l.b16 %v1109
    %v2011 = vunpack.c.h.b16 %v1109
    %v2012 = vunpack.c.l.b16 %v1110
    %v2013 = vunpack.c.h.b16 %v1110
    %v2014 = vunpack.c.l.b16 %v1111
    %v2015 = vunpack.c.h.b16 %v1111
    %v2016 = vunpack.c.l.b16 %v1112
    %v2017 = vunpack.c.h.b16 %v1112
    %v2018 = vunpack.c.l.b16 %v1113
    %v2019 = vunpack.c.h.b16 %v1113
    %v2020 = vunpack.c.l.b16 %v1114
    %v2021 = vunpack.c.h.b16 %v1114
    %v2022 = vunpack.c.l.b16 %v1115
    %v2023 = vunpack.c.h.b16 %v1115
    %v2024 = vunpack.c.l.b16 %v1116
    %v2025 = vunpack.c.h.b16 %v1116
    %v2026 = vunpack.c.l.b16 %v1117
    %v2027 = vunpack.c.h.b16 %v1117
    %v2028 = vunpack.c.l.b16 %v1118
    %v2029 = vunpack.c.h.b16 %v1118
    %v2030 = vunpack.c.l.b16 %v1119
    %v2031 = vunpack.c.h.b16 %v1119
    %v2032 = vunpack.c.l.b16 %v1120
    %v2033 = vunpack.c.h.b16 %v1120
    %v2034 = vunpack.c.l.b16 %v1121
    %v2035 = vunpack.c.h.b16 %v1121
    %v2036 = vunpack.c.l.b16 %v1122
    %v2037 = vunpack.c.h.b16 %v1122
    %v2038 = vunpack.c.l.b16 %v1123
    %v2039 = vunpack.c.h.b16 %v1123
    %v2040 = vunpack.c.l.b16 %v1124
    %v2041 = vunpack.c.h.b16 %v1124
    %v2042 = vunpack.c.l.b16 %v1125
    %v2043 = vunpack.c.h.b16 %v1125
    %v2044 = vunpack.c.l.b16 %v1126
    %v2045 = vunpack.c.h.b16 %v1126
    %v2046 = vunpack.c.l.b16 %v1127
    %v2047 = vunpack.c.h.b16 %v1127
    %v2048 = vunpack.c.l.b16 %v1128
    %v2049 = vunpack.c.h.b16 %v1128
    %v2050 = vunpack.c.l.b16 %v1129
    %v2051 = vunpack.c.h.b16 %v1129
    %v2052 = vunpack.c.l.b16 %v1130
    %v2053 = vunpack.c.h.b16 %v1130
    %v2054 = vunpack.c.l.b16 %v1131
    %v2055 = vunpack.c.h.b16 %v1131
    %v2056 = vunpack.c.l.b16 %v1132
    %v2057 = vunpack.c.h.b16 %v1132
    %v2058 = vunpack.c.l.b16 %v1133
    %v2059 = vunpack.c.h.b16 %v1133
    %v2060 = vunpack.c.l.b16 %v1134
    %v2061 = vunpack.c.h.b16 %v1134
    %v2062 = vunpack.c.l.b16 %v1135
    %v2063 = vunpack.c.h.b16 %v1135
    %v2064 = vunpack.c.l.b16 %v1136
    %v2065 = vunpack.c.h.b16 %v1136
    %v2066 = vunpack.c.l.b16 %v1137
    %v2067 = vunpack.c.h.b16 %v1137
    %v2068 = vunpack.c.l.b16 %v1138
    %v2069 = vunpack.c.h.b16 %v1138
    %v2070 = vunpack.c.l.b16 %v1139
    %v2071 = vunpack.c.h.b16 %v1139
    %v2072 = vunpack.c.l.b16 %v1140
    %v2073 = vunpack.c.h.b16 %v1140
    %v2074 = vunpack.c.l.b16 %v1141
    %v2075 = vunpack.c.h.b16 %v1141
    %v2076 = vunpack.c.l.b16 %v1142
    %v2077 = vunpack.c.h.b16 %v1142
    %v2078 = vunpack.c.l.b16 %v1143
    %v2079 = vunpack.c.h.b16 %v1143
    %v2080 = vunpack.c.l.b16 %v1144
    %v2081 = vunpack.c.h.b16 %v1144
    %v2082 = vunpack.c.l.b16 %v1145
    %v2083 = vunpack.c.h.b16 %v1145
    %v2084 = vunpack.c.l.b16 %v1146
    %v2085 = vunpack.c.h.b16 %v1146
    %v2086 = vunpack.c.l.b16 %v1147
    %v2087 = vunpack.c.h.b16 %v1147
    %v2088 = vunpack.c.l.b16 %v1148
    %v2089 = vunpack.c.h.b16 %v1148
    %v2090 = vunpack.c.l.b16 %v1149
    %v2091 = vunpack.c.h.b16 %v1149
    %v2092 = vunpack.c.l.b16 %v1150
    %v2093 = vunpack.c.h.b16 %v1150
    %v2094 = vunpack.c.l.b16 %v1151
    %v2095 = vunpack.c.h.b16 %v1151
    %v2096 = vunpack.c.l.b16 %v1152
    %v2097 = vunpack.c.h.b16 %v1152
    %v2098 = vunpack.c.l.b16 %v1153
    %v2099 = vunpack.c.h.b16 %v1153
    %v2100 = vunpack.c.l.b16 %v1154
    %v2101 = vunpack.c.h.b16 %v1154
    %v2102 = vunpack.c.l.b16 %v1155
    %v2103 = vunpack.c.h.b16 %v1155
    %v2104 = vunpack.c.l.b16 %v1156
    %v2105 = vunpack.c.h.b16 %v1156
    %v2106 = vunpack.c.l.b16 %v1157
    %v2107 = vunpack.c.h.b16 %v1157
    %v2108 = vunpack.c.l.b16 %v1158
    %v2109 = vunpack.c.h.b16 %v1158
    %v2110 = vunpack.c.l.b16 %v1159
    %v2111 = vunpack.c.h.b16 %v1159
    %v2112 = vunpack.c.l.b16 %v1160
    %v2113 = vunpack.c.h.b16 %v1160
    %v2114 = vunpack.c.l.b16 %v1161
    %v2115 = vunpack.c.h.b16 %v1161
    %v2116 = vunpack.c.l.b16 %v1162
    %v2117 = vunpack.c.h.b16 %v1162
    %v2118 = vunpack.c.l.b16 %v1163
    %v2119 = vunpack.c.h.b16 %v1163
    %v2120 = vunpack.c.l.b16 %v1164
    %v2121 = vunpack.c.h.b16 %v1164
    %v2122 = vunpack.c.l.b16 %v1165
    %v2123 = vunpack.c.h.b16 %v1165
    %v2124 = vunpack.c.l.b16 %v1166
    %v2125 = vunpack.c.h.b16 %v1166
    %v2126 = vunpack.c.l.b16 %v1167
    %v2127 = vunpack.c.h.b16 %v1167
    %v2128 = vunpack.c.l.b16 %v1168
    %v2129 = vunpack.c.h.b16 %v1168
    %v2130 = vunpack.c.l.b16 %v1169
    %v2131 = vunpack.c.h.b16 %v1169
    %v2132 = vunpack.c.l.b16 %v1170
    %v2133 = vunpack.c.h.b16 %v1170
    %v2134 = vunpack.c.l.b16 %v1171
    %v2135 = vunpack.c.h.b16 %v1171
    %v2136 = vunpack.c.l.b16 %v1172
    %v2137 = vunpack.c.h.b16 %v1172
    %v2138 = vunpack.c.l.b16 %v1173
    %v2139 = vunpack.c.h.b16 %v1173
    %v2140 = vunpack.c.l.b16 %v1174
    %v2141 = vunpack.c.h.b16 %v1174
    %v2142 = vunpack.c.l.b16 %v1175
    %v2143 = vunpack.c.h.b16 %v1175
    %v2144 = vunpack.c.l.b16 %v1176
    %v2145 = vunpack.c.h.b16 %v1176
    %v2146 = vunpack.c.l.b16 %v1177
    %v2147 = vunpack.c.h.b16 %v1177
    %v2148 = vunpack.c.l.b16 %v1178
    %v2149 = vunpack.c.h.b16 %v1178
    %v2150 = vunpack.c.l.b16 %v1179
    %v2151 = vunpack.c.h.b16 %v1179
    %v2152 = vunpack.c.l.b16 %v1180
    %v2153 = vunpack.c.h.b16 %v1180
    %v2154 = vunpack.c.l.b16 %v1181
    %v2155 = vunpack.c.h.b16 %v1181
    %v2156 = vunpack.c.l.b16 %v1182
    %v2157 = vunpack.c.h.b16 %v1182
    %v2158 = vunpack.c.l.b16 %v1183
    %v2159 = vunpack.c.h.b16 %v1183
    %v2160 = vunpack.c.l.b16 %v1184
    %v2161 = vunpack.c.h.b16 %v1184
    %v2162 = vunpack.c.l.b16 %v1185
    %v2163 = vunpack.c.h.b16 %v1185
    %v2164 = vunpack.c.l.b16 %v1186
    %v2165 = vunpack.c.h.b16 %v1186
    %v2166 = vunpack.c.l.b16 %v1187
    %v2167 = vunpack.c.h.b16 %v1187
    %v2168 = vunpack.c.l.b16 %v1188
    %v2169 = vunpack.c.h.b16 %v1188
    %v2170 = vunpack.c.l.b16 %v1189
    %v2171 = vunpack.c.h.b16 %v1189
    %v2172 = vunpack.c.l.b16 %v1190
    %v2173 = vunpack.c.h.b16 %v1190
    %v2174 = vunpack.c.l.b16 %v1191
    %v2175 = vunpack.c.h.b16 %v1191
    %v2176 = vunpack.c.l.b16 %v1192
    %v2177 = vunpack.c.h.b16 %v1192
    %v2178 = vunpack.c.l.b16 %v1193
    %v2179 = vunpack.c.h.b16 %v1193
    %v2180 = vunpack.c.l.b16 %v1194
    %v2181 = vunpack.c.h.b16 %v1194
    %v2182 = vunpack.c.l.b16 %v1195
    %v2183 = vunpack.c.h.b16 %v1195
    %v2184 = vunpack.c.l.b16 %v1196
    %v2185 = vunpack.c.h.b16 %v1196
    %v2186 = vunpack.c.l.b16 %v1197
    %v2187 = vunpack.c.h.b16 %v1197
    %v2188 = vunpack.c.l.b16 %v1198
    %v2189 = vunpack.c.h.b16 %v1198
    %v2190 = vunpack.c.l.b16 %v1199
    %v2191 = vunpack.c.h.b16 %v1199
    %v2192 = vunpack.c.l.b16 %v1200
    %v2193 = vunpack.c.h.b16 %v1200
    %v2194 = vunpack.c.l.b16 %v1201
    %v2195 = vunpack.c.h.b16 %v1201
    %v2196 = vunpack.c.l.b16 %v1202
    %v2197 = vunpack.c.h.b16 %v1202
    %v2198 = vunpack.c.l.b16 %v1203
    %v2199 = vunpack.c.h.b16 %v1203
    %v2200 = vunpack.c.l.b16 %v1204
    %v2201 = vunpack.c.h.b16 %v1204
    %v2202 = vunpack.c.l.b16 %v1205
    %v2203 = vunpack.c.h.b16 %v1205
    %v2204 = vunpack.c.l.b16 %v1206
    %v2205 = vunpack.c.h.b16 %v1206
    %v2206 = vunpack.c.l.b16 %v1207
    %v2207 = vunpack.c.h.b16 %v1207
    %v2208 = vunpack.c.l.b16 %v1208
    %v2209 = vunpack.c.h.b16 %v1208
    %v2210 = vunpack.c.l.b16 %v1209
    %v2211 = vunpack.c.h.b16 %v1209
    %v2212 = vunpack.c.l.b16 %v1210
    %v2213 = vunpack.c.h.b16 %v1210
    %v2214 = vunpack.c.l.b16 %v1211
    %v2215 = vunpack.c.h.b16 %v1211
    %v2216 = vunpack.c.l.b16 %v1212
    %v2217 = vunpack.c.h.b16 %v1212
    %v2218 = vunpack.c.l.b16 %v1213
    %v2219 = vunpack.c.h.b16 %v1213
    %v2220 = vunpack.c.l.b16 %v1214
    %v2221 = vunpack.c.h.b16 %v1214
    %v2222 = vunpack.c.l.b16 %v1215
    %v2223 = vunpack.c.h.b16 %v1215
    %v2224 = vunpack.c.l.b16 %v1216
    %v2225 = vunpack.c.h.b16 %v1216
    %v2226 = vunpack.c.l.b16 %v1217
    %v2227 = vunpack.c.h.b16 %v1217
    %v2228 = vunpack.c.l.b16 %v1218
    %v2229 = vunpack.c.h.b16 %v1218
    %v2230 = vunpack.c.l.b16 %v1219
    %v2231 = vunpack.c.h.b16 %v1219
    %v2232 = vunpack.c.l.b16 %v1220
    %v2233 = vunpack.c.h.b16 %v1220
    %v2234 = vunpack.c.l.b16 %v1221
    %v2235 = vunpack.c.h.b16 %v1221
    %v2236 = vunpack.c.l.b16 %v1222
    %v2237 = vunpack.c.h.b16 %v1222
    %v2238 = vunpack.c.l.b16 %v1223
    %v2239 = vunpack.c.h.b16 %v1223
    %v2240 = vunpack.c.l.b16 %v1224
    %v2241 = vunpack.c.h.b16 %v1224
    %v2242 = vunpack.c.l.b16 %v1225
    %v2243 = vunpack.c.h.b16 %v1225
    %v2244 = vunpack.c.l.b16 %v1226
    %v2245 = vunpack.c.h.b16 %v1226
    %v2246 = vunpack.c.l.b16 %v1227
    %v2247 = vunpack.c.h.b16 %v1227
    %v2248 = vunpack.c.l.b16 %v1228
    %v2249 = vunpack.c.h.b16 %v1228
    %v2250 = vunpack.c.l.b16 %v1229
    %v2251 = vunpack.c.h.b16 %v1229
    %v2252 = vunpack.c.l.b16 %v1230
    %v2253 = vunpack.c.h.b16 %v1230
    %v2254 = vunpack.c.l.b16 %v1231
    %v2255 = vunpack.c.h.b16 %v1231
    %v2256 = vunpack.c.l.b16 %v1232
    %v2257 = vunpack.c.h.b16 %v1232
    %v2258 = vunpack.c.l.b16 %v1233
    %v2259 = vunpack.c.h.b16 %v1233
    %v2260 = vunpack.c.l.b16 %v1234
    %v2261 = vunpack.c.h.b16 %v1234
    %v2262 = vunpack.c.l.b16 %v1235
    %v2263 = vunpack.c.h.b16 %v1235
    %v2264 = vunpack.c.l.b16 %v1236
    %v2265 = vunpack.c.h.b16 %v1236
    %v2266 = vunpack.c.l.b16 %v1237
    %v2267 = vunpack.c.h.b16 %v1237
    %v2268 = vunpack.c.l.b16 %v1238
    %v2269 = vunpack.c.h.b16 %v1238
    %v2270 = vunpack.c.l.b16 %v1239
    %v2271 = vunpack.c.h.b16 %v1239
    %v2272 = vunpack.c.l.b16 %v1240
    %v2273 = vunpack.c.h.b16 %v1240
    %v2274 = vunpack.c.l.b16 %v1241
    %v2275 = vunpack.c.h.b16 %v1241
    %v2276 = vunpack.c.l.b16 %v1242
    %v2277 = vunpack.c.h.b16 %v1242
    %v2278 = vunpack.c.l.b16 %v1243
    %v2279 = vunpack.c.h.b16 %v1243
    %v2280 = vunpack.c.l.b16 %v1244
    %v2281 = vunpack.c.h.b16 %v1244
    %v2282 = vunpack.c.l.b16 %v1245
    %v2283 = vunpack.c.h.b16 %v1245
    %v2284 = vunpack.c.l.b16 %v1246
    %v2285 = vunpack.c.h.b16 %v1246
    %v2286 = vunpack.c.l.b16 %v1247
    %v2287 = vunpack.c.h.b16 %v1247
    %v2288 = vunpack.c.l.b16 %v1248
    %v2289 = vunpack.c.h.b16 %v1248
    %v2290 = vunpack.c.l.b16 %v1249
    %v2291 = vunpack.c.h.b16 %v1249
    %v2292 = vunpack.c.l.b16 %v1250
    %v2293 = vunpack.c.h.b16 %v1250
    %v2294 = vunpack.c.l.b16 %v1251
    %v2295 = vunpack.c.h.b16 %v1251
    %v2296 = vunpack.c.l.b16 %v1252
    %v2297 = vunpack.c.h.b16 %v1252
    %v2298 = vunpack.c.l.b16 %v1253
    %v2299 = vunpack.c.h.b16 %v1253
    %v2300 = vunpack.c.l.b16 %v1254
    %v2301 = vunpack.c.h.b16 %v1254
    %v2302 = vunpack.c.l.b16 %v1255
    %v2303 = vunpack.c.h.b16 %v1255
    %v2304 = vunpack.c.l.b16 %v1256
    %v2305 = vunpack.c.h.b16 %v1256
    %v2306 = vunpack.c.l.b16 %v1257
    %v2307 = vunpack.c.h.b16 %v1257
    %v2308 = vunpack.c.l.b16 %v1258
    %v2309 = vunpack.c.h.b16 %v1258
    %v2310 = vunpack.c.l.b16 %v1259
    %v2311 = vunpack.c.h.b16 %v1259
    %v2312 = vunpack.c.l.b16 %v1260
    %v2313 = vunpack.c.h.b16 %v1260
    %v2314 = vunpack.c.l.b16 %v1261
    %v2315 = vunpack.c.h.b16 %v1261
    %v2316 = vunpack.c.l.b16 %v1262
    %v2317 = vunpack.c.h.b16 %v1262
    %v2318 = vunpack.c.l.b16 %v1263
    %v2319 = vunpack.c.h.b16 %v1263
    %v2320 = vunpack.c.l.b16 %v1264
    %v2321 = vunpack.c.h.b16 %v1264
    %v2322 = vunpack.c.l.b16 %v1265
    %v2323 = vunpack.c.h.b16 %v1265
    %v2324 = vunpack.c.l.b16 %v1266
    %v2325 = vunpack.c.h.b16 %v1266
    %v2326 = vunpack.c.l.b16 %v1267
    %v2327 = vunpack.c.h.b16 %v1267
    %v2328 = vunpack.c.l.b16 %v1268
    %v2329 = vunpack.c.h.b16 %v1268
    %v2330 = vunpack.c.l.b16 %v1269
    %v2331 = vunpack.c.h.b16 %v1269
    %v2332 = vunpack.c.l.b16 %v1270
    %v2333 = vunpack.c.h.b16 %v1270
    %v2334 = vunpack.c.l.b16 %v1271
    %v2335 = vunpack.c.h.b16 %v1271
    %v2336 = vunpack.c.l.b16 %v1272
    %v2337 = vunpack.c.h.b16 %v1272
    %v2338 = vunpack.c.l.b16 %v1273
    %v2339 = vunpack.c.h.b16 %v1273
    %v2340 = vunpack.c.l.b16 %v1274
    %v2341 = vunpack.c.h.b16 %v1274
    %v2342 = vunpack.c.l.b16 %v1275
    %v2343 = vunpack.c.h.b16 %v1275
    %v2344 = vunpack.c.l.b16 %v1276
    %v2345 = vunpack.c.h.b16 %v1276
    %v2346 = vunpack.c.l.b16 %v1277
    %v2347 = vunpack.c.h.b16 %v1277
    %v2348 = vunpack.c.l.b16 %v1278
    %v2349 = vunpack.c.h.b16 %v1278
    %v2350 = vunpack.c.l.b16 %v1279
    %v2351 = vunpack.c.h.b16 %v1279
    %v2352 = vunpack.c.l.b16 %v1280
    %v2353 = vunpack.c.h.b16 %v1280
    %v2354 = vunpack.c.l.b16 %v1281
    %v2355 = vunpack.c.h.b16 %v1281
    %v2356 = vunpack.c.l.b16 %v1282
    %v2357 = vunpack.c.h.b16 %v1282
    %v2358 = vunpack.c.l.b16 %v1283
    %v2359 = vunpack.c.h.b16 %v1283
    %v2360 = vunpack.c.l.b16 %v1284
    %v2361 = vunpack.c.h.b16 %v1284
    %v2362 = vunpack.c.l.b16 %v1285
    %v2363 = vunpack.c.h.b16 %v1285
    %v2364 = vunpack.c.l.b16 %v1286
    %v2365 = vunpack.c.h.b16 %v1286
    %v2366 = vunpack.c.l.b16 %v1287
    %v2367 = vunpack.c.h.b16 %v1287
    %v2368 = vunpack.c.l.b16 %v1288
    %v2369 = vunpack.c.h.b16 %v1288
    %v2370 = vunpack.c.l.b16 %v1289
    %v2371 = vunpack.c.h.b16 %v1289
    %v2372 = vunpack.c.l.b16 %v1290
    %v2373 = vunpack.c.h.b16 %v1290
    %v2374 = vunpack.c.l.b16 %v1291
    %v2375 = vunpack.c.h.b16 %v1291
    %v2376 = vunpack.c.l.b16 %v1292
    %v2377 = vunpack.c.h.b16 %v1292
    %v2378 = vunpack.c.l.b16 %v1293
    %v2379 = vunpack.c.h.b16 %v1293
    %v2380 = vunpack.c.l.b16 %v1294
    %v2381 = vunpack.c.h.b16 %v1294
    %v2382 = vunpack.c.l.b16 %v1295
    %v2383 = vunpack.c.h.b16 %v1295
    %v2384 = vunpack.c.l.b16 %v1296
    %v2385 = vunpack.c.h.b16 %v1296
    %v2386 = vunpack.c.l.b16 %v1297
    %v2387 = vunpack.c.h.b16 %v1297
    %v2388 = vunpack.c.l.b16 %v1298
    %v2389 = vunpack.c.h.b16 %v1298
    %v2390 = vunpack.c.l.b16 %v1299
    %v2391 = vunpack.c.h.b16 %v1299
    %v2392 = vunpack.c.l.b16 %v1300
    %v2393 = vunpack.c.h.b16 %v1300
    %v2394 = vunpack.c.l.b16 %v1301
    %v2395 = vunpack.c.h.b16 %v1301
    %v2396 = vunpack.c.l.b16 %v1302
    %v2397 = vunpack.c.h.b16 %v1302
    %v2398 = vunpack.c.l.b16 %v1303
    %v2399 = vunpack.c.h.b16 %v1303
    %v2400 = vunpack.c.l.b16 %v1304
    %v2401 = vunpack.c.h.b16 %v1304
    %v2402 = vunpack.c.l.b16 %v1305
    %v2403 = vunpack.c.h.b16 %v1305
    %v2404 = vunpack.c.l.b16 %v1306
    %v2405 = vunpack.c.h.b16 %v1306
    %v2406 = vunpack.c.l.b16 %v1307
    %v2407 = vunpack.c.h.b16 %v1307
    %v2408 = vunpack.c.l.b16 %v1308
    %v2409 = vunpack.c.h.b16 %v1308
    %v2410 = vunpack.c.l.b16 %v1309
    %v2411 = vunpack.c.h.b16 %v1309
    %v2412 = vunpack.c.l.b16 %v1310
    %v2413 = vunpack.c.h.b16 %v1310
    %v2414 = vunpack.c.l.b16 %v1311
    %v2415 = vunpack.c.h.b16 %v1311
    %v2416 = vunpack.c.l.b16 %v1312
    %v2417 = vunpack.c.h.b16 %v1312
    %v2418 = vunpack.c.l.b16 %v1313
    %v2419 = vunpack.c.h.b16 %v1313
    %v2420 = vunpack.c.l.b16 %v1314
    %v2421 = vunpack.c.h.b16 %v1314
    %v2422 = vunpack.c.l.b16 %v1315
    %v2423 = vunpack.c.h.b16 %v1315
    %v2424 = vunpack.c.l.b16 %v1316
    %v2425 = vunpack.c.h.b16 %v1316
    %v2426 = vunpack.c.l.b16 %v1317
    %v2427 = vunpack.c.h.b16 %v1317
    %v2428 = vunpack.c.l.b16 %v1318
    %v2429 = vunpack.c.h.b16 %v1318
    %v2430 = vunpack.c.l.b16 %v1319
    %v2431 = vunpack.c.h.b16 %v1319
    %v2432 = vunpack.c.l.b16 %v1320
    %v2433 = vunpack.c.h.b16 %v1320
    %v2434 = vunpack.c.l.b16 %v1321
    %v2435 = vunpack.c.h.b16 %v1321
    %v2436 = vunpack.c.l.b16 %v1322
    %v2437 = vunpack.c.h.b16 %v1322
    %v2438 = vunpack.c.l.b16 %v1323
    %v2439 = vunpack.c.h.b16 %v1323
    %v2440 = vunpack.c.l.b16 %v1324
    %v2441 = vunpack.c.h.b16 %v1324
    %v2442 = vunpack.c.l.b16 %v1325
    %v2443 = vunpack.c.h.b16 %v1325
    %v2444 = vunpack.c.l.b16 %v1326
    %v2445 = vunpack.c.h.b16 %v1326
    %v2446 = vunpack.c.l.b16 %v1327
    %v2447 = vunpack.c.h.b16 %v1327
    %v2448 = vunpack.c.l.b16 %v1328
    %v2449 = vunpack.c.h.b16 %v1328
    %v2450 = vunpack.c.l.b16 %v1329
    %v2451 = vunpack.c.h.b16 %v1329
    %v2452 = vunpack.c.l.b16 %v1330
    %v2453 = vunpack.c.h.b16 %v1330
    %v2454 = vunpack.c.l.b16 %v1331
    %v2455 = vunpack.c.h.b16 %v1331
    %v2456 = vunpack.c.l.b16 %v1332
    %v2457 = vunpack.c.h.b16 %v1332
    %v2458 = vunpack.c.l.b16 %v1333
    %v2459 = vunpack.c.h.b16 %v1333
    %v2460 = vunpack.c.l.b16 %v1334
    %v2461 = vunpack.c.h.b16 %v1334
    %v2462 = vunpack.c.l.b16 %v1335
    %v2463 = vunpack.c.h.b16 %v1335
    %v2464 = vunpack.c.l.b16 %v1336
    %v2465 = vunpack.c.h.b16 %v1336
    %v2466 = vunpack.c.l.b16 %v1337
    %v2467 = vunpack.c.h.b16 %v1337
    %v2468 = vunpack.c.l.b16 %v1338
    %v2469 = vunpack.c.h.b16 %v1338
    %v2470 = vunpack.c.l.b16 %v1339
    %v2471 = vunpack.c.h.b16 %v1339
    %v2472 = vunpack.c.l.b16 %v1340
    %v2473 = vunpack.c.h.b16 %v1340
    %v2474 = vunpack.c.l.b16 %v1341
    %v2475 = vunpack.c.h.b16 %v1341
    %v2476 = vunpack.c.l.b16 %v1342
    %v2477 = vunpack.c.h.b16 %v1342
    %v2478 = vunpack.c.l.b16 %v1343
    %v2479 = vunpack.c.h.b16 %v1343
    %v2480 = vunpack.c.l.b16 %v1344
    %v2481 = vunpack.c.h.b16 %v1344
    %v2482 = vunpack.c.l.b16 %v1345
    %v2483 = vunpack.c.h.b16 %v1345
    %v2484 = vunpack.c.l.b16 %v1346
    %v2485 = vunpack.c.h.b16 %v1346
    %v2486 = vunpack.c.l.b16 %v1347
    %v2487 = vunpack.c.h.b16 %v1347
    %v2488 = vunpack.c.l.b16 %v1348
    %v2489 = vunpack.c.h.b16 %v1348
    %v2490 = vunpack.c.l.b16 %v1349
    %v2491 = vunpack.c.h.b16 %v1349
    %v2492 = vunpack.c.l.b16 %v1350
    %v2493 = vunpack.c.h.b16 %v1350
    %v2494 = vunpack.c.l.b16 %v1351
    %v2495 = vunpack.c.h.b16 %v1351
    %v2496 = vunpack.c.l.b16 %v1352
    %v2497 = vunpack.c.h.b16 %v1352
    %v2498 = vunpack.c.l.b16 %v1353
    %v2499 = vunpack.c.h.b16 %v1353
    %v2500 = vunpack.c.l.b16 %v1354
    %v2501 = vunpack.c.h.b16 %v1354
    %v2502 = vunpack.c.l.b16 %v1355
    %v2503 = vunpack.c.h.b16 %v1355
    %v2504 = vunpack.c.l.b16 %v1356
    %v2505 = vunpack.c.h.b16 %v1356
    %v2506 = vunpack.c.l.b16 %v1357
    %v2507 = vunpack.c.h.b16 %v1357
    %v2508 = vunpack.c.l.b16 %v1358
    %v2509 = vunpack.c.h.b16 %v1358
    %v2510 = vunpack.c.l.b16 %v1359
    %v2511 = vunpack.c.h.b16 %v1359
    %v2512 = vunpack.c.l.b16 %v1360
    %v2513 = vunpack.c.h.b16 %v1360
    %v2514 = vunpack.c.l.b16 %v1361
    %v2515 = vunpack.c.h.b16 %v1361
    %v2516 = vunpack.c.l.b16 %v1362
    %v2517 = vunpack.c.h.b16 %v1362
    %v2518 = vunpack.c.l.b16 %v1363
    %v2519 = vunpack.c.h.b16 %v1363
    %v2520 = vunpack.c.l.b16 %v1364
    %v2521 = vunpack.c.h.b16 %v1364
    %v2522 = vunpack.c.l.b16 %v1365
    %v2523 = vunpack.c.h.b16 %v1365
    %v2524 = vunpack.c.l.b16 %v1366
    %v2525 = vunpack.c.h.b16 %v1366
    %v2526 = vunpack.c.l.b16 %v1367
    %v2527 = vunpack.c.h.b16 %v1367
    %v2528 = vunpack.c.l.b16 %v1368
    %v2529 = vunpack.c.h.b16 %v1368
    %v2530 = vunpack.c.l.b16 %v1369
    %v2531 = vunpack.c.h.b16 %v1369
    %v2532 = vunpack.c.l.b16 %v1370
    %v2533 = vunpack.c.h.b16 %v1370
    %v2534 = vunpack.c.l.b16 %v1371
    %v2535 = vunpack.c.h.b16 %v1371
    %v2536 = vunpack.c.l.b16 %v1372
    %v2537 = vunpack.c.h.b16 %v1372
    %v2538 = vunpack.c.l.b16 %v1373
    %v2539 = vunpack.c.h.b16 %v1373
    %v2540 = vunpack.c.l.b16 %v1374
    %v2541 = vunpack.c.h.b16 %v1374
    %v2542 = vunpack.c.l.b16 %v1375
    %v2543 = vunpack.c.h.b16 %v1375
    %v2544 = vunpack.c.l.b16 %v1376
    %v2545 = vunpack.c.h.b16 %v1376
    %v2546 = vunpack.c.l.b16 %v1377
    %v2547 = vunpack.c.h.b16 %v1377
    %v2548 = vunpack.c.l.b16 %v1378
    %v2549 = vunpack.c.h.b16 %v1378
    %v2550 = vunpack.c.l.b16 %v1379
    %v2551 = vunpack.c.h.b16 %v1379
    %v2552 = vunpack.c.l.b16 %v1380
    %v2553 = vunpack.c.h.b16 %v1380
    %v2554 = vunpack.c.l.b16 %v1381
    %v2555 = vunpack.c.h.b16 %v1381
    %v2556 = vunpack.c.l.b16 %v1382
    %v2557 = vunpack.c.h.b16 %v1382
    %v2558 = vunpack.c.l.b16 %v1383
    %v2559 = vunpack.c.h.b16 %v1383
    %v2560 = vunpack.c.l.b16 %v1384
    %v2561 = vunpack.c.h.b16 %v1384
    %v2562 = vunpack.c.l.b16 %v1385
    %v2563 = vunpack.c.h.b16 %v1385
    %v2564 = vunpack.c.l.b16 %v1386
    %v2565 = vunpack.c.h.b16 %v1386
    %v2566 = vunpack.c.l.b16 %v1387
    %v2567 = vunpack.c.h.b16 %v1387
    %v2568 = vunpack.c.l.b16 %v1388
    %v2569 = vunpack.c.h.b16 %v1388
    %v2570 = vunpack.c.l.b16 %v1389
    %v2571 = vunpack.c.h.b16 %v1389
    %v2572 = vunpack.c.l.b16 %v1390
    %v2573 = vunpack.c.h.b16 %v1390
    %v2574 = vunpack.c.l.b16 %v1391
    %v2575 = vunpack.c.h.b16 %v1391
    %v2576 = vunpack.c.l.b16 %v1392
    %v2577 = vunpack.c.h.b16 %v1392
    %v2578 = vunpack.c.l.b16 %v1393
    %v2579 = vunpack.c.h.b16 %v1393
    %v2580 = vunpack.c.l.b16 %v1394
    %v2581 = vunpack.c.h.b16 %v1394
    %v2582 = vunpack.c.l.b16 %v1395
    %v2583 = vunpack.c.h.b16 %v1395
    %v2584 = vunpack.c.l.b16 %v1396
    %v2585 = vunpack.c.h.b16 %v1396
    %v2586 = vunpack.c.l.b16 %v1397
    %v2587 = vunpack.c.h.b16 %v1397
    %v2588 = vunpack.c.l.b16 %v1398
    %v2589 = vunpack.c.h.b16 %v1398
    %v2590 = vunpack.c.l.b16 %v1399
    %v2591 = vunpack.c.h.b16 %v1399
    %v2592 = vunpack.c.l.b16 %v1400
    %v2593 = vunpack.c.h.b16 %v1400
    %v2594 = vunpack.c.l.b16 %v1401
    %v2595 = vunpack.c.h.b16 %v1401
    %v2596 = vunpack.c.l.b16 %v1402
    %v2597 = vunpack.c.h.b16 %v1402
    %v2598 = vunpack.c.l.b16 %v1403
    %v2599 = vunpack.c.h.b16 %v1403
    %v2600 = vunpack.c.l.b16 %v1404
    %v2601 = vunpack.c.h.b16 %v1404
    %v2602 = vunpack.c.l.b16 %v1405
    %v2603 = vunpack.c.h.b16 %v1405
    %v2604 = vunpack.c.l.b16 %v1406
    %v2605 = vunpack.c.h.b16 %v1406
    %v2606 = vunpack.c.l.b16 %v1407
    %v2607 = vunpack.c.h.b16 %v1407
    %v2608 = vunpack.c.l.b16 %v1408
    %v2609 = vunpack.c.h.b16 %v1408
    %v2610 = vunpack.c.l.b16 %v1409
    %v2611 = vunpack.c.h.b16 %v1409
    %v2612 = vunpack.c.l.b16 %v1410
    %v2613 = vunpack.c.h.b16 %v1410
    %v2614 = vunpack.c.l.b16 %v1411
    %v2615 = vunpack.c.h.b16 %v1411
    %v2616 = vunpack.c.l.b16 %v1412
    %v2617 = vunpack.c.h.b16 %v1412
    %v2618 = vunpack.c.l.b16 %v1413
    %v2619 = vunpack.c.h.b16 %v1413
    %v2620 = vunpack.c.l.b16 %v1414
    %v2621 = vunpack.c.h.b16 %v1414
    %v2622 = vunpack.c.l.b16 %v1415
    %v2623 = vunpack.c.h.b16 %v1415
    %v2624 = vunpack.c.l.b16 %v1416
    %v2625 = vunpack.c.h.b16 %v1416
    %v2626 = vunpack.c.l.b16 %v1417
    %v2627 = vunpack.c.h.b16 %v1417
    %v2628 = vunpack.c.l.b16 %v1418
    %v2629 = vunpack.c.h.b16 %v1418
    %v2630 = vunpack.c.l.b16 %v1419
    %v2631 = vunpack.c.h.b16 %v1419
    %v2632 = vunpack.c.l.b16 %v1420
    %v2633 = vunpack.c.h.b16 %v1420
    %v2634 = vunpack.c.l.b16 %v1421
    %v2635 = vunpack.c.h.b16 %v1421
    %v2636 = vunpack.c.l.b16 %v1422
    %v2637 = vunpack.c.h.b16 %v1422
    %v2638 = vunpack.c.l.b16 %v1423
    %v2639 = vunpack.c.h.b16 %v1423
    %v2640 = vunpack.c.l.b16 %v1424
    %v2641 = vunpack.c.h.b16 %v1424
    %v2642 = vunpack.c.l.b16 %v1425
    %v2643 = vunpack.c.h.b16 %v1425
    %v2644 = vunpack.c.l.b16 %v1426
    %v2645 = vunpack.c.h.b16 %v1426
    %v2646 = vunpack.c.l.b16 %v1427
    %v2647 = vunpack.c.h.b16 %v1427
    %v2648 = vunpack.c.l.b16 %v1428
    %v2649 = vunpack.c.h.b16 %v1428
    %v2650 = vunpack.c.l.b16 %v1429
    %v2651 = vunpack.c.h.b16 %v1429
    %v2652 = vunpack.c.l.b16 %v1430
    %v2653 = vunpack.c.h.b16 %v1430
    %v2654 = vunpack.c.l.b16 %v1431
    %v2655 = vunpack.c.h.b16 %v1431
    %v2656 = vunpack.c.l.b16 %v1432
    %v2657 = vunpack.c.h.b16 %v1432
    %v2658 = vunpack.c.l.b16 %v1433
    %v2659 = vunpack.c.h.b16 %v1433
    %v2660 = vunpack.c.l.b16 %v1434
    %v2661 = vunpack.c.h.b16 %v1434
    %v2662 = vunpack.c.l.b16 %v1435
    %v2663 = vunpack.c.h.b16 %v1435
    %v2664 = vunpack.c.l.b16 %v1436
    %v2665 = vunpack.c.h.b16 %v1436
    %v2666 = vunpack.c.l.b16 %v1437
    %v2667 = vunpack.c.h.b16 %v1437
    %v2668 = vunpack.c.l.b16 %v1438
    %v2669 = vunpack.c.h.b16 %v1438
    %v2670 = vunpack.c.l.b16 %v1439
    %v2671 = vunpack.c.h.b16 %v1439
    %v2672 = vunpack.c.l.b16 %v1440
    %v2673 = vunpack.c.h.b16 %v1440
    %v2674 = vunpack.c.l.b16 %v1441
    %v2675 = vunpack.c.h.b16 %v1441
    %v2676 = vunpack.c.l.b16 %v1442
    %v2677 = vunpack.c.h.b16 %v1442
    %v2678 = vunpack.c.l.b16 %v1443
    %v2679 = vunpack.c.h.b16 %v1443
    %v2680 = vunpack.c.l.b16 %v1444
    %v2681 = vunpack.c.h.b16 %v1444
    %v2682 = vunpack.c.l.b16 %v1445
    %v2683 = vunpack.c.h.b16 %v1445
    %v2684 = vunpack.c.l.b16 %v1446
    %v2685 = vunpack.c.h.b16 %v1446
    %v2686 = vunpack.c.l.b16 %v1447
    %v2687 = vunpack.c.h.b16 %v1447
    %v2688 = vunpack.c.l.b16 %v1448
    %v2689 = vunpack.c.h.b16 %v1448
    %v2690 = vunpack.c.l.b16 %v1449
    %v2691 = vunpack.c.h.b16 %v1449
    %v2692 = vunpack.c.l.b16 %v1450
    %v2693 = vunpack.c.h.b16 %v1450
    %v2694 = vunpack.c.l.b16 %v1451
    %v2695 = vunpack.c.h.b16 %v1451
    %v2696 = vunpack.c.l.b16 %v1452
    %v2697 = vunpack.c.h.b16 %v1452
    %v2698 = vunpack.c.l.b16 %v1453
    %v2699 = vunpack.c.h.b16 %v1453
    %v2700 = vunpack.c.l.b16 %v1454
    %v2701 = vunpack.c.h.b16 %v1454
    %v2702 = vunpack.c.l.b16 %v1455
    %v2703 = vunpack.c.h.b16 %v1455
    %v2704 = vunpack.c.l.b16 %v1456
    %v2705 = vunpack.c.h.b16 %v1456
    %v2706 = vunpack.c.l.b16 %v1457
    %v2707 = vunpack.c.h.b16 %v1457
    %v2708 = vunpack.c.l.b16 %v1458
    %v2709 = vunpack.c.h.b16 %v1458
    %v2710 = vunpack.c.l.b16 %v1459
    %v2711 = vunpack.c.h.b16 %v1459
    %v2712 = vunpack.c.l.b16 %v1460
    %v2713 = vunpack.c.h.b16 %v1460
    %v2714 = vunpack.c.l.b16 %v1461
    %v2715 = vunpack.c.h.b16 %v1461
    %v2716 = vunpack.c.l.b16 %v1462
    %v2717 = vunpack.c.h.b16 %v1462
    %v2718 = vunpack.c.l.b16 %v1463
    %v2719 = vunpack.c.h.b16 %v1463
    %v2720 = vunpack.c.l.b16 %v1464
    %v2721 = vunpack.c.h.b16 %v1464
    %v2722 = vunpack.c.l.b16 %v1465
    %v2723 = vunpack.c.h.b16 %v1465
    %v2724 = vunpack.c.l.b16 %v1466
    %v2725 = vunpack.c.h.b16 %v1466
    %v2726 = vunpack.c.l.b16 %v1467
    %v2727 = vunpack.c.h.b16 %v1467
    %v2728 = vunpack.c.l.b16 %v1468
    %v2729 = vunpack.c.h.b16 %v1468
    %v2730 = vunpack.c.l.b16 %v1469
    %v2731 = vunpack.c.h.b16 %v1469
    %v2732 = vunpack.c.l.b16 %v1470
    %v2733 = vunpack.c.h.b16 %v1470
    %v2734 = vunpack.c.l.b16 %v1471
    %v2735 = vunpack.c.h.b16 %v1471
    %v2736 = vunpack.c.l.b16 %v1472
    %v2737 = vunpack.c.h.b16 %v1472
    %v2738 = vunpack.c.l.b16 %v1473
    %v2739 = vunpack.c.h.b16 %v1473
    %v2740 = vunpack.c.l.b16 %v1474
    %v2741 = vunpack.c.h.b16 %v1474
    %v2742 = vunpack.c.l.b16 %v1475
    %v2743 = vunpack.c.h.b16 %v1475
    %v2744 = vunpack.c.l.b16 %v1476
    %v2745 = vunpack.c.h.b16 %v1476
    %v2746 = vunpack.c.l.b16 %v1477
    %v2747 = vunpack.c.h.b16 %v1477
    %v2748 = vunpack.c.l.b16 %v1478
    %v2749 = vunpack.c.h.b16 %v1478
    %v2750 = vunpack.c.l.b16 %v1479
    %v2751 = vunpack.c.h.b16 %v1479
    %v2752 = vunpack.c.l.b16 %v1480
    %v2753 = vunpack.c.h.b16 %v1480
    %v2754 = vunpack.c.l.b16 %v1481
    %v2755 = vunpack.c.h.b16 %v1481
    %v2756 = vunpack.c.l.b16 %v1482
    %v2757 = vunpack.c.h.b16 %v1482
    %v2758 = vunpack.c.l.b16 %v1483
    %v2759 = vunpack.c.h.b16 %v1483
    %v2760 = vunpack.c.l.b16 %v1484
    %v2761 = vunpack.c.h.b16 %v1484
    %v2762 = vunpack.c.l.b16 %v1485
    %v2763 = vunpack.c.h.b16 %v1485
    %v2764 = vunpack.c.l.b16 %v1486
    %v2765 = vunpack.c.h.b16 %v1486
    %v2766 = vunpack.c.l.b16 %v1487
    %v2767 = vunpack.c.h.b16 %v1487
    %v2768 = vunpack.c.l.b16 %v1488
    %v2769 = vunpack.c.h.b16 %v1488
    %v2770 = vunpack.c.l.b16 %v1489
    %v2771 = vunpack.c.h.b16 %v1489
    %v2772 = vunpack.c.l.b16 %v1490
    %v2773 = vunpack.c.h.b16 %v1490
    %v2774 = vunpack.c.l.b16 %v1491
    %v2775 = vunpack.c.h.b16 %v1491
    %v2776 = vunpack.c.l.b16 %v1492
    %v2777 = vunpack.c.h.b16 %v1492
    %v2778 = vunpack.c.l.b16 %v1493
    %v2779 = vunpack.c.h.b16 %v1493
    %v2780 = vunpack.c.l.b16 %v1494
    %v2781 = vunpack.c.h.b16 %v1494
    %v2782 = vunpack.c.l.b16 %v1495
    %v2783 = vunpack.c.h.b16 %v1495
    %v2784 = vunpack.c.l.b16 %v1496
    %v2785 = vunpack.c.h.b16 %v1496
    %v2786 = vunpack.c.l.b16 %v1497
    %v2787 = vunpack.c.h.b16 %v1497
    %v2788 = vunpack.c.l.b16 %v1498
    %v2789 = vunpack.c.h.b16 %v1498
    %v2790 = vunpack.c.l.b16 %v1499
    %v2791 = vunpack.c.h.b16 %v1499
    %v2792 = vunpack.c.l.b16 %v1500
    %v2793 = vunpack.c.h.b16 %v1500
    %v2794 = vunpack.c.l.b16 %v1501
    %v2795 = vunpack.c.h.b16 %v1501
    %v2796 = vunpack.c.l.b16 %v1502
    %v2797 = vunpack.c.h.b16 %v1502
    %v2798 = vunpack.c.l.b16 %v1503
    %v2799 = vunpack.c.h.b16 %v1503
    %v2800 = vunpack.c.l.b16 %v1504
    %v2801 = vunpack.c.h.b16 %v1504
    %v2802 = vunpack.c.l.b16 %v1505
    %v2803 = vunpack.c.h.b16 %v1505
    %v2804 = vunpack.c.l.b16 %v1506
    %v2805 = vunpack.c.h.b16 %v1506
    %v2806 = vunpack.c.l.b16 %v1507
    %v2807 = vunpack.c.h.b16 %v1507
    %v2808 = vunpack.c.l.b16 %v1508
    %v2809 = vunpack.c.h.b16 %v1508
    %v2810 = vunpack.c.l.b16 %v1509
    %v2811 = vunpack.c.h.b16 %v1509
    %v2812 = vunpack.c.l.b16 %v1510
    %v2813 = vunpack.c.h.b16 %v1510
    %v2814 = vunpack.c.l.b16 %v1511
    %v2815 = vunpack.c.h.b16 %v1511
    %v2816 = vunpack.c.l.b16 %v1512
    %v2817 = vunpack.c.h.b16 %v1512
    %v2818 = vunpack.c.l.b16 %v1513
    %v2819 = vunpack.c.h.b16 %v1513
    %v2820 = vunpack.c.l.b16 %v1514
    %v2821 = vunpack.c.h.b16 %v1514
    %v2822 = vunpack.c.l.b16 %v1515
    %v2823 = vunpack.c.h.b16 %v1515
    %v2824 = vunpack.c.l.b16 %v1516
    %v2825 = vunpack.c.h.b16 %v1516
    %v2826 = vunpack.c.l.b16 %v1517
    %v2827 = vunpack.c.h.b16 %v1517
    %v2828 = vunpack.c.l.b16 %v1518
    %v2829 = vunpack.c.h.b16 %v1518
    %v2830 = vunpack.c.l.b16 %v1519
    %v2831 = vunpack.c.h.b16 %v1519
    %v2832 = vunpack.c.l.b16 %v1520
    %v2833 = vunpack.c.h.b16 %v1520
    %v2834 = vunpack.c.l.b16 %v1521
    %v2835 = vunpack.c.h.b16 %v1521
    %v2836 = vunpack.c.l.b16 %v1522
    %v2837 = vunpack.c.h.b16 %v1522
    %v2838 = vunpack.c.l.b16 %v1523
    %v2839 = vunpack.c.h.b16 %v1523
    %v2840 = vunpack.c.l.b16 %v1524
    %v2841 = vunpack.c.h.b16 %v1524
    %v2842 = vunpack.c.l.b16 %v1525
    %v2843 = vunpack.c.h.b16 %v1525
    %v2844 = vunpack.c.l.b16 %v1526
    %v2845 = vunpack.c.h.b16 %v1526
    %v2846 = vunpack.c.l.b16 %v1527
    %v2847 = vunpack.c.h.b16 %v1527
    %v2848 = vunpack.c.l.b16 %v1528
    %v2849 = vunpack.c.h.b16 %v1528
    %v2850 = vunpack.c.l.b16 %v1529
    %v2851 = vunpack.c.h.b16 %v1529
    %v2852 = vunpack.c.l.b16 %v1530
    %v2853 = vunpack.c.h.b16 %v1530
    %v2854 = vunpack.c.l.b16 %v1531
    %v2855 = vunpack.c.h.b16 %v1531
    %v2856 = vunpack.c.l.b16 %v1532
    %v2857 = vunpack.c.h.b16 %v1532
    %v2858 = vunpack.c.l.b16 %v1533
    %v2859 = vunpack.c.h.b16 %v1533
    %v2860 = vunpack.c.l.b16 %v1534
    %v2861 = vunpack.c.h.b16 %v1534
    %v2862 = vunpack.c.l.b16 %v1535
    %v2863 = vunpack.c.h.b16 %v1535
    %v2864 = vpack.c.b16 %v2006, %v2000
    %v2865 = vpack.c.b16 %v2007, %v2001
    %v2866 = vpack.c.b16 %v2008, %v2002
    %v2867 = vpack.c.b16 %v2009, %v2003
    %v2868 = vpack.c.b16 %v2010, %v2004
    %v2869 = vpack.c.b16 %v2011, %v2005
    %v2870 = vpack.c.b16 %v2018, %v2012
    %v2871 = vpack.c.b16 %v2019, %v2013
    %v2872 = vpack.c.b16 %v2020, %v2014
    %v2873 = vpack.c.b16 %v2021, %v2015
    %v2874 = vpack.c.b16 %v2022, %v2016
    %v2875 = vpack.c.b16 %v2023, %v2017
    %v2876 = vpack.c.b16 %v2030, %v2024
    %v2877 = vpack.c.b16 %v2031, %v2025
    %v2878 = vpack.c.b16 %v2032, %v2026
    %v2879 = vpack.c.b16 %v2033, %v2027
    %v2880 = vpack.c.b16 %v2034, %v2028
    %v2881 = vpack.c.b16 %v2035, %v2029
    %v2882 = vpack.c.b16 %v2042, %v2036
    %v2883 = vpack.c.b16 %v2043, %v2037
    %v2884 = vpack.c.b16 %v2044, %v2038
    %v2885 = vpack.c.b16 %v2045, %v2039
    %v2886 = vpack.c.b16 %v2046, %v2040
    %v2887 = vpack.c.b16 %v2047, %v2041
    %v2888 = vpack.c.b16 %v2054, %v2048
    %v2889 = vpack.c.b16 %v2055, %v2049
    %v2890 = vpack.c.b16 %v2056, %v2050
    %v2891 = vpack.c.b16 %v2057, %v2051
    %v2892 = vpack.c.b16 %v2058, %v2052
    %v2893 = vpack.c.b16 %v2059, %v2053
    %v2894 = vpack.c.b16 %v2066, %v2060
    %v2895 = vpack.c.b16 %v2067, %v2061
    %v2896 = vpack.c.b16 %v2068, %v2062
    %v2897 = vpack.c.b16 %v2069, %v2063
    %v2898 = vpack.c.b16 %v2070, %v2064
    %v2899 = vpack.c.b16 %v2071, %v2065
    %v2900 = vpack.c.b16 %v2078, %v2072
    %v2901 = vpack.c.b16 %v2079, %v2073
    %v2902 = vpack.c.b16 %v2080, %v2074
    %v2903 = vpack.c.b16 %v2081, %v2075
    %v2904 = vpack.c.b16 %v2082, %v2076
    %v2905 = vpack.c.b16 %v2083, %v2077
    %v2906 = vpack.c.b16 %v2090, %v2084
    %v2907 = vpack.c.b16 %v2091, %v2085
    %v2908 = vpack.c.b16 %v2092, %v2086
    %v2909 = vpack.c.b16 %v2093, %v2087
    %v2910 = vpack.c.b16 %v2094, %v2088
    %v2911 = vpack.c.b16 %v2095, %v2089
    %v2912 = vpack.c.b16 %v2102, %v2096
    %v2913 = vpack.c.b16 %v2103, %v2097
    %v2914 = vpack.c.b16 %v2104, %v2098
    %v2915 = vpack.c.b16 %v2105, %v2099
    %v2916 = vpack.c.b16 %v2106, %v2100
    %v2917 = vpack.c.b16 %v2107, %v2101
    %v2918 = vpack.c.b16 %v2114, %v2108
    %v2919 = vpack.c.b16 %v2115, %v2109
    %v2920 = vpack.c.b16 %v2116, %v2110
    %v2921 = vpack.c.b16 %v2117, %v2111
    %v2922 = vpack.c.b16 %v2118, %v2112
    %v2923 = vpack.c.b16 %v2119, %v2113
    %v2924 = vpack.c.b16 %v2126, %v2120
    %v2925 = vpack.c.b16 %v2127, %v2121
    %v2926 = vpack.c.b16 %v2128, %v2122
    %v2927 = vpack.c.b16 %v2129, %v2123
    %v2928 = vpack.c.b16 %v2130, %v2124
    %v2929 = vpack.c.b16 %v2131, %v2125
    %v2930 = vpack.c.b16 %v2138, %v2132
    %v2931 = vpack.c.b16 %v2139, %v2133
    %v2932 = vpack.c.b16 %v2140, %v2134
    %v2933 = vpack.c.b16 %v2141, %v2135
    %v2934 = vpack.c.b16 %v2142, %v2136
    %v2935 = vpack.c.b16 %v2143, %v2137
    %v2936 = vpack.c.b16 %v2150, %v2144
    %v2937 = vpack.c.b16 %v2151, %v2145
    %v2938 = vpack.c.b16 %v2152, %v2146
    %v2939 = vpack.c.b16 %v2153, %v2147
    %v2940 = vpack.c.b16 %v2154, %v2148
    %v2941 = vpack.c.b16 %v2155, %v2149
    %v2942 = vpack.c.b16 %v2162, %v2156
    %v2943 = vpack.c.b16 %v2163, %v2157
    %v2944 = vpack.c.b16 %v2164, %v2158
    %v2945 = vpack.c.b16 %v2165, %v2159
    %v2946 = vpack.c.b16 %v2166, %v2160
    %v2947 = vpack.c.b16 %v2167, %v2161
    %v2948 = vpack.c.b16 %v2174, %v2168
    %v2949 = vpack.c.b16 %v2175, %v2169
    %v2950 = vpack.c.b16 %v2176, %v2170
    %v2951 = vpack.c.b16 %v2177, %v2171
    %v2952 = vpack.c.b16 %v2178, %v2172
    %v2953 = vpack.c.b16 %v2179, %v2173
    %v2954 = vpack.c.b16 %v2186, %v2180
    %v2955 = vpack.c.b16 %v2187, %v2181
    %v2956 = vpack.c.b16 %v2188, %v2182
    %v2957 = vpack.c.b16 %v2189, %v2183
    %v2958 = vpack.c.b16 %v2190, %v2184
    %v2959 = vpack.c.b16 %v2191, %v2185
    %v2960 = vpack.c.b16 %v2198, %v2192
    %v2961 = vpack.c.b16 %v2199, %v2193
    %v2962 = vpack.c.b16 %v2200, %v2194
    %v2963 = vpack.c.b16 %v2201, %v2195
    %v2964 = vpack.c.b16 %v2202, %v2196
    %v2965 = vpack.c.b16 %v2203, %v2197
    %v2966 = vpack.c.b16 %v2210, %v2204
    %v2967 = vpack.c.b16 %v2211, %v2205
    %v2968 = vpack.c.b16 %v2212, %v2206
    %v2969 = vpack.c.b16 %v2213, %v2207
    %v2970 = vpack.c.b16 %v2214, %v2208
    %v2971 = vpack.c.b16 %v2215, %v2209
    %v2972 = vpack.c.b16 %v2222, %v2216
    %v2973 = vpack.c.b16 %v2223, %v2217
    %v2974 = vpack.c.b16 %v2224, %v2218
    %v2975 = vpack.c.b16 %v2225, %v2219
    %v2976 = vpack.c.b16 %v2226, %v2220
    %v2977 = vpack.c.b16 %v2227, %v2221
    %v2978 = vpack.c.b16 %v2234, %v2228
    %v2979 = vpack.c.b16 %v2235, %v2229
    %v2980 = vpack.c.b16 %v2236, %v2230
    %v2981 = vpack.c.b16 %v2237, %v2231
    %v2982 = vpack.c.b16 %v2238, %v2232
    %v2983 = vpack.c.b16 %v2239, %v2233
    %v2984 = vpack.c.b16 %v2246, %v2240
    %v2985 = vpack.c.b16 %v2247, %v2241
    %v2986 = vpack.c.b16 %v2248, %v2242
    %v2987 = vpack.c.b16 %v2249, %v2243
    %v2988 = vpack.c.b16 %v2250, %v2244
    %v2989 = vpack.c.b16 %v2251, %v2245
    %v2990 = vpack.c.b16 %v2258, %v2252
    %v2991 = vpack.c.b16 %v2259, %v2253
    %v2992 = vpack.c.b16 %v2260, %v2254
    %v2993 = vpack.c.b16 %v2261, %v2255
    %v2994 = vpack.c.b16 %v2262, %v2256
    %v2995 = vpack.c.b16 %v2263, %v2257
    %v2996 = vpack.c.b16 %v2270, %v2264
    %v2997 = vpack.c.b16 %v2271, %v2265
    %v2998 = vpack.c.b16 %v2272, %v2266
    %v2999 = vpack.c.b16 %v2273, %v2267
    %v3000 = vpack.c.b16 %v2274, %v2268
    %v3001 = vpack.c.b16 %v2275, %v2269
    %v3002 = vpack.c.b16 %v2282, %v2276
    %v3003 = vpack.c.b16 %v2283, %v2277
    %v3004 = vpack.c.b16 %v2284, %v2278
    %v3005 = vpack.c.b16 %v2285, %v2279
    %v3006 = vpack.c.b16 %v2286, %v2280
    %v3007 = vpack.c.b16 %v2287, %v2281
    %v3008 = vpack.c.b16 %v2294, %v2288
    %v3009 = vpack.c.b16 %v2295, %v2289
    %v3010 = vpack.c.b16 %v2296, %v2290
    %v3011 = vpack.c.b16 %v2297, %v2291
    %v3012 = vpack.c.b16 %v2298, %v2292
    %v3013 = vpack.c.b16 %v2299, %v2293
    %v3014 = vpack.c.b16 %v2306, %v2300
    %v3015 = vpack.c.b16 %v2307, %v2301
    %v3016 = vpack.c.b16 %v2308, %v2302
    %v3017 = vpack.c.b16 %v2309, %v2303
    %v3018 = vpack.c.b16 %v2310, %v2304
    %v3019 = vpack.c.b16 %v2311, %v2305
    %v3020 = vpack.c.b16 %v2318, %v2312
    %v3021 = vpack.c.b16 %v2319, %v2313
    %v3022 = vpack.c.b16 %v2320, %v2314
    %v3023 = vpack.c.b16 %v2321, %v2315
    %v3024 = vpack.c.b16 %v2322, %v2316
    %v3025 = vpack.c.b16 %v2323, %v2317
    %v3026 = vpack.c.b16 %v2330, %v2324
    %v3027 = vpack.c.b16 %v2331, %v2325
    %v3028 = vpack.c.b16 %v2332, %v2326
    %v3029 = vpack.c.b16 %v2333, %v2327
    %v3030 = vpack.c.b16 %v2334, %v2328
    %v3031 = vpack.c.b16 %v2335, %v2329
    %v3032 = vpack.c.b16 %v2342, %v2336
    %v3033 = vpack.c.b16 %v2343, %v2337
    %v3034 = vpack.c.b16 %v2344, %v2338
    %v3035 = vpack.c.b16 %v2345, %v2339
    %v3036 = vpack.c.b16 %v2346, %v2340
    %v3037 = vpack.c.b16 %v2347, %v2341
    %v3038 = vpack.c.b16 %v2354, %v2348
    %v3039 = vpack.c.b16 %v2355, %v2349
    %v3040 = vpack.c.b16 %v2356, %v2350
    %v3041 = vpack.c.b16 %v2357, %v2351
    %v3042 = vpack.c.b16 %v2358, %v2352
    %v3043 = vpack.c.b16 %v2359, %v2353
    %v3044 = vpack.c.b16 %v2366, %v2360
    %v3045 = vpack.c.b16 %v2367, %v2361
    %v3046 = vpack.c.b16 %v2368, %v2362
    %v3047 = vpack.c.b16 %v2369, %v2363
    %v3048 = vpack.c.b16 %v2370, %v2364
    %v3049 = vpack.c.b16 %v2371, %v2365
    %v3050 = vpack.c.b16 %v2378, %v2372
    %v3051 = vpack.c.b16 %v2379, %v2373
    %v3052 = vpack.c.b16 %v2380, %v2374
    %v3053 = vpack.c.b16 %v2381, %v2375
    %v3054 = vpack.c.b16 %v2382, %v2376
    %v3055 = vpack.c.b16 %v2383, %v2377
    %v3056 = vpack.c.b16 %v2390, %v2384
    %v3057 = vpack.c.b16 %v2391, %v2385
    %v3058 = vpack.c.b16 %v2392, %v2386
    %v3059 = vpack.c.b16 %v2393, %v2387
    %v3060 = vpack.c.b16 %v2394, %v2388
    %v3061 = vpack.c.b16 %v2395, %v2389
    %v3062 = vpack.c.b16 %v2402, %v2396
    %v3063 = vpack.c.b16 %v2403, %v2397
    %v3064 = vpack.c.b16 %v2404, %v2398
    %v3065 = vpack.c.b16 %v2405, %v2399
    %v3066 = vpack.c.b16 %v2406, %v2400
    %v3067 = vpack.c.b16 %v2407, %v2401
    %v3068 = vpack.c.b16 %v2414, %v2408
    %v3069 = vpack.c.b16 %v2415, %v2409
    %v3070 = vpack.c.b16 %v2416, %v2410
    %v3071 = vpack.c.b16 %v2417, %v2411
    %v3072 = vpack.c.b16 %v2418, %v2412
    %v3073 = vpack.c.b16 %v2419, %v2413
    %v3074 = vpack.c.b16 %v2426, %v2420
    %v3075 = vpack.c.b16 %v2427, %v2421
    %v3076 = vpack.c.b16 %v2428, %v2422
    %v3077 = vpack.c.b16 %v2429, %v2423
    %v3078 = vpack.c.b16 %v2430, %v2424
    %v3079 = vpack.c.b16 %v2431, %v2425
    %v3080 = vpack.c.b16 %v2438, %v2432
    %v3081 = vpack.c.b16 %v2439, %v2433
    %v3082 = vpack.c.b16 %v2440, %v2434
    %v3083 = vpack.c.b16 %v2441, %v2435
    %v3084 = vpack.c.b16 %v2442, %v2436
    %v3085 = vpack.c.b16 %v2443, %v2437
    %v3086 = vpack.c.b16 %v2450, %v2444
    %v3087 = vpack.c.b16 %v2451, %v2445
    %v3088 = vpack.c.b16 %v2452, %v2446
    %v3089 = vpack.c.b16 %v2453, %v2447
    %v3090 = vpack.c.b16 %v2454, %v2448
    %v3091 = vpack.c.b16 %v2455, %v2449
    %v3092 = vpack.c.b16 %v2462, %v2456
    %v3093 = vpack.c.b16 %v2463, %v2457
    %v3094 = vpack.c.b16 %v2464, %v2458
    %v3095 = vpack.c.b16 %v2465, %v2459
    %v3096 = vpack.c.b16 %v2466, %v2460
    %v3097 = vpack.c.b16 %v2467, %v2461
    %v3098 = vpack.c.b16 %v2474, %v2468
    %v3099 = vpack.c.b16 %v2475, %v2469
    %v3100 = vpack.c.b16 %v2476, %v2470
    %v3101 = vpack.c.b16 %v2477, %v2471
    %v3102 = vpack.c.b16 %v2478, %v2472
    %v3103 = vpack.c.b16 %v2479, %v2473
    %v3104 = vpack.c.b16 %v2486, %v2480
    %v3105 = vpack.c.b16 %v2487, %v2481
    %v3106 = vpack.c.b16 %v2488, %v2482
    %v3107 = vpack.c.b16 %v2489, %v2483
    %v3108 = vpack.c.b16 %v2490, %v2484
    %v3109 = vpack.c.b16 %v2491, %v2485
    %v3110 = vpack.c.b16 %v2498, %v2492
    %v3111 = vpack.c.b16 %v2499, %v2493
    %v3112 = vpack.c.b16 %v2500, %v2494
    %v3113 = vpack.c.b16 %v2501, %v2495
    %v3114 = vpack.c.b16 %v2502, %v2496
    %v3115 = vpack.c.b16 %v2503, %v2497
    %v3116 = vpack.c.b16 %v2510, %v2504
    %v3117 = vpack.c.b16 %v2511, %v2505
    %v3118 = vpack.c.b16 %v2512, %v2506
    %v3119 = vpack.c.b16 %v2513, %v2507
    %v3120 = vpack.c.b16 %v2514, %v2508
    %v3121 = vpack.c.b16 %v2515, %v2509
    %v3122 = vpack.c.b16 %v2522, %v2516
    %v3123 = vpack.c.b16 %v2523, %v2517
    %v3124 = vpack.c.b16 %v2524, %v2518
    %v3125 = vpack.c.b16 %v2525, %v2519
    %v3126 = vpack.c.b16 %v2526, %v2520
    %v3127 = vpack.c.b16 %v2527, %v2521
    %v3128 = vpack.c.b16 %v2534, %v2528
    %v3129 = vpack.c.b16 %v2535, %v2529
    %v3130 = vpack.c.b16 %v2536, %v2530
    %v3131 = vpack.c.b16 %v2537, %v2531
    %v3132 = vpack.c.b16 %v2538, %v2532
    %v3133 = vpack.c.b16 %v2539, %v2533
    %v3134 = vpack.c.b16 %v2546, %v2540
    %v3135 = vpack.c.b16 %v2547, %v2541
    %v3136 = vpack.c.b16 %v2548, %v2542
    %v3137 = vpack.c.b16 %v2549, %v2543
    %v3138 = vpack.c.b16 %v2550, %v2544
    %v3139 = vpack.c.b16 %v2551, %v2545
    %v3140 = vpack.c.b16 %v2558, %v2552
    %v3141 = vpack.c.b16 %v2559, %v2553
    %v3142 = vpack.c.b16 %v2560, %v2554
    %v3143 = vpack.c.b16 %v2561, %v2555
    %v3144 = vpack.c.b16 %v2562, %v2556
    %v3145 = vpack.c.b16 %v2563, %v2557
    %v3146 = vpack.c.b16 %v2570, %v2564
    %v3147 = vpack.c.b16 %v2571, %v2565
    %v3148 = vpack.c.b16 %v2572, %v2566
    %v3149 = vpack.c.b16 %v2573, %v2567
    %v3150 = vpack.c.b16 %v2574, %v2568
    %v3151 = vpack.c.b16 %v2575, %v2569
    %v3152 = vpack.c.b16 %v2582, %v2576
    %v3153 = vpack.c.b16 %v2583, %v2577
    %v3154 = vpack.c.b16 %v2584, %v2578
    %v3155 = vpack.c.b16 %v2585, %v2579
    %v3156 = vpack.c.b16 %v2586, %v2580
    %v3157 = vpack.c.b16 %v2587, %v2581
    %v3158 = vpack.c.b16 %v2594, %v2588
    %v3159 = vpack.c.b16 %v2595, %v2589
    %v3160 = vpack.c.b16 %v2596, %v2590
    %v3161 = vpack.c.b16 %v2597, %v2591
    %v3162 = vpack.c.b16 %v2598, %v2592
    %v3163 = vpack.c.b16 %v2599, %v2593
    %v3164 = vpack.c.b16 %v2606, %v2600
    %v3165 = vpack.c.b16 %v2607, %v2601
    %v3166 = vpack.c.b16 %v2608, %v2602
    %v3167 = vpack.c.b16 %v2609, %v2603
    %v3168 = vpack.c.b16 %v2610, %v2604
    %v3169 = vpack.c.b16 %v2611, %v2605
    %v3170 = vpack.c.b16 %v2618, %v2612
    %v3171 = vpack.c.b16 %v2619, %v2613
    %v3172 = vpack.c.b16 %v2620, %v2614
    %v3173 = vpack.c.b16 %v2621, %v2615
    %v3174 = vpack.c.b16 %v2622, %v2616
    %v3175 = vpack.c.b16 %v2623, %v2617
    %v3176 = vpack.c.b16 %v2630, %v2624
    %v3177 = vpack.c.b16 %v2631, %v2625
    %v3178 = vpack.c.b16 %v2632, %v2626
    %v3179 = vpack.c.b16 %v2633, %v2627
    %v3180 = vpack.c.b16 %v2634, %v2628
    %v3181 = vpack.c.b16 %v2635, %v2629
    %v3182 = vpack.c.b16 %v2642, %v2636
    %v3183 = vpack.c.b16 %v2643, %v2637
    %v3184 = vpack.c.b16 %v2644, %v2638
    %v3185 = vpack.c.b16 %v2645, %v2639
    %v3186 = vpack.c.b16 %v2646, %v2640
    %v3187 = vpack.c.b16 %v2647, %v2641
    %v3188 = vpack.c.b16 %v2654, %v2648
    %v3189 = vpack.c.b16 %v2655, %v2649
    %v3190 = vpack.c.b16 %v2656, %v2650
    %v3191 = vpack.c.b16 %v2657, %v2651
    %v3192 = vpack.c.b16 %v2658, %v2652
    %v3193 = vpack.c.b16 %v2659, %v2653
    %v3194 = vpack.c.b16 %v2666, %v2660
    %v3195 = vpack.c.b16 %v2667, %v2661
    %v3196 = vpack.c.b16 %v2668, %v2662
    %v3197 = vpack.c.b16 %v2669, %v2663
    %v3198 = vpack.c.b16 %v2670, %v2664
    %v3199 = vpack.c.b16 %v2671, %v2665
    %v3200 = vpack.c.b16 %v2678, %v2672
    %v3201 = vpack.c.b16 %v2679, %v2673
    %v3202 = vpack.c.b16 %v2680, %v2674
    %v3203 = vpack.c.b16 %v2681, %v2675
    %v3204 = vpack.c.b16 %v2682, %v2676
    %v3205 = vpack.c.b16 %v2683, %v2677
    %v3206 = vpack.c.b16 %v2690, %v2684
    %v3207 = vpack.c.b16 %v2691, %v2685
    %v3208 = vpack.c.b16 %v2692, %v2686
    %v3209 = vpack.c.b16 %v2693, %v2687
    %v3210 = vpack.c.b16 %v2694, %v2688
    %v3211 = vpack.c.b16 %v2695, %v2689
    %v3212 = vpack.c.b16 %v2702, %v2696
    %v3213 = vpack.c.b16 %v2703, %v2697
    %v3214 = vpack.c.b16 %v2704, %v2698
    %v3215 = vpack.c.b16 %v2705, %v2699
    %v3216 = vpack.c.b16 %v2706, %v2700
    %v3217 = vpack.c.b16 %v2707, %v2701
    %v3218 = vpack.c.b16 %v2714, %v2708
    %v3219 = vpack.c.b16 %v2715, %v2709
    %v3220 = vpack.c.b16 %v2716, %v2710
    %v3221 = vpack.c.b16 %v2717, %v2711
    %v3222 = vpack.c.b16 %v2718, %v2712
    %v3223 = vpack.c.b16 %v2719, %v2713
    %v3224 = vpack.c.b16 %v2726, %v2720
    %v3225 = vpack.c.b16 %v2727, %v2721
    %v3226 = vpack.c.b16 %v2728, %v2722
    %v3227 = vpack.c.b16 %v2729, %v2723
    %v3228 = vpack.c.b16 %v2730, %v2724
    %v3229 = vpack.c.b16 %v2731, %v2725
    %v3230 = vpack.c.b16 %v2738, %v2732
    %v3231 = vpack.c.b16 %v2739, %v2733
    %v3232 = vpack.c.b16 %v2740, %v2734
    %v3233 = vpack.c.b16 %v2741, %v2735
    %v3234 = vpack.c.b16 %v2742, %v2736
    %v3235 = vpack.c.b16 %v2743, %v2737
    %v3236 = vpack.c.b16 %v2750, %v2744
    %v3237 = vpack.c.b16 %v2751, %v2745
    %v3238 = vpack.c.b16 %v2752, %v2746
    %v3239 = vpack.c.b16 %v2753, %v2747
    %v3240 = vpack.c.b16 %v2754, %v2748
    %v3241 = vpack.c.b16 %v2755, %v2749
    %v3242 = vpack.c.b16 %v2762, %v2756
    %v3243 = vpack.c.b16 %v2763, %v2757
    %v3244 = vpack.c.b16 %v2764, %v2758
    %v3245 = vpack.c.b16 %v2765, %v2759
    %v3246 = vpack.c.b16 %v2766, %v2760
    %v3247 = vpack.c.b16 %v2767, %v2761
    %v3248 = vpack.c.b16 %v2774, %v2768
    %v3249 = vpack.c.b16 %v2775, %v2769
    %v3250 = vpack.c.b16 %v2776, %v2770
    %v3251 = vpack.c.b16 %v2777, %v2771
    %v3252 = vpack.c.b16 %v2778, %v2772
    %v3253 = vpack.c.b16 %v2779, %v2773
    %v3254 = vpack.c.b16 %v2786, %v2780
    %v3255 = vpack.c.b16 %v2787, %v2781
    %v3256 = vpack.c.b16 %v2788, %v2782
    %v3257 = vpack.c.b16 %v2789, %v2783
    %v3258 = vpack.c.b16 %v2790, %v2784
    %v3259 = vpack.c.b16 %v2791, %v2785
    %v3260 = vpack.c.b16 %v2798, %v2792
    %v3261 = vpack.c.b16 %v2799, %v2793
    %v3262 = vpack.c.b16 %v2800, %v2794
    %v3263 = vpack.c.b16 %v2801, %v2795
    %v3264 = vpack.c.b16 %v2802, %v2796
    %v3265 = vpack.c.b16 %v2803, %v2797
    %v3266 = vpack.c.b16 %v2810, %v2804
    %v3267 = vpack.c.b16 %v2811, %v2805
    %v3268 = vpack.c.b16 %v2812, %v2806
    %v3269 = vpack.c.b16 %v2813, %v2807
    %v3270 = vpack.c.b16 %v2814, %v2808
    %v3271 = vpack.c.b16 %v2815, %v2809
    %v3272 = vpack.c.b16 %v2822, %v2816
    %v3273 = vpack.c.b16 %v2823, %v2817
    %v3274 = vpack.c.b16 %v2824, %v2818
    %v3275 = vpack.c.b16 %v2825, %v2819
    %v3276 = vpack.c.b16 %v2826, %v2820
    %v3277 = vpack.c.b16 %v2827, %v2821
    %v3278 = vpack.c.b16 %v2834, %v2828
    %v3279 = vpack.c.b16 %v2835, %v2829
    %v3280 = vpack.c.b16 %v2836, %v2830
    %v3281 = vpack.c.b16 %v2837, %v2831
    %v3282 = vpack.c.b16 %v2838, %v2832
    %v3283 = vpack.c.b16 %v2839, %v2833
    %v3284 = vpack.c.b16 %v2846, %v2840
    %v3285 = vpack.c.b16 %v2847, %v2841
    %v3286 = vpack.c.b16 %v2848, %v2842
    %v3287 = vpack.c.b16 %v2849, %v2843
    %v3288 = vpack.c.b16 %v2850, %v2844
    %v3289 = vpack.c.b16 %v2851, %v2845
    %v3290 = vpack.c.b16 %v2858, %v2852
    %v3291 = vpack.c.b16 %v2859, %v2853
    %v3292 = vpack.c.b16 %v2860, %v2854
    %v3293 = vpack.c.b16 %v2861, %v2855
    %v3294 = vpack.c.b16 %v2862, %v2856
    %v3295 = vpack.c.b16 %v2863, %v2857
    %3728 = vmatprep.subr.bf16.mxu0 %v2865
    %3729 = vmatpush1.bf16.msra.mxu0 %v2864
    %3730 = vmatprep.subr.bf16.mxu0 %v2871
    %3731 = vmatpush1.bf16.msra.mxu0 %v2870
    %3732 = vmatprep.subr.bf16.mxu0 %v2877
    %3733 = vmatpush1.bf16.msra.mxu0 %v2876
    %3734 = vmatprep.subr.bf16.mxu0 %v2883
    %3735 = vmatpush1.bf16.msra.mxu0 %v2882
    %3736 = vmatprep.subr.bf16.mxu0 %v2889
    %3737 = vmatpush1.bf16.msra.mxu0 %v2888
    %3738 = vmatprep.subr.bf16.mxu0 %v2895
    %3739 = vmatpush1.bf16.msra.mxu0 %v2894
    %3740 = vmatprep.subr.bf16.mxu0 %v2901
    %3741 = vmatpush1.bf16.msra.mxu0 %v2900
    %3742 = vmatprep.subr.bf16.mxu0 %v2907
    %3743 = vmatpush1.bf16.msra.mxu0 %v2906
    %3744 = vmatprep.subr.bf16.mxu0 %v2913
    %3745 = vmatpush1.bf16.msra.mxu0 %v2912
    %3746 = vmatprep.subr.bf16.mxu0 %v2919
    %3747 = vmatpush1.bf16.msra.mxu0 %v2918
    %3748 = vmatprep.subr.bf16.mxu0 %v2925
    %3749 = vmatpush1.bf16.msra.mxu0 %v2924
    %3750 = vmatprep.subr.bf16.mxu0 %v2931
    %3751 = vmatpush1.bf16.msra.mxu0 %v2930
    %3752 = vmatprep.subr.bf16.mxu0 %v2937
    %3753 = vmatpush1.bf16.msra.mxu0 %v2936
    %3754 = vmatprep.subr.bf16.mxu0 %v2943
    %3755 = vmatpush1.bf16.msra.mxu0 %v2942
    %3756 = vmatprep.subr.bf16.mxu0 %v2949
    %3757 = vmatpush1.bf16.msra.mxu0 %v2948
    %3758 = vmatprep.subr.bf16.mxu0 %v2955
    %3759 = vmatpush1.bf16.msra.mxu0 %v2954
    %3760 = vmatprep.mubr.bf16.mxu0 %v1060
    %3761 = vmatmul.mubr.bf16.gmra.mrb[0].mxu0 %v1057
    %v3762 = vpop.f32.mrb[0].mxu0
    %v3763 = vadd.f32 %v1541, %v3762
    %v3764 = vpop.f32.mrb[0].mxu0
    %v3765 = vadd.f32 %v1545, %v3764
    %v3766 = vpop.f32.mrb[0].mxu0
    %v3767 = vadd.f32 %v1541, %v3766
    %v3768 = vpop.f32.mrb[0].mxu0
    %v3769 = vadd.f32 %v1545, %v3768
    %3770 = vmatprep.mubr.bf16.mxu0 %v1032
    %3771 = vmatmul.mubr.bf16.gmra.mrb[0].mxu0 %v1030
    %v3772 = vpop.f32.mrb[0].mxu0
    %v3773 = vadd.f32 %v1541, %v3772
    %v3774 = vpop.f32.mrb[0].mxu0
    %v3775 = vadd.f32 %v1545, %v3774
    %v3776 = vpop.f32.mrb[0].mxu0
    %v3777 = vadd.f32 %v1541, %v3776
    %v3778 = vpop.f32.mrb[0].mxu0
    %v3779 = vadd.f32 %v1545, %v3778
    %3780 = vmatprep.mubr.bf16.mxu0 %v1038
    %3781 = vmatmul.mubr.bf16.gmra.mrb[0].mxu0 %v1036
    %v3782 = vpop.f32.mrb[0].mxu0
    %v3783 = vadd.f32 %v1541, %v3782
    %v3784 = vpop.f32.mrb[0].mxu0
    %v3785 = vadd.f32 %v1545, %v3784
    %v3786 = vpop.f32.mrb[0].mxu0
    %v3787 = vadd.f32 %v1541, %v3786
    %v3788 = vpop.f32.mrb[0].mxu0
    %v3789 = vadd.f32 %v1545, %v3788
    %3790 = vmatprep.mubr.bf16.mxu0 %v1044
    %3791 = vmatmul.mubr.bf16.gmra.mrb[0].mxu0 %v1042
    %v3792 = vpop.f32.mrb[0].mxu0
    %v3793 = vadd.f32 %v1541, %v3792
    %v3794 = vpop.f32.mrb[0].mxu0
    %v3795 = vadd.f32 %v1545, %v3794
    %v3796 = vpop.f32.mrb[0].mxu0
    %v3797 = vpop.f32.mrb[0].mxu0
    %3798 = vdwg.mxu0
    %3799 = vmatprep.subr.bf16.mxu0 %v2961
    %3800 = vmatpush1.bf16.msra.mxu0 %v2960
    %3801 = vmatprep.subr.bf16.mxu0 %v2967
    %3802 = vmatpush1.bf16.msra.mxu0 %v2966
    %3803 = vmatprep.subr.bf16.mxu0 %v2973
    %3804 = vmatpush1.bf16.msra.mxu0 %v2972
    %3805 = vmatprep.subr.bf16.mxu0 %v2979
    %3806 = vmatpush1.bf16.msra.mxu0 %v2978
    %3807 = vmatprep.subr.bf16.mxu0 %v2985
    %3808 = vmatpush1.bf16.msra.mxu0 %v2984
    %3809 = vmatprep.subr.bf16.mxu0 %v2991
    %3810 = vmatpush1.bf16.msra.mxu0 %v2990
    %3811 = vmatprep.subr.bf16.mxu0 %v2997
    %3812 = vmatpush1.bf16.msra.mxu0 %v2996
    %3813 = vmatprep.subr.bf16.mxu0 %v3003
    %3814 = vmatpush1.bf16.msra.mxu0 %v3002
    %3815 = vmatprep.subr.bf16.mxu0 %v3009
    %3816 = vmatpush1.bf16.msra.mxu0 %v3008
    %3817 = vmatprep.subr.bf16.mxu0 %v3015
    %3818 = vmatpush1.bf16.msra.mxu0 %v3014
    %3819 = vmatprep.subr.bf16.mxu0 %v3021
    %3820 = vmatpush1.bf16.msra.mxu0 %v3020
    %3821 = vmatprep.subr.bf16.mxu0 %v3027
    %3822 = vmatpush1.bf16.msra.mxu0 %v3026
    %3823 = vmatprep.subr.bf16.mxu0 %v3033
    %3824 = vmatpush1.bf16.msra.mxu0 %v3032
    %3825 = vmatprep.subr.bf16.mxu0 %v3039
    %3826 = vmatpush1.bf16.msra.mxu0 %v3038
    %3827 = vmatprep.subr.bf16.mxu0 %v3045
    %3828 = vmatpush1.bf16.msra.mxu0 %v3044
    %3829 = vmatprep.subr.bf16.mxu0 %v3051
    %3830 = vmatpush1.bf16.msra.mxu0 %v3050
    %3831 = vmatprep.mubr.bf16.mxu0 %v1002
    %3832 = vmatmul.mubr.bf16.gmra.mrb[0].mxu0 %v1063
    %v3833 = vpop.f32.mrb[0].mxu0
    %v3834 = vadd.f32 %v3763, %v3833
    %v3835 = vpop.f32.mrb[0].mxu0
    %v3836 = vadd.f32 %v3765, %v3835
    %v3837 = vpop.f32.mrb[0].mxu0
    %v3838 = vadd.f32 %v3767, %v3837
    %v3839 = vpop.f32.mrb[0].mxu0
    %v3840 = vadd.f32 %v3769, %v3839
    %3841 = vmatprep.mubr.bf16.mxu0 %v1005
    %3842 = vmatmul.mubr.bf16.gmra.mrb[0].mxu0 %v1034
    %v3843 = vpop.f32.mrb[0].mxu0
    %v3844 = vadd.f32 %v3773, %v3843
    %v3845 = vpop.f32.mrb[0].mxu0
    %v3846 = vadd.f32 %v3775, %v3845
    %v3847 = vpop.f32.mrb[0].mxu0
    %v3848 = vadd.f32 %v3777, %v3847
    %v3849 = vpop.f32.mrb[0].mxu0
    %v3850 = vadd.f32 %v3779, %v3849
    %3851 = vmatprep.mubr.bf16.mxu0 %v1008
    %3852 = vmatmul.mubr.bf16.gmra.mrb[0].mxu0 %v1040
    %v3853 = vpop.f32.mrb[0].mxu0
    %v3854 = vadd.f32 %v3783, %v3853
    %v3855 = vpop.f32.mrb[0].mxu0
    %v3856 = vadd.f32 %v3785, %v3855
    %v3857 = vpop.f32.mrb[0].mxu0
    %v3858 = vadd.f32 %v3787, %v3857
    %v3859 = vpop.f32.mrb[0].mxu0
    %v3860 = vadd.f32 %v3789, %v3859
    %3861 = vmatprep.mubr.bf16.mxu0 %v1011
    %3862 = vmatmul.mubr.bf16.gmra.mrb[0].mxu0 %v1046
    %v3863 = vpop.f32.mrb[0].mxu0
    %v3864 = vadd.f32 %v3793, %v3863
    %v3865 = vpop.f32.mrb[0].mxu0
    %v3866 = vadd.f32 %v3795, %v3865
    %v3867 = vpop.f32.mrb[0].mxu0
    %v3868 = vpop.f32.mrb[0].mxu0
    %3869 = vdwg.mxu0
    %3870 = vmatprep.subr.bf16.mxu0 %v3057
    %3871 = vmatpush1.bf16.msra.mxu0 %v3056
    %3872 = vmatprep.subr.bf16.mxu0 %v3063
    %3873 = vmatpush1.bf16.msra.mxu0 %v3062
    %3874 = vmatprep.subr.bf16.mxu0 %v3069
    %3875 = vmatpush1.bf16.msra.mxu0 %v3068
    %3876 = vmatprep.subr.bf16.mxu0 %v3075
    %3877 = vmatpush1.bf16.msra.mxu0 %v3074
    %3878 = vmatprep.subr.bf16.mxu0 %v3081
    %3879 = vmatpush1.bf16.msra.mxu0 %v3080
    %3880 = vmatprep.subr.bf16.mxu0 %v3087
    %3881 = vmatpush1.bf16.msra.mxu0 %v3086
    %3882 = vmatprep.subr.bf16.mxu0 %v3093
    %3883 = vmatpush1.bf16.msra.mxu0 %v3092
    %3884 = vmatprep.subr.bf16.mxu0 %v3099
    %3885 = vmatpush1.bf16.msra.mxu0 %v3098
    %3886 = vmatprep.subr.bf16.mxu0 %v3105
    %3887 = vmatpush1.bf16.msra.mxu0 %v3104
    %3888 = vmatprep.subr.bf16.mxu0 %v3111
    %3889 = vmatpush1.bf16.msra.mxu0 %v3110
    %3890 = vmatprep.subr.bf16.mxu0 %v3117
    %3891 = vmatpush1.bf16.msra.mxu0 %v3116
    %3892 = vmatprep.subr.bf16.mxu0 %v3123
    %3893 = vmatpush1.bf16.msra.mxu0 %v3122
    %3894 = vmatprep.subr.bf16.mxu0 %v3129
    %3895 = vmatpush1.bf16.msra.mxu0 %v3128
    %3896 = vmatprep.subr.bf16.mxu0 %v3135
    %3897 = vmatpush1.bf16.msra.mxu0 %v3134
    %3898 = vmatprep.subr.bf16.mxu0 %v3141
    %3899 = vmatpush1.bf16.msra.mxu0 %v3140
    %3900 = vmatprep.subr.bf16.mxu0 %v3147
    %3901 = vmatpush1.bf16.msra.mxu0 %v3146
    %3902 = vmatprep.mubr.bf16.mxu0 %v1004
    %3903 = vmatmul.mubr.bf16.gmra.mrb[0].mxu0 %v1003
    %v3904 = vpop.f32.mrb[0].mxu0
    %v3905 = vadd.f32 %v3834, %v3904
    %v3906 = vpop.f32.mrb[0].mxu0
    %v3907 = vadd.f32 %v3836, %v3906
    %v3908 = vpop.f32.mrb[0].mxu0
    %v3909 = vadd.f32 %v3838, %v3908
    %v3910 = vpop.f32.mrb[0].mxu0
    %v3911 = vadd.f32 %v3840, %v3910
    %3912 = vmatprep.mubr.bf16.mxu0 %v1007
    %3913 = vmatmul.mubr.bf16.gmra.mrb[0].mxu0 %v1006
    %v3914 = vpop.f32.mrb[0].mxu0
    %v3915 = vadd.f32 %v3844, %v3914
    %v3916 = vpop.f32.mrb[0].mxu0
    %v3917 = vadd.f32 %v3846, %v3916
    %v3918 = vpop.f32.mrb[0].mxu0
    %v3919 = vadd.f32 %v3848, %v3918
    %v3920 = vpop.f32.mrb[0].mxu0
    %v3921 = vadd.f32 %v3850, %v3920
    %3922 = vmatprep.mubr.bf16.mxu0 %v1010
    %3923 = vmatmul.mubr.bf16.gmra.mrb[0].mxu0 %v1009
    %v3924 = vpop.f32.mrb[0].mxu0
    %v3925 = vadd.f32 %v3854, %v3924
    %v3926 = vpop.f32.mrb[0].mxu0
    %v3927 = vadd.f32 %v3856, %v3926
    %v3928 = vpop.f32.mrb[0].mxu0
    %v3929 = vadd.f32 %v3858, %v3928
    %v3930 = vpop.f32.mrb[0].mxu0
    %v3931 = vadd.f32 %v3860, %v3930
    %3932 = vmatprep.mubr.bf16.mxu0 %v1013
    %3933 = vmatmul.mubr.bf16.gmra.mrb[0].mxu0 %v1012
    %v3934 = vpop.f32.mrb[0].mxu0
    %v3935 = vadd.f32 %v3864, %v3934
    %v3936 = vpop.f32.mrb[0].mxu0
    %v3937 = vadd.f32 %v3866, %v3936
    %v3938 = vpop.f32.mrb[0].mxu0
    %v3939 = vpop.f32.mrb[0].mxu0
    %3940 = vdwg.mxu0
    %3941 = vmatprep.subr.bf16.mxu0 %v3153
    %3942 = vmatpush1.bf16.msra.mxu0 %v3152
    %3943 = vmatprep.subr.bf16.mxu0 %v3159
    %3944 = vmatpush1.bf16.msra.mxu0 %v3158
    %3945 = vmatprep.subr.bf16.mxu0 %v3165
    %3946 = vmatpush1.bf16.msra.mxu0 %v3164
    %3947 = vmatprep.subr.bf16.mxu0 %v3171
    %3948 = vmatpush1.bf16.msra.mxu0 %v3170
    %3949 = vmatprep.subr.bf16.mxu0 %v3177
    %3950 = vmatpush1.bf16.msra.mxu0 %v3176
    %3951 = vmatprep.subr.bf16.mxu0 %v3183
    %3952 = vmatpush1.bf16.msra.mxu0 %v3182
    %3953 = vmatprep.subr.bf16.mxu0 %v3189
    %3954 = vmatpush1.bf16.msra.mxu0 %v3188
    %3955 = vmatprep.subr.bf16.mxu0 %v3195
    %3956 = vmatpush1.bf16.msra.mxu0 %v3194
    %3957 = vmatprep.subr.bf16.mxu0 %v3201
    %3958 = vmatpush1.bf16.msra.mxu0 %v3200
    %3959 = vmatprep.subr.bf16.mxu0 %v3207
    %3960 = vmatpush1.bf16.msra.mxu0 %v3206
    %3961 = vmatprep.subr.bf16.mxu0 %v3213
    %3962 = vmatpush1.bf16.msra.mxu0 %v3212
    %3963 = vmatprep.subr.bf16.mxu0 %v3219
    %3964 = vmatpush1.bf16.msra.mxu0 %v3218
    %3965 = vmatprep.subr.bf16.mxu0 %v3225
    %3966 = vmatpush1.bf16.msra.mxu0 %v3224
    %3967 = vmatprep.subr.bf16.mxu0 %v3231
    %3968 = vmatpush1.bf16.msra.mxu0 %v3230
    %3969 = vmatprep.subr.bf16.mxu0 %v3237
    %3970 = vmatpush1.bf16.msra.mxu0 %v3236
    %3971 = vmatprep.subr.bf16.mxu0 %v3243
    %3972 = vmatpush1.bf16.msra.mxu0 %v3242
    %3973 = vmatprep.mubr.bf16.mxu0 %v1070
    %3974 = vmatmul.mubr.bf16.gmra.mrb[0].mxu0 %v1067
    %v3975 = vpop.f32.mrb[0].mxu0
    %v3976 = vadd.f32 %v3905, %v3975
    %v3977 = vpop.f32.mrb[0].mxu0
    %v3978 = vadd.f32 %v3907, %v3977
    %v3979 = vpop.f32.mrb[0].mxu0
    %v3980 = vadd.f32 %v3909, %v3979
    %v3981 = vpop.f32.mrb[0].mxu0
    %v3982 = vadd.f32 %v3911, %v3981
    %3983 = vmatprep.mubr.bf16.mxu0 %v1077
    %3984 = vmatmul.mubr.bf16.gmra.mrb[0].mxu0 %v1075
    %v3985 = vpop.f32.mrb[0].mxu0
    %v3986 = vadd.f32 %v3915, %v3985
    %v3987 = vpop.f32.mrb[0].mxu0
    %v3988 = vadd.f32 %v3917, %v3987
    %v3989 = vpop.f32.mrb[0].mxu0
    %v3990 = vadd.f32 %v3919, %v3989
    %v3991 = vpop.f32.mrb[0].mxu0
    %v3992 = vadd.f32 %v3921, %v3991
    %3993 = vmatprep.mubr.bf16.mxu0 %v1083
    %3994 = vmatmul.mubr.bf16.gmra.mrb[0].mxu0 %v1081
    %v3995 = vpop.f32.mrb[0].mxu0
    %v3996 = vadd.f32 %v3925, %v3995
    %v3997 = vpop.f32.mrb[0].mxu0
    %v3998 = vadd.f32 %v3927, %v3997
    %v3999 = vpop.f32.mrb[0].mxu0
    %v4000 = vadd.f32 %v3929, %v3999
    %v4001 = vpop.f32.mrb[0].mxu0
    %v4002 = vadd.f32 %v3931, %v4001
    %4003 = vmatprep.mubr.bf16.mxu0 %v1099
    %4004 = vmatmul.mubr.bf16.gmra.mrb[0].mxu0 %v1096
    %v4005 = vpop.f32.mrb[0].mxu0
    %v4006 = vadd.f32 %v3935, %v4005
    %v4007 = vpop.f32.mrb[0].mxu0
    %v4008 = vadd.f32 %v3937, %v4007
    %v4009 = vpop.f32.mrb[0].mxu0
    %v4010 = vpop.f32.mrb[0].mxu0
    %4011 = vdwg.mxu0
    %4012 = vmatprep.subr.bf16.mxu0 %v3249
    %4013 = vmatpush1.bf16.msra.mxu0 %v3248
    %4014 = vmatprep.subr.bf16.mxu0 %v3255
    %4015 = vmatpush1.bf16.msra.mxu0 %v3254
    %4016 = vmatprep.subr.bf16.mxu0 %v3261
    %4017 = vmatpush1.bf16.msra.mxu0 %v3260
    %4018 = vmatprep.subr.bf16.mxu0 %v3267
    %4019 = vmatpush1.bf16.msra.mxu0 %v3266
    %4020 = vmatprep.subr.bf16.mxu0 %v3273
    %4021 = vmatpush1.bf16.msra.mxu0 %v3272
    %4022 = vmatprep.subr.bf16.mxu0 %v3279
    %4023 = vmatpush1.bf16.msra.mxu0 %v3278
    %4024 = vmatprep.subr.bf16.mxu0 %v3285
    %4025 = vmatpush1.bf16.msra.mxu0 %v3284
    %4026 = vmatprep.subr.bf16.mxu0 %v3291
    %4027 = vmatpush1.bf16.msra.mxu0 %v3290
    %4028 = vmatprep.subr.bf16.mxu0 0
    %4029 = vmatpush1.bf16.msra.mxu0 0
    %4030 = vmatprep.subr.bf16.mxu0 0
    %4031 = vmatpush1.bf16.msra.mxu0 0
    %4032 = vmatprep.subr.bf16.mxu0 0
    %4033 = vmatpush1.bf16.msra.mxu0 0
    %4034 = vmatprep.subr.bf16.mxu0 0
    %4035 = vmatpush1.bf16.msra.mxu0 0
    %4036 = vmatprep.subr.bf16.mxu0 0
    %4037 = vmatpush1.bf16.msra.mxu0 0
    %4038 = vmatprep.subr.bf16.mxu0 0
    %4039 = vmatpush1.bf16.msra.mxu0 0
    %4040 = vmatprep.subr.bf16.mxu0 0
    %4041 = vmatpush1.bf16.msra.mxu0 0
    %4042 = vmatprep.subr.bf16.mxu0 0
    %4043 = vmatpush1.bf16.msra.mxu0 0
    %4044 = vmatprep.mubr.bf16.mxu0 0
    %4045 = vmatmul.mubr.bf16.gmra.mrb[0].mxu0 %v1073
    %v4046 = vpop.f32.mrb[0].mxu0
    %v4047 = vadd.f32 %v3976, %v4046
    %v4048 = vpop.f32.mrb[0].mxu0
    %v4049 = vadd.f32 %v3978, %v4048
    %v4050 = vpop.f32.mrb[0].mxu0
    %v4051 = vadd.f32 %v3980, %v4050
    %v4052 = vpop.f32.mrb[0].mxu0
    %v4053 = vadd.f32 %v3982, %v4052
    %4054 = vmatprep.mubr.bf16.mxu0 0
    %4055 = vmatmul.mubr.bf16.gmra.mrb[0].mxu0 %v1079
    %v4056 = vpop.f32.mrb[0].mxu0
    %v4057 = vadd.f32 %v3986, %v4056
    %v4058 = vpop.f32.mrb[0].mxu0
    %v4059 = vadd.f32 %v3988, %v4058
    %v4060 = vpop.f32.mrb[0].mxu0
    %v4061 = vadd.f32 %v3990, %v4060
    %v4062 = vpop.f32.mrb[0].mxu0
    %v4063 = vadd.f32 %v3992, %v4062
    %4064 = vmatprep.mubr.bf16.mxu0 0
    %4065 = vmatmul.mubr.bf16.gmra.mrb[0].mxu0 %v1085
    %v4066 = vpop.f32.mrb[0].mxu0
    %v4067 = vadd.f32 %v3996, %v4066
    %v4068 = vpop.f32.mrb[0].mxu0
    %v4069 = vadd.f32 %v3998, %v4068
    %v4070 = vpop.f32.mrb[0].mxu0
    %v4071 = vadd.f32 %v4000, %v4070
    %v4072 = vpop.f32.mrb[0].mxu0
    %v4073 = vadd.f32 %v4002, %v4072
    %4074 = vmatprep.mubr.bf16.mxu0 0
    %4075 = vmatmul.mubr.bf16.gmra.mrb[0].mxu0 %v1102
    %v4076 = vpop.f32.mrb[0].mxu0
    %v4077 = vadd.f32 %v4006, %v4076
    %v4078 = vpop.f32.mrb[0].mxu0
    %v4079 = vadd.f32 %v4008, %v4078
    %v4080 = vpop.f32.mrb[0].mxu0
    %v4081 = vpop.f32.mrb[0].mxu0
    %4082 = vdwg.mxu0
    %4083 = vmatprep.subr.bf16.mxu0 %v2867
    %4084 = vmatpush1.bf16.msra.mxu0 %v2866
    %4085 = vmatprep.subr.bf16.mxu0 %v2873
    %4086 = vmatpush1.bf16.msra.mxu0 %v2872
    %4087 = vmatprep.subr.bf16.mxu0 %v2879
    %4088 = vmatpush1.bf16.msra.mxu0 %v2878
    %4089 = vmatprep.subr.bf16.mxu0 %v2885
    %4090 = vmatpush1.bf16.msra.mxu0 %v2884
    %4091 = vmatprep.subr.bf16.mxu0 %v2891
    %4092 = vmatpush1.bf16.msra.mxu0 %v2890
    %4093 = vmatprep.subr.bf16.mxu0 %v2897
    %4094 = vmatpush1.bf16.msra.mxu0 %v2896
    %4095 = vmatprep.subr.bf16.mxu0 %v2903
    %4096 = vmatpush1.bf16.msra.mxu0 %v2902
    %4097 = vmatprep.subr.bf16.mxu0 %v2909
    %4098 = vmatpush1.bf16.msra.mxu0 %v2908
    %4099 = vmatprep.subr.bf16.mxu0 %v2915
    %4100 = vmatpush1.bf16.msra.mxu0 %v2914
    %4101 = vmatprep.subr.bf16.mxu0 %v2921
    %4102 = vmatpush1.bf16.msra.mxu0 %v2920
    %4103 = vmatprep.subr.bf16.mxu0 %v2927
    %4104 = vmatpush1.bf16.msra.mxu0 %v2926
    %4105 = vmatprep.subr.bf16.mxu0 %v2933
    %4106 = vmatpush1.bf16.msra.mxu0 %v2932
    %4107 = vmatprep.subr.bf16.mxu0 %v2939
    %4108 = vmatpush1.bf16.msra.mxu0 %v2938
    %4109 = vmatprep.subr.bf16.mxu0 %v2945
    %4110 = vmatpush1.bf16.msra.mxu0 %v2944
    %4111 = vmatprep.subr.bf16.mxu0 %v2951
    %4112 = vmatpush1.bf16.msra.mxu0 %v2950
    %4113 = vmatprep.subr.bf16.mxu0 %v2957
    %4114 = vmatpush1.bf16.msra.mxu0 %v2956
    %4115 = vmatprep.mubr.bf16.mxu0 %v1060
    %4116 = vmatmul.mubr.bf16.gmra.mrb[0].mxu0 %v1057
    %v4117 = vpop.f32.mrb[0].mxu0
    %v4118 = vadd.f32 %v1549, %v4117
    %v4119 = vpop.f32.mrb[0].mxu0
    %v4120 = vadd.f32 %v1553, %v4119
    %v4121 = vpop.f32.mrb[0].mxu0
    %v4122 = vadd.f32 %v1549, %v4121
    %v4123 = vpop.f32.mrb[0].mxu0
    %v4124 = vadd.f32 %v1553, %v4123
    %4125 = vmatprep.mubr.bf16.mxu0 %v1032
    %4126 = vmatmul.mubr.bf16.gmra.mrb[0].mxu0 %v1030
    %v4127 = vpop.f32.mrb[0].mxu0
    %v4128 = vadd.f32 %v1549, %v4127
    %v4129 = vpop.f32.mrb[0].mxu0
    %v4130 = vadd.f32 %v1553, %v4129
    %v4131 = vpop.f32.mrb[0].mxu0
    %v4132 = vadd.f32 %v1549, %v4131
    %v4133 = vpop.f32.mrb[0].mxu0
    %v4134 = vadd.f32 %v1553, %v4133
    %4135 = vmatprep.mubr.bf16.mxu0 %v1038
    %4136 = vmatmul.mubr.bf16.gmra.mrb[0].mxu0 %v1036
    %v4137 = vpop.f32.mrb[0].mxu0
    %v4138 = vadd.f32 %v1549, %v4137
    %v4139 = vpop.f32.mrb[0].mxu0
    %v4140 = vadd.f32 %v1553, %v4139
    %v4141 = vpop.f32.mrb[0].mxu0
    %v4142 = vadd.f32 %v1549, %v4141
    %v4143 = vpop.f32.mrb[0].mxu0
    %v4144 = vadd.f32 %v1553, %v4143
    %4145 = vmatprep.mubr.bf16.mxu0 %v1044
    %4146 = vmatmul.mubr.bf16.gmra.mrb[0].mxu0 %v1042
    %v4147 = vpop.f32.mrb[0].mxu0
    %v4148 = vadd.f32 %v1549, %v4147
    %v4149 = vpop.f32.mrb[0].mxu0
    %v4150 = vadd.f32 %v1553, %v4149
    %v4151 = vpop.f32.mrb[0].mxu0
    %v4152 = vpop.f32.mrb[0].mxu0
    %4153 = vdwg.mxu0
    %4154 = vmatprep.subr.bf16.mxu0 %v2963
    %4155 = vmatpush1.bf16.msra.mxu0 %v2962
    %4156 = vmatprep.subr.bf16.mxu0 %v2969
    %4157 = vmatpush1.bf16.msra.mxu0 %v2968
    %4158 = vmatprep.subr.bf16.mxu0 %v2975
    %4159 = vmatpush1.bf16.msra.mxu0 %v2974
    %4160 = vmatprep.subr.bf16.mxu0 %v2981
    %4161 = vmatpush1.bf16.msra.mxu0 %v2980
    %4162 = vmatprep.subr.bf16.mxu0 %v2987
    %4163 = vmatpush1.bf16.msra.mxu0 %v2986
    %4164 = vmatprep.subr.bf16.mxu0 %v2993
    %4165 = vmatpush1.bf16.msra.mxu0 %v2992
    %4166 = vmatprep.subr.bf16.mxu0 %v2999
    %4167 = vmatpush1.bf16.msra.mxu0 %v2998
    %4168 = vmatprep.subr.bf16.mxu0 %v3005
    %4169 = vmatpush1.bf16.msra.mxu0 %v3004
    %4170 = vmatprep.subr.bf16.mxu0 %v3011
    %4171 = vmatpush1.bf16.msra.mxu0 %v3010
    %4172 = vmatprep.subr.bf16.mxu0 %v3017
    %4173 = vmatpush1.bf16.msra.mxu0 %v3016
    %4174 = vmatprep.subr.bf16.mxu0 %v3023
    %4175 = vmatpush1.bf16.msra.mxu0 %v3022
    %4176 = vmatprep.subr.bf16.mxu0 %v3029
    %4177 = vmatpush1.bf16.msra.mxu0 %v3028
    %4178 = vmatprep.subr.bf16.mxu0 %v3035
    %4179 = vmatpush1.bf16.msra.mxu0 %v3034
    %4180 = vmatprep.subr.bf16.mxu0 %v3041
    %4181 = vmatpush1.bf16.msra.mxu0 %v3040
    %4182 = vmatprep.subr.bf16.mxu0 %v3047
    %4183 = vmatpush1.bf16.msra.mxu0 %v3046
    %4184 = vmatprep.subr.bf16.mxu0 %v3053
    %4185 = vmatpush1.bf16.msra.mxu0 %v3052
    %4186 = vmatprep.mubr.bf16.mxu0 %v1002
    %4187 = vmatmul.mubr.bf16.gmra.mrb[0].mxu0 %v1063
    %v4188 = vpop.f32.mrb[0].mxu0
    %v4189 = vadd.f32 %v4118, %v4188
    %v4190 = vpop.f32.mrb[0].mxu0
    %v4191 = vadd.f32 %v4120, %v4190
    %v4192 = vpop.f32.mrb[0].mxu0
    %v4193 = vadd.f32 %v4122, %v4192
    %v4194 = vpop.f32.mrb[0].mxu0
    %v4195 = vadd.f32 %v4124, %v4194
    %4196 = vmatprep.mubr.bf16.mxu0 %v1005
    %4197 = vmatmul.mubr.bf16.gmra.mrb[0].mxu0 %v1034
    %v4198 = vpop.f32.mrb[0].mxu0
    %v4199 = vadd.f32 %v4128, %v4198
    %v4200 = vpop.f32.mrb[0].mxu0
    %v4201 = vadd.f32 %v4130, %v4200
    %v4202 = vpop.f32.mrb[0].mxu0
    %v4203 = vadd.f32 %v4132, %v4202
    %v4204 = vpop.f32.mrb[0].mxu0
    %v4205 = vadd.f32 %v4134, %v4204
    %4206 = vmatprep.mubr.bf16.mxu0 %v1008
    %4207 = vmatmul.mubr.bf16.gmra.mrb[0].mxu0 %v1040
    %v4208 = vpop.f32.mrb[0].mxu0
    %v4209 = vadd.f32 %v4138, %v4208
    %v4210 = vpop.f32.mrb[0].mxu0
    %v4211 = vadd.f32 %v4140, %v4210
    %v4212 = vpop.f32.mrb[0].mxu0
    %v4213 = vadd.f32 %v4142, %v4212
    %v4214 = vpop.f32.mrb[0].mxu0
    %v4215 = vadd.f32 %v4144, %v4214
    %4216 = vmatprep.mubr.bf16.mxu0 %v1011
    %4217 = vmatmul.mubr.bf16.gmra.mrb[0].mxu0 %v1046
    %v4218 = vpop.f32.mrb[0].mxu0
    %v4219 = vadd.f32 %v4148, %v4218
    %v4220 = vpop.f32.mrb[0].mxu0
    %v4221 = vadd.f32 %v4150, %v4220
    %v4222 = vpop.f32.mrb[0].mxu0
    %v4223 = vpop.f32.mrb[0].mxu0
    %4224 = vdwg.mxu0
    %4225 = vmatprep.subr.bf16.mxu0 %v3059
    %4226 = vmatpush1.bf16.msra.mxu0 %v3058
    %4227 = vmatprep.subr.bf16.mxu0 %v3065
    %4228 = vmatpush1.bf16.msra.mxu0 %v3064
    %4229 = vmatprep.subr.bf16.mxu0 %v3071
    %4230 = vmatpush1.bf16.msra.mxu0 %v3070
    %4231 = vmatprep.subr.bf16.mxu0 %v3077
    %4232 = vmatpush1.bf16.msra.mxu0 %v3076
    %4233 = vmatprep.subr.bf16.mxu0 %v3083
    %4234 = vmatpush1.bf16.msra.mxu0 %v3082
    %4235 = vmatprep.subr.bf16.mxu0 %v3089
    %4236 = vmatpush1.bf16.msra.mxu0 %v3088
    %4237 = vmatprep.subr.bf16.mxu0 %v3095
    %4238 = vmatpush1.bf16.msra.mxu0 %v3094
    %4239 = vmatprep.subr.bf16.mxu0 %v3101
    %4240 = vmatpush1.bf16.msra.mxu0 %v3100
    %4241 = vmatprep.subr.bf16.mxu0 %v3107
    %4242 = vmatpush1.bf16.msra.mxu0 %v3106
    %4243 = vmatprep.subr.bf16.mxu0 %v3113
    %4244 = vmatpush1.bf16.msra.mxu0 %v3112
    %4245 = vmatprep.subr.bf16.mxu0 %v3119
    %4246 = vmatpush1.bf16.msra.mxu0 %v3118
    %4247 = vmatprep.subr.bf16.mxu0 %v3125
    %4248 = vmatpush1.bf16.msra.mxu0 %v3124
    %4249 = vmatprep.subr.bf16.mxu0 %v3131
    %4250 = vmatpush1.bf16.msra.mxu0 %v3130
    %4251 = vmatprep.subr.bf16.mxu0 %v3137
    %4252 = vmatpush1.bf16.msra.mxu0 %v3136
    %4253 = vmatprep.subr.bf16.mxu0 %v3143
    %4254 = vmatpush1.bf16.msra.mxu0 %v3142
    %4255 = vmatprep.subr.bf16.mxu0 %v3149
    %4256 = vmatpush1.bf16.msra.mxu0 %v3148
    %4257 = vmatprep.mubr.bf16.mxu0 %v1004
    %4258 = vmatmul.mubr.bf16.gmra.mrb[0].mxu0 %v1003
    %v4259 = vpop.f32.mrb[0].mxu0
    %v4260 = vadd.f32 %v4189, %v4259
    %v4261 = vpop.f32.mrb[0].mxu0
    %v4262 = vadd.f32 %v4191, %v4261
    %v4263 = vpop.f32.mrb[0].mxu0
    %v4264 = vadd.f32 %v4193, %v4263
    %v4265 = vpop.f32.mrb[0].mxu0
    %v4266 = vadd.f32 %v4195, %v4265
    %4267 = vmatprep.mubr.bf16.mxu0 %v1007
    %4268 = vmatmul.mubr.bf16.gmra.mrb[0].mxu0 %v1006
    %v4269 = vpop.f32.mrb[0].mxu0
    %v4270 = vadd.f32 %v4199, %v4269
    %v4271 = vpop.f32.mrb[0].mxu0
    %v4272 = vadd.f32 %v4201, %v4271
    %v4273 = vpop.f32.mrb[0].mxu0
    %v4274 = vadd.f32 %v4203, %v4273
    %v4275 = vpop.f32.mrb[0].mxu0
    %v4276 = vadd.f32 %v4205, %v4275
    %4277 = vmatprep.mubr.bf16.mxu0 %v1010
    %4278 = vmatmul.mubr.bf16.gmra.mrb[0].mxu0 %v1009
    %v4279 = vpop.f32.mrb[0].mxu0
    %v4280 = vadd.f32 %v4209, %v4279
    %v4281 = vpop.f32.mrb[0].mxu0
    %v4282 = vadd.f32 %v4211, %v4281
    %v4283 = vpop.f32.mrb[0].mxu0
    %v4284 = vadd.f32 %v4213, %v4283
    %v4285 = vpop.f32.mrb[0].mxu0
    %v4286 = vadd.f32 %v4215, %v4285
    %4287 = vmatprep.mubr.bf16.mxu0 %v1013
    %4288 = vmatmul.mubr.bf16.gmra.mrb[0].mxu0 %v1012
    %v4289 = vpop.f32.mrb[0].mxu0
    %v4290 = vadd.f32 %v4219, %v4289
    %v4291 = vpop.f32.mrb[0].mxu0
    %v4292 = vadd.f32 %v4221, %v4291
    %v4293 = vpop.f32.mrb[0].mxu0
    %v4294 = vpop.f32.mrb[0].mxu0
    %4295 = vdwg.mxu0
    %4296 = vmatprep.subr.bf16.mxu0 %v3155
    %4297 = vmatpush1.bf16.msra.mxu0 %v3154
    %4298 = vmatprep.subr.bf16.mxu0 %v3161
    %4299 = vmatpush1.bf16.msra.mxu0 %v3160
    %4300 = vmatprep.subr.bf16.mxu0 %v3167
    %4301 = vmatpush1.bf16.msra.mxu0 %v3166
    %4302 = vmatprep.subr.bf16.mxu0 %v3173
    %4303 = vmatpush1.bf16.msra.mxu0 %v3172
    %4304 = vmatprep.subr.bf16.mxu0 %v3179
    %4305 = vmatpush1.bf16.msra.mxu0 %v3178
    %4306 = vmatprep.subr.bf16.mxu0 %v3185
    %4307 = vmatpush1.bf16.msra.mxu0 %v3184
    %4308 = vmatprep.subr.bf16.mxu0 %v3191
    %4309 = vmatpush1.bf16.msra.mxu0 %v3190
    %4310 = vmatprep.subr.bf16.mxu0 %v3197
    %4311 = vmatpush1.bf16.msra.mxu0 %v3196
    %4312 = vmatprep.subr.bf16.mxu0 %v3203
    %4313 = vmatpush1.bf16.msra.mxu0 %v3202
    %4314 = vmatprep.subr.bf16.mxu0 %v3209
    %4315 = vmatpush1.bf16.msra.mxu0 %v3208
    %4316 = vmatprep.subr.bf16.mxu0 %v3215
    %4317 = vmatpush1.bf16.msra.mxu0 %v3214
    %4318 = vmatprep.subr.bf16.mxu0 %v3221
    %4319 = vmatpush1.bf16.msra.mxu0 %v3220
    %4320 = vmatprep.subr.bf16.mxu0 %v3227
    %4321 = vmatpush1.bf16.msra.mxu0 %v3226
    %4322 = vmatprep.subr.bf16.mxu0 %v3233
    %4323 = vmatpush1.bf16.msra.mxu0 %v3232
    %4324 = vmatprep.subr.bf16.mxu0 %v3239
    %4325 = vmatpush1.bf16.msra.mxu0 %v3238
    %4326 = vmatprep.subr.bf16.mxu0 %v3245
    %4327 = vmatpush1.bf16.msra.mxu0 %v3244
    %4328 = vmatprep.mubr.bf16.mxu0 %v1070
    %4329 = vmatmul.mubr.bf16.gmra.mrb[0].mxu0 %v1067
    %v4330 = vpop.f32.mrb[0].mxu0
    %v4331 = vadd.f32 %v4260, %v4330
    %v4332 = vpop.f32.mrb[0].mxu0
    %v4333 = vadd.f32 %v4262, %v4332
    %v4334 = vpop.f32.mrb[0].mxu0
    %v4335 = vadd.f32 %v4264, %v4334
    %v4336 = vpop.f32.mrb[0].mxu0
    %v4337 = vadd.f32 %v4266, %v4336
    %4338 = vmatprep.mubr.bf16.mxu0 %v1077
    %4339 = vmatmul.mubr.bf16.gmra.mrb[0].mxu0 %v1075
    %v4340 = vpop.f32.mrb[0].mxu0
    %v4341 = vadd.f32 %v4270, %v4340
    %v4342 = vpop.f32.mrb[0].mxu0
    %v4343 = vadd.f32 %v4272, %v4342
    %v4344 = vpop.f32.mrb[0].mxu0
    %v4345 = vadd.f32 %v4274, %v4344
    %v4346 = vpop.f32.mrb[0].mxu0
    %v4347 = vadd.f32 %v4276, %v4346
    %4348 = vmatprep.mubr.bf16.mxu0 %v1083
    %4349 = vmatmul.mubr.bf16.gmra.mrb[0].mxu0 %v1081
    %v4350 = vpop.f32.mrb[0].mxu0
    %v4351 = vadd.f32 %v4280, %v4350
    %v4352 = vpop.f32.mrb[0].mxu0
    %v4353 = vadd.f32 %v4282, %v4352
    %v4354 = vpop.f32.mrb[0].mxu0
    %v4355 = vadd.f32 %v4284, %v4354
    %v4356 = vpop.f32.mrb[0].mxu0
    %v4357 = vadd.f32 %v4286, %v4356
    %4358 = vmatprep.mubr.bf16.mxu0 %v1099
    %4359 = vmatmul.mubr.bf16.gmra.mrb[0].mxu0 %v1096
    %v4360 = vpop.f32.mrb[0].mxu0
    %v4361 = vadd.f32 %v4290, %v4360
    %v4362 = vpop.f32.mrb[0].mxu0
    %v4363 = vadd.f32 %v4292, %v4362
    %v4364 = vpop.f32.mrb[0].mxu0
    %v4365 = vpop.f32.mrb[0].mxu0
    %4366 = vdwg.mxu0
    %4367 = vmatprep.subr.bf16.mxu0 %v3251
    %4368 = vmatpush1.bf16.msra.mxu0 %v3250
    %4369 = vmatprep.subr.bf16.mxu0 %v3257
    %4370 = vmatpush1.bf16.msra.mxu0 %v3256
    %4371 = vmatprep.subr.bf16.mxu0 %v3263
    %4372 = vmatpush1.bf16.msra.mxu0 %v3262
    %4373 = vmatprep.subr.bf16.mxu0 %v3269
    %4374 = vmatpush1.bf16.msra.mxu0 %v3268
    %4375 = vmatprep.subr.bf16.mxu0 %v3275
    %4376 = vmatpush1.bf16.msra.mxu0 %v3274
    %4377 = vmatprep.subr.bf16.mxu0 %v3281
    %4378 = vmatpush1.bf16.msra.mxu0 %v3280
    %4379 = vmatprep.subr.bf16.mxu0 %v3287
    %4380 = vmatpush1.bf16.msra.mxu0 %v3286
    %4381 = vmatprep.subr.bf16.mxu0 %v3293
    %4382 = vmatpush1.bf16.msra.mxu0 %v3292
    %4383 = vmatprep.subr.bf16.mxu0 0
    %4384 = vmatpush1.bf16.msra.mxu0 0
    %4385 = vmatprep.subr.bf16.mxu0 0
    %4386 = vmatpush1.bf16.msra.mxu0 0
    %4387 = vmatprep.subr.bf16.mxu0 0
    %4388 = vmatpush1.bf16.msra.mxu0 0
    %4389 = vmatprep.subr.bf16.mxu0 0
    %4390 = vmatpush1.bf16.msra.mxu0 0
    %4391 = vmatprep.subr.bf16.mxu0 0
    %4392 = vmatpush1.bf16.msra.mxu0 0
    %4393 = vmatprep.subr.bf16.mxu0 0
    %4394 = vmatpush1.bf16.msra.mxu0 0
    %4395 = vmatprep.subr.bf16.mxu0 0
    %4396 = vmatpush1.bf16.msra.mxu0 0
    %4397 = vmatprep.subr.bf16.mxu0 0
    %4398 = vmatpush1.bf16.msra.mxu0 0
    %4399 = vmatprep.mubr.bf16.mxu0 0
    %4400 = vmatmul.mubr.bf16.gmra.mrb[0].mxu0 %v1073
    %v4401 = vpop.f32.mrb[0].mxu0
    %v4402 = vadd.f32 %v4331, %v4401
    %v4403 = vpop.f32.mrb[0].mxu0
    %v4404 = vadd.f32 %v4333, %v4403
    %v4405 = vpop.f32.mrb[0].mxu0
    %v4406 = vadd.f32 %v4335, %v4405
    %v4407 = vpop.f32.mrb[0].mxu0
    %v4408 = vadd.f32 %v4337, %v4407
    %4409 = vmatprep.mubr.bf16.mxu0 0
    %4410 = vmatmul.mubr.bf16.gmra.mrb[0].mxu0 %v1079
    %v4411 = vpop.f32.mrb[0].mxu0
    %v4412 = vadd.f32 %v4341, %v4411
    %v4413 = vpop.f32.mrb[0].mxu0
    %v4414 = vadd.f32 %v4343, %v4413
    %v4415 = vpop.f32.mrb[0].mxu0
    %v4416 = vadd.f32 %v4345, %v4415
    %v4417 = vpop.f32.mrb[0].mxu0
    %v4418 = vadd.f32 %v4347, %v4417
    %4419 = vmatprep.mubr.bf16.mxu0 0
    %4420 = vmatmul.mubr.bf16.gmra.mrb[0].mxu0 %v1085
    %v4421 = vpop.f32.mrb[0].mxu0
    %v4422 = vadd.f32 %v4351, %v4421
    %v4423 = vpop.f32.mrb[0].mxu0
    %v4424 = vadd.f32 %v4353, %v4423
    %v4425 = vpop.f32.mrb[0].mxu0
    %v4426 = vadd.f32 %v4355, %v4425
    %v4427 = vpop.f32.mrb[0].mxu0
    %v4428 = vadd.f32 %v4357, %v4427
    %4429 = vmatprep.mubr.bf16.mxu0 0
    %4430 = vmatmul.mubr.bf16.gmra.mrb[0].mxu0 %v1102
    %v4431 = vpop.f32.mrb[0].mxu0
    %v4432 = vadd.f32 %v4361, %v4431
    %v4433 = vpop.f32.mrb[0].mxu0
    %v4434 = vadd.f32 %v4363, %v4433
    %v4435 = vpop.f32.mrb[0].mxu0
    %v4436 = vpop.f32.mrb[0].mxu0
    %4437 = vdwg.mxu0
    %4438 = vmatprep.subr.bf16.mxu0 %v2869
    %4439 = vmatpush1.bf16.msra.mxu0 %v2868
    %4440 = vmatprep.subr.bf16.mxu0 %v2875
    %4441 = vmatpush1.bf16.msra.mxu0 %v2874
    %4442 = vmatprep.subr.bf16.mxu0 %v2881
    %4443 = vmatpush1.bf16.msra.mxu0 %v2880
    %4444 = vmatprep.subr.bf16.mxu0 %v2887
    %4445 = vmatpush1.bf16.msra.mxu0 %v2886
    %4446 = vmatprep.subr.bf16.mxu0 %v2893
    %4447 = vmatpush1.bf16.msra.mxu0 %v2892
    %4448 = vmatprep.subr.bf16.mxu0 %v2899
    %4449 = vmatpush1.bf16.msra.mxu0 %v2898
    %4450 = vmatprep.subr.bf16.mxu0 %v2905
    %4451 = vmatpush1.bf16.msra.mxu0 %v2904
    %4452 = vmatprep.subr.bf16.mxu0 %v2911
    %4453 = vmatpush1.bf16.msra.mxu0 %v2910
    %4454 = vmatprep.subr.bf16.mxu0 %v2917
    %4455 = vmatpush1.bf16.msra.mxu0 %v2916
    %4456 = vmatprep.subr.bf16.mxu0 %v2923
    %4457 = vmatpush1.bf16.msra.mxu0 %v2922
    %4458 = vmatprep.subr.bf16.mxu0 %v2929
    %4459 = vmatpush1.bf16.msra.mxu0 %v2928
    %4460 = vmatprep.subr.bf16.mxu0 %v2935
    %4461 = vmatpush1.bf16.msra.mxu0 %v2934
    %4462 = vmatprep.subr.bf16.mxu0 %v2941
    %4463 = vmatpush1.bf16.msra.mxu0 %v2940
    %4464 = vmatprep.subr.bf16.mxu0 %v2947
    %4465 = vmatpush1.bf16.msra.mxu0 %v2946
    %4466 = vmatprep.subr.bf16.mxu0 %v2953
    %4467 = vmatpush1.bf16.msra.mxu0 %v2952
    %4468 = vmatprep.subr.bf16.mxu0 %v2959
    %4469 = vmatpush1.bf16.msra.mxu0 %v2958
    %4470 = vmatprep.mubr.bf16.mxu0 %v1060
    %4471 = vmatmul.mubr.bf16.gmra.mrb[0].mxu0 %v1057
    %v4472 = vpop.f32.mrb[0].mxu0
    %v4473 = vadd.f32 %v1557, %v4472
    %v4474 = vpop.f32.mrb[0].mxu0
    %v4475 = vadd.f32 %v1561, %v4474
    %v4476 = vpop.f32.mrb[0].mxu0
    %v4477 = vadd.f32 %v1557, %v4476
    %v4478 = vpop.f32.mrb[0].mxu0
    %v4479 = vadd.f32 %v1561, %v4478
    %4480 = vmatprep.mubr.bf16.mxu0 %v1032
    %4481 = vmatmul.mubr.bf16.gmra.mrb[0].mxu0 %v1030
    %v4482 = vpop.f32.mrb[0].mxu0
    %v4483 = vadd.f32 %v1557, %v4482
    %v4484 = vpop.f32.mrb[0].mxu0
    %v4485 = vadd.f32 %v1561, %v4484
    %v4486 = vpop.f32.mrb[0].mxu0
    %v4487 = vadd.f32 %v1557, %v4486
    %v4488 = vpop.f32.mrb[0].mxu0
    %v4489 = vadd.f32 %v1561, %v4488
    %4490 = vmatprep.mubr.bf16.mxu0 %v1038
    %4491 = vmatmul.mubr.bf16.gmra.mrb[0].mxu0 %v1036
    %v4492 = vpop.f32.mrb[0].mxu0
    %v4493 = vadd.f32 %v1557, %v4492
    %v4494 = vpop.f32.mrb[0].mxu0
    %v4495 = vadd.f32 %v1561, %v4494
    %v4496 = vpop.f32.mrb[0].mxu0
    %v4497 = vadd.f32 %v1557, %v4496
    %v4498 = vpop.f32.mrb[0].mxu0
    %v4499 = vadd.f32 %v1561, %v4498
    %4500 = vmatprep.mubr.bf16.mxu0 %v1044
    %4501 = vmatmul.mubr.bf16.gmra.mrb[0].mxu0 %v1042
    %v4502 = vpop.f32.mrb[0].mxu0
    %v4503 = vadd.f32 %v1557, %v4502
    %v4504 = vpop.f32.mrb[0].mxu0
    %v4505 = vadd.f32 %v1561, %v4504
    %v4506 = vpop.f32.mrb[0].mxu0
    %v4507 = vpop.f32.mrb[0].mxu0
    %4508 = vdwg.mxu0
    %4509 = vmatprep.subr.bf16.mxu0 %v2965
    %4510 = vmatpush1.bf16.msra.mxu0 %v2964
    %4511 = vmatprep.subr.bf16.mxu0 %v2971
    %4512 = vmatpush1.bf16.msra.mxu0 %v2970
    %4513 = vmatprep.subr.bf16.mxu0 %v2977
    %4514 = vmatpush1.bf16.msra.mxu0 %v2976
    %4515 = vmatprep.subr.bf16.mxu0 %v2983
    %4516 = vmatpush1.bf16.msra.mxu0 %v2982
    %4517 = vmatprep.subr.bf16.mxu0 %v2989
    %4518 = vmatpush1.bf16.msra.mxu0 %v2988
    %4519 = vmatprep.subr.bf16.mxu0 %v2995
    %4520 = vmatpush1.bf16.msra.mxu0 %v2994
    %4521 = vmatprep.subr.bf16.mxu0 %v3001
    %4522 = vmatpush1.bf16.msra.mxu0 %v3000
    %4523 = vmatprep.subr.bf16.mxu0 %v3007
    %4524 = vmatpush1.bf16.msra.mxu0 %v3006
    %4525 = vmatprep.subr.bf16.mxu0 %v3013
    %4526 = vmatpush1.bf16.msra.mxu0 %v3012
    %4527 = vmatprep.subr.bf16.mxu0 %v3019
    %4528 = vmatpush1.bf16.msra.mxu0 %v3018
    %4529 = vmatprep.subr.bf16.mxu0 %v3025
    %4530 = vmatpush1.bf16.msra.mxu0 %v3024
    %4531 = vmatprep.subr.bf16.mxu0 %v3031
    %4532 = vmatpush1.bf16.msra.mxu0 %v3030
    %4533 = vmatprep.subr.bf16.mxu0 %v3037
    %4534 = vmatpush1.bf16.msra.mxu0 %v3036
    %4535 = vmatprep.subr.bf16.mxu0 %v3043
    %4536 = vmatpush1.bf16.msra.mxu0 %v3042
    %4537 = vmatprep.subr.bf16.mxu0 %v3049
    %4538 = vmatpush1.bf16.msra.mxu0 %v3048
    %4539 = vmatprep.subr.bf16.mxu0 %v3055
    %4540 = vmatpush1.bf16.msra.mxu0 %v3054
    %4541 = vmatprep.mubr.bf16.mxu0 %v1002
    %4542 = vmatmul.mubr.bf16.gmra.mrb[0].mxu0 %v1063
    %v4543 = vpop.f32.mrb[0].mxu0
    %v4544 = vadd.f32 %v4473, %v4543
    %v4545 = vpop.f32.mrb[0].mxu0
    %v4546 = vadd.f32 %v4475, %v4545
    %v4547 = vpop.f32.mrb[0].mxu0
    %v4548 = vadd.f32 %v4477, %v4547
    %v4549 = vpop.f32.mrb[0].mxu0
    %v4550 = vadd.f32 %v4479, %v4549
    %4551 = vmatprep.mubr.bf16.mxu0 %v1005
    %4552 = vmatmul.mubr.bf16.gmra.mrb[0].mxu0 %v1034
    %v4553 = vpop.f32.mrb[0].mxu0
    %v4554 = vadd.f32 %v4483, %v4553
    %v4555 = vpop.f32.mrb[0].mxu0
    %v4556 = vadd.f32 %v4485, %v4555
    %v4557 = vpop.f32.mrb[0].mxu0
    %v4558 = vadd.f32 %v4487, %v4557
    %v4559 = vpop.f32.mrb[0].mxu0
    %v4560 = vadd.f32 %v4489, %v4559
    %4561 = vmatprep.mubr.bf16.mxu0 %v1008
    %4562 = vmatmul.mubr.bf16.gmra.mrb[0].mxu0 %v1040
    %v4563 = vpop.f32.mrb[0].mxu0
    %v4564 = vadd.f32 %v4493, %v4563
    %v4565 = vpop.f32.mrb[0].mxu0
    %v4566 = vadd.f32 %v4495, %v4565
    %v4567 = vpop.f32.mrb[0].mxu0
    %v4568 = vadd.f32 %v4497, %v4567
    %v4569 = vpop.f32.mrb[0].mxu0
    %v4570 = vadd.f32 %v4499, %v4569
    %4571 = vmatprep.mubr.bf16.mxu0 %v1011
    %4572 = vmatmul.mubr.bf16.gmra.mrb[0].mxu0 %v1046
    %v4573 = vpop.f32.mrb[0].mxu0
    %v4574 = vadd.f32 %v4503, %v4573
    %v4575 = vpop.f32.mrb[0].mxu0
    %v4576 = vadd.f32 %v4505, %v4575
    %v4577 = vpop.f32.mrb[0].mxu0
    %v4578 = vpop.f32.mrb[0].mxu0
    %4579 = vdwg.mxu0
    %4580 = vmatprep.subr.bf16.mxu0 %v3061
    %4581 = vmatpush1.bf16.msra.mxu0 %v3060
    %4582 = vmatprep.subr.bf16.mxu0 %v3067
    %4583 = vmatpush1.bf16.msra.mxu0 %v3066
    %4584 = vmatprep.subr.bf16.mxu0 %v3073
    %4585 = vmatpush1.bf16.msra.mxu0 %v3072
    %4586 = vmatprep.subr.bf16.mxu0 %v3079
    %4587 = vmatpush1.bf16.msra.mxu0 %v3078
    %4588 = vmatprep.subr.bf16.mxu0 %v3085
    %4589 = vmatpush1.bf16.msra.mxu0 %v3084
    %4590 = vmatprep.subr.bf16.mxu0 %v3091
    %4591 = vmatpush1.bf16.msra.mxu0 %v3090
    %4592 = vmatprep.subr.bf16.mxu0 %v3097
    %4593 = vmatpush1.bf16.msra.mxu0 %v3096
    %4594 = vmatprep.subr.bf16.mxu0 %v3103
    %4595 = vmatpush1.bf16.msra.mxu0 %v3102
    %4596 = vmatprep.subr.bf16.mxu0 %v3109
    %4597 = vmatpush1.bf16.msra.mxu0 %v3108
    %4598 = vmatprep.subr.bf16.mxu0 %v3115
    %4599 = vmatpush1.bf16.msra.mxu0 %v3114
    %4600 = vmatprep.subr.bf16.mxu0 %v3121
    %4601 = vmatpush1.bf16.msra.mxu0 %v3120
    %4602 = vmatprep.subr.bf16.mxu0 %v3127
    %4603 = vmatpush1.bf16.msra.mxu0 %v3126
    %4604 = vmatprep.subr.bf16.mxu0 %v3133
    %4605 = vmatpush1.bf16.msra.mxu0 %v3132
    %4606 = vmatprep.subr.bf16.mxu0 %v3139
    %4607 = vmatpush1.bf16.msra.mxu0 %v3138
    %4608 = vmatprep.subr.bf16.mxu0 %v3145
    %4609 = vmatpush1.bf16.msra.mxu0 %v3144
    %4610 = vmatprep.subr.bf16.mxu0 %v3151
    %4611 = vmatpush1.bf16.msra.mxu0 %v3150
    %4612 = vmatprep.mubr.bf16.mxu0 %v1004
    %4613 = vmatmul.mubr.bf16.gmra.mrb[0].mxu0 %v1003
    %v4614 = vpop.f32.mrb[0].mxu0
    %v4615 = vadd.f32 %v4544, %v4614
    %v4616 = vpop.f32.mrb[0].mxu0
    %v4617 = vadd.f32 %v4546, %v4616
    %v4618 = vpop.f32.mrb[0].mxu0
    %v4619 = vadd.f32 %v4548, %v4618
    %v4620 = vpop.f32.mrb[0].mxu0
    %v4621 = vadd.f32 %v4550, %v4620
    %4622 = vmatprep.mubr.bf16.mxu0 %v1007
    %4623 = vmatmul.mubr.bf16.gmra.mrb[0].mxu0 %v1006
    %v4624 = vpop.f32.mrb[0].mxu0
    %v4625 = vadd.f32 %v4554, %v4624
    %v4626 = vpop.f32.mrb[0].mxu0
    %v4627 = vadd.f32 %v4556, %v4626
    %v4628 = vpop.f32.mrb[0].mxu0
    %v4629 = vadd.f32 %v4558, %v4628
    %v4630 = vpop.f32.mrb[0].mxu0
    %v4631 = vadd.f32 %v4560, %v4630
    %4632 = vmatprep.mubr.bf16.mxu0 %v1010
    %4633 = vmatmul.mubr.bf16.gmra.mrb[0].mxu0 %v1009
    %v4634 = vpop.f32.mrb[0].mxu0
    %v4635 = vadd.f32 %v4564, %v4634
    %v4636 = vpop.f32.mrb[0].mxu0
    %v4637 = vadd.f32 %v4566, %v4636
    %v4638 = vpop.f32.mrb[0].mxu0
    %v4639 = vadd.f32 %v4568, %v4638
    %v4640 = vpop.f32.mrb[0].mxu0
    %v4641 = vadd.f32 %v4570, %v4640
    %4642 = vmatprep.mubr.bf16.mxu0 %v1013
    %4643 = vmatmul.mubr.bf16.gmra.mrb[0].mxu0 %v1012
    %v4644 = vpop.f32.mrb[0].mxu0
    %v4645 = vadd.f32 %v4574, %v4644
    %v4646 = vpop.f32.mrb[0].mxu0
    %v4647 = vadd.f32 %v4576, %v4646
    %v4648 = vpop.f32.mrb[0].mxu0
    %v4649 = vpop.f32.mrb[0].mxu0
    %4650 = vdwg.mxu0
    %4651 = vmatprep.subr.bf16.mxu0 %v3157
    %4652 = vmatpush1.bf16.msra.mxu0 %v3156
    %4653 = vmatprep.subr.bf16.mxu0 %v3163
    %4654 = vmatpush1.bf16.msra.mxu0 %v3162
    %4655 = vmatprep.subr.bf16.mxu0 %v3169
    %4656 = vmatpush1.bf16.msra.mxu0 %v3168
    %4657 = vmatprep.subr.bf16.mxu0 %v3175
    %4658 = vmatpush1.bf16.msra.mxu0 %v3174
    %4659 = vmatprep.subr.bf16.mxu0 %v3181
    %4660 = vmatpush1.bf16.msra.mxu0 %v3180
    %4661 = vmatprep.subr.bf16.mxu0 %v3187
    %4662 = vmatpush1.bf16.msra.mxu0 %v3186
    %4663 = vmatprep.subr.bf16.mxu0 %v3193
    %4664 = vmatpush1.bf16.msra.mxu0 %v3192
    %4665 = vmatprep.subr.bf16.mxu0 %v3199
    %4666 = vmatpush1.bf16.msra.mxu0 %v3198
    %4667 = vmatprep.subr.bf16.mxu0 %v3205
    %4668 = vmatpush1.bf16.msra.mxu0 %v3204
    %4669 = vmatprep.subr.bf16.mxu0 %v3211
    %4670 = vmatpush1.bf16.msra.mxu0 %v3210
    %4671 = vmatprep.subr.bf16.mxu0 %v3217
    %4672 = vmatpush1.bf16.msra.mxu0 %v3216
    %4673 = vmatprep.subr.bf16.mxu0 %v3223
    %4674 = vmatpush1.bf16.msra.mxu0 %v3222
    %4675 = vmatprep.subr.bf16.mxu0 %v3229
    %4676 = vmatpush1.bf16.msra.mxu0 %v3228
    %4677 = vmatprep.subr.bf16.mxu0 %v3235
    %4678 = vmatpush1.bf16.msra.mxu0 %v3234
    %4679 = vmatprep.subr.bf16.mxu0 %v3241
    %4680 = vmatpush1.bf16.msra.mxu0 %v3240
    %4681 = vmatprep.subr.bf16.mxu0 %v3247
    %4682 = vmatpush1.bf16.msra.mxu0 %v3246
    %4683 = vmatprep.mubr.bf16.mxu0 %v1070
    %4684 = vmatmul.mubr.bf16.gmra.mrb[0].mxu0 %v1067
    %v4685 = vpop.f32.mrb[0].mxu0
    %v4686 = vadd.f32 %v4615, %v4685
    %v4687 = vpop.f32.mrb[0].mxu0
    %v4688 = vadd.f32 %v4617, %v4687
    %v4689 = vpop.f32.mrb[0].mxu0
    %v4690 = vadd.f32 %v4619, %v4689
    %v4691 = vpop.f32.mrb[0].mxu0
    %v4692 = vadd.f32 %v4621, %v4691
    %4693 = vmatprep.mubr.bf16.mxu0 %v1077
    %4694 = vmatmul.mubr.bf16.gmra.mrb[0].mxu0 %v1075
    %v4695 = vpop.f32.mrb[0].mxu0
    %v4696 = vadd.f32 %v4625, %v4695
    %v4697 = vpop.f32.mrb[0].mxu0
    %v4698 = vadd.f32 %v4627, %v4697
    %v4699 = vpop.f32.mrb[0].mxu0
    %v4700 = vadd.f32 %v4629, %v4699
    %v4701 = vpop.f32.mrb[0].mxu0
    %v4702 = vadd.f32 %v4631, %v4701
    %4703 = vmatprep.mubr.bf16.mxu0 %v1083
    %4704 = vmatmul.mubr.bf16.gmra.mrb[0].mxu0 %v1081
    %v4705 = vpop.f32.mrb[0].mxu0
    %v4706 = vadd.f32 %v4635, %v4705
    %v4707 = vpop.f32.mrb[0].mxu0
    %v4708 = vadd.f32 %v4637, %v4707
    %v4709 = vpop.f32.mrb[0].mxu0
    %v4710 = vadd.f32 %v4639, %v4709
    %v4711 = vpop.f32.mrb[0].mxu0
    %v4712 = vadd.f32 %v4641, %v4711
    %4713 = vmatprep.mubr.bf16.mxu0 %v1099
    %4714 = vmatmul.mubr.bf16.gmra.mrb[0].mxu0 %v1096
    %v4715 = vpop.f32.mrb[0].mxu0
    %v4716 = vadd.f32 %v4645, %v4715
    %v4717 = vpop.f32.mrb[0].mxu0
    %v4718 = vadd.f32 %v4647, %v4717
    %v4719 = vpop.f32.mrb[0].mxu0
    %v4720 = vpop.f32.mrb[0].mxu0
    %4721 = vdwg.mxu0
    %4722 = vmatprep.subr.bf16.mxu0 %v3253
    %4723 = vmatpush1.bf16.msra.mxu0 %v3252
    %4724 = vmatprep.subr.bf16.mxu0 %v3259
    %4725 = vmatpush1.bf16.msra.mxu0 %v3258
    %4726 = vmatprep.subr.bf16.mxu0 %v3265
    %4727 = vmatpush1.bf16.msra.mxu0 %v3264
    %4728 = vmatprep.subr.bf16.mxu0 %v3271
    %4729 = vmatpush1.bf16.msra.mxu0 %v3270
    %4730 = vmatprep.subr.bf16.mxu0 %v3277
    %4731 = vmatpush1.bf16.msra.mxu0 %v3276
    %4732 = vmatprep.subr.bf16.mxu0 %v3283
    %4733 = vmatpush1.bf16.msra.mxu0 %v3282
    %4734 = vmatprep.subr.bf16.mxu0 %v3289
    %4735 = vmatpush1.bf16.msra.mxu0 %v3288
    %4736 = vmatprep.subr.bf16.mxu0 %v3295
    %4737 = vmatpush1.bf16.msra.mxu0 %v3294
    %4738 = vmatprep.subr.bf16.mxu0 0
    %4739 = vmatpush1.bf16.msra.mxu0 0
    %4740 = vmatprep.subr.bf16.mxu0 0
    %4741 = vmatpush1.bf16.msra.mxu0 0
    %4742 = vmatprep.subr.bf16.mxu0 0
    %4743 = vmatpush1.bf16.msra.mxu0 0
    %4744 = vmatprep.subr.bf16.mxu0 0
    %4745 = vmatpush1.bf16.msra.mxu0 0
    %4746 = vmatprep.subr.bf16.mxu0 0
    %4747 = vmatpush1.bf16.msra.mxu0 0
    %4748 = vmatprep.subr.bf16.mxu0 0
    %4749 = vmatpush1.bf16.msra.mxu0 0
    %4750 = vmatprep.subr.bf16.mxu0 0
    %4751 = vmatpush1.bf16.msra.mxu0 0
    %4752 = vmatprep.subr.bf16.mxu0 0
    %4753 = vmatpush1.bf16.msra.mxu0 0
    %4754 = vmatprep.mubr.bf16.mxu0 0
    %4755 = vmatmul.mubr.bf16.gmra.mrb[0].mxu0 %v1073
    %v4756 = vpop.f32.mrb[0].mxu0
    %v4757 = vadd.f32 %v4686, %v4756
    %v4758 = vpop.f32.mrb[0].mxu0
    %v4759 = vadd.f32 %v4688, %v4758
    %v4760 = vpop.f32.mrb[0].mxu0
    %v4761 = vadd.f32 %v4690, %v4760
    %v4762 = vpop.f32.mrb[0].mxu0
    %v4763 = vadd.f32 %v4692, %v4762
    %4764 = vmatprep.mubr.bf16.mxu0 0
    %4765 = vmatmul.mubr.bf16.gmra.mrb[0].mxu0 %v1079
    %v4766 = vpop.f32.mrb[0].mxu0
    %v4767 = vadd.f32 %v4696, %v4766
    %v4768 = vpop.f32.mrb[0].mxu0
    %v4769 = vadd.f32 %v4698, %v4768
    %v4770 = vpop.f32.mrb[0].mxu0
    %v4771 = vadd.f32 %v4700, %v4770
    %v4772 = vpop.f32.mrb[0].mxu0
    %v4773 = vadd.f32 %v4702, %v4772
    %4774 = vmatprep.mubr.bf16.mxu0 0
    %4775 = vmatmul.mubr.bf16.gmra.mrb[0].mxu0 %v1085
    %v4776 = vpop.f32.mrb[0].mxu0
    %v4777 = vadd.f32 %v4706, %v4776
    %v4778 = vpop.f32.mrb[0].mxu0
    %v4779 = vadd.f32 %v4708, %v4778
    %v4780 = vpop.f32.mrb[0].mxu0
    %v4781 = vadd.f32 %v4710, %v4780
    %v4782 = vpop.f32.mrb[0].mxu0
    %v4783 = vadd.f32 %v4712, %v4782
    %4784 = vmatprep.mubr.bf16.mxu0 0
    %4785 = vmatmul.mubr.bf16.gmra.mrb[0].mxu0 %v1102
    %v4786 = vpop.f32.mrb[0].mxu0
    %v4787 = vadd.f32 %v4716, %v4786
    %v4788 = vpop.f32.mrb[0].mxu0
    %v4789 = vadd.f32 %v4718, %v4788
    %v4790 = vpop.f32.mrb[0].mxu0
    %v4791 = vpop.f32.mrb[0].mxu0
    %4792 = vdwg.mxu0
    %v4793 = vmax.f32 %v4047, 0.0
    %v4794 = vmax.f32 %v4049, 0.0
    %v4795 = vmax.f32 %v4402, 0.0
    %v4796 = vmax.f32 %v4404, 0.0
    %v4797 = vmax.f32 %v4757, 0.0
    %v4798 = vmax.f32 %v4759, 0.0
    %v4799 = vmax.f32 %v4051, 0.0
    %v4800 = vmax.f32 %v4053, 0.0
    %v4801 = vmax.f32 %v4406, 0.0
    %v4802 = vmax.f32 %v4408, 0.0
    %v4803 = vmax.f32 %v4761, 0.0
    %v4804 = vmax.f32 %v4763, 0.0
    %v4805 = vmax.f32 %v4057, 0.0
    %v4806 = vmax.f32 %v4059, 0.0
    %v4807 = vmax.f32 %v4412, 0.0
    %v4808 = vmax.f32 %v4414, 0.0
    %v4809 = vmax.f32 %v4767, 0.0
    %v4810 = vmax.f32 %v4769, 0.0
    %v4811 = vmax.f32 %v4061, 0.0
    %v4812 = vmax.f32 %v4063, 0.0
    %v4813 = vmax.f32 %v4416, 0.0
    %v4814 = vmax.f32 %v4418, 0.0
    %v4815 = vmax.f32 %v4771, 0.0
    %v4816 = vmax.f32 %v4773, 0.0
    %v4817 = vmax.f32 %v4067, 0.0
    %v4818 = vmax.f32 %v4069, 0.0
    %v4819 = vmax.f32 %v4422, 0.0
    %v4820 = vmax.f32 %v4424, 0.0
    %v4821 = vmax.f32 %v4777, 0.0
    %v4822 = vmax.f32 %v4779, 0.0
    %v4823 = vmax.f32 %v4071, 0.0
    %v4824 = vmax.f32 %v4073, 0.0
    %v4825 = vmax.f32 %v4426, 0.0
    %v4826 = vmax.f32 %v4428, 0.0
    %v4827 = vmax.f32 %v4781, 0.0
    %v4828 = vmax.f32 %v4783, 0.0
    %v4829 = vmax.f32 %v4077, 0.0
    %v4830 = vmax.f32 %v4079, 0.0
    %v4831 = vmax.f32 %v4432, 0.0
    %v4832 = vmax.f32 %v4434, 0.0
    %v4833 = vmax.f32 %v4787, 0.0
    %v4834 = vmax.f32 %v4789, 0.0
    %v4835 = vpack.c.bf16 %v4799, %v4793
    %v4836 = vpack.c.bf16 %v4800, %v4794
    %v4837 = vpack.c.bf16 %v4801, %v4795
    %v4838 = vpack.c.bf16 %v4802, %v4796
    %v4839 = vpack.c.bf16 %v4803, %v4797
    %v4840 = vpack.c.bf16 %v4804, %v4798
    %v4841 = vpack.c.bf16 %v4811, %v4805
    %v4842 = vpack.c.bf16 %v4812, %v4806
    %v4843 = vpack.c.bf16 %v4813, %v4807
    %v4844 = vpack.c.bf16 %v4814, %v4808
    %v4845 = vpack.c.bf16 %v4815, %v4809
    %v4846 = vpack.c.bf16 %v4816, %v4810
    %v4847 = vpack.c.bf16 %v4823, %v4817
    %v4848 = vpack.c.bf16 %v4824, %v4818
    %v4849 = vpack.c.bf16 %v4825, %v4819
    %v4850 = vpack.c.bf16 %v4826, %v4820
    %v4851 = vpack.c.bf16 %v4827, %v4821
    %v4852 = vpack.c.bf16 %v4828, %v4822
    %v4853 = vpack.c.bf16 %v4829, %v4829
    %v4854 = vpack.c.bf16 %v4830, %v4830
    %v4855 = vpack.c.bf16 %v4831, %v4831
    %v4856 = vpack.c.bf16 %v4832, %v4832
    %v4857 = vpack.c.bf16 %v4833, %v4833
    %v4858 = vpack.c.bf16 %v4834, %v4834
    %v4883 = vrot.slane %v4835, 1
    %v4884 = vrot.slane %v4841, 1
    %v4885 = vsel %vm195, %v4883, %v4884
    %v4886 = vrot.slane %v4836, 1
    %v4887 = vrot.slane %v4842, 1
    %v4888 = vsel %vm195, %v4886, %v4887
    %v4889 = vrot.slane %v4837, 1
    %v4890 = vrot.slane %v4843, 1
    %v4891 = vsel %vm195, %v4889, %v4890
    %v4892 = vrot.slane %v4838, 1
    %v4893 = vrot.slane %v4844, 1
    %v4894 = vsel %vm195, %v4892, %v4893
    %v4895 = vrot.slane %v4839, 1
    %v4896 = vrot.slane %v4845, 1
    %v4897 = vsel %vm195, %v4895, %v4896
    %v4898 = vrot.slane %v4840, 1
    %v4899 = vrot.slane %v4846, 1
    %v4900 = vsel %vm195, %v4898, %v4899
    %v4901 = vrot.slane %v4847, 1
    %v4902 = vsel %vm195, %v4884, %v4901
    %v4903 = vrot.slane %v4848, 1
    %v4904 = vsel %vm195, %v4887, %v4903
    %v4905 = vrot.slane %v4849, 1
    %v4906 = vsel %vm195, %v4890, %v4905
    %v4907 = vrot.slane %v4850, 1
    %v4908 = vsel %vm195, %v4893, %v4907
    %v4909 = vrot.slane %v4851, 1
    %v4910 = vsel %vm195, %v4896, %v4909
    %v4911 = vrot.slane %v4852, 1
    %v4912 = vsel %vm195, %v4899, %v4911
    %v4913 = vrot.slane %v4853, 1
    %v4914 = vsel %vm195, %v4901, %v4913
    %v4915 = vrot.slane %v4854, 1
    %v4916 = vsel %vm195, %v4903, %v4915
    %v4917 = vrot.slane %v4855, 1
    %v4918 = vsel %vm195, %v4905, %v4917
    %v4919 = vrot.slane %v4856, 1
    %v4920 = vsel %vm195, %v4907, %v4919
    %v4921 = vrot.slane %v4857, 1
    %v4922 = vsel %vm195, %v4909, %v4921
    %v4923 = vrot.slane %v4858, 1
    %v4924 = vsel %vm195, %v4911, %v4923
    %v4944 = vsel %vm206, %v4913, 0
    %v4947 = vsel %vm206, %v4915, 0
    %v4950 = vsel %vm206, %v4917, 0
    %v4953 = vsel %vm206, %v4919, 0
    %v4956 = vsel %vm206, %v4921, 0
    %v4959 = vsel %vm206, %v4923, 0
    %v4961 = vmax.bf16 %v4835, %v4885
    %v4962 = vmax.bf16 %v4836, %v4888
    %v4963 = vmax.bf16 %v4837, %v4891
    %v4964 = vmax.bf16 %v4838, %v4894
    %v4965 = vmax.bf16 %v4839, %v4897
    %v4966 = vmax.bf16 %v4840, %v4900
    %v4967 = vmax.bf16 %v4841, %v4902
    %v4968 = vmax.bf16 %v4842, %v4904
    %v4969 = vmax.bf16 %v4843, %v4906
    %v4970 = vmax.bf16 %v4844, %v4908
    %v4971 = vmax.bf16 %v4845, %v4910
    %v4972 = vmax.bf16 %v4846, %v4912
    %v4973 = vmax.bf16 %v4847, %v4914
    %v4974 = vmax.bf16 %v4848, %v4916
    %v4975 = vmax.bf16 %v4849, %v4918
    %v4976 = vmax.bf16 %v4850, %v4920
    %v4977 = vmax.bf16 %v4851, %v4922
    %v4978 = vmax.bf16 %v4852, %v4924
    %v4979 = vmax.bf16 %v4853, %v4944
    %v4980 = vmax.bf16 %v4854, %v4947
    %v4981 = vmax.bf16 %v4855, %v4950
    %v4982 = vmax.bf16 %v4856, %v4953
    %v4983 = vmax.bf16 %v4857, %v4956
    %v4984 = vmax.bf16 %v4858, %v4959
    %5009 = vrot.lane.b32.xlu0 %v4961, 104
    %v5010 = vpop.permute.xlu0 %5009
    %5011 = vrot.lane.b32.xlu0 %v4962, 104
    %v5012 = vpop.permute.xlu0 %5011
    %5013 = vrot.lane.b32.xlu0 %v4963, 104
    %v5014 = vpop.permute.xlu0 %5013
    %5015 = vrot.lane.b32.xlu0 %v4964, 104
    %v5016 = vpop.permute.xlu0 %5015
    %5017 = vrot.lane.b32.xlu0 %v4965, 104
    %v5018 = vpop.permute.xlu0 %5017
    %5019 = vrot.lane.b32.xlu0 %v4966, 104
    %v5020 = vpop.permute.xlu0 %5019
    %5021 = vrot.lane.b32.xlu0 %v4967, 104
    %v5022 = vpop.permute.xlu0 %5021
    %5023 = vrot.lane.b32.xlu0 %v4968, 104
    %v5024 = vpop.permute.xlu0 %5023
    %5025 = vrot.lane.b32.xlu0 %v4969, 104
    %v5026 = vpop.permute.xlu0 %5025
    %5027 = vrot.lane.b32.xlu0 %v4970, 104
    %v5028 = vpop.permute.xlu0 %5027
    %5029 = vrot.lane.b32.xlu0 %v4971, 104
    %v5030 = vpop.permute.xlu0 %5029
    %5031 = vrot.lane.b32.xlu0 %v4972, 104
    %v5032 = vpop.permute.xlu0 %5031
    %5033 = vrot.lane.b32.xlu0 %v4973, 104
    %v5034 = vpop.permute.xlu0 %5033
    %5035 = vrot.lane.b32.xlu0 %v4974, 104
    %v5036 = vpop.permute.xlu0 %5035
    %5037 = vrot.lane.b32.xlu0 %v4975, 104
    %v5038 = vpop.permute.xlu0 %5037
    %5039 = vrot.lane.b32.xlu0 %v4976, 104
    %v5040 = vpop.permute.xlu0 %5039
    %5041 = vrot.lane.b32.xlu0 %v4977, 104
    %v5042 = vpop.permute.xlu0 %5041
    %5043 = vrot.lane.b32.xlu0 %v4978, 104
    %v5044 = vpop.permute.xlu0 %5043
    %5045 = vrot.lane.b32.xlu0 %v4979, 104
    %v5046 = vpop.permute.xlu0 %5045
    %5047 = vrot.lane.b32.xlu0 %v4980, 104
    %v5048 = vpop.permute.xlu0 %5047
    %5049 = vrot.lane.b32.xlu0 %v4981, 104
    %v5050 = vpop.permute.xlu0 %5049
    %5051 = vrot.lane.b32.xlu0 %v4982, 104
    %v5052 = vpop.permute.xlu0 %5051
    %5053 = vrot.lane.b32.xlu0 %v4983, 104
    %v5054 = vpop.permute.xlu0 %5053
    %5055 = vrot.lane.b32.xlu0 %v4984, 104
    %v5056 = vpop.permute.xlu0 %5055
    %vm5057 = vcmask 850944
    %v5058 = vsel %vm5057, %v5010, %v5012
    %v5059 = vsel %vm5057, %v5012, %v5014
    %v5060 = vsel %vm5057, %v5014, %v5016
    %v5061 = vsel %vm5057, %v5016, %v5018
    %v5062 = vsel %vm5057, %v5018, %v5020
    %v5063 = vsel %vm5057, %v5022, %v5024
    %v5064 = vsel %vm5057, %v5024, %v5026
    %v5065 = vsel %vm5057, %v5026, %v5028
    %v5066 = vsel %vm5057, %v5028, %v5030
    %v5067 = vsel %vm5057, %v5030, %v5032
    %v5068 = vsel %vm5057, %v5034, %v5036
    %v5069 = vsel %vm5057, %v5036, %v5038
    %v5070 = vsel %vm5057, %v5038, %v5040
    %v5071 = vsel %vm5057, %v5040, %v5042
    %v5072 = vsel %vm5057, %v5042, %v5044
    %v5073 = vsel %vm5057, %v5046, %v5048
    %v5074 = vsel %vm5057, %v5048, %v5050
    %v5075 = vsel %vm5057, %v5050, %v5052
    %v5076 = vsel %vm5057, %v5052, %v5054
    %v5077 = vsel %vm5057, %v5054, %v5056
    %vm5098 = vcmask 850944
    %v5100 = vsel %vm5098, %v5020, 0
    %v5103 = vsel %vm5098, %v5032, 0
    %v5106 = vsel %vm5098, %v5044, 0
    %v5109 = vsel %vm5098, %v5056, 0
    %v5111 = vmax.bf16 %v4961, %v5058
    %v5112 = vmax.bf16 %v4962, %v5059
    %v5113 = vmax.bf16 %v4963, %v5060
    %v5114 = vmax.bf16 %v4964, %v5061
    %v5115 = vmax.bf16 %v4965, %v5062
    %v5116 = vmax.bf16 %v4966, %v5100
    %v5117 = vmax.bf16 %v4967, %v5063
    %v5118 = vmax.bf16 %v4968, %v5064
    %v5119 = vmax.bf16 %v4969, %v5065
    %v5120 = vmax.bf16 %v4970, %v5066
    %v5121 = vmax.bf16 %v4971, %v5067
    %v5122 = vmax.bf16 %v4972, %v5103
    %v5123 = vmax.bf16 %v4973, %v5068
    %v5124 = vmax.bf16 %v4974, %v5069
    %v5125 = vmax.bf16 %v4975, %v5070
    %v5126 = vmax.bf16 %v4976, %v5071
    %v5127 = vmax.bf16 %v4977, %v5072
    %v5128 = vmax.bf16 %v4978, %v5106
    %v5129 = vmax.bf16 %v4979, %v5073
    %v5130 = vmax.bf16 %v4980, %v5074
    %v5131 = vmax.bf16 %v4981, %v5075
    %v5132 = vmax.bf16 %v4982, %v5076
    %v5133 = vmax.bf16 %v4983, %v5077
    %v5134 = vmax.bf16 %v4984, %v5109
    %s5135 = smul.u32 4, 14
    %s5136 = smul.u32 %s5135, 96
    %s5137 = smul.u32 %s5136, 2
    %s5138 = sshll.u32 %s5137, 4
    %5139 = dma.done [#allocation3], %s5138
    %v5140 = vld [vmem:[#allocation2] sm:$0xff]
    %v5141 = vld [vmem:[#allocation2 + $0x8] sm:$0xff]
    %v5142 = vld [vmem:[#allocation2 + $0x10] sm:$0xff]
    %v5143 = vld [vmem:[#allocation2 + $0x18] sm:$0xff]
    %v5144 = vld [vmem:[#allocation2 + $0x20] sm:$0xff]
    %v5145 = vld [vmem:[#allocation2 + $0x28] sm:$0xff]
    %v5146 = vld [vmem:[#allocation2 + $0x30] sm:$0xff]
    %v5147 = vld [vmem:[#allocation2 + $0x38] sm:$0xff]
    %v5148 = vld [vmem:[#allocation2 + $0x40] sm:$0xff]
    %v5149 = vld [vmem:[#allocation2 + $0x48] sm:$0xff]
    %v5150 = vld [vmem:[#allocation2 + $0x50] sm:$0xff]
    %v5151 = vld [vmem:[#allocation2 + $0x58] sm:$0xff]
    %v5152 = vld [vmem:[#allocation2 + $0x60] sm:$0xff]
    %v5153 = vld [vmem:[#allocation2 + $0x68] sm:$0xff]
    %v5154 = vld [vmem:[#allocation2 + $0x70] sm:$0xff]
    %v5155 = vld [vmem:[#allocation2 + $0x78] sm:$0xff]
    %v5156 = vld [vmem:[#allocation2 + $0x80] sm:$0xff]
    %v5157 = vld [vmem:[#allocation2 + $0x88] sm:$0xff]
    %v5158 = vld [vmem:[#allocation2 + $0x90] sm:$0xff]
    %v5159 = vld [vmem:[#allocation2 + $0x98] sm:$0xff]
    %v5160 = vld [vmem:[#allocation2 + $0xa0] sm:$0xff]
    %v5161 = vld [vmem:[#allocation2 + $0xa8] sm:$0xff]
    %v5162 = vld [vmem:[#allocation2 + $0xb0] sm:$0xff]
    %v5163 = vld [vmem:[#allocation2 + $0xb8] sm:$0xff]
    %v5164 = vld [vmem:[#allocation2 + $0xc0] sm:$0xff]
    %v5165 = vld [vmem:[#allocation2 + $0xc8] sm:$0xff]
    %v5166 = vld [vmem:[#allocation2 + $0xd0] sm:$0xff]
    %v5167 = vld [vmem:[#allocation2 + $0xd8] sm:$0xff]
    %v5168 = vld [vmem:[#allocation2 + $0xe0] sm:$0xff]
    %v5169 = vld [vmem:[#allocation2 + $0xe8] sm:$0xff]
    %v5170 = vld [vmem:[#allocation2 + $0xf0] sm:$0xff]
    %v5171 = vld [vmem:[#allocation2 + $0xf8] sm:$0xff]
    %v5172 = vld [vmem:[#allocation2 + $0x100] sm:$0xff]
    %v5173 = vld [vmem:[#allocation2 + $0x108] sm:$0xff]
    %v5174 = vld [vmem:[#allocation2 + $0x110] sm:$0xff]
    %v5175 = vld [vmem:[#allocation2 + $0x118] sm:$0xff]
    %v5176 = vld [vmem:[#allocation2 + $0x120] sm:$0xff]
    %v5177 = vld [vmem:[#allocation2 + $0x128] sm:$0xff]
    %v5178 = vld [vmem:[#allocation2 + $0x130] sm:$0xff]
    %v5179 = vld [vmem:[#allocation2 + $0x138] sm:$0xff]
    %v5180 = vld [vmem:[#allocation2 + $0x140] sm:$0xff]
    %v5181 = vld [vmem:[#allocation2 + $0x148] sm:$0xff]
    %v5182 = vld [vmem:[#allocation2 + $0x150] sm:$0xff]
    %v5183 = vld [vmem:[#allocation2 + $0x158] sm:$0xff]
    %v5184 = vld [vmem:[#allocation2 + $0x160] sm:$0xff]
    %v5185 = vld [vmem:[#allocation2 + $0x168] sm:$0xff]
    %v5186 = vld [vmem:[#allocation2 + $0x170] sm:$0xff]
    %v5187 = vld [vmem:[#allocation2 + $0x178] sm:$0xff]
    %v5188 = vld [vmem:[#allocation2 + $0x180] sm:$0xff]
    %v5189 = vld [vmem:[#allocation2 + $0x188] sm:$0xff]
    %v5190 = vld [vmem:[#allocation2 + $0x190] sm:$0xff]
    %v5191 = vld [vmem:[#allocation2 + $0x198] sm:$0xff]
    %v5192 = vld [vmem:[#allocation2 + $0x1a0] sm:$0xff]
    %v5193 = vld [vmem:[#allocation2 + $0x1a8] sm:$0xff]
    %v5194 = vld [vmem:[#allocation2 + $0x1b0] sm:$0xff]
    %v5195 = vld [vmem:[#allocation2 + $0x1b8] sm:$0xff]
    %v5196 = vld [vmem:[#allocation2 + $0x1c0] sm:$0xff]
    %v5197 = vld [vmem:[#allocation2 + $0x1c8] sm:$0xff]
    %v5198 = vld [vmem:[#allocation2 + $0x1d0] sm:$0xff]
    %v5199 = vld [vmem:[#allocation2 + $0x1d8] sm:$0xff]
    %v5200 = vld [vmem:[#allocation2 + $0x1e0] sm:$0xff]
    %v5201 = vld [vmem:[#allocation2 + $0x1e8] sm:$0xff]
    %v5202 = vld [vmem:[#allocation2 + $0x1f0] sm:$0xff]
    %v5203 = vld [vmem:[#allocation2 + $0x1f8] sm:$0xff]
    %v5204 = vld [vmem:[#allocation2 + $0x200] sm:$0xff]
    %v5205 = vld [vmem:[#allocation2 + $0x208] sm:$0xff]
    %v5206 = vld [vmem:[#allocation2 + $0x210] sm:$0xff]
    %v5207 = vld [vmem:[#allocation2 + $0x218] sm:$0xff]
    %v5208 = vld [vmem:[#allocation2 + $0x220] sm:$0xff]
    %v5209 = vld [vmem:[#allocation2 + $0x228] sm:$0xff]
    %v5210 = vld [vmem:[#allocation2 + $0x230] sm:$0xff]
    %v5211 = vld [vmem:[#allocation2 + $0x238] sm:$0xff]
    %v5212 = vld [vmem:[#allocation2 + $0x240] sm:$0xff]
    %v5213 = vld [vmem:[#allocation2 + $0x248] sm:$0xff]
    %v5214 = vld [vmem:[#allocation2 + $0x250] sm:$0xff]
    %v5215 = vld [vmem:[#allocation2 + $0x258] sm:$0xff]
    %v5216 = vld [vmem:[#allocation2 + $0x260] sm:$0xff]
    %v5217 = vld [vmem:[#allocation2 + $0x268] sm:$0xff]
    %v5218 = vld [vmem:[#allocation2 + $0x270] sm:$0xff]
    %v5219 = vld [vmem:[#allocation2 + $0x278] sm:$0xff]
    %v5220 = vld [vmem:[#allocation2 + $0x280] sm:$0xff]
    %v5221 = vld [vmem:[#allocation2 + $0x288] sm:$0xff]
    %v5222 = vld [vmem:[#allocation2 + $0x290] sm:$0xff]
    %v5223 = vld [vmem:[#allocation2 + $0x298] sm:$0xff]
    %v5224 = vld [vmem:[#allocation2 + $0x2a0] sm:$0xff]
    %v5225 = vld [vmem:[#allocation2 + $0x2a8] sm:$0xff]
    %v5226 = vld [vmem:[#allocation2 + $0x2b0] sm:$0xff]
    %v5227 = vld [vmem:[#allocation2 + $0x2b8] sm:$0xff]
    %v5228 = vld [vmem:[#allocation2 + $0x2c0] sm:$0xff]
    %v5229 = vld [vmem:[#allocation2 + $0x2c8] sm:$0xff]
    %v5230 = vld [vmem:[#allocation2 + $0x2d0] sm:$0xff]
    %v5231 = vld [vmem:[#allocation2 + $0x2d8] sm:$0xff]
    %v5232 = vld [vmem:[#allocation2 + $0x2e0] sm:$0xff]
    %v5233 = vld [vmem:[#allocation2 + $0x2e8] sm:$0xff]
    %v5234 = vld [vmem:[#allocation2 + $0x2f0] sm:$0xff]
    %v5235 = vld [vmem:[#allocation2 + $0x2f8] sm:$0xff]
    %s5236 = scalar_lea.vmem [#allocation2], 768
    %v5237 = vld [vmem:[%s5236] sm:$0xff]
    %v5238 = vld [vmem:[%s5236 + $0x8] sm:$0xff]
    %v5239 = vld [vmem:[%s5236 + $0x10] sm:$0xff]
    %v5240 = vld [vmem:[%s5236 + $0x18] sm:$0xff]
    %v5241 = vld [vmem:[%s5236 + $0x20] sm:$0xff]
    %v5242 = vld [vmem:[%s5236 + $0x28] sm:$0xff]
    %v5243 = vld [vmem:[%s5236 + $0x30] sm:$0xff]
    %v5244 = vld [vmem:[%s5236 + $0x38] sm:$0xff]
    %v5245 = vld [vmem:[%s5236 + $0x40] sm:$0xff]
    %v5246 = vld [vmem:[%s5236 + $0x48] sm:$0xff]
    %v5247 = vld [vmem:[%s5236 + $0x50] sm:$0xff]
    %v5248 = vld [vmem:[%s5236 + $0x58] sm:$0xff]
    %v5249 = vld [vmem:[%s5236 + $0x60] sm:$0xff]
    %v5250 = vld [vmem:[%s5236 + $0x68] sm:$0xff]
    %v5251 = vld [vmem:[%s5236 + $0x70] sm:$0xff]
    %v5252 = vld [vmem:[%s5236 + $0x78] sm:$0xff]
    %v5253 = vld [vmem:[%s5236 + $0x80] sm:$0xff]
    %v5254 = vld [vmem:[%s5236 + $0x88] sm:$0xff]
    %v5255 = vld [vmem:[%s5236 + $0x90] sm:$0xff]
    %v5256 = vld [vmem:[%s5236 + $0x98] sm:$0xff]
    %v5257 = vld [vmem:[%s5236 + $0xa0] sm:$0xff]
    %v5258 = vld [vmem:[%s5236 + $0xa8] sm:$0xff]
    %v5259 = vld [vmem:[%s5236 + $0xb0] sm:$0xff]
    %v5260 = vld [vmem:[%s5236 + $0xb8] sm:$0xff]
    %v5261 = vld [vmem:[%s5236 + $0xc0] sm:$0xff]
    %v5262 = vld [vmem:[%s5236 + $0xc8] sm:$0xff]
    %v5263 = vld [vmem:[%s5236 + $0xd0] sm:$0xff]
    %v5264 = vld [vmem:[%s5236 + $0xd8] sm:$0xff]
    %v5265 = vld [vmem:[%s5236 + $0xe0] sm:$0xff]
    %v5266 = vld [vmem:[%s5236 + $0xe8] sm:$0xff]
    %v5267 = vld [vmem:[%s5236 + $0xf0] sm:$0xff]
    %v5268 = vld [vmem:[%s5236 + $0xf8] sm:$0xff]
    %v5269 = vld [vmem:[%s5236 + $0x100] sm:$0xff]
    %v5270 = vld [vmem:[%s5236 + $0x108] sm:$0xff]
    %v5271 = vld [vmem:[%s5236 + $0x110] sm:$0xff]
    %v5272 = vld [vmem:[%s5236 + $0x118] sm:$0xff]
    %v5273 = vld [vmem:[%s5236 + $0x120] sm:$0xff]
    %v5274 = vld [vmem:[%s5236 + $0x128] sm:$0xff]
    %v5275 = vld [vmem:[%s5236 + $0x130] sm:$0xff]
    %v5276 = vld [vmem:[%s5236 + $0x138] sm:$0xff]
    %v5277 = vld [vmem:[%s5236 + $0x140] sm:$0xff]
    %v5278 = vld [vmem:[%s5236 + $0x148] sm:$0xff]
    %v5279 = vld [vmem:[%s5236 + $0x150] sm:$0xff]
    %v5280 = vld [vmem:[%s5236 + $0x158] sm:$0xff]
    %v5281 = vld [vmem:[%s5236 + $0x160] sm:$0xff]
    %v5282 = vld [vmem:[%s5236 + $0x168] sm:$0xff]
    %v5283 = vld [vmem:[%s5236 + $0x170] sm:$0xff]
    %v5284 = vld [vmem:[%s5236 + $0x178] sm:$0xff]
    %v5285 = vld [vmem:[%s5236 + $0x180] sm:$0xff]
    %v5286 = vld [vmem:[%s5236 + $0x188] sm:$0xff]
    %v5287 = vld [vmem:[%s5236 + $0x190] sm:$0xff]
    %v5288 = vld [vmem:[%s5236 + $0x198] sm:$0xff]
    %v5289 = vld [vmem:[%s5236 + $0x1a0] sm:$0xff]
    %v5290 = vld [vmem:[%s5236 + $0x1a8] sm:$0xff]
    %v5291 = vld [vmem:[%s5236 + $0x1b0] sm:$0xff]
    %v5292 = vld [vmem:[%s5236 + $0x1b8] sm:$0xff]
    %v5293 = vld [vmem:[%s5236 + $0x1c0] sm:$0xff]
    %v5294 = vld [vmem:[%s5236 + $0x1c8] sm:$0xff]
    %v5295 = vld [vmem:[%s5236 + $0x1d0] sm:$0xff]
    %v5296 = vld [vmem:[%s5236 + $0x1d8] sm:$0xff]
    %v5297 = vld [vmem:[%s5236 + $0x1e0] sm:$0xff]
    %v5298 = vld [vmem:[%s5236 + $0x1e8] sm:$0xff]
    %v5299 = vld [vmem:[%s5236 + $0x1f0] sm:$0xff]
    %v5300 = vld [vmem:[%s5236 + $0x1f8] sm:$0xff]
    %v5301 = vld [vmem:[%s5236 + $0x200] sm:$0xff]
    %v5302 = vld [vmem:[%s5236 + $0x208] sm:$0xff]
    %v5303 = vld [vmem:[%s5236 + $0x210] sm:$0xff]
    %v5304 = vld [vmem:[%s5236 + $0x218] sm:$0xff]
    %v5305 = vld [vmem:[%s5236 + $0x220] sm:$0xff]
    %v5306 = vld [vmem:[%s5236 + $0x228] sm:$0xff]
    %v5307 = vld [vmem:[%s5236 + $0x230] sm:$0xff]
    %v5308 = vld [vmem:[%s5236 + $0x238] sm:$0xff]
    %v5309 = vld [vmem:[%s5236 + $0x240] sm:$0xff]
    %v5310 = vld [vmem:[%s5236 + $0x248] sm:$0xff]
    %v5311 = vld [vmem:[%s5236 + $0x250] sm:$0xff]
    %v5312 = vld [vmem:[%s5236 + $0x258] sm:$0xff]
    %v5313 = vld [vmem:[%s5236 + $0x260] sm:$0xff]
    %v5314 = vld [vmem:[%s5236 + $0x268] sm:$0xff]
    %v5315 = vld [vmem:[%s5236 + $0x270] sm:$0xff]
    %v5316 = vld [vmem:[%s5236 + $0x278] sm:$0xff]
    %v5317 = vld [vmem:[%s5236 + $0x280] sm:$0xff]
    %v5318 = vld [vmem:[%s5236 + $0x288] sm:$0xff]
    %v5319 = vld [vmem:[%s5236 + $0x290] sm:$0xff]
    %v5320 = vld [vmem:[%s5236 + $0x298] sm:$0xff]
    %v5321 = vld [vmem:[%s5236 + $0x2a0] sm:$0xff]
    %v5322 = vld [vmem:[%s5236 + $0x2a8] sm:$0xff]
    %v5323 = vld [vmem:[%s5236 + $0x2b0] sm:$0xff]
    %v5324 = vld [vmem:[%s5236 + $0x2b8] sm:$0xff]
    %v5325 = vld [vmem:[%s5236 + $0x2c0] sm:$0xff]
    %v5326 = vld [vmem:[%s5236 + $0x2c8] sm:$0xff]
    %v5327 = vld [vmem:[%s5236 + $0x2d0] sm:$0xff]
    %v5328 = vld [vmem:[%s5236 + $0x2d8] sm:$0xff]
    %v5329 = vld [vmem:[%s5236 + $0x2e0] sm:$0xff]
    %v5330 = vld [vmem:[%s5236 + $0x2e8] sm:$0xff]
    %v5331 = vld [vmem:[%s5236 + $0x2f0] sm:$0xff]
    %v5332 = vld [vmem:[%s5236 + $0x2f8] sm:$0xff]
    %v5339 = vrot.slane %v5111, 2
    %v5340 = vrot.slane %v5112, 2
    %v5341 = vrot.slane %v5113, 2
    %v5342 = vrot.slane %v5114, 2
    %v5343 = vrot.slane %v5115, 2
    %v5344 = vrot.slane %v5116, 2
    %5351 = vmatprep.subr.bf16.mxu0 %v5238
    %5352 = vmatpush1.bf16.msra.mxu0 %v5237
    %5353 = vmatprep.subr.bf16.mxu0 %v5240
    %5354 = vmatpush1.bf16.msra.mxu0 %v5239
    %5355 = vmatprep.subr.bf16.mxu0 %v5242
    %5356 = vmatpush1.bf16.msra.mxu0 %v5241
    %5357 = vmatprep.subr.bf16.mxu0 %v5244
    %5358 = vmatpush1.bf16.msra.mxu0 %v5243
    %5359 = vmatprep.subr.bf16.mxu0 %v5246
    %5360 = vmatpush1.bf16.msra.mxu0 %v5245
    %5361 = vmatprep.subr.bf16.mxu0 %v5248
    %5362 = vmatpush1.bf16.msra.mxu0 %v5247
    %5363 = vmatprep.subr.bf16.mxu0 %v5250
    %5364 = vmatpush1.bf16.msra.mxu0 %v5249
    %5365 = vmatprep.subr.bf16.mxu0 %v5252
    %5366 = vmatpush1.bf16.msra.mxu0 %v5251
    %5367 = vmatprep.subr.bf16.mxu0 %v5254
    %5368 = vmatpush1.bf16.msra.mxu0 %v5253
    %5369 = vmatprep.subr.bf16.mxu0 %v5256
    %5370 = vmatpush1.bf16.msra.mxu0 %v5255
    %5371 = vmatprep.subr.bf16.mxu0 %v5258
    %5372 = vmatpush1.bf16.msra.mxu0 %v5257
    %5373 = vmatprep.subr.bf16.mxu0 %v5260
    %5374 = vmatpush1.bf16.msra.mxu0 %v5259
    %5375 = vmatprep.subr.bf16.mxu0 %v5262
    %5376 = vmatpush1.bf16.msra.mxu0 %v5261
    %5377 = vmatprep.subr.bf16.mxu0 %v5264
    %5378 = vmatpush1.bf16.msra.mxu0 %v5263
    %5379 = vmatprep.subr.bf16.mxu0 %v5266
    %5380 = vmatpush1.bf16.msra.mxu0 %v5265
    %5381 = vmatprep.subr.bf16.mxu0 %v5268
    %5382 = vmatpush1.bf16.msra.mxu0 %v5267
    %5383 = vmatprep.mubr.bf16.mxu0 %v5340
    %5384 = vmatmul.mubr.bf16.gmra.mrb[0].mxu0 %v5339
    %v5385 = vpop.f32.mrb[0].mxu0
    %v5386 = vadd.f32 0.0, %v5385
    %v5387 = vpop.f32.mrb[0].mxu0
    %v5388 = vadd.f32 0.0, %v5387
    %v5389 = vpop.f32.mrb[0].mxu0
    %v5390 = vpop.f32.mrb[0].mxu0
    %5391 = vdwg.mxu0
    %5392 = vmatprep.subr.bf16.mxu0 %v5270
    %5393 = vmatpush1.bf16.msra.mxu0 %v5269
    %5394 = vmatprep.subr.bf16.mxu0 %v5272
    %5395 = vmatpush1.bf16.msra.mxu0 %v5271
    %5396 = vmatprep.subr.bf16.mxu0 %v5274
    %5397 = vmatpush1.bf16.msra.mxu0 %v5273
    %5398 = vmatprep.subr.bf16.mxu0 %v5276
    %5399 = vmatpush1.bf16.msra.mxu0 %v5275
    %5400 = vmatprep.subr.bf16.mxu0 %v5278
    %5401 = vmatpush1.bf16.msra.mxu0 %v5277
    %5402 = vmatprep.subr.bf16.mxu0 %v5280
    %5403 = vmatpush1.bf16.msra.mxu0 %v5279
    %5404 = vmatprep.subr.bf16.mxu0 %v5282
    %5405 = vmatpush1.bf16.msra.mxu0 %v5281
    %5406 = vmatprep.subr.bf16.mxu0 %v5284
    %5407 = vmatpush1.bf16.msra.mxu0 %v5283
    %5408 = vmatprep.subr.bf16.mxu0 %v5286
    %5409 = vmatpush1.bf16.msra.mxu0 %v5285
    %5410 = vmatprep.subr.bf16.mxu0 %v5288
    %5411 = vmatpush1.bf16.msra.mxu0 %v5287
    %5412 = vmatprep.subr.bf16.mxu0 %v5290
    %5413 = vmatpush1.bf16.msra.mxu0 %v5289
    %5414 = vmatprep.subr.bf16.mxu0 %v5292
    %5415 = vmatpush1.bf16.msra.mxu0 %v5291
    %5416 = vmatprep.subr.bf16.mxu0 %v5294
    %5417 = vmatpush1.bf16.msra.mxu0 %v5293
    %5418 = vmatprep.subr.bf16.mxu0 %v5296
    %5419 = vmatpush1.bf16.msra.mxu0 %v5295
    %5420 = vmatprep.subr.bf16.mxu0 %v5298
    %5421 = vmatpush1.bf16.msra.mxu0 %v5297
    %5422 = vmatprep.subr.bf16.mxu0 %v5300
    %5423 = vmatpush1.bf16.msra.mxu0 %v5299
    %5424 = vmatprep.mubr.bf16.mxu0 %v5342
    %5425 = vmatmul.mubr.bf16.gmra.mrb[0].mxu0 %v5341
    %v5426 = vpop.f32.mrb[0].mxu0
    %v5427 = vadd.f32 %v5386, %v5426
    %v5428 = vpop.f32.mrb[0].mxu0
    %v5429 = vadd.f32 %v5388, %v5428
    %v5430 = vpop.f32.mrb[0].mxu0
    %v5431 = vpop.f32.mrb[0].mxu0
    %5432 = vdwg.mxu0
    %5433 = vmatprep.subr.bf16.mxu0 %v5302
    %5434 = vmatpush1.bf16.msra.mxu0 %v5301
    %5435 = vmatprep.subr.bf16.mxu0 %v5304
    %5436 = vmatpush1.bf16.msra.mxu0 %v5303
    %5437 = vmatprep.subr.bf16.mxu0 %v5306
    %5438 = vmatpush1.bf16.msra.mxu0 %v5305
    %5439 = vmatprep.subr.bf16.mxu0 %v5308
    %5440 = vmatpush1.bf16.msra.mxu0 %v5307
    %5441 = vmatprep.subr.bf16.mxu0 %v5310
    %5442 = vmatpush1.bf16.msra.mxu0 %v5309
    %5443 = vmatprep.subr.bf16.mxu0 %v5312
    %5444 = vmatpush1.bf16.msra.mxu0 %v5311
    %5445 = vmatprep.subr.bf16.mxu0 %v5314
    %5446 = vmatpush1.bf16.msra.mxu0 %v5313
    %5447 = vmatprep.subr.bf16.mxu0 %v5316
    %5448 = vmatpush1.bf16.msra.mxu0 %v5315
    %5449 = vmatprep.subr.bf16.mxu0 %v5318
    %5450 = vmatpush1.bf16.msra.mxu0 %v5317
    %5451 = vmatprep.subr.bf16.mxu0 %v5320
    %5452 = vmatpush1.bf16.msra.mxu0 %v5319
    %5453 = vmatprep.subr.bf16.mxu0 %v5322
    %5454 = vmatpush1.bf16.msra.mxu0 %v5321
    %5455 = vmatprep.subr.bf16.mxu0 %v5324
    %5456 = vmatpush1.bf16.msra.mxu0 %v5323
    %5457 = vmatprep.subr.bf16.mxu0 %v5326
    %5458 = vmatpush1.bf16.msra.mxu0 %v5325
    %5459 = vmatprep.subr.bf16.mxu0 %v5328
    %5460 = vmatpush1.bf16.msra.mxu0 %v5327
    %5461 = vmatprep.subr.bf16.mxu0 %v5330
    %5462 = vmatpush1.bf16.msra.mxu0 %v5329
    %5463 = vmatprep.subr.bf16.mxu0 %v5332
    %5464 = vmatpush1.bf16.msra.mxu0 %v5331
    %5465 = vmatprep.mubr.bf16.mxu0 %v5344
    %5466 = vmatmul.mubr.bf16.gmra.mrb[0].mxu0 %v5343
    %v5467 = vpop.f32.mrb[0].mxu0
    %v5468 = vadd.f32 %v5427, %v5467
    %v5469 = vpop.f32.mrb[0].mxu0
    %v5470 = vadd.f32 %v5429, %v5469
    %v5471 = vpop.f32.mrb[0].mxu0
    %v5472 = vpop.f32.mrb[0].mxu0
    %5473 = vdwg.mxu0
    %5474 = vmatprep.subr.bf16.mxu0 %v5141
    %5475 = vmatpush1.bf16.msra.mxu0 %v5140
    %5476 = vmatprep.subr.bf16.mxu0 %v5143
    %5477 = vmatpush1.bf16.msra.mxu0 %v5142
    %5478 = vmatprep.subr.bf16.mxu0 %v5145
    %5479 = vmatpush1.bf16.msra.mxu0 %v5144
    %5480 = vmatprep.subr.bf16.mxu0 %v5147
    %5481 = vmatpush1.bf16.msra.mxu0 %v5146
    %5482 = vmatprep.subr.bf16.mxu0 %v5149
    %5483 = vmatpush1.bf16.msra.mxu0 %v5148
    %5484 = vmatprep.subr.bf16.mxu0 %v5151
    %5485 = vmatpush1.bf16.msra.mxu0 %v5150
    %5486 = vmatprep.subr.bf16.mxu0 %v5153
    %5487 = vmatpush1.bf16.msra.mxu0 %v5152
    %5488 = vmatprep.subr.bf16.mxu0 %v5155
    %5489 = vmatpush1.bf16.msra.mxu0 %v5154
    %5490 = vmatprep.subr.bf16.mxu0 %v5157
    %5491 = vmatpush1.bf16.msra.mxu0 %v5156
    %5492 = vmatprep.subr.bf16.mxu0 %v5159
    %5493 = vmatpush1.bf16.msra.mxu0 %v5158
    %5494 = vmatprep.subr.bf16.mxu0 %v5161
    %5495 = vmatpush1.bf16.msra.mxu0 %v5160
    %5496 = vmatprep.subr.bf16.mxu0 %v5163
    %5497 = vmatpush1.bf16.msra.mxu0 %v5162
    %5498 = vmatprep.subr.bf16.mxu0 %v5165
    %5499 = vmatpush1.bf16.msra.mxu0 %v5164
    %5500 = vmatprep.subr.bf16.mxu0 %v5167
    %5501 = vmatpush1.bf16.msra.mxu0 %v5166
    %5502 = vmatprep.subr.bf16.mxu0 %v5169
    %5503 = vmatpush1.bf16.msra.mxu0 %v5168
    %5504 = vmatprep.subr.bf16.mxu0 %v5171
    %5505 = vmatpush1.bf16.msra.mxu0 %v5170
    %5506 = vmatprep.mubr.bf16.mxu0 %v5112
    %5507 = vmatmul.mubr.bf16.gmra.mrb[0].mxu0 %v5111
    %v5508 = vpop.f32.mrb[0].mxu0
    %v5509 = vadd.f32 %v5468, %v5508
    %v5510 = vpop.f32.mrb[0].mxu0
    %v5511 = vadd.f32 %v5470, %v5510
    %v5512 = vpop.f32.mrb[0].mxu0
    %v5513 = vpop.f32.mrb[0].mxu0
    %5514 = vdwg.mxu0
    %5515 = vmatprep.subr.bf16.mxu0 %v5173
    %5516 = vmatpush1.bf16.msra.mxu0 %v5172
    %5517 = vmatprep.subr.bf16.mxu0 %v5175
    %5518 = vmatpush1.bf16.msra.mxu0 %v5174
    %5519 = vmatprep.subr.bf16.mxu0 %v5177
    %5520 = vmatpush1.bf16.msra.mxu0 %v5176
    %5521 = vmatprep.subr.bf16.mxu0 %v5179
    %5522 = vmatpush1.bf16.msra.mxu0 %v5178
    %5523 = vmatprep.subr.bf16.mxu0 %v5181
    %5524 = vmatpush1.bf16.msra.mxu0 %v5180
    %5525 = vmatprep.subr.bf16.mxu0 %v5183
    %5526 = vmatpush1.bf16.msra.mxu0 %v5182
    %5527 = vmatprep.subr.bf16.mxu0 %v5185
    %5528 = vmatpush1.bf16.msra.mxu0 %v5184
    %5529 = vmatprep.subr.bf16.mxu0 %v5187
    %5530 = vmatpush1.bf16.msra.mxu0 %v5186
    %5531 = vmatprep.subr.bf16.mxu0 %v5189
    %5532 = vmatpush1.bf16.msra.mxu0 %v5188
    %5533 = vmatprep.subr.bf16.mxu0 %v5191
    %5534 = vmatpush1.bf16.msra.mxu0 %v5190
    %5535 = vmatprep.subr.bf16.mxu0 %v5193
    %5536 = vmatpush1.bf16.msra.mxu0 %v5192
    %5537 = vmatprep.subr.bf16.mxu0 %v5195
    %5538 = vmatpush1.bf16.msra.mxu0 %v5194
    %5539 = vmatprep.subr.bf16.mxu0 %v5197
    %5540 = vmatpush1.bf16.msra.mxu0 %v5196
    %5541 = vmatprep.subr.bf16.mxu0 %v5199
    %5542 = vmatpush1.bf16.msra.mxu0 %v5198
    %5543 = vmatprep.subr.bf16.mxu0 %v5201
    %5544 = vmatpush1.bf16.msra.mxu0 %v5200
    %5545 = vmatprep.subr.bf16.mxu0 %v5203
    %5546 = vmatpush1.bf16.msra.mxu0 %v5202
    %5547 = vmatprep.mubr.bf16.mxu0 %v5114
    %5548 = vmatmul.mubr.bf16.gmra.mrb[0].mxu0 %v5113
    %v5549 = vpop.f32.mrb[0].mxu0
    %v5550 = vadd.f32 %v5509, %v5549
    %v5551 = vpop.f32.mrb[0].mxu0
    %v5552 = vadd.f32 %v5511, %v5551
    %v5553 = vpop.f32.mrb[0].mxu0
    %v5554 = vpop.f32.mrb[0].mxu0
    %5555 = vdwg.mxu0
    %5556 = vmatprep.subr.bf16.mxu0 %v5205
    %5557 = vmatpush1.bf16.msra.mxu0 %v5204
    %5558 = vmatprep.subr.bf16.mxu0 %v5207
    %5559 = vmatpush1.bf16.msra.mxu0 %v5206
    %5560 = vmatprep.subr.bf16.mxu0 %v5209
    %5561 = vmatpush1.bf16.msra.mxu0 %v5208
    %5562 = vmatprep.subr.bf16.mxu0 %v5211
    %5563 = vmatpush1.bf16.msra.mxu0 %v5210
    %5564 = vmatprep.subr.bf16.mxu0 %v5213
    %5565 = vmatpush1.bf16.msra.mxu0 %v5212
    %5566 = vmatprep.subr.bf16.mxu0 %v5215
    %5567 = vmatpush1.bf16.msra.mxu0 %v5214
    %5568 = vmatprep.subr.bf16.mxu0 %v5217
    %5569 = vmatpush1.bf16.msra.mxu0 %v5216
    %5570 = vmatprep.subr.bf16.mxu0 %v5219
    %5571 = vmatpush1.bf16.msra.mxu0 %v5218
    %5572 = vmatprep.subr.bf16.mxu0 %v5221
    %5573 = vmatpush1.bf16.msra.mxu0 %v5220
    %5574 = vmatprep.subr.bf16.mxu0 %v5223
    %5575 = vmatpush1.bf16.msra.mxu0 %v5222
    %5576 = vmatprep.subr.bf16.mxu0 %v5225
    %5577 = vmatpush1.bf16.msra.mxu0 %v5224
    %5578 = vmatprep.subr.bf16.mxu0 %v5227
    %5579 = vmatpush1.bf16.msra.mxu0 %v5226
    %5580 = vmatprep.subr.bf16.mxu0 %v5229
    %5581 = vmatpush1.bf16.msra.mxu0 %v5228
    %5582 = vmatprep.subr.bf16.mxu0 %v5231
    %5583 = vmatpush1.bf16.msra.mxu0 %v5230
    %5584 = vmatprep.subr.bf16.mxu0 %v5233
    %5585 = vmatpush1.bf16.msra.mxu0 %v5232
    %5586 = vmatprep.subr.bf16.mxu0 %v5235
    %5587 = vmatpush1.bf16.msra.mxu0 %v5234
    %5588 = vmatprep.mubr.bf16.mxu0 %v5116
    %5589 = vmatmul.mubr.bf16.gmra.mrb[0].mxu0 %v5115
    %v5590 = vpop.f32.mrb[0].mxu0
    %v5591 = vadd.f32 %v5550, %v5590
    %v5592 = vpop.f32.mrb[0].mxu0
    %v5593 = vadd.f32 %v5552, %v5592
    %v5594 = vpop.f32.mrb[0].mxu0
    %v5595 = vpop.f32.mrb[0].mxu0
    %5596 = vdwg.mxu0
    %s5597 = scalar_lea.vmem [#allocation2], 1536
    %v5598 = vld [vmem:[%s5597] sm:$0xff]
    %v5599 = vld [vmem:[%s5597 + $0x8] sm:$0xff]
    %v5600 = vld [vmem:[%s5597 + $0x10] sm:$0xff]
    %v5601 = vld [vmem:[%s5597 + $0x18] sm:$0xff]
    %v5602 = vld [vmem:[%s5597 + $0x20] sm:$0xff]
    %v5603 = vld [vmem:[%s5597 + $0x28] sm:$0xff]
    %v5604 = vld [vmem:[%s5597 + $0x30] sm:$0xff]
    %v5605 = vld [vmem:[%s5597 + $0x38] sm:$0xff]
    %v5606 = vld [vmem:[%s5597 + $0x40] sm:$0xff]
    %v5607 = vld [vmem:[%s5597 + $0x48] sm:$0xff]
    %v5608 = vld [vmem:[%s5597 + $0x50] sm:$0xff]
    %v5609 = vld [vmem:[%s5597 + $0x58] sm:$0xff]
    %v5610 = vld [vmem:[%s5597 + $0x60] sm:$0xff]
    %v5611 = vld [vmem:[%s5597 + $0x68] sm:$0xff]
    %v5612 = vld [vmem:[%s5597 + $0x70] sm:$0xff]
    %v5613 = vld [vmem:[%s5597 + $0x78] sm:$0xff]
    %v5614 = vld [vmem:[%s5597 + $0x80] sm:$0xff]
    %v5615 = vld [vmem:[%s5597 + $0x88] sm:$0xff]
    %v5616 = vld [vmem:[%s5597 + $0x90] sm:$0xff]
    %v5617 = vld [vmem:[%s5597 + $0x98] sm:$0xff]
    %v5618 = vld [vmem:[%s5597 + $0xa0] sm:$0xff]
    %v5619 = vld [vmem:[%s5597 + $0xa8] sm:$0xff]
    %v5620 = vld [vmem:[%s5597 + $0xb0] sm:$0xff]
    %v5621 = vld [vmem:[%s5597 + $0xb8] sm:$0xff]
    %v5622 = vld [vmem:[%s5597 + $0xc0] sm:$0xff]
    %v5623 = vld [vmem:[%s5597 + $0xc8] sm:$0xff]
    %v5624 = vld [vmem:[%s5597 + $0xd0] sm:$0xff]
    %v5625 = vld [vmem:[%s5597 + $0xd8] sm:$0xff]
    %v5626 = vld [vmem:[%s5597 + $0xe0] sm:$0xff]
    %v5627 = vld [vmem:[%s5597 + $0xe8] sm:$0xff]
    %v5628 = vld [vmem:[%s5597 + $0xf0] sm:$0xff]
    %v5629 = vld [vmem:[%s5597 + $0xf8] sm:$0xff]
    %v5630 = vld [vmem:[%s5597 + $0x100] sm:$0xff]
    %v5631 = vld [vmem:[%s5597 + $0x108] sm:$0xff]
    %v5632 = vld [vmem:[%s5597 + $0x110] sm:$0xff]
    %v5633 = vld [vmem:[%s5597 + $0x118] sm:$0xff]
    %v5634 = vld [vmem:[%s5597 + $0x120] sm:$0xff]
    %v5635 = vld [vmem:[%s5597 + $0x128] sm:$0xff]
    %v5636 = vld [vmem:[%s5597 + $0x130] sm:$0xff]
    %v5637 = vld [vmem:[%s5597 + $0x138] sm:$0xff]
    %v5638 = vld [vmem:[%s5597 + $0x140] sm:$0xff]
    %v5639 = vld [vmem:[%s5597 + $0x148] sm:$0xff]
    %v5640 = vld [vmem:[%s5597 + $0x150] sm:$0xff]
    %v5641 = vld [vmem:[%s5597 + $0x158] sm:$0xff]
    %v5642 = vld [vmem:[%s5597 + $0x160] sm:$0xff]
    %v5643 = vld [vmem:[%s5597 + $0x168] sm:$0xff]
    %v5644 = vld [vmem:[%s5597 + $0x170] sm:$0xff]
    %v5645 = vld [vmem:[%s5597 + $0x178] sm:$0xff]
    %v5646 = vld [vmem:[%s5597 + $0x180] sm:$0xff]
    %v5647 = vld [vmem:[%s5597 + $0x188] sm:$0xff]
    %v5648 = vld [vmem:[%s5597 + $0x190] sm:$0xff]
    %v5649 = vld [vmem:[%s5597 + $0x198] sm:$0xff]
    %v5650 = vld [vmem:[%s5597 + $0x1a0] sm:$0xff]
    %v5651 = vld [vmem:[%s5597 + $0x1a8] sm:$0xff]
    %v5652 = vld [vmem:[%s5597 + $0x1b0] sm:$0xff]
    %v5653 = vld [vmem:[%s5597 + $0x1b8] sm:$0xff]
    %v5654 = vld [vmem:[%s5597 + $0x1c0] sm:$0xff]
    %v5655 = vld [vmem:[%s5597 + $0x1c8] sm:$0xff]
    %v5656 = vld [vmem:[%s5597 + $0x1d0] sm:$0xff]
    %v5657 = vld [vmem:[%s5597 + $0x1d8] sm:$0xff]
    %v5658 = vld [vmem:[%s5597 + $0x1e0] sm:$0xff]
    %v5659 = vld [vmem:[%s5597 + $0x1e8] sm:$0xff]
    %v5660 = vld [vmem:[%s5597 + $0x1f0] sm:$0xff]
    %v5661 = vld [vmem:[%s5597 + $0x1f8] sm:$0xff]
    %v5662 = vld [vmem:[%s5597 + $0x200] sm:$0xff]
    %v5663 = vld [vmem:[%s5597 + $0x208] sm:$0xff]
    %v5664 = vld [vmem:[%s5597 + $0x210] sm:$0xff]
    %v5665 = vld [vmem:[%s5597 + $0x218] sm:$0xff]
    %v5666 = vld [vmem:[%s5597 + $0x220] sm:$0xff]
    %v5667 = vld [vmem:[%s5597 + $0x228] sm:$0xff]
    %v5668 = vld [vmem:[%s5597 + $0x230] sm:$0xff]
    %v5669 = vld [vmem:[%s5597 + $0x238] sm:$0xff]
    %v5670 = vld [vmem:[%s5597 + $0x240] sm:$0xff]
    %v5671 = vld [vmem:[%s5597 + $0x248] sm:$0xff]
    %v5672 = vld [vmem:[%s5597 + $0x250] sm:$0xff]
    %v5673 = vld [vmem:[%s5597 + $0x258] sm:$0xff]
    %v5674 = vld [vmem:[%s5597 + $0x260] sm:$0xff]
    %v5675 = vld [vmem:[%s5597 + $0x268] sm:$0xff]
    %v5676 = vld [vmem:[%s5597 + $0x270] sm:$0xff]
    %v5677 = vld [vmem:[%s5597 + $0x278] sm:$0xff]
    %v5678 = vld [vmem:[%s5597 + $0x280] sm:$0xff]
    %v5679 = vld [vmem:[%s5597 + $0x288] sm:$0xff]
    %v5680 = vld [vmem:[%s5597 + $0x290] sm:$0xff]
    %v5681 = vld [vmem:[%s5597 + $0x298] sm:$0xff]
    %v5682 = vld [vmem:[%s5597 + $0x2a0] sm:$0xff]
    %v5683 = vld [vmem:[%s5597 + $0x2a8] sm:$0xff]
    %v5684 = vld [vmem:[%s5597 + $0x2b0] sm:$0xff]
    %v5685 = vld [vmem:[%s5597 + $0x2b8] sm:$0xff]
    %v5686 = vld [vmem:[%s5597 + $0x2c0] sm:$0xff]
    %v5687 = vld [vmem:[%s5597 + $0x2c8] sm:$0xff]
    %v5688 = vld [vmem:[%s5597 + $0x2d0] sm:$0xff]
    %v5689 = vld [vmem:[%s5597 + $0x2d8] sm:$0xff]
    %v5690 = vld [vmem:[%s5597 + $0x2e0] sm:$0xff]
    %v5691 = vld [vmem:[%s5597 + $0x2e8] sm:$0xff]
    %v5692 = vld [vmem:[%s5597 + $0x2f0] sm:$0xff]
    %v5693 = vld [vmem:[%s5597 + $0x2f8] sm:$0xff]
    %v5694 = vrot.slane %v5111, 4
    %v5695 = vrot.slane %v5112, 4
    %v5696 = vrot.slane %v5113, 4
    %v5697 = vrot.slane %v5114, 4
    %v5698 = vrot.slane %v5115, 4
    %v5699 = vrot.slane %v5116, 4
    %5706 = vmatprep.subr.bf16.mxu0 %v5599
    %5707 = vmatpush1.bf16.msra.mxu0 %v5598
    %5708 = vmatprep.subr.bf16.mxu0 %v5601
    %5709 = vmatpush1.bf16.msra.mxu0 %v5600
    %5710 = vmatprep.subr.bf16.mxu0 %v5603
    %5711 = vmatpush1.bf16.msra.mxu0 %v5602
    %5712 = vmatprep.subr.bf16.mxu0 %v5605
    %5713 = vmatpush1.bf16.msra.mxu0 %v5604
    %5714 = vmatprep.subr.bf16.mxu0 %v5607
    %5715 = vmatpush1.bf16.msra.mxu0 %v5606
    %5716 = vmatprep.subr.bf16.mxu0 %v5609
    %5717 = vmatpush1.bf16.msra.mxu0 %v5608
    %5718 = vmatprep.subr.bf16.mxu0 %v5611
    %5719 = vmatpush1.bf16.msra.mxu0 %v5610
    %5720 = vmatprep.subr.bf16.mxu0 %v5613
    %5721 = vmatpush1.bf16.msra.mxu0 %v5612
    %5722 = vmatprep.subr.bf16.mxu0 %v5615
    %5723 = vmatpush1.bf16.msra.mxu0 %v5614
    %5724 = vmatprep.subr.bf16.mxu0 %v5617
    %5725 = vmatpush1.bf16.msra.mxu0 %v5616
    %5726 = vmatprep.subr.bf16.mxu0 %v5619
    %5727 = vmatpush1.bf16.msra.mxu0 %v5618
    %5728 = vmatprep.subr.bf16.mxu0 %v5621
    %5729 = vmatpush1.bf16.msra.mxu0 %v5620
    %5730 = vmatprep.subr.bf16.mxu0 %v5623
    %5731 = vmatpush1.bf16.msra.mxu0 %v5622
    %5732 = vmatprep.subr.bf16.mxu0 %v5625
    %5733 = vmatpush1.bf16.msra.mxu0 %v5624
    %5734 = vmatprep.subr.bf16.mxu0 %v5627
    %5735 = vmatpush1.bf16.msra.mxu0 %v5626
    %5736 = vmatprep.subr.bf16.mxu0 %v5629
    %5737 = vmatpush1.bf16.msra.mxu0 %v5628
    %5738 = vmatprep.mubr.bf16.mxu0 %v5695
    %5739 = vmatmul.mubr.bf16.gmra.mrb[0].mxu0 %v5694
    %v5740 = vpop.f32.mrb[0].mxu0
    %v5741 = vadd.f32 0.0, %v5740
    %v5742 = vpop.f32.mrb[0].mxu0
    %v5743 = vadd.f32 0.0, %v5742
    %v5744 = vpop.f32.mrb[0].mxu0
    %v5745 = vpop.f32.mrb[0].mxu0
    %5746 = vdwg.mxu0
    %5747 = vmatprep.subr.bf16.mxu0 %v5631
    %5748 = vmatpush1.bf16.msra.mxu0 %v5630
    %5749 = vmatprep.subr.bf16.mxu0 %v5633
    %5750 = vmatpush1.bf16.msra.mxu0 %v5632
    %5751 = vmatprep.subr.bf16.mxu0 %v5635
    %5752 = vmatpush1.bf16.msra.mxu0 %v5634
    %5753 = vmatprep.subr.bf16.mxu0 %v5637
    %5754 = vmatpush1.bf16.msra.mxu0 %v5636
    %5755 = vmatprep.subr.bf16.mxu0 %v5639
    %5756 = vmatpush1.bf16.msra.mxu0 %v5638
    %5757 = vmatprep.subr.bf16.mxu0 %v5641
    %5758 = vmatpush1.bf16.msra.mxu0 %v5640
    %5759 = vmatprep.subr.bf16.mxu0 %v5643
    %5760 = vmatpush1.bf16.msra.mxu0 %v5642
    %5761 = vmatprep.subr.bf16.mxu0 %v5645
    %5762 = vmatpush1.bf16.msra.mxu0 %v5644
    %5763 = vmatprep.subr.bf16.mxu0 %v5647
    %5764 = vmatpush1.bf16.msra.mxu0 %v5646
    %5765 = vmatprep.subr.bf16.mxu0 %v5649
    %5766 = vmatpush1.bf16.msra.mxu0 %v5648
    %5767 = vmatprep.subr.bf16.mxu0 %v5651
    %5768 = vmatpush1.bf16.msra.mxu0 %v5650
    %5769 = vmatprep.subr.bf16.mxu0 %v5653
    %5770 = vmatpush1.bf16.msra.mxu0 %v5652
    %5771 = vmatprep.subr.bf16.mxu0 %v5655
    %5772 = vmatpush1.bf16.msra.mxu0 %v5654
    %5773 = vmatprep.subr.bf16.mxu0 %v5657
    %5774 = vmatpush1.bf16.msra.mxu0 %v5656
    %5775 = vmatprep.subr.bf16.mxu0 %v5659
    %5776 = vmatpush1.bf16.msra.mxu0 %v5658
    %5777 = vmatprep.subr.bf16.mxu0 %v5661
    %5778 = vmatpush1.bf16.msra.mxu0 %v5660
    %5779 = vmatprep.mubr.bf16.mxu0 %v5697
    %5780 = vmatmul.mubr.bf16.gmra.mrb[0].mxu0 %v5696
    %v5781 = vpop.f32.mrb[0].mxu0
    %v5782 = vadd.f32 %v5741, %v5781
    %v5783 = vpop.f32.mrb[0].mxu0
    %v5784 = vadd.f32 %v5743, %v5783
    %v5785 = vpop.f32.mrb[0].mxu0
    %v5786 = vpop.f32.mrb[0].mxu0
    %5787 = vdwg.mxu0
    %5788 = vmatprep.subr.bf16.mxu0 %v5663
    %5789 = vmatpush1.bf16.msra.mxu0 %v5662
    %5790 = vmatprep.subr.bf16.mxu0 %v5665
    %5791 = vmatpush1.bf16.msra.mxu0 %v5664
    %5792 = vmatprep.subr.bf16.mxu0 %v5667
    %5793 = vmatpush1.bf16.msra.mxu0 %v5666
    %5794 = vmatprep.subr.bf16.mxu0 %v5669
    %5795 = vmatpush1.bf16.msra.mxu0 %v5668
    %5796 = vmatprep.subr.bf16.mxu0 %v5671
    %5797 = vmatpush1.bf16.msra.mxu0 %v5670
    %5798 = vmatprep.subr.bf16.mxu0 %v5673
    %5799 = vmatpush1.bf16.msra.mxu0 %v5672
    %5800 = vmatprep.subr.bf16.mxu0 %v5675
    %5801 = vmatpush1.bf16.msra.mxu0 %v5674
    %5802 = vmatprep.subr.bf16.mxu0 %v5677
    %5803 = vmatpush1.bf16.msra.mxu0 %v5676
    %5804 = vmatprep.subr.bf16.mxu0 %v5679
    %5805 = vmatpush1.bf16.msra.mxu0 %v5678
    %5806 = vmatprep.subr.bf16.mxu0 %v5681
    %5807 = vmatpush1.bf16.msra.mxu0 %v5680
    %5808 = vmatprep.subr.bf16.mxu0 %v5683
    %5809 = vmatpush1.bf16.msra.mxu0 %v5682
    %5810 = vmatprep.subr.bf16.mxu0 %v5685
    %5811 = vmatpush1.bf16.msra.mxu0 %v5684
    %5812 = vmatprep.subr.bf16.mxu0 %v5687
    %5813 = vmatpush1.bf16.msra.mxu0 %v5686
    %5814 = vmatprep.subr.bf16.mxu0 %v5689
    %5815 = vmatpush1.bf16.msra.mxu0 %v5688
    %5816 = vmatprep.subr.bf16.mxu0 %v5691
    %5817 = vmatpush1.bf16.msra.mxu0 %v5690
    %5818 = vmatprep.subr.bf16.mxu0 %v5693
    %5819 = vmatpush1.bf16.msra.mxu0 %v5692
    %5820 = vmatprep.mubr.bf16.mxu0 %v5699
    %5821 = vmatmul.mubr.bf16.gmra.mrb[0].mxu0 %v5698
    %v5822 = vpop.f32.mrb[0].mxu0
    %v5823 = vadd.f32 %v5782, %v5822
    %v5824 = vpop.f32.mrb[0].mxu0
    %v5825 = vadd.f32 %v5784, %v5824
    %v5826 = vpop.f32.mrb[0].mxu0
    %v5827 = vpop.f32.mrb[0].mxu0
    %5828 = vdwg.mxu0
    %v5829 = vadd.f32 %v5591, %v5823
    %v5830 = vadd.f32 %v5593, %v5825
    %s5831 = scalar_lea.vmem [#allocation2], 2304
    %v5832 = vld [vmem:[%s5831] sm:$0xff]
    %v5833 = vld [vmem:[%s5831 + $0x8] sm:$0xff]
    %v5834 = vld [vmem:[%s5831 + $0x10] sm:$0xff]
    %v5835 = vld [vmem:[%s5831 + $0x18] sm:$0xff]
    %v5836 = vld [vmem:[%s5831 + $0x20] sm:$0xff]
    %v5837 = vld [vmem:[%s5831 + $0x28] sm:$0xff]
    %v5838 = vld [vmem:[%s5831 + $0x30] sm:$0xff]
    %v5839 = vld [vmem:[%s5831 + $0x38] sm:$0xff]
    %v5840 = vld [vmem:[%s5831 + $0x40] sm:$0xff]
    %v5841 = vld [vmem:[%s5831 + $0x48] sm:$0xff]
    %v5842 = vld [vmem:[%s5831 + $0x50] sm:$0xff]
    %v5843 = vld [vmem:[%s5831 + $0x58] sm:$0xff]
    %v5844 = vld [vmem:[%s5831 + $0x60] sm:$0xff]
    %v5845 = vld [vmem:[%s5831 + $0x68] sm:$0xff]
    %v5846 = vld [vmem:[%s5831 + $0x70] sm:$0xff]
    %v5847 = vld [vmem:[%s5831 + $0x78] sm:$0xff]
    %v5848 = vld [vmem:[%s5831 + $0x80] sm:$0xff]
    %v5849 = vld [vmem:[%s5831 + $0x88] sm:$0xff]
    %v5850 = vld [vmem:[%s5831 + $0x90] sm:$0xff]
    %v5851 = vld [vmem:[%s5831 + $0x98] sm:$0xff]
    %v5852 = vld [vmem:[%s5831 + $0xa0] sm:$0xff]
    %v5853 = vld [vmem:[%s5831 + $0xa8] sm:$0xff]
    %v5854 = vld [vmem:[%s5831 + $0xb0] sm:$0xff]
    %v5855 = vld [vmem:[%s5831 + $0xb8] sm:$0xff]
    %v5856 = vld [vmem:[%s5831 + $0xc0] sm:$0xff]
    %v5857 = vld [vmem:[%s5831 + $0xc8] sm:$0xff]
    %v5858 = vld [vmem:[%s5831 + $0xd0] sm:$0xff]
    %v5859 = vld [vmem:[%s5831 + $0xd8] sm:$0xff]
    %v5860 = vld [vmem:[%s5831 + $0xe0] sm:$0xff]
    %v5861 = vld [vmem:[%s5831 + $0xe8] sm:$0xff]
    %v5862 = vld [vmem:[%s5831 + $0xf0] sm:$0xff]
    %v5863 = vld [vmem:[%s5831 + $0xf8] sm:$0xff]
    %v5864 = vld [vmem:[%s5831 + $0x100] sm:$0xff]
    %v5865 = vld [vmem:[%s5831 + $0x108] sm:$0xff]
    %v5866 = vld [vmem:[%s5831 + $0x110] sm:$0xff]
    %v5867 = vld [vmem:[%s5831 + $0x118] sm:$0xff]
    %v5868 = vld [vmem:[%s5831 + $0x120] sm:$0xff]
    %v5869 = vld [vmem:[%s5831 + $0x128] sm:$0xff]
    %v5870 = vld [vmem:[%s5831 + $0x130] sm:$0xff]
    %v5871 = vld [vmem:[%s5831 + $0x138] sm:$0xff]
    %v5872 = vld [vmem:[%s5831 + $0x140] sm:$0xff]
    %v5873 = vld [vmem:[%s5831 + $0x148] sm:$0xff]
    %v5874 = vld [vmem:[%s5831 + $0x150] sm:$0xff]
    %v5875 = vld [vmem:[%s5831 + $0x158] sm:$0xff]
    %v5876 = vld [vmem:[%s5831 + $0x160] sm:$0xff]
    %v5877 = vld [vmem:[%s5831 + $0x168] sm:$0xff]
    %v5878 = vld [vmem:[%s5831 + $0x170] sm:$0xff]
    %v5879 = vld [vmem:[%s5831 + $0x178] sm:$0xff]
    %v5880 = vld [vmem:[%s5831 + $0x180] sm:$0xff]
    %v5881 = vld [vmem:[%s5831 + $0x188] sm:$0xff]
    %v5882 = vld [vmem:[%s5831 + $0x190] sm:$0xff]
    %v5883 = vld [vmem:[%s5831 + $0x198] sm:$0xff]
    %v5884 = vld [vmem:[%s5831 + $0x1a0] sm:$0xff]
    %v5885 = vld [vmem:[%s5831 + $0x1a8] sm:$0xff]
    %v5886 = vld [vmem:[%s5831 + $0x1b0] sm:$0xff]
    %v5887 = vld [vmem:[%s5831 + $0x1b8] sm:$0xff]
    %v5888 = vld [vmem:[%s5831 + $0x1c0] sm:$0xff]
    %v5889 = vld [vmem:[%s5831 + $0x1c8] sm:$0xff]
    %v5890 = vld [vmem:[%s5831 + $0x1d0] sm:$0xff]
    %v5891 = vld [vmem:[%s5831 + $0x1d8] sm:$0xff]
    %v5892 = vld [vmem:[%s5831 + $0x1e0] sm:$0xff]
    %v5893 = vld [vmem:[%s5831 + $0x1e8] sm:$0xff]
    %v5894 = vld [vmem:[%s5831 + $0x1f0] sm:$0xff]
    %v5895 = vld [vmem:[%s5831 + $0x1f8] sm:$0xff]
    %v5896 = vld [vmem:[%s5831 + $0x200] sm:$0xff]
    %v5897 = vld [vmem:[%s5831 + $0x208] sm:$0xff]
    %v5898 = vld [vmem:[%s5831 + $0x210] sm:$0xff]
    %v5899 = vld [vmem:[%s5831 + $0x218] sm:$0xff]
    %v5900 = vld [vmem:[%s5831 + $0x220] sm:$0xff]
    %v5901 = vld [vmem:[%s5831 + $0x228] sm:$0xff]
    %v5902 = vld [vmem:[%s5831 + $0x230] sm:$0xff]
    %v5903 = vld [vmem:[%s5831 + $0x238] sm:$0xff]
    %v5904 = vld [vmem:[%s5831 + $0x240] sm:$0xff]
    %v5905 = vld [vmem:[%s5831 + $0x248] sm:$0xff]
    %v5906 = vld [vmem:[%s5831 + $0x250] sm:$0xff]
    %v5907 = vld [vmem:[%s5831 + $0x258] sm:$0xff]
    %v5908 = vld [vmem:[%s5831 + $0x260] sm:$0xff]
    %v5909 = vld [vmem:[%s5831 + $0x268] sm:$0xff]
    %v5910 = vld [vmem:[%s5831 + $0x270] sm:$0xff]
    %v5911 = vld [vmem:[%s5831 + $0x278] sm:$0xff]
    %v5912 = vld [vmem:[%s5831 + $0x280] sm:$0xff]
    %v5913 = vld [vmem:[%s5831 + $0x288] sm:$0xff]
    %v5914 = vld [vmem:[%s5831 + $0x290] sm:$0xff]
    %v5915 = vld [vmem:[%s5831 + $0x298] sm:$0xff]
    %v5916 = vld [vmem:[%s5831 + $0x2a0] sm:$0xff]
    %v5917 = vld [vmem:[%s5831 + $0x2a8] sm:$0xff]
    %v5918 = vld [vmem:[%s5831 + $0x2b0] sm:$0xff]
    %v5919 = vld [vmem:[%s5831 + $0x2b8] sm:$0xff]
    %v5920 = vld [vmem:[%s5831 + $0x2c0] sm:$0xff]
    %v5921 = vld [vmem:[%s5831 + $0x2c8] sm:$0xff]
    %v5922 = vld [vmem:[%s5831 + $0x2d0] sm:$0xff]
    %v5923 = vld [vmem:[%s5831 + $0x2d8] sm:$0xff]
    %v5924 = vld [vmem:[%s5831 + $0x2e0] sm:$0xff]
    %v5925 = vld [vmem:[%s5831 + $0x2e8] sm:$0xff]
    %v5926 = vld [vmem:[%s5831 + $0x2f0] sm:$0xff]
    %v5927 = vld [vmem:[%s5831 + $0x2f8] sm:$0xff]
    %v5928 = vrot.slane %v5111, 6
    %v5929 = vrot.slane %v5112, 6
    %v5930 = vrot.slane %v5113, 6
    %v5931 = vrot.slane %v5114, 6
    %v5932 = vrot.slane %v5115, 6
    %v5933 = vrot.slane %v5116, 6
    %5940 = vmatprep.subr.bf16.mxu0 %v5833
    %5941 = vmatpush1.bf16.msra.mxu0 %v5832
    %5942 = vmatprep.subr.bf16.mxu0 %v5835
    %5943 = vmatpush1.bf16.msra.mxu0 %v5834
    %5944 = vmatprep.subr.bf16.mxu0 %v5837
    %5945 = vmatpush1.bf16.msra.mxu0 %v5836
    %5946 = vmatprep.subr.bf16.mxu0 %v5839
    %5947 = vmatpush1.bf16.msra.mxu0 %v5838
    %5948 = vmatprep.subr.bf16.mxu0 %v5841
    %5949 = vmatpush1.bf16.msra.mxu0 %v5840
    %5950 = vmatprep.subr.bf16.mxu0 %v5843
    %5951 = vmatpush1.bf16.msra.mxu0 %v5842
    %5952 = vmatprep.subr.bf16.mxu0 %v5845
    %5953 = vmatpush1.bf16.msra.mxu0 %v5844
    %5954 = vmatprep.subr.bf16.mxu0 %v5847
    %5955 = vmatpush1.bf16.msra.mxu0 %v5846
    %5956 = vmatprep.subr.bf16.mxu0 %v5849
    %5957 = vmatpush1.bf16.msra.mxu0 %v5848
    %5958 = vmatprep.subr.bf16.mxu0 %v5851
    %5959 = vmatpush1.bf16.msra.mxu0 %v5850
    %5960 = vmatprep.subr.bf16.mxu0 %v5853
    %5961 = vmatpush1.bf16.msra.mxu0 %v5852
    %5962 = vmatprep.subr.bf16.mxu0 %v5855
    %5963 = vmatpush1.bf16.msra.mxu0 %v5854
    %5964 = vmatprep.subr.bf16.mxu0 %v5857
    %5965 = vmatpush1.bf16.msra.mxu0 %v5856
    %5966 = vmatprep.subr.bf16.mxu0 %v5859
    %5967 = vmatpush1.bf16.msra.mxu0 %v5858
    %5968 = vmatprep.subr.bf16.mxu0 %v5861
    %5969 = vmatpush1.bf16.msra.mxu0 %v5860
    %5970 = vmatprep.subr.bf16.mxu0 %v5863
    %5971 = vmatpush1.bf16.msra.mxu0 %v5862
    %5972 = vmatprep.mubr.bf16.mxu0 %v5929
    %5973 = vmatmul.mubr.bf16.gmra.mrb[0].mxu0 %v5928
    %v5974 = vpop.f32.mrb[0].mxu0
    %v5975 = vadd.f32 0.0, %v5974
    %v5976 = vpop.f32.mrb[0].mxu0
    %v5977 = vadd.f32 0.0, %v5976
    %v5978 = vpop.f32.mrb[0].mxu0
    %v5979 = vpop.f32.mrb[0].mxu0
    %5980 = vdwg.mxu0
    %5981 = vmatprep.subr.bf16.mxu0 %v5865
    %5982 = vmatpush1.bf16.msra.mxu0 %v5864
    %5983 = vmatprep.subr.bf16.mxu0 %v5867
    %5984 = vmatpush1.bf16.msra.mxu0 %v5866
    %5985 = vmatprep.subr.bf16.mxu0 %v5869
    %5986 = vmatpush1.bf16.msra.mxu0 %v5868
    %5987 = vmatprep.subr.bf16.mxu0 %v5871
    %5988 = vmatpush1.bf16.msra.mxu0 %v5870
    %5989 = vmatprep.subr.bf16.mxu0 %v5873
    %5990 = vmatpush1.bf16.msra.mxu0 %v5872
    %5991 = vmatprep.subr.bf16.mxu0 %v5875
    %5992 = vmatpush1.bf16.msra.mxu0 %v5874
    %5993 = vmatprep.subr.bf16.mxu0 %v5877
    %5994 = vmatpush1.bf16.msra.mxu0 %v5876
    %5995 = vmatprep.subr.bf16.mxu0 %v5879
    %5996 = vmatpush1.bf16.msra.mxu0 %v5878
    %5997 = vmatprep.subr.bf16.mxu0 %v5881
    %5998 = vmatpush1.bf16.msra.mxu0 %v5880
    %5999 = vmatprep.subr.bf16.mxu0 %v5883
    %6000 = vmatpush1.bf16.msra.mxu0 %v5882
    %6001 = vmatprep.subr.bf16.mxu0 %v5885
    %6002 = vmatpush1.bf16.msra.mxu0 %v5884
    %6003 = vmatprep.subr.bf16.mxu0 %v5887
    %6004 = vmatpush1.bf16.msra.mxu0 %v5886
    %6005 = vmatprep.subr.bf16.mxu0 %v5889
    %6006 = vmatpush1.bf16.msra.mxu0 %v5888
    %6007 = vmatprep.subr.bf16.mxu0 %v5891
    %6008 = vmatpush1.bf16.msra.mxu0 %v5890
    %6009 = vmatprep.subr.bf16.mxu0 %v5893
    %6010 = vmatpush1.bf16.msra.mxu0 %v5892
    %6011 = vmatprep.subr.bf16.mxu0 %v5895
    %6012 = vmatpush1.bf16.msra.mxu0 %v5894
    %6013 = vmatprep.mubr.bf16.mxu0 %v5931
    %6014 = vmatmul.mubr.bf16.gmra.mrb[0].mxu0 %v5930
    %v6015 = vpop.f32.mrb[0].mxu0
    %v6016 = vadd.f32 %v5975, %v6015
    %v6017 = vpop.f32.mrb[0].mxu0
    %v6018 = vadd.f32 %v5977, %v6017
    %v6019 = vpop.f32.mrb[0].mxu0
    %v6020 = vpop.f32.mrb[0].mxu0
    %6021 = vdwg.mxu0
    %6022 = vmatprep.subr.bf16.mxu0 %v5897
    %6023 = vmatpush1.bf16.msra.mxu0 %v5896
    %6024 = vmatprep.subr.bf16.mxu0 %v5899
    %6025 = vmatpush1.bf16.msra.mxu0 %v5898
    %6026 = vmatprep.subr.bf16.mxu0 %v5901
    %6027 = vmatpush1.bf16.msra.mxu0 %v5900
    %6028 = vmatprep.subr.bf16.mxu0 %v5903
    %6029 = vmatpush1.bf16.msra.mxu0 %v5902
    %6030 = vmatprep.subr.bf16.mxu0 %v5905
    %6031 = vmatpush1.bf16.msra.mxu0 %v5904
    %6032 = vmatprep.subr.bf16.mxu0 %v5907
    %6033 = vmatpush1.bf16.msra.mxu0 %v5906
    %6034 = vmatprep.subr.bf16.mxu0 %v5909
    %6035 = vmatpush1.bf16.msra.mxu0 %v5908
    %6036 = vmatprep.subr.bf16.mxu0 %v5911
    %6037 = vmatpush1.bf16.msra.mxu0 %v5910
    %6038 = vmatprep.subr.bf16.mxu0 %v5913
    %6039 = vmatpush1.bf16.msra.mxu0 %v5912
    %6040 = vmatprep.subr.bf16.mxu0 %v5915
    %6041 = vmatpush1.bf16.msra.mxu0 %v5914
    %6042 = vmatprep.subr.bf16.mxu0 %v5917
    %6043 = vmatpush1.bf16.msra.mxu0 %v5916
    %6044 = vmatprep.subr.bf16.mxu0 %v5919
    %6045 = vmatpush1.bf16.msra.mxu0 %v5918
    %6046 = vmatprep.subr.bf16.mxu0 %v5921
    %6047 = vmatpush1.bf16.msra.mxu0 %v5920
    %6048 = vmatprep.subr.bf16.mxu0 %v5923
    %6049 = vmatpush1.bf16.msra.mxu0 %v5922
    %6050 = vmatprep.subr.bf16.mxu0 %v5925
    %6051 = vmatpush1.bf16.msra.mxu0 %v5924
    %6052 = vmatprep.subr.bf16.mxu0 %v5927
    %6053 = vmatpush1.bf16.msra.mxu0 %v5926
    %6054 = vmatprep.mubr.bf16.mxu0 %v5933
    %6055 = vmatmul.mubr.bf16.gmra.mrb[0].mxu0 %v5932
    %v6056 = vpop.f32.mrb[0].mxu0
    %v6057 = vadd.f32 %v6016, %v6056
    %v6058 = vpop.f32.mrb[0].mxu0
    %v6059 = vadd.f32 %v6018, %v6058
    %v6060 = vpop.f32.mrb[0].mxu0
    %v6061 = vpop.f32.mrb[0].mxu0
    %6062 = vdwg.mxu0
    %v6063 = vadd.f32 %v5829, %v6057
    %v6064 = vadd.f32 %v5830, %v6059
    %s6065 = scalar_lea.vmem [#allocation2], 3072
    %v6066 = vld [vmem:[%s6065] sm:$0xff]
    %v6067 = vld [vmem:[%s6065 + $0x8] sm:$0xff]
    %v6068 = vld [vmem:[%s6065 + $0x10] sm:$0xff]
    %v6069 = vld [vmem:[%s6065 + $0x18] sm:$0xff]
    %v6070 = vld [vmem:[%s6065 + $0x20] sm:$0xff]
    %v6071 = vld [vmem:[%s6065 + $0x28] sm:$0xff]
    %v6072 = vld [vmem:[%s6065 + $0x30] sm:$0xff]
    %v6073 = vld [vmem:[%s6065 + $0x38] sm:$0xff]
    %v6074 = vld [vmem:[%s6065 + $0x40] sm:$0xff]
    %v6075 = vld [vmem:[%s6065 + $0x48] sm:$0xff]
    %v6076 = vld [vmem:[%s6065 + $0x50] sm:$0xff]
    %v6077 = vld [vmem:[%s6065 + $0x58] sm:$0xff]
    %v6078 = vld [vmem:[%s6065 + $0x60] sm:$0xff]
    %v6079 = vld [vmem:[%s6065 + $0x68] sm:$0xff]
    %v6080 = vld [vmem:[%s6065 + $0x70] sm:$0xff]
    %v6081 = vld [vmem:[%s6065 + $0x78] sm:$0xff]
    %v6082 = vld [vmem:[%s6065 + $0x80] sm:$0xff]
    %v6083 = vld [vmem:[%s6065 + $0x88] sm:$0xff]
    %v6084 = vld [vmem:[%s6065 + $0x90] sm:$0xff]
    %v6085 = vld [vmem:[%s6065 + $0x98] sm:$0xff]
    %v6086 = vld [vmem:[%s6065 + $0xa0] sm:$0xff]
    %v6087 = vld [vmem:[%s6065 + $0xa8] sm:$0xff]
    %v6088 = vld [vmem:[%s6065 + $0xb0] sm:$0xff]
    %v6089 = vld [vmem:[%s6065 + $0xb8] sm:$0xff]
    %v6090 = vld [vmem:[%s6065 + $0xc0] sm:$0xff]
    %v6091 = vld [vmem:[%s6065 + $0xc8] sm:$0xff]
    %v6092 = vld [vmem:[%s6065 + $0xd0] sm:$0xff]
    %v6093 = vld [vmem:[%s6065 + $0xd8] sm:$0xff]
    %v6094 = vld [vmem:[%s6065 + $0xe0] sm:$0xff]
    %v6095 = vld [vmem:[%s6065 + $0xe8] sm:$0xff]
    %v6096 = vld [vmem:[%s6065 + $0xf0] sm:$0xff]
    %v6097 = vld [vmem:[%s6065 + $0xf8] sm:$0xff]
    %v6098 = vld [vmem:[%s6065 + $0x100] sm:$0xff]
    %v6099 = vld [vmem:[%s6065 + $0x108] sm:$0xff]
    %v6100 = vld [vmem:[%s6065 + $0x110] sm:$0xff]
    %v6101 = vld [vmem:[%s6065 + $0x118] sm:$0xff]
    %v6102 = vld [vmem:[%s6065 + $0x120] sm:$0xff]
    %v6103 = vld [vmem:[%s6065 + $0x128] sm:$0xff]
    %v6104 = vld [vmem:[%s6065 + $0x130] sm:$0xff]
    %v6105 = vld [vmem:[%s6065 + $0x138] sm:$0xff]
    %v6106 = vld [vmem:[%s6065 + $0x140] sm:$0xff]
    %v6107 = vld [vmem:[%s6065 + $0x148] sm:$0xff]
    %v6108 = vld [vmem:[%s6065 + $0x150] sm:$0xff]
    %v6109 = vld [vmem:[%s6065 + $0x158] sm:$0xff]
    %v6110 = vld [vmem:[%s6065 + $0x160] sm:$0xff]
    %v6111 = vld [vmem:[%s6065 + $0x168] sm:$0xff]
    %v6112 = vld [vmem:[%s6065 + $0x170] sm:$0xff]
    %v6113 = vld [vmem:[%s6065 + $0x178] sm:$0xff]
    %v6114 = vld [vmem:[%s6065 + $0x180] sm:$0xff]
    %v6115 = vld [vmem:[%s6065 + $0x188] sm:$0xff]
    %v6116 = vld [vmem:[%s6065 + $0x190] sm:$0xff]
    %v6117 = vld [vmem:[%s6065 + $0x198] sm:$0xff]
    %v6118 = vld [vmem:[%s6065 + $0x1a0] sm:$0xff]
    %v6119 = vld [vmem:[%s6065 + $0x1a8] sm:$0xff]
    %v6120 = vld [vmem:[%s6065 + $0x1b0] sm:$0xff]
    %v6121 = vld [vmem:[%s6065 + $0x1b8] sm:$0xff]
    %v6122 = vld [vmem:[%s6065 + $0x1c0] sm:$0xff]
    %v6123 = vld [vmem:[%s6065 + $0x1c8] sm:$0xff]
    %v6124 = vld [vmem:[%s6065 + $0x1d0] sm:$0xff]
    %v6125 = vld [vmem:[%s6065 + $0x1d8] sm:$0xff]
    %v6126 = vld [vmem:[%s6065 + $0x1e0] sm:$0xff]
    %v6127 = vld [vmem:[%s6065 + $0x1e8] sm:$0xff]
    %v6128 = vld [vmem:[%s6065 + $0x1f0] sm:$0xff]
    %v6129 = vld [vmem:[%s6065 + $0x1f8] sm:$0xff]
    %v6130 = vld [vmem:[%s6065 + $0x200] sm:$0xff]
    %v6131 = vld [vmem:[%s6065 + $0x208] sm:$0xff]
    %v6132 = vld [vmem:[%s6065 + $0x210] sm:$0xff]
    %v6133 = vld [vmem:[%s6065 + $0x218] sm:$0xff]
    %v6134 = vld [vmem:[%s6065 + $0x220] sm:$0xff]
    %v6135 = vld [vmem:[%s6065 + $0x228] sm:$0xff]
    %v6136 = vld [vmem:[%s6065 + $0x230] sm:$0xff]
    %v6137 = vld [vmem:[%s6065 + $0x238] sm:$0xff]
    %v6138 = vld [vmem:[%s6065 + $0x240] sm:$0xff]
    %v6139 = vld [vmem:[%s6065 + $0x248] sm:$0xff]
    %v6140 = vld [vmem:[%s6065 + $0x250] sm:$0xff]
    %v6141 = vld [vmem:[%s6065 + $0x258] sm:$0xff]
    %v6142 = vld [vmem:[%s6065 + $0x260] sm:$0xff]
    %v6143 = vld [vmem:[%s6065 + $0x268] sm:$0xff]
    %v6144 = vld [vmem:[%s6065 + $0x270] sm:$0xff]
    %v6145 = vld [vmem:[%s6065 + $0x278] sm:$0xff]
    %v6146 = vld [vmem:[%s6065 + $0x280] sm:$0xff]
    %v6147 = vld [vmem:[%s6065 + $0x288] sm:$0xff]
    %v6148 = vld [vmem:[%s6065 + $0x290] sm:$0xff]
    %v6149 = vld [vmem:[%s6065 + $0x298] sm:$0xff]
    %v6150 = vld [vmem:[%s6065 + $0x2a0] sm:$0xff]
    %v6151 = vld [vmem:[%s6065 + $0x2a8] sm:$0xff]
    %v6152 = vld [vmem:[%s6065 + $0x2b0] sm:$0xff]
    %v6153 = vld [vmem:[%s6065 + $0x2b8] sm:$0xff]
    %v6154 = vld [vmem:[%s6065 + $0x2c0] sm:$0xff]
    %v6155 = vld [vmem:[%s6065 + $0x2c8] sm:$0xff]
    %v6156 = vld [vmem:[%s6065 + $0x2d0] sm:$0xff]
    %v6157 = vld [vmem:[%s6065 + $0x2d8] sm:$0xff]
    %v6158 = vld [vmem:[%s6065 + $0x2e0] sm:$0xff]
    %v6159 = vld [vmem:[%s6065 + $0x2e8] sm:$0xff]
    %v6160 = vld [vmem:[%s6065 + $0x2f0] sm:$0xff]
    %v6161 = vld [vmem:[%s6065 + $0x2f8] sm:$0xff]
    %6162 = vmatprep.subr.bf16.mxu0 %v6067
    %6163 = vmatpush1.bf16.msra.mxu0 %v6066
    %6164 = vmatprep.subr.bf16.mxu0 %v6069
    %6165 = vmatpush1.bf16.msra.mxu0 %v6068
    %6166 = vmatprep.subr.bf16.mxu0 %v6071
    %6167 = vmatpush1.bf16.msra.mxu0 %v6070
    %6168 = vmatprep.subr.bf16.mxu0 %v6073
    %6169 = vmatpush1.bf16.msra.mxu0 %v6072
    %6170 = vmatprep.subr.bf16.mxu0 %v6075
    %6171 = vmatpush1.bf16.msra.mxu0 %v6074
    %6172 = vmatprep.subr.bf16.mxu0 %v6077
    %6173 = vmatpush1.bf16.msra.mxu0 %v6076
    %6174 = vmatprep.subr.bf16.mxu0 %v6079
    %6175 = vmatpush1.bf16.msra.mxu0 %v6078
    %6176 = vmatprep.subr.bf16.mxu0 %v6081
    %6177 = vmatpush1.bf16.msra.mxu0 %v6080
    %6178 = vmatprep.subr.bf16.mxu0 %v6083
    %6179 = vmatpush1.bf16.msra.mxu0 %v6082
    %6180 = vmatprep.subr.bf16.mxu0 %v6085
    %6181 = vmatpush1.bf16.msra.mxu0 %v6084
    %6182 = vmatprep.subr.bf16.mxu0 %v6087
    %6183 = vmatpush1.bf16.msra.mxu0 %v6086
    %6184 = vmatprep.subr.bf16.mxu0 %v6089
    %6185 = vmatpush1.bf16.msra.mxu0 %v6088
    %6186 = vmatprep.subr.bf16.mxu0 %v6091
    %6187 = vmatpush1.bf16.msra.mxu0 %v6090
    %6188 = vmatprep.subr.bf16.mxu0 %v6093
    %6189 = vmatpush1.bf16.msra.mxu0 %v6092
    %6190 = vmatprep.subr.bf16.mxu0 %v6095
    %6191 = vmatpush1.bf16.msra.mxu0 %v6094
    %6192 = vmatprep.subr.bf16.mxu0 %v6097
    %6193 = vmatpush1.bf16.msra.mxu0 %v6096
    %6194 = vmatprep.mubr.bf16.mxu0 %v5118
    %6195 = vmatmul.mubr.bf16.gmra.mrb[0].mxu0 %v5117
    %v6196 = vpop.f32.mrb[0].mxu0
    %v6197 = vadd.f32 0.0, %v6196
    %v6198 = vpop.f32.mrb[0].mxu0
    %v6199 = vadd.f32 0.0, %v6198
    %v6200 = vpop.f32.mrb[0].mxu0
    %v6201 = vpop.f32.mrb[0].mxu0
    %6202 = vdwg.mxu0
    %6203 = vmatprep.subr.bf16.mxu0 %v6099
    %6204 = vmatpush1.bf16.msra.mxu0 %v6098
    %6205 = vmatprep.subr.bf16.mxu0 %v6101
    %6206 = vmatpush1.bf16.msra.mxu0 %v6100
    %6207 = vmatprep.subr.bf16.mxu0 %v6103
    %6208 = vmatpush1.bf16.msra.mxu0 %v6102
    %6209 = vmatprep.subr.bf16.mxu0 %v6105
    %6210 = vmatpush1.bf16.msra.mxu0 %v6104
    %6211 = vmatprep.subr.bf16.mxu0 %v6107
    %6212 = vmatpush1.bf16.msra.mxu0 %v6106
    %6213 = vmatprep.subr.bf16.mxu0 %v6109
    %6214 = vmatpush1.bf16.msra.mxu0 %v6108
    %6215 = vmatprep.subr.bf16.mxu0 %v6111
    %6216 = vmatpush1.bf16.msra.mxu0 %v6110
    %6217 = vmatprep.subr.bf16.mxu0 %v6113
    %6218 = vmatpush1.bf16.msra.mxu0 %v6112
    %6219 = vmatprep.subr.bf16.mxu0 %v6115
    %6220 = vmatpush1.bf16.msra.mxu0 %v6114
    %6221 = vmatprep.subr.bf16.mxu0 %v6117
    %6222 = vmatpush1.bf16.msra.mxu0 %v6116
    %6223 = vmatprep.subr.bf16.mxu0 %v6119
    %6224 = vmatpush1.bf16.msra.mxu0 %v6118
    %6225 = vmatprep.subr.bf16.mxu0 %v6121
    %6226 = vmatpush1.bf16.msra.mxu0 %v6120
    %6227 = vmatprep.subr.bf16.mxu0 %v6123
    %6228 = vmatpush1.bf16.msra.mxu0 %v6122
    %6229 = vmatprep.subr.bf16.mxu0 %v6125
    %6230 = vmatpush1.bf16.msra.mxu0 %v6124
    %6231 = vmatprep.subr.bf16.mxu0 %v6127
    %6232 = vmatpush1.bf16.msra.mxu0 %v6126
    %6233 = vmatprep.subr.bf16.mxu0 %v6129
    %6234 = vmatpush1.bf16.msra.mxu0 %v6128
    %6235 = vmatprep.mubr.bf16.mxu0 %v5120
    %6236 = vmatmul.mubr.bf16.gmra.mrb[0].mxu0 %v5119
    %v6237 = vpop.f32.mrb[0].mxu0
    %v6238 = vadd.f32 %v6197, %v6237
    %v6239 = vpop.f32.mrb[0].mxu0
    %v6240 = vadd.f32 %v6199, %v6239
    %v6241 = vpop.f32.mrb[0].mxu0
    %v6242 = vpop.f32.mrb[0].mxu0
    %6243 = vdwg.mxu0
    %6244 = vmatprep.subr.bf16.mxu0 %v6131
    %6245 = vmatpush1.bf16.msra.mxu0 %v6130
    %6246 = vmatprep.subr.bf16.mxu0 %v6133
    %6247 = vmatpush1.bf16.msra.mxu0 %v6132
    %6248 = vmatprep.subr.bf16.mxu0 %v6135
    %6249 = vmatpush1.bf16.msra.mxu0 %v6134
    %6250 = vmatprep.subr.bf16.mxu0 %v6137
    %6251 = vmatpush1.bf16.msra.mxu0 %v6136
    %6252 = vmatprep.subr.bf16.mxu0 %v6139
    %6253 = vmatpush1.bf16.msra.mxu0 %v6138
    %6254 = vmatprep.subr.bf16.mxu0 %v6141
    %6255 = vmatpush1.bf16.msra.mxu0 %v6140
    %6256 = vmatprep.subr.bf16.mxu0 %v6143
    %6257 = vmatpush1.bf16.msra.mxu0 %v6142
    %6258 = vmatprep.subr.bf16.mxu0 %v6145
    %6259 = vmatpush1.bf16.msra.mxu0 %v6144
    %6260 = vmatprep.subr.bf16.mxu0 %v6147
    %6261 = vmatpush1.bf16.msra.mxu0 %v6146
    %6262 = vmatprep.subr.bf16.mxu0 %v6149
    %6263 = vmatpush1.bf16.msra.mxu0 %v6148
    %6264 = vmatprep.subr.bf16.mxu0 %v6151
    %6265 = vmatpush1.bf16.msra.mxu0 %v6150
    %6266 = vmatprep.subr.bf16.mxu0 %v6153
    %6267 = vmatpush1.bf16.msra.mxu0 %v6152
    %6268 = vmatprep.subr.bf16.mxu0 %v6155
    %6269 = vmatpush1.bf16.msra.mxu0 %v6154
    %6270 = vmatprep.subr.bf16.mxu0 %v6157
    %6271 = vmatpush1.bf16.msra.mxu0 %v6156
    %6272 = vmatprep.subr.bf16.mxu0 %v6159
    %6273 = vmatpush1.bf16.msra.mxu0 %v6158
    %6274 = vmatprep.subr.bf16.mxu0 %v6161
    %6275 = vmatpush1.bf16.msra.mxu0 %v6160
    %6276 = vmatprep.mubr.bf16.mxu0 %v5122
    %6277 = vmatmul.mubr.bf16.gmra.mrb[0].mxu0 %v5121
    %v6278 = vpop.f32.mrb[0].mxu0
    %v6279 = vadd.f32 %v6238, %v6278
    %v6280 = vpop.f32.mrb[0].mxu0
    %v6281 = vadd.f32 %v6240, %v6280
    %v6282 = vpop.f32.mrb[0].mxu0
    %v6283 = vpop.f32.mrb[0].mxu0
    %6284 = vdwg.mxu0
    %v6285 = vadd.f32 %v6063, %v6279
    %v6286 = vadd.f32 %v6064, %v6281
    %s6287 = scalar_lea.vmem [#allocation2], 3840
    %v6288 = vld [vmem:[%s6287] sm:$0xff]
    %v6289 = vld [vmem:[%s6287 + $0x8] sm:$0xff]
    %v6290 = vld [vmem:[%s6287 + $0x10] sm:$0xff]
    %v6291 = vld [vmem:[%s6287 + $0x18] sm:$0xff]
    %v6292 = vld [vmem:[%s6287 + $0x20] sm:$0xff]
    %v6293 = vld [vmem:[%s6287 + $0x28] sm:$0xff]
    %v6294 = vld [vmem:[%s6287 + $0x30] sm:$0xff]
    %v6295 = vld [vmem:[%s6287 + $0x38] sm:$0xff]
    %v6296 = vld [vmem:[%s6287 + $0x40] sm:$0xff]
    %v6297 = vld [vmem:[%s6287 + $0x48] sm:$0xff]
    %v6298 = vld [vmem:[%s6287 + $0x50] sm:$0xff]
    %v6299 = vld [vmem:[%s6287 + $0x58] sm:$0xff]
    %v6300 = vld [vmem:[%s6287 + $0x60] sm:$0xff]
    %v6301 = vld [vmem:[%s6287 + $0x68] sm:$0xff]
    %v6302 = vld [vmem:[%s6287 + $0x70] sm:$0xff]
    %v6303 = vld [vmem:[%s6287 + $0x78] sm:$0xff]
    %v6304 = vld [vmem:[%s6287 + $0x80] sm:$0xff]
    %v6305 = vld [vmem:[%s6287 + $0x88] sm:$0xff]
    %v6306 = vld [vmem:[%s6287 + $0x90] sm:$0xff]
    %v6307 = vld [vmem:[%s6287 + $0x98] sm:$0xff]
    %v6308 = vld [vmem:[%s6287 + $0xa0] sm:$0xff]
    %v6309 = vld [vmem:[%s6287 + $0xa8] sm:$0xff]
    %v6310 = vld [vmem:[%s6287 + $0xb0] sm:$0xff]
    %v6311 = vld [vmem:[%s6287 + $0xb8] sm:$0xff]
    %v6312 = vld [vmem:[%s6287 + $0xc0] sm:$0xff]
    %v6313 = vld [vmem:[%s6287 + $0xc8] sm:$0xff]
    %v6314 = vld [vmem:[%s6287 + $0xd0] sm:$0xff]
    %v6315 = vld [vmem:[%s6287 + $0xd8] sm:$0xff]
    %v6316 = vld [vmem:[%s6287 + $0xe0] sm:$0xff]
    %v6317 = vld [vmem:[%s6287 + $0xe8] sm:$0xff]
    %v6318 = vld [vmem:[%s6287 + $0xf0] sm:$0xff]
    %v6319 = vld [vmem:[%s6287 + $0xf8] sm:$0xff]
    %v6320 = vld [vmem:[%s6287 + $0x100] sm:$0xff]
    %v6321 = vld [vmem:[%s6287 + $0x108] sm:$0xff]
    %v6322 = vld [vmem:[%s6287 + $0x110] sm:$0xff]
    %v6323 = vld [vmem:[%s6287 + $0x118] sm:$0xff]
    %v6324 = vld [vmem:[%s6287 + $0x120] sm:$0xff]
    %v6325 = vld [vmem:[%s6287 + $0x128] sm:$0xff]
    %v6326 = vld [vmem:[%s6287 + $0x130] sm:$0xff]
    %v6327 = vld [vmem:[%s6287 + $0x138] sm:$0xff]
    %v6328 = vld [vmem:[%s6287 + $0x140] sm:$0xff]
    %v6329 = vld [vmem:[%s6287 + $0x148] sm:$0xff]
    %v6330 = vld [vmem:[%s6287 + $0x150] sm:$0xff]
    %v6331 = vld [vmem:[%s6287 + $0x158] sm:$0xff]
    %v6332 = vld [vmem:[%s6287 + $0x160] sm:$0xff]
    %v6333 = vld [vmem:[%s6287 + $0x168] sm:$0xff]
    %v6334 = vld [vmem:[%s6287 + $0x170] sm:$0xff]
    %v6335 = vld [vmem:[%s6287 + $0x178] sm:$0xff]
    %v6336 = vld [vmem:[%s6287 + $0x180] sm:$0xff]
    %v6337 = vld [vmem:[%s6287 + $0x188] sm:$0xff]
    %v6338 = vld [vmem:[%s6287 + $0x190] sm:$0xff]
    %v6339 = vld [vmem:[%s6287 + $0x198] sm:$0xff]
    %v6340 = vld [vmem:[%s6287 + $0x1a0] sm:$0xff]
    %v6341 = vld [vmem:[%s6287 + $0x1a8] sm:$0xff]
    %v6342 = vld [vmem:[%s6287 + $0x1b0] sm:$0xff]
    %v6343 = vld [vmem:[%s6287 + $0x1b8] sm:$0xff]
    %v6344 = vld [vmem:[%s6287 + $0x1c0] sm:$0xff]
    %v6345 = vld [vmem:[%s6287 + $0x1c8] sm:$0xff]
    %v6346 = vld [vmem:[%s6287 + $0x1d0] sm:$0xff]
    %v6347 = vld [vmem:[%s6287 + $0x1d8] sm:$0xff]
    %v6348 = vld [vmem:[%s6287 + $0x1e0] sm:$0xff]
    %v6349 = vld [vmem:[%s6287 + $0x1e8] sm:$0xff]
    %v6350 = vld [vmem:[%s6287 + $0x1f0] sm:$0xff]
    %v6351 = vld [vmem:[%s6287 + $0x1f8] sm:$0xff]
    %v6352 = vld [vmem:[%s6287 + $0x200] sm:$0xff]
    %v6353 = vld [vmem:[%s6287 + $0x208] sm:$0xff]
    %v6354 = vld [vmem:[%s6287 + $0x210] sm:$0xff]
    %v6355 = vld [vmem:[%s6287 + $0x218] sm:$0xff]
    %v6356 = vld [vmem:[%s6287 + $0x220] sm:$0xff]
    %v6357 = vld [vmem:[%s6287 + $0x228] sm:$0xff]
    %v6358 = vld [vmem:[%s6287 + $0x230] sm:$0xff]
    %v6359 = vld [vmem:[%s6287 + $0x238] sm:$0xff]
    %v6360 = vld [vmem:[%s6287 + $0x240] sm:$0xff]
    %v6361 = vld [vmem:[%s6287 + $0x248] sm:$0xff]
    %v6362 = vld [vmem:[%s6287 + $0x250] sm:$0xff]
    %v6363 = vld [vmem:[%s6287 + $0x258] sm:$0xff]
    %v6364 = vld [vmem:[%s6287 + $0x260] sm:$0xff]
    %v6365 = vld [vmem:[%s6287 + $0x268] sm:$0xff]
    %v6366 = vld [vmem:[%s6287 + $0x270] sm:$0xff]
    %v6367 = vld [vmem:[%s6287 + $0x278] sm:$0xff]
    %v6368 = vld [vmem:[%s6287 + $0x280] sm:$0xff]
    %v6369 = vld [vmem:[%s6287 + $0x288] sm:$0xff]
    %v6370 = vld [vmem:[%s6287 + $0x290] sm:$0xff]
    %v6371 = vld [vmem:[%s6287 + $0x298] sm:$0xff]
    %v6372 = vld [vmem:[%s6287 + $0x2a0] sm:$0xff]
    %v6373 = vld [vmem:[%s6287 + $0x2a8] sm:$0xff]
    %v6374 = vld [vmem:[%s6287 + $0x2b0] sm:$0xff]
    %v6375 = vld [vmem:[%s6287 + $0x2b8] sm:$0xff]
    %v6376 = vld [vmem:[%s6287 + $0x2c0] sm:$0xff]
    %v6377 = vld [vmem:[%s6287 + $0x2c8] sm:$0xff]
    %v6378 = vld [vmem:[%s6287 + $0x2d0] sm:$0xff]
    %v6379 = vld [vmem:[%s6287 + $0x2d8] sm:$0xff]
    %v6380 = vld [vmem:[%s6287 + $0x2e0] sm:$0xff]
    %v6381 = vld [vmem:[%s6287 + $0x2e8] sm:$0xff]
    %v6382 = vld [vmem:[%s6287 + $0x2f0] sm:$0xff]
    %v6383 = vld [vmem:[%s6287 + $0x2f8] sm:$0xff]
    %v6390 = vrot.slane %v5117, 2
    %v6391 = vrot.slane %v5118, 2
    %v6392 = vrot.slane %v5119, 2
    %v6393 = vrot.slane %v5120, 2
    %v6394 = vrot.slane %v5121, 2
    %v6395 = vrot.slane %v5122, 2
    %6402 = vmatprep.subr.bf16.mxu0 %v6289
    %6403 = vmatpush1.bf16.msra.mxu0 %v6288
    %6404 = vmatprep.subr.bf16.mxu0 %v6291
    %6405 = vmatpush1.bf16.msra.mxu0 %v6290
    %6406 = vmatprep.subr.bf16.mxu0 %v6293
    %6407 = vmatpush1.bf16.msra.mxu0 %v6292
    %6408 = vmatprep.subr.bf16.mxu0 %v6295
    %6409 = vmatpush1.bf16.msra.mxu0 %v6294
    %6410 = vmatprep.subr.bf16.mxu0 %v6297
    %6411 = vmatpush1.bf16.msra.mxu0 %v6296
    %6412 = vmatprep.subr.bf16.mxu0 %v6299
    %6413 = vmatpush1.bf16.msra.mxu0 %v6298
    %6414 = vmatprep.subr.bf16.mxu0 %v6301
    %6415 = vmatpush1.bf16.msra.mxu0 %v6300
    %6416 = vmatprep.subr.bf16.mxu0 %v6303
    %6417 = vmatpush1.bf16.msra.mxu0 %v6302
    %6418 = vmatprep.subr.bf16.mxu0 %v6305
    %6419 = vmatpush1.bf16.msra.mxu0 %v6304
    %6420 = vmatprep.subr.bf16.mxu0 %v6307
    %6421 = vmatpush1.bf16.msra.mxu0 %v6306
    %6422 = vmatprep.subr.bf16.mxu0 %v6309
    %6423 = vmatpush1.bf16.msra.mxu0 %v6308
    %6424 = vmatprep.subr.bf16.mxu0 %v6311
    %6425 = vmatpush1.bf16.msra.mxu0 %v6310
    %6426 = vmatprep.subr.bf16.mxu0 %v6313
    %6427 = vmatpush1.bf16.msra.mxu0 %v6312
    %6428 = vmatprep.subr.bf16.mxu0 %v6315
    %6429 = vmatpush1.bf16.msra.mxu0 %v6314
    %6430 = vmatprep.subr.bf16.mxu0 %v6317
    %6431 = vmatpush1.bf16.msra.mxu0 %v6316
    %6432 = vmatprep.subr.bf16.mxu0 %v6319
    %6433 = vmatpush1.bf16.msra.mxu0 %v6318
    %6434 = vmatprep.mubr.bf16.mxu0 %v6391
    %6435 = vmatmul.mubr.bf16.gmra.mrb[0].mxu0 %v6390
    %v6436 = vpop.f32.mrb[0].mxu0
    %v6437 = vadd.f32 0.0, %v6436
    %v6438 = vpop.f32.mrb[0].mxu0
    %v6439 = vadd.f32 0.0, %v6438
    %v6440 = vpop.f32.mrb[0].mxu0
    %v6441 = vpop.f32.mrb[0].mxu0
    %6442 = vdwg.mxu0
    %6443 = vmatprep.subr.bf16.mxu0 %v6321
    %6444 = vmatpush1.bf16.msra.mxu0 %v6320
    %6445 = vmatprep.subr.bf16.mxu0 %v6323
    %6446 = vmatpush1.bf16.msra.mxu0 %v6322
    %6447 = vmatprep.subr.bf16.mxu0 %v6325
    %6448 = vmatpush1.bf16.msra.mxu0 %v6324
    %6449 = vmatprep.subr.bf16.mxu0 %v6327
    %6450 = vmatpush1.bf16.msra.mxu0 %v6326
    %6451 = vmatprep.subr.bf16.mxu0 %v6329
    %6452 = vmatpush1.bf16.msra.mxu0 %v6328
    %6453 = vmatprep.subr.bf16.mxu0 %v6331
    %6454 = vmatpush1.bf16.msra.mxu0 %v6330
    %6455 = vmatprep.subr.bf16.mxu0 %v6333
    %6456 = vmatpush1.bf16.msra.mxu0 %v6332
    %6457 = vmatprep.subr.bf16.mxu0 %v6335
    %6458 = vmatpush1.bf16.msra.mxu0 %v6334
    %6459 = vmatprep.subr.bf16.mxu0 %v6337
    %6460 = vmatpush1.bf16.msra.mxu0 %v6336
    %6461 = vmatprep.subr.bf16.mxu0 %v6339
    %6462 = vmatpush1.bf16.msra.mxu0 %v6338
    %6463 = vmatprep.subr.bf16.mxu0 %v6341
    %6464 = vmatpush1.bf16.msra.mxu0 %v6340
    %6465 = vmatprep.subr.bf16.mxu0 %v6343
    %6466 = vmatpush1.bf16.msra.mxu0 %v6342
    %6467 = vmatprep.subr.bf16.mxu0 %v6345
    %6468 = vmatpush1.bf16.msra.mxu0 %v6344
    %6469 = vmatprep.subr.bf16.mxu0 %v6347
    %6470 = vmatpush1.bf16.msra.mxu0 %v6346
    %6471 = vmatprep.subr.bf16.mxu0 %v6349
    %6472 = vmatpush1.bf16.msra.mxu0 %v6348
    %6473 = vmatprep.subr.bf16.mxu0 %v6351
    %6474 = vmatpush1.bf16.msra.mxu0 %v6350
    %6475 = vmatprep.mubr.bf16.mxu0 %v6393
    %6476 = vmatmul.mubr.bf16.gmra.mrb[0].mxu0 %v6392
    %v6477 = vpop.f32.mrb[0].mxu0
    %v6478 = vadd.f32 %v6437, %v6477
    %v6479 = vpop.f32.mrb[0].mxu0
    %v6480 = vadd.f32 %v6439, %v6479
    %v6481 = vpop.f32.mrb[0].mxu0
    %v6482 = vpop.f32.mrb[0].mxu0
    %6483 = vdwg.mxu0
    %6484 = vmatprep.subr.bf16.mxu0 %v6353
    %6485 = vmatpush1.bf16.msra.mxu0 %v6352
    %6486 = vmatprep.subr.bf16.mxu0 %v6355
    %6487 = vmatpush1.bf16.msra.mxu0 %v6354
    %6488 = vmatprep.subr.bf16.mxu0 %v6357
    %6489 = vmatpush1.bf16.msra.mxu0 %v6356
    %6490 = vmatprep.subr.bf16.mxu0 %v6359
    %6491 = vmatpush1.bf16.msra.mxu0 %v6358
    %6492 = vmatprep.subr.bf16.mxu0 %v6361
    %6493 = vmatpush1.bf16.msra.mxu0 %v6360
    %6494 = vmatprep.subr.bf16.mxu0 %v6363
    %6495 = vmatpush1.bf16.msra.mxu0 %v6362
    %6496 = vmatprep.subr.bf16.mxu0 %v6365
    %6497 = vmatpush1.bf16.msra.mxu0 %v6364
    %6498 = vmatprep.subr.bf16.mxu0 %v6367
    %6499 = vmatpush1.bf16.msra.mxu0 %v6366
    %6500 = vmatprep.subr.bf16.mxu0 %v6369
    %6501 = vmatpush1.bf16.msra.mxu0 %v6368
    %6502 = vmatprep.subr.bf16.mxu0 %v6371
    %6503 = vmatpush1.bf16.msra.mxu0 %v6370
    %6504 = vmatprep.subr.bf16.mxu0 %v6373
    %6505 = vmatpush1.bf16.msra.mxu0 %v6372
    %6506 = vmatprep.subr.bf16.mxu0 %v6375
    %6507 = vmatpush1.bf16.msra.mxu0 %v6374
    %6508 = vmatprep.subr.bf16.mxu0 %v6377
    %6509 = vmatpush1.bf16.msra.mxu0 %v6376
    %6510 = vmatprep.subr.bf16.mxu0 %v6379
    %6511 = vmatpush1.bf16.msra.mxu0 %v6378
    %6512 = vmatprep.subr.bf16.mxu0 %v6381
    %6513 = vmatpush1.bf16.msra.mxu0 %v6380
    %6514 = vmatprep.subr.bf16.mxu0 %v6383
    %6515 = vmatpush1.bf16.msra.mxu0 %v6382
    %6516 = vmatprep.mubr.bf16.mxu0 %v6395
    %6517 = vmatmul.mubr.bf16.gmra.mrb[0].mxu0 %v6394
    %v6518 = vpop.f32.mrb[0].mxu0
    %v6519 = vadd.f32 %v6478, %v6518
    %v6520 = vpop.f32.mrb[0].mxu0
    %v6521 = vadd.f32 %v6480, %v6520
    %v6522 = vpop.f32.mrb[0].mxu0
    %v6523 = vpop.f32.mrb[0].mxu0
    %6524 = vdwg.mxu0
    %v6525 = vadd.f32 %v6285, %v6519
    %v6526 = vadd.f32 %v6286, %v6521
    %s6527 = scalar_lea.vmem [#allocation2], 4608
    %v6528 = vld [vmem:[%s6527] sm:$0xff]
    %v6529 = vld [vmem:[%s6527 + $0x8] sm:$0xff]
    %v6530 = vld [vmem:[%s6527 + $0x10] sm:$0xff]
    %v6531 = vld [vmem:[%s6527 + $0x18] sm:$0xff]
    %v6532 = vld [vmem:[%s6527 + $0x20] sm:$0xff]
    %v6533 = vld [vmem:[%s6527 + $0x28] sm:$0xff]
    %v6534 = vld [vmem:[%s6527 + $0x30] sm:$0xff]
    %v6535 = vld [vmem:[%s6527 + $0x38] sm:$0xff]
    %v6536 = vld [vmem:[%s6527 + $0x40] sm:$0xff]
    %v6537 = vld [vmem:[%s6527 + $0x48] sm:$0xff]
    %v6538 = vld [vmem:[%s6527 + $0x50] sm:$0xff]
    %v6539 = vld [vmem:[%s6527 + $0x58] sm:$0xff]
    %v6540 = vld [vmem:[%s6527 + $0x60] sm:$0xff]
    %v6541 = vld [vmem:[%s6527 + $0x68] sm:$0xff]
    %v6542 = vld [vmem:[%s6527 + $0x70] sm:$0xff]
    %v6543 = vld [vmem:[%s6527 + $0x78] sm:$0xff]
    %v6544 = vld [vmem:[%s6527 + $0x80] sm:$0xff]
    %v6545 = vld [vmem:[%s6527 + $0x88] sm:$0xff]
    %v6546 = vld [vmem:[%s6527 + $0x90] sm:$0xff]
    %v6547 = vld [vmem:[%s6527 + $0x98] sm:$0xff]
    %v6548 = vld [vmem:[%s6527 + $0xa0] sm:$0xff]
    %v6549 = vld [vmem:[%s6527 + $0xa8] sm:$0xff]
    %v6550 = vld [vmem:[%s6527 + $0xb0] sm:$0xff]
    %v6551 = vld [vmem:[%s6527 + $0xb8] sm:$0xff]
    %v6552 = vld [vmem:[%s6527 + $0xc0] sm:$0xff]
    %v6553 = vld [vmem:[%s6527 + $0xc8] sm:$0xff]
    %v6554 = vld [vmem:[%s6527 + $0xd0] sm:$0xff]
    %v6555 = vld [vmem:[%s6527 + $0xd8] sm:$0xff]
    %v6556 = vld [vmem:[%s6527 + $0xe0] sm:$0xff]
    %v6557 = vld [vmem:[%s6527 + $0xe8] sm:$0xff]
    %v6558 = vld [vmem:[%s6527 + $0xf0] sm:$0xff]
    %v6559 = vld [vmem:[%s6527 + $0xf8] sm:$0xff]
    %v6560 = vld [vmem:[%s6527 + $0x100] sm:$0xff]
    %v6561 = vld [vmem:[%s6527 + $0x108] sm:$0xff]
    %v6562 = vld [vmem:[%s6527 + $0x110] sm:$0xff]
    %v6563 = vld [vmem:[%s6527 + $0x118] sm:$0xff]
    %v6564 = vld [vmem:[%s6527 + $0x120] sm:$0xff]
    %v6565 = vld [vmem:[%s6527 + $0x128] sm:$0xff]
    %v6566 = vld [vmem:[%s6527 + $0x130] sm:$0xff]
    %v6567 = vld [vmem:[%s6527 + $0x138] sm:$0xff]
    %v6568 = vld [vmem:[%s6527 + $0x140] sm:$0xff]
    %v6569 = vld [vmem:[%s6527 + $0x148] sm:$0xff]
    %v6570 = vld [vmem:[%s6527 + $0x150] sm:$0xff]
    %v6571 = vld [vmem:[%s6527 + $0x158] sm:$0xff]
    %v6572 = vld [vmem:[%s6527 + $0x160] sm:$0xff]
    %v6573 = vld [vmem:[%s6527 + $0x168] sm:$0xff]
    %v6574 = vld [vmem:[%s6527 + $0x170] sm:$0xff]
    %v6575 = vld [vmem:[%s6527 + $0x178] sm:$0xff]
    %v6576 = vld [vmem:[%s6527 + $0x180] sm:$0xff]
    %v6577 = vld [vmem:[%s6527 + $0x188] sm:$0xff]
    %v6578 = vld [vmem:[%s6527 + $0x190] sm:$0xff]
    %v6579 = vld [vmem:[%s6527 + $0x198] sm:$0xff]
    %v6580 = vld [vmem:[%s6527 + $0x1a0] sm:$0xff]
    %v6581 = vld [vmem:[%s6527 + $0x1a8] sm:$0xff]
    %v6582 = vld [vmem:[%s6527 + $0x1b0] sm:$0xff]
    %v6583 = vld [vmem:[%s6527 + $0x1b8] sm:$0xff]
    %v6584 = vld [vmem:[%s6527 + $0x1c0] sm:$0xff]
    %v6585 = vld [vmem:[%s6527 + $0x1c8] sm:$0xff]
    %v6586 = vld [vmem:[%s6527 + $0x1d0] sm:$0xff]
    %v6587 = vld [vmem:[%s6527 + $0x1d8] sm:$0xff]
    %v6588 = vld [vmem:[%s6527 + $0x1e0] sm:$0xff]
    %v6589 = vld [vmem:[%s6527 + $0x1e8] sm:$0xff]
    %v6590 = vld [vmem:[%s6527 + $0x1f0] sm:$0xff]
    %v6591 = vld [vmem:[%s6527 + $0x1f8] sm:$0xff]
    %v6592 = vld [vmem:[%s6527 + $0x200] sm:$0xff]
    %v6593 = vld [vmem:[%s6527 + $0x208] sm:$0xff]
    %v6594 = vld [vmem:[%s6527 + $0x210] sm:$0xff]
    %v6595 = vld [vmem:[%s6527 + $0x218] sm:$0xff]
    %v6596 = vld [vmem:[%s6527 + $0x220] sm:$0xff]
    %v6597 = vld [vmem:[%s6527 + $0x228] sm:$0xff]
    %v6598 = vld [vmem:[%s6527 + $0x230] sm:$0xff]
    %v6599 = vld [vmem:[%s6527 + $0x238] sm:$0xff]
    %v6600 = vld [vmem:[%s6527 + $0x240] sm:$0xff]
    %v6601 = vld [vmem:[%s6527 + $0x248] sm:$0xff]
    %v6602 = vld [vmem:[%s6527 + $0x250] sm:$0xff]
    %v6603 = vld [vmem:[%s6527 + $0x258] sm:$0xff]
    %v6604 = vld [vmem:[%s6527 + $0x260] sm:$0xff]
    %v6605 = vld [vmem:[%s6527 + $0x268] sm:$0xff]
    %v6606 = vld [vmem:[%s6527 + $0x270] sm:$0xff]
    %v6607 = vld [vmem:[%s6527 + $0x278] sm:$0xff]
    %v6608 = vld [vmem:[%s6527 + $0x280] sm:$0xff]
    %v6609 = vld [vmem:[%s6527 + $0x288] sm:$0xff]
    %v6610 = vld [vmem:[%s6527 + $0x290] sm:$0xff]
    %v6611 = vld [vmem:[%s6527 + $0x298] sm:$0xff]
    %v6612 = vld [vmem:[%s6527 + $0x2a0] sm:$0xff]
    %v6613 = vld [vmem:[%s6527 + $0x2a8] sm:$0xff]
    %v6614 = vld [vmem:[%s6527 + $0x2b0] sm:$0xff]
    %v6615 = vld [vmem:[%s6527 + $0x2b8] sm:$0xff]
    %v6616 = vld [vmem:[%s6527 + $0x2c0] sm:$0xff]
    %v6617 = vld [vmem:[%s6527 + $0x2c8] sm:$0xff]
    %v6618 = vld [vmem:[%s6527 + $0x2d0] sm:$0xff]
    %v6619 = vld [vmem:[%s6527 + $0x2d8] sm:$0xff]
    %v6620 = vld [vmem:[%s6527 + $0x2e0] sm:$0xff]
    %v6621 = vld [vmem:[%s6527 + $0x2e8] sm:$0xff]
    %v6622 = vld [vmem:[%s6527 + $0x2f0] sm:$0xff]
    %v6623 = vld [vmem:[%s6527 + $0x2f8] sm:$0xff]
    %v6624 = vrot.slane %v5117, 4
    %v6625 = vrot.slane %v5118, 4
    %v6626 = vrot.slane %v5119, 4
    %v6627 = vrot.slane %v5120, 4
    %v6628 = vrot.slane %v5121, 4
    %v6629 = vrot.slane %v5122, 4
    %6636 = vmatprep.subr.bf16.mxu0 %v6529
    %6637 = vmatpush1.bf16.msra.mxu0 %v6528
    %6638 = vmatprep.subr.bf16.mxu0 %v6531
    %6639 = vmatpush1.bf16.msra.mxu0 %v6530
    %6640 = vmatprep.subr.bf16.mxu0 %v6533
    %6641 = vmatpush1.bf16.msra.mxu0 %v6532
    %6642 = vmatprep.subr.bf16.mxu0 %v6535
    %6643 = vmatpush1.bf16.msra.mxu0 %v6534
    %6644 = vmatprep.subr.bf16.mxu0 %v6537
    %6645 = vmatpush1.bf16.msra.mxu0 %v6536
    %6646 = vmatprep.subr.bf16.mxu0 %v6539
    %6647 = vmatpush1.bf16.msra.mxu0 %v6538
    %6648 = vmatprep.subr.bf16.mxu0 %v6541
    %6649 = vmatpush1.bf16.msra.mxu0 %v6540
    %6650 = vmatprep.subr.bf16.mxu0 %v6543
    %6651 = vmatpush1.bf16.msra.mxu0 %v6542
    %6652 = vmatprep.subr.bf16.mxu0 %v6545
    %6653 = vmatpush1.bf16.msra.mxu0 %v6544
    %6654 = vmatprep.subr.bf16.mxu0 %v6547
    %6655 = vmatpush1.bf16.msra.mxu0 %v6546
    %6656 = vmatprep.subr.bf16.mxu0 %v6549
    %6657 = vmatpush1.bf16.msra.mxu0 %v6548
    %6658 = vmatprep.subr.bf16.mxu0 %v6551
    %6659 = vmatpush1.bf16.msra.mxu0 %v6550
    %6660 = vmatprep.subr.bf16.mxu0 %v6553
    %6661 = vmatpush1.bf16.msra.mxu0 %v6552
    %6662 = vmatprep.subr.bf16.mxu0 %v6555
    %6663 = vmatpush1.bf16.msra.mxu0 %v6554
    %6664 = vmatprep.subr.bf16.mxu0 %v6557
    %6665 = vmatpush1.bf16.msra.mxu0 %v6556
    %6666 = vmatprep.subr.bf16.mxu0 %v6559
    %6667 = vmatpush1.bf16.msra.mxu0 %v6558
    %6668 = vmatprep.mubr.bf16.mxu0 %v6625
    %6669 = vmatmul.mubr.bf16.gmra.mrb[0].mxu0 %v6624
    %v6670 = vpop.f32.mrb[0].mxu0
    %v6671 = vadd.f32 0.0, %v6670
    %v6672 = vpop.f32.mrb[0].mxu0
    %v6673 = vadd.f32 0.0, %v6672
    %v6674 = vpop.f32.mrb[0].mxu0
    %v6675 = vpop.f32.mrb[0].mxu0
    %6676 = vdwg.mxu0
    %6677 = vmatprep.subr.bf16.mxu0 %v6561
    %6678 = vmatpush1.bf16.msra.mxu0 %v6560
    %6679 = vmatprep.subr.bf16.mxu0 %v6563
    %6680 = vmatpush1.bf16.msra.mxu0 %v6562
    %6681 = vmatprep.subr.bf16.mxu0 %v6565
    %6682 = vmatpush1.bf16.msra.mxu0 %v6564
    %6683 = vmatprep.subr.bf16.mxu0 %v6567
    %6684 = vmatpush1.bf16.msra.mxu0 %v6566
    %6685 = vmatprep.subr.bf16.mxu0 %v6569
    %6686 = vmatpush1.bf16.msra.mxu0 %v6568
    %6687 = vmatprep.subr.bf16.mxu0 %v6571
    %6688 = vmatpush1.bf16.msra.mxu0 %v6570
    %6689 = vmatprep.subr.bf16.mxu0 %v6573
    %6690 = vmatpush1.bf16.msra.mxu0 %v6572
    %6691 = vmatprep.subr.bf16.mxu0 %v6575
    %6692 = vmatpush1.bf16.msra.mxu0 %v6574
    %6693 = vmatprep.subr.bf16.mxu0 %v6577
    %6694 = vmatpush1.bf16.msra.mxu0 %v6576
    %6695 = vmatprep.subr.bf16.mxu0 %v6579
    %6696 = vmatpush1.bf16.msra.mxu0 %v6578
    %6697 = vmatprep.subr.bf16.mxu0 %v6581
    %6698 = vmatpush1.bf16.msra.mxu0 %v6580
    %6699 = vmatprep.subr.bf16.mxu0 %v6583
    %6700 = vmatpush1.bf16.msra.mxu0 %v6582
    %6701 = vmatprep.subr.bf16.mxu0 %v6585
    %6702 = vmatpush1.bf16.msra.mxu0 %v6584
    %6703 = vmatprep.subr.bf16.mxu0 %v6587
    %6704 = vmatpush1.bf16.msra.mxu0 %v6586
    %6705 = vmatprep.subr.bf16.mxu0 %v6589
    %6706 = vmatpush1.bf16.msra.mxu0 %v6588
    %6707 = vmatprep.subr.bf16.mxu0 %v6591
    %6708 = vmatpush1.bf16.msra.mxu0 %v6590
    %6709 = vmatprep.mubr.bf16.mxu0 %v6627
    %6710 = vmatmul.mubr.bf16.gmra.mrb[0].mxu0 %v6626
    %v6711 = vpop.f32.mrb[0].mxu0
    %v6712 = vadd.f32 %v6671, %v6711
    %v6713 = vpop.f32.mrb[0].mxu0
    %v6714 = vadd.f32 %v6673, %v6713
    %v6715 = vpop.f32.mrb[0].mxu0
    %v6716 = vpop.f32.mrb[0].mxu0
    %6717 = vdwg.mxu0
    %6718 = vmatprep.subr.bf16.mxu0 %v6593
    %6719 = vmatpush1.bf16.msra.mxu0 %v6592
    %6720 = vmatprep.subr.bf16.mxu0 %v6595
    %6721 = vmatpush1.bf16.msra.mxu0 %v6594
    %6722 = vmatprep.subr.bf16.mxu0 %v6597
    %6723 = vmatpush1.bf16.msra.mxu0 %v6596
    %6724 = vmatprep.subr.bf16.mxu0 %v6599
    %6725 = vmatpush1.bf16.msra.mxu0 %v6598
    %6726 = vmatprep.subr.bf16.mxu0 %v6601
    %6727 = vmatpush1.bf16.msra.mxu0 %v6600
    %6728 = vmatprep.subr.bf16.mxu0 %v6603
    %6729 = vmatpush1.bf16.msra.mxu0 %v6602
    %6730 = vmatprep.subr.bf16.mxu0 %v6605
    %6731 = vmatpush1.bf16.msra.mxu0 %v6604
    %6732 = vmatprep.subr.bf16.mxu0 %v6607
    %6733 = vmatpush1.bf16.msra.mxu0 %v6606
    %6734 = vmatprep.subr.bf16.mxu0 %v6609
    %6735 = vmatpush1.bf16.msra.mxu0 %v6608
    %6736 = vmatprep.subr.bf16.mxu0 %v6611
    %6737 = vmatpush1.bf16.msra.mxu0 %v6610
    %6738 = vmatprep.subr.bf16.mxu0 %v6613
    %6739 = vmatpush1.bf16.msra.mxu0 %v6612
    %6740 = vmatprep.subr.bf16.mxu0 %v6615
    %6741 = vmatpush1.bf16.msra.mxu0 %v6614
    %6742 = vmatprep.subr.bf16.mxu0 %v6617
    %6743 = vmatpush1.bf16.msra.mxu0 %v6616
    %6744 = vmatprep.subr.bf16.mxu0 %v6619
    %6745 = vmatpush1.bf16.msra.mxu0 %v6618
    %6746 = vmatprep.subr.bf16.mxu0 %v6621
    %6747 = vmatpush1.bf16.msra.mxu0 %v6620
    %6748 = vmatprep.subr.bf16.mxu0 %v6623
    %6749 = vmatpush1.bf16.msra.mxu0 %v6622
    %6750 = vmatprep.mubr.bf16.mxu0 %v6629
    %6751 = vmatmul.mubr.bf16.gmra.mrb[0].mxu0 %v6628
    %v6752 = vpop.f32.mrb[0].mxu0
    %v6753 = vadd.f32 %v6712, %v6752
    %v6754 = vpop.f32.mrb[0].mxu0
    %v6755 = vadd.f32 %v6714, %v6754
    %v6756 = vpop.f32.mrb[0].mxu0
    %v6757 = vpop.f32.mrb[0].mxu0
    %6758 = vdwg.mxu0
    %v6759 = vadd.f32 %v6525, %v6753
    %v6760 = vadd.f32 %v6526, %v6755
    %s6761 = scalar_lea.vmem [#allocation2], 5376
    %v6762 = vld [vmem:[%s6761] sm:$0xff]
    %v6763 = vld [vmem:[%s6761 + $0x8] sm:$0xff]
    %v6764 = vld [vmem:[%s6761 + $0x10] sm:$0xff]
    %v6765 = vld [vmem:[%s6761 + $0x18] sm:$0xff]
    %v6766 = vld [vmem:[%s6761 + $0x20] sm:$0xff]
    %v6767 = vld [vmem:[%s6761 + $0x28] sm:$0xff]
    %v6768 = vld [vmem:[%s6761 + $0x30] sm:$0xff]
    %v6769 = vld [vmem:[%s6761 + $0x38] sm:$0xff]
    %v6770 = vld [vmem:[%s6761 + $0x40] sm:$0xff]
    %v6771 = vld [vmem:[%s6761 + $0x48] sm:$0xff]
    %v6772 = vld [vmem:[%s6761 + $0x50] sm:$0xff]
    %v6773 = vld [vmem:[%s6761 + $0x58] sm:$0xff]
    %v6774 = vld [vmem:[%s6761 + $0x60] sm:$0xff]
    %v6775 = vld [vmem:[%s6761 + $0x68] sm:$0xff]
    %v6776 = vld [vmem:[%s6761 + $0x70] sm:$0xff]
    %v6777 = vld [vmem:[%s6761 + $0x78] sm:$0xff]
    %v6778 = vld [vmem:[%s6761 + $0x80] sm:$0xff]
    %v6779 = vld [vmem:[%s6761 + $0x88] sm:$0xff]
    %v6780 = vld [vmem:[%s6761 + $0x90] sm:$0xff]
    %v6781 = vld [vmem:[%s6761 + $0x98] sm:$0xff]
    %v6782 = vld [vmem:[%s6761 + $0xa0] sm:$0xff]
    %v6783 = vld [vmem:[%s6761 + $0xa8] sm:$0xff]
    %v6784 = vld [vmem:[%s6761 + $0xb0] sm:$0xff]
    %v6785 = vld [vmem:[%s6761 + $0xb8] sm:$0xff]
    %v6786 = vld [vmem:[%s6761 + $0xc0] sm:$0xff]
    %v6787 = vld [vmem:[%s6761 + $0xc8] sm:$0xff]
    %v6788 = vld [vmem:[%s6761 + $0xd0] sm:$0xff]
    %v6789 = vld [vmem:[%s6761 + $0xd8] sm:$0xff]
    %v6790 = vld [vmem:[%s6761 + $0xe0] sm:$0xff]
    %v6791 = vld [vmem:[%s6761 + $0xe8] sm:$0xff]
    %v6792 = vld [vmem:[%s6761 + $0xf0] sm:$0xff]
    %v6793 = vld [vmem:[%s6761 + $0xf8] sm:$0xff]
    %v6794 = vld [vmem:[%s6761 + $0x100] sm:$0xff]
    %v6795 = vld [vmem:[%s6761 + $0x108] sm:$0xff]
    %v6796 = vld [vmem:[%s6761 + $0x110] sm:$0xff]
    %v6797 = vld [vmem:[%s6761 + $0x118] sm:$0xff]
    %v6798 = vld [vmem:[%s6761 + $0x120] sm:$0xff]
    %v6799 = vld [vmem:[%s6761 + $0x128] sm:$0xff]
    %v6800 = vld [vmem:[%s6761 + $0x130] sm:$0xff]
    %v6801 = vld [vmem:[%s6761 + $0x138] sm:$0xff]
    %v6802 = vld [vmem:[%s6761 + $0x140] sm:$0xff]
    %v6803 = vld [vmem:[%s6761 + $0x148] sm:$0xff]
    %v6804 = vld [vmem:[%s6761 + $0x150] sm:$0xff]
    %v6805 = vld [vmem:[%s6761 + $0x158] sm:$0xff]
    %v6806 = vld [vmem:[%s6761 + $0x160] sm:$0xff]
    %v6807 = vld [vmem:[%s6761 + $0x168] sm:$0xff]
    %v6808 = vld [vmem:[%s6761 + $0x170] sm:$0xff]
    %v6809 = vld [vmem:[%s6761 + $0x178] sm:$0xff]
    %v6810 = vld [vmem:[%s6761 + $0x180] sm:$0xff]
    %v6811 = vld [vmem:[%s6761 + $0x188] sm:$0xff]
    %v6812 = vld [vmem:[%s6761 + $0x190] sm:$0xff]
    %v6813 = vld [vmem:[%s6761 + $0x198] sm:$0xff]
    %v6814 = vld [vmem:[%s6761 + $0x1a0] sm:$0xff]
    %v6815 = vld [vmem:[%s6761 + $0x1a8] sm:$0xff]
    %v6816 = vld [vmem:[%s6761 + $0x1b0] sm:$0xff]
    %v6817 = vld [vmem:[%s6761 + $0x1b8] sm:$0xff]
    %v6818 = vld [vmem:[%s6761 + $0x1c0] sm:$0xff]
    %v6819 = vld [vmem:[%s6761 + $0x1c8] sm:$0xff]
    %v6820 = vld [vmem:[%s6761 + $0x1d0] sm:$0xff]
    %v6821 = vld [vmem:[%s6761 + $0x1d8] sm:$0xff]
    %v6822 = vld [vmem:[%s6761 + $0x1e0] sm:$0xff]
    %v6823 = vld [vmem:[%s6761 + $0x1e8] sm:$0xff]
    %v6824 = vld [vmem:[%s6761 + $0x1f0] sm:$0xff]
    %v6825 = vld [vmem:[%s6761 + $0x1f8] sm:$0xff]
    %v6826 = vld [vmem:[%s6761 + $0x200] sm:$0xff]
    %v6827 = vld [vmem:[%s6761 + $0x208] sm:$0xff]
    %v6828 = vld [vmem:[%s6761 + $0x210] sm:$0xff]
    %v6829 = vld [vmem:[%s6761 + $0x218] sm:$0xff]
    %v6830 = vld [vmem:[%s6761 + $0x220] sm:$0xff]
    %v6831 = vld [vmem:[%s6761 + $0x228] sm:$0xff]
    %v6832 = vld [vmem:[%s6761 + $0x230] sm:$0xff]
    %v6833 = vld [vmem:[%s6761 + $0x238] sm:$0xff]
    %v6834 = vld [vmem:[%s6761 + $0x240] sm:$0xff]
    %v6835 = vld [vmem:[%s6761 + $0x248] sm:$0xff]
    %v6836 = vld [vmem:[%s6761 + $0x250] sm:$0xff]
    %v6837 = vld [vmem:[%s6761 + $0x258] sm:$0xff]
    %v6838 = vld [vmem:[%s6761 + $0x260] sm:$0xff]
    %v6839 = vld [vmem:[%s6761 + $0x268] sm:$0xff]
    %v6840 = vld [vmem:[%s6761 + $0x270] sm:$0xff]
    %v6841 = vld [vmem:[%s6761 + $0x278] sm:$0xff]
    %v6842 = vld [vmem:[%s6761 + $0x280] sm:$0xff]
    %v6843 = vld [vmem:[%s6761 + $0x288] sm:$0xff]
    %v6844 = vld [vmem:[%s6761 + $0x290] sm:$0xff]
    %v6845 = vld [vmem:[%s6761 + $0x298] sm:$0xff]
    %v6846 = vld [vmem:[%s6761 + $0x2a0] sm:$0xff]
    %v6847 = vld [vmem:[%s6761 + $0x2a8] sm:$0xff]
    %v6848 = vld [vmem:[%s6761 + $0x2b0] sm:$0xff]
    %v6849 = vld [vmem:[%s6761 + $0x2b8] sm:$0xff]
    %v6850 = vld [vmem:[%s6761 + $0x2c0] sm:$0xff]
    %v6851 = vld [vmem:[%s6761 + $0x2c8] sm:$0xff]
    %v6852 = vld [vmem:[%s6761 + $0x2d0] sm:$0xff]
    %v6853 = vld [vmem:[%s6761 + $0x2d8] sm:$0xff]
    %v6854 = vld [vmem:[%s6761 + $0x2e0] sm:$0xff]
    %v6855 = vld [vmem:[%s6761 + $0x2e8] sm:$0xff]
    %v6856 = vld [vmem:[%s6761 + $0x2f0] sm:$0xff]
    %v6857 = vld [vmem:[%s6761 + $0x2f8] sm:$0xff]
    %v6858 = vrot.slane %v5117, 6
    %v6859 = vrot.slane %v5118, 6
    %v6860 = vrot.slane %v5119, 6
    %v6861 = vrot.slane %v5120, 6
    %v6862 = vrot.slane %v5121, 6
    %v6863 = vrot.slane %v5122, 6
    %6870 = vmatprep.subr.bf16.mxu0 %v6763
    %6871 = vmatpush1.bf16.msra.mxu0 %v6762
    %6872 = vmatprep.subr.bf16.mxu0 %v6765
    %6873 = vmatpush1.bf16.msra.mxu0 %v6764
    %6874 = vmatprep.subr.bf16.mxu0 %v6767
    %6875 = vmatpush1.bf16.msra.mxu0 %v6766
    %6876 = vmatprep.subr.bf16.mxu0 %v6769
    %6877 = vmatpush1.bf16.msra.mxu0 %v6768
    %6878 = vmatprep.subr.bf16.mxu0 %v6771
    %6879 = vmatpush1.bf16.msra.mxu0 %v6770
    %6880 = vmatprep.subr.bf16.mxu0 %v6773
    %6881 = vmatpush1.bf16.msra.mxu0 %v6772
    %6882 = vmatprep.subr.bf16.mxu0 %v6775
    %6883 = vmatpush1.bf16.msra.mxu0 %v6774
    %6884 = vmatprep.subr.bf16.mxu0 %v6777
    %6885 = vmatpush1.bf16.msra.mxu0 %v6776
    %6886 = vmatprep.subr.bf16.mxu0 %v6779
    %6887 = vmatpush1.bf16.msra.mxu0 %v6778
    %6888 = vmatprep.subr.bf16.mxu0 %v6781
    %6889 = vmatpush1.bf16.msra.mxu0 %v6780
    %6890 = vmatprep.subr.bf16.mxu0 %v6783
    %6891 = vmatpush1.bf16.msra.mxu0 %v6782
    %6892 = vmatprep.subr.bf16.mxu0 %v6785
    %6893 = vmatpush1.bf16.msra.mxu0 %v6784
    %6894 = vmatprep.subr.bf16.mxu0 %v6787
    %6895 = vmatpush1.bf16.msra.mxu0 %v6786
    %6896 = vmatprep.subr.bf16.mxu0 %v6789
    %6897 = vmatpush1.bf16.msra.mxu0 %v6788
    %6898 = vmatprep.subr.bf16.mxu0 %v6791
    %6899 = vmatpush1.bf16.msra.mxu0 %v6790
    %6900 = vmatprep.subr.bf16.mxu0 %v6793
    %6901 = vmatpush1.bf16.msra.mxu0 %v6792
    %6902 = vmatprep.mubr.bf16.mxu0 %v6859
    %6903 = vmatmul.mubr.bf16.gmra.mrb[0].mxu0 %v6858
    %v6904 = vpop.f32.mrb[0].mxu0
    %v6905 = vadd.f32 0.0, %v6904
    %v6906 = vpop.f32.mrb[0].mxu0
    %v6907 = vadd.f32 0.0, %v6906
    %v6908 = vpop.f32.mrb[0].mxu0
    %v6909 = vpop.f32.mrb[0].mxu0
    %6910 = vdwg.mxu0
    %6911 = vmatprep.subr.bf16.mxu0 %v6795
    %6912 = vmatpush1.bf16.msra.mxu0 %v6794
    %6913 = vmatprep.subr.bf16.mxu0 %v6797
    %6914 = vmatpush1.bf16.msra.mxu0 %v6796
    %6915 = vmatprep.subr.bf16.mxu0 %v6799
    %6916 = vmatpush1.bf16.msra.mxu0 %v6798
    %6917 = vmatprep.subr.bf16.mxu0 %v6801
    %6918 = vmatpush1.bf16.msra.mxu0 %v6800
    %6919 = vmatprep.subr.bf16.mxu0 %v6803
    %6920 = vmatpush1.bf16.msra.mxu0 %v6802
    %6921 = vmatprep.subr.bf16.mxu0 %v6805
    %6922 = vmatpush1.bf16.msra.mxu0 %v6804
    %6923 = vmatprep.subr.bf16.mxu0 %v6807
    %6924 = vmatpush1.bf16.msra.mxu0 %v6806
    %6925 = vmatprep.subr.bf16.mxu0 %v6809
    %6926 = vmatpush1.bf16.msra.mxu0 %v6808
    %6927 = vmatprep.subr.bf16.mxu0 %v6811
    %6928 = vmatpush1.bf16.msra.mxu0 %v6810
    %6929 = vmatprep.subr.bf16.mxu0 %v6813
    %6930 = vmatpush1.bf16.msra.mxu0 %v6812
    %6931 = vmatprep.subr.bf16.mxu0 %v6815
    %6932 = vmatpush1.bf16.msra.mxu0 %v6814
    %6933 = vmatprep.subr.bf16.mxu0 %v6817
    %6934 = vmatpush1.bf16.msra.mxu0 %v6816
    %6935 = vmatprep.subr.bf16.mxu0 %v6819
    %6936 = vmatpush1.bf16.msra.mxu0 %v6818
    %6937 = vmatprep.subr.bf16.mxu0 %v6821
    %6938 = vmatpush1.bf16.msra.mxu0 %v6820
    %6939 = vmatprep.subr.bf16.mxu0 %v6823
    %6940 = vmatpush1.bf16.msra.mxu0 %v6822
    %6941 = vmatprep.subr.bf16.mxu0 %v6825
    %6942 = vmatpush1.bf16.msra.mxu0 %v6824
    %6943 = vmatprep.mubr.bf16.mxu0 %v6861
    %6944 = vmatmul.mubr.bf16.gmra.mrb[0].mxu0 %v6860
    %v6945 = vpop.f32.mrb[0].mxu0
    %v6946 = vadd.f32 %v6905, %v6945
    %v6947 = vpop.f32.mrb[0].mxu0
    %v6948 = vadd.f32 %v6907, %v6947
    %v6949 = vpop.f32.mrb[0].mxu0
    %v6950 = vpop.f32.mrb[0].mxu0
    %6951 = vdwg.mxu0
    %6952 = vmatprep.subr.bf16.mxu0 %v6827
    %6953 = vmatpush1.bf16.msra.mxu0 %v6826
    %6954 = vmatprep.subr.bf16.mxu0 %v6829
    %6955 = vmatpush1.bf16.msra.mxu0 %v6828
    %6956 = vmatprep.subr.bf16.mxu0 %v6831
    %6957 = vmatpush1.bf16.msra.mxu0 %v6830
    %6958 = vmatprep.subr.bf16.mxu0 %v6833
    %6959 = vmatpush1.bf16.msra.mxu0 %v6832
    %6960 = vmatprep.subr.bf16.mxu0 %v6835
    %6961 = vmatpush1.bf16.msra.mxu0 %v6834
    %6962 = vmatprep.subr.bf16.mxu0 %v6837
    %6963 = vmatpush1.bf16.msra.mxu0 %v6836
    %6964 = vmatprep.subr.bf16.mxu0 %v6839
    %6965 = vmatpush1.bf16.msra.mxu0 %v6838
    %6966 = vmatprep.subr.bf16.mxu0 %v6841
    %6967 = vmatpush1.bf16.msra.mxu0 %v6840
    %6968 = vmatprep.subr.bf16.mxu0 %v6843
    %6969 = vmatpush1.bf16.msra.mxu0 %v6842
    %6970 = vmatprep.subr.bf16.mxu0 %v6845
    %6971 = vmatpush1.bf16.msra.mxu0 %v6844
    %6972 = vmatprep.subr.bf16.mxu0 %v6847
    %6973 = vmatpush1.bf16.msra.mxu0 %v6846
    %6974 = vmatprep.subr.bf16.mxu0 %v6849
    %6975 = vmatpush1.bf16.msra.mxu0 %v6848
    %6976 = vmatprep.subr.bf16.mxu0 %v6851
    %6977 = vmatpush1.bf16.msra.mxu0 %v6850
    %6978 = vmatprep.subr.bf16.mxu0 %v6853
    %6979 = vmatpush1.bf16.msra.mxu0 %v6852
    %6980 = vmatprep.subr.bf16.mxu0 %v6855
    %6981 = vmatpush1.bf16.msra.mxu0 %v6854
    %6982 = vmatprep.subr.bf16.mxu0 %v6857
    %6983 = vmatpush1.bf16.msra.mxu0 %v6856
    %6984 = vmatprep.mubr.bf16.mxu0 %v6863
    %6985 = vmatmul.mubr.bf16.gmra.mrb[0].mxu0 %v6862
    %v6986 = vpop.f32.mrb[0].mxu0
    %v6987 = vadd.f32 %v6946, %v6986
    %v6988 = vpop.f32.mrb[0].mxu0
    %v6989 = vadd.f32 %v6948, %v6988
    %v6990 = vpop.f32.mrb[0].mxu0
    %v6991 = vpop.f32.mrb[0].mxu0
    %6992 = vdwg.mxu0
    %v6993 = vadd.f32 %v6759, %v6987
    %v6994 = vadd.f32 %v6760, %v6989
    %s6995 = scalar_lea.vmem [#allocation2], 6144
    %v6996 = vld [vmem:[%s6995] sm:$0xff]
    %v6997 = vld [vmem:[%s6995 + $0x8] sm:$0xff]
    %v6998 = vld [vmem:[%s6995 + $0x10] sm:$0xff]
    %v6999 = vld [vmem:[%s6995 + $0x18] sm:$0xff]
    %v7000 = vld [vmem:[%s6995 + $0x20] sm:$0xff]
    %v7001 = vld [vmem:[%s6995 + $0x28] sm:$0xff]
    %v7002 = vld [vmem:[%s6995 + $0x30] sm:$0xff]
    %v7003 = vld [vmem:[%s6995 + $0x38] sm:$0xff]
    %v7004 = vld [vmem:[%s6995 + $0x40] sm:$0xff]
    %v7005 = vld [vmem:[%s6995 + $0x48] sm:$0xff]
    %v7006 = vld [vmem:[%s6995 + $0x50] sm:$0xff]
    %v7007 = vld [vmem:[%s6995 + $0x58] sm:$0xff]
    %v7008 = vld [vmem:[%s6995 + $0x60] sm:$0xff]
    %v7009 = vld [vmem:[%s6995 + $0x68] sm:$0xff]
    %v7010 = vld [vmem:[%s6995 + $0x70] sm:$0xff]
    %v7011 = vld [vmem:[%s6995 + $0x78] sm:$0xff]
    %v7012 = vld [vmem:[%s6995 + $0x80] sm:$0xff]
    %v7013 = vld [vmem:[%s6995 + $0x88] sm:$0xff]
    %v7014 = vld [vmem:[%s6995 + $0x90] sm:$0xff]
    %v7015 = vld [vmem:[%s6995 + $0x98] sm:$0xff]
    %v7016 = vld [vmem:[%s6995 + $0xa0] sm:$0xff]
    %v7017 = vld [vmem:[%s6995 + $0xa8] sm:$0xff]
    %v7018 = vld [vmem:[%s6995 + $0xb0] sm:$0xff]
    %v7019 = vld [vmem:[%s6995 + $0xb8] sm:$0xff]
    %v7020 = vld [vmem:[%s6995 + $0xc0] sm:$0xff]
    %v7021 = vld [vmem:[%s6995 + $0xc8] sm:$0xff]
    %v7022 = vld [vmem:[%s6995 + $0xd0] sm:$0xff]
    %v7023 = vld [vmem:[%s6995 + $0xd8] sm:$0xff]
    %v7024 = vld [vmem:[%s6995 + $0xe0] sm:$0xff]
    %v7025 = vld [vmem:[%s6995 + $0xe8] sm:$0xff]
    %v7026 = vld [vmem:[%s6995 + $0xf0] sm:$0xff]
    %v7027 = vld [vmem:[%s6995 + $0xf8] sm:$0xff]
    %v7028 = vld [vmem:[%s6995 + $0x100] sm:$0xff]
    %v7029 = vld [vmem:[%s6995 + $0x108] sm:$0xff]
    %v7030 = vld [vmem:[%s6995 + $0x110] sm:$0xff]
    %v7031 = vld [vmem:[%s6995 + $0x118] sm:$0xff]
    %v7032 = vld [vmem:[%s6995 + $0x120] sm:$0xff]
    %v7033 = vld [vmem:[%s6995 + $0x128] sm:$0xff]
    %v7034 = vld [vmem:[%s6995 + $0x130] sm:$0xff]
    %v7035 = vld [vmem:[%s6995 + $0x138] sm:$0xff]
    %v7036 = vld [vmem:[%s6995 + $0x140] sm:$0xff]
    %v7037 = vld [vmem:[%s6995 + $0x148] sm:$0xff]
    %v7038 = vld [vmem:[%s6995 + $0x150] sm:$0xff]
    %v7039 = vld [vmem:[%s6995 + $0x158] sm:$0xff]
    %v7040 = vld [vmem:[%s6995 + $0x160] sm:$0xff]
    %v7041 = vld [vmem:[%s6995 + $0x168] sm:$0xff]
    %v7042 = vld [vmem:[%s6995 + $0x170] sm:$0xff]
    %v7043 = vld [vmem:[%s6995 + $0x178] sm:$0xff]
    %v7044 = vld [vmem:[%s6995 + $0x180] sm:$0xff]
    %v7045 = vld [vmem:[%s6995 + $0x188] sm:$0xff]
    %v7046 = vld [vmem:[%s6995 + $0x190] sm:$0xff]
    %v7047 = vld [vmem:[%s6995 + $0x198] sm:$0xff]
    %v7048 = vld [vmem:[%s6995 + $0x1a0] sm:$0xff]
    %v7049 = vld [vmem:[%s6995 + $0x1a8] sm:$0xff]
    %v7050 = vld [vmem:[%s6995 + $0x1b0] sm:$0xff]
    %v7051 = vld [vmem:[%s6995 + $0x1b8] sm:$0xff]
    %v7052 = vld [vmem:[%s6995 + $0x1c0] sm:$0xff]
    %v7053 = vld [vmem:[%s6995 + $0x1c8] sm:$0xff]
    %v7054 = vld [vmem:[%s6995 + $0x1d0] sm:$0xff]
    %v7055 = vld [vmem:[%s6995 + $0x1d8] sm:$0xff]
    %v7056 = vld [vmem:[%s6995 + $0x1e0] sm:$0xff]
    %v7057 = vld [vmem:[%s6995 + $0x1e8] sm:$0xff]
    %v7058 = vld [vmem:[%s6995 + $0x1f0] sm:$0xff]
    %v7059 = vld [vmem:[%s6995 + $0x1f8] sm:$0xff]
    %v7060 = vld [vmem:[%s6995 + $0x200] sm:$0xff]
    %v7061 = vld [vmem:[%s6995 + $0x208] sm:$0xff]
    %v7062 = vld [vmem:[%s6995 + $0x210] sm:$0xff]
    %v7063 = vld [vmem:[%s6995 + $0x218] sm:$0xff]
    %v7064 = vld [vmem:[%s6995 + $0x220] sm:$0xff]
    %v7065 = vld [vmem:[%s6995 + $0x228] sm:$0xff]
    %v7066 = vld [vmem:[%s6995 + $0x230] sm:$0xff]
    %v7067 = vld [vmem:[%s6995 + $0x238] sm:$0xff]
    %v7068 = vld [vmem:[%s6995 + $0x240] sm:$0xff]
    %v7069 = vld [vmem:[%s6995 + $0x248] sm:$0xff]
    %v7070 = vld [vmem:[%s6995 + $0x250] sm:$0xff]
    %v7071 = vld [vmem:[%s6995 + $0x258] sm:$0xff]
    %v7072 = vld [vmem:[%s6995 + $0x260] sm:$0xff]
    %v7073 = vld [vmem:[%s6995 + $0x268] sm:$0xff]
    %v7074 = vld [vmem:[%s6995 + $0x270] sm:$0xff]
    %v7075 = vld [vmem:[%s6995 + $0x278] sm:$0xff]
    %v7076 = vld [vmem:[%s6995 + $0x280] sm:$0xff]
    %v7077 = vld [vmem:[%s6995 + $0x288] sm:$0xff]
    %v7078 = vld [vmem:[%s6995 + $0x290] sm:$0xff]
    %v7079 = vld [vmem:[%s6995 + $0x298] sm:$0xff]
    %v7080 = vld [vmem:[%s6995 + $0x2a0] sm:$0xff]
    %v7081 = vld [vmem:[%s6995 + $0x2a8] sm:$0xff]
    %v7082 = vld [vmem:[%s6995 + $0x2b0] sm:$0xff]
    %v7083 = vld [vmem:[%s6995 + $0x2b8] sm:$0xff]
    %v7084 = vld [vmem:[%s6995 + $0x2c0] sm:$0xff]
    %v7085 = vld [vmem:[%s6995 + $0x2c8] sm:$0xff]
    %v7086 = vld [vmem:[%s6995 + $0x2d0] sm:$0xff]
    %v7087 = vld [vmem:[%s6995 + $0x2d8] sm:$0xff]
    %v7088 = vld [vmem:[%s6995 + $0x2e0] sm:$0xff]
    %v7089 = vld [vmem:[%s6995 + $0x2e8] sm:$0xff]
    %v7090 = vld [vmem:[%s6995 + $0x2f0] sm:$0xff]
    %v7091 = vld [vmem:[%s6995 + $0x2f8] sm:$0xff]
    %7092 = vmatprep.subr.bf16.mxu0 %v6997
    %7093 = vmatpush1.bf16.msra.mxu0 %v6996
    %7094 = vmatprep.subr.bf16.mxu0 %v6999
    %7095 = vmatpush1.bf16.msra.mxu0 %v6998
    %7096 = vmatprep.subr.bf16.mxu0 %v7001
    %7097 = vmatpush1.bf16.msra.mxu0 %v7000
    %7098 = vmatprep.subr.bf16.mxu0 %v7003
    %7099 = vmatpush1.bf16.msra.mxu0 %v7002
    %7100 = vmatprep.subr.bf16.mxu0 %v7005
    %7101 = vmatpush1.bf16.msra.mxu0 %v7004
    %7102 = vmatprep.subr.bf16.mxu0 %v7007
    %7103 = vmatpush1.bf16.msra.mxu0 %v7006
    %7104 = vmatprep.subr.bf16.mxu0 %v7009
    %7105 = vmatpush1.bf16.msra.mxu0 %v7008
    %7106 = vmatprep.subr.bf16.mxu0 %v7011
    %7107 = vmatpush1.bf16.msra.mxu0 %v7010
    %7108 = vmatprep.subr.bf16.mxu0 %v7013
    %7109 = vmatpush1.bf16.msra.mxu0 %v7012
    %7110 = vmatprep.subr.bf16.mxu0 %v7015
    %7111 = vmatpush1.bf16.msra.mxu0 %v7014
    %7112 = vmatprep.subr.bf16.mxu0 %v7017
    %7113 = vmatpush1.bf16.msra.mxu0 %v7016
    %7114 = vmatprep.subr.bf16.mxu0 %v7019
    %7115 = vmatpush1.bf16.msra.mxu0 %v7018
    %7116 = vmatprep.subr.bf16.mxu0 %v7021
    %7117 = vmatpush1.bf16.msra.mxu0 %v7020
    %7118 = vmatprep.subr.bf16.mxu0 %v7023
    %7119 = vmatpush1.bf16.msra.mxu0 %v7022
    %7120 = vmatprep.subr.bf16.mxu0 %v7025
    %7121 = vmatpush1.bf16.msra.mxu0 %v7024
    %7122 = vmatprep.subr.bf16.mxu0 %v7027
    %7123 = vmatpush1.bf16.msra.mxu0 %v7026
    %7124 = vmatprep.mubr.bf16.mxu0 %v5124
    %7125 = vmatmul.mubr.bf16.gmra.mrb[0].mxu0 %v5123
    %v7126 = vpop.f32.mrb[0].mxu0
    %v7127 = vadd.f32 0.0, %v7126
    %v7128 = vpop.f32.mrb[0].mxu0
    %v7129 = vadd.f32 0.0, %v7128
    %v7130 = vpop.f32.mrb[0].mxu0
    %v7131 = vpop.f32.mrb[0].mxu0
    %7132 = vdwg.mxu0
    %7133 = vmatprep.subr.bf16.mxu0 %v7029
    %7134 = vmatpush1.bf16.msra.mxu0 %v7028
    %7135 = vmatprep.subr.bf16.mxu0 %v7031
    %7136 = vmatpush1.bf16.msra.mxu0 %v7030
    %7137 = vmatprep.subr.bf16.mxu0 %v7033
    %7138 = vmatpush1.bf16.msra.mxu0 %v7032
    %7139 = vmatprep.subr.bf16.mxu0 %v7035
    %7140 = vmatpush1.bf16.msra.mxu0 %v7034
    %7141 = vmatprep.subr.bf16.mxu0 %v7037
    %7142 = vmatpush1.bf16.msra.mxu0 %v7036
    %7143 = vmatprep.subr.bf16.mxu0 %v7039
    %7144 = vmatpush1.bf16.msra.mxu0 %v7038
    %7145 = vmatprep.subr.bf16.mxu0 %v7041
    %7146 = vmatpush1.bf16.msra.mxu0 %v7040
    %7147 = vmatprep.subr.bf16.mxu0 %v7043
    %7148 = vmatpush1.bf16.msra.mxu0 %v7042
    %7149 = vmatprep.subr.bf16.mxu0 %v7045
    %7150 = vmatpush1.bf16.msra.mxu0 %v7044
    %7151 = vmatprep.subr.bf16.mxu0 %v7047
    %7152 = vmatpush1.bf16.msra.mxu0 %v7046
    %7153 = vmatprep.subr.bf16.mxu0 %v7049
    %7154 = vmatpush1.bf16.msra.mxu0 %v7048
    %7155 = vmatprep.subr.bf16.mxu0 %v7051
    %7156 = vmatpush1.bf16.msra.mxu0 %v7050
    %7157 = vmatprep.subr.bf16.mxu0 %v7053
    %7158 = vmatpush1.bf16.msra.mxu0 %v7052
    %7159 = vmatprep.subr.bf16.mxu0 %v7055
    %7160 = vmatpush1.bf16.msra.mxu0 %v7054
    %7161 = vmatprep.subr.bf16.mxu0 %v7057
    %7162 = vmatpush1.bf16.msra.mxu0 %v7056
    %7163 = vmatprep.subr.bf16.mxu0 %v7059
    %7164 = vmatpush1.bf16.msra.mxu0 %v7058
    %7165 = vmatprep.mubr.bf16.mxu0 %v5126
    %7166 = vmatmul.mubr.bf16.gmra.mrb[0].mxu0 %v5125
    %v7167 = vpop.f32.mrb[0].mxu0
    %v7168 = vadd.f32 %v7127, %v7167
    %v7169 = vpop.f32.mrb[0].mxu0
    %v7170 = vadd.f32 %v7129, %v7169
    %v7171 = vpop.f32.mrb[0].mxu0
    %v7172 = vpop.f32.mrb[0].mxu0
    %7173 = vdwg.mxu0
    %7174 = vmatprep.subr.bf16.mxu0 %v7061
    %7175 = vmatpush1.bf16.msra.mxu0 %v7060
    %7176 = vmatprep.subr.bf16.mxu0 %v7063
    %7177 = vmatpush1.bf16.msra.mxu0 %v7062
    %7178 = vmatprep.subr.bf16.mxu0 %v7065
    %7179 = vmatpush1.bf16.msra.mxu0 %v7064
    %7180 = vmatprep.subr.bf16.mxu0 %v7067
    %7181 = vmatpush1.bf16.msra.mxu0 %v7066
    %7182 = vmatprep.subr.bf16.mxu0 %v7069
    %7183 = vmatpush1.bf16.msra.mxu0 %v7068
    %7184 = vmatprep.subr.bf16.mxu0 %v7071
    %7185 = vmatpush1.bf16.msra.mxu0 %v7070
    %7186 = vmatprep.subr.bf16.mxu0 %v7073
    %7187 = vmatpush1.bf16.msra.mxu0 %v7072
    %7188 = vmatprep.subr.bf16.mxu0 %v7075
    %7189 = vmatpush1.bf16.msra.mxu0 %v7074
    %7190 = vmatprep.subr.bf16.mxu0 %v7077
    %7191 = vmatpush1.bf16.msra.mxu0 %v7076
    %7192 = vmatprep.subr.bf16.mxu0 %v7079
    %7193 = vmatpush1.bf16.msra.mxu0 %v7078
    %7194 = vmatprep.subr.bf16.mxu0 %v7081
    %7195 = vmatpush1.bf16.msra.mxu0 %v7080
    %7196 = vmatprep.subr.bf16.mxu0 %v7083
    %7197 = vmatpush1.bf16.msra.mxu0 %v7082
    %7198 = vmatprep.subr.bf16.mxu0 %v7085
    %7199 = vmatpush1.bf16.msra.mxu0 %v7084
    %7200 = vmatprep.subr.bf16.mxu0 %v7087
    %7201 = vmatpush1.bf16.msra.mxu0 %v7086
    %7202 = vmatprep.subr.bf16.mxu0 %v7089
    %7203 = vmatpush1.bf16.msra.mxu0 %v7088
    %7204 = vmatprep.subr.bf16.mxu0 %v7091
    %7205 = vmatpush1.bf16.msra.mxu0 %v7090
    %7206 = vmatprep.mubr.bf16.mxu0 %v5128
    %7207 = vmatmul.mubr.bf16.gmra.mrb[0].mxu0 %v5127
    %v7208 = vpop.f32.mrb[0].mxu0
    %v7209 = vadd.f32 %v7168, %v7208
    %v7210 = vpop.f32.mrb[0].mxu0
    %v7211 = vadd.f32 %v7170, %v7210
    %v7212 = vpop.f32.mrb[0].mxu0
    %v7213 = vpop.f32.mrb[0].mxu0
    %7214 = vdwg.mxu0
    %v7215 = vadd.f32 %v6993, %v7209
    %v7216 = vadd.f32 %v6994, %v7211
    %s7217 = scalar_lea.vmem [#allocation2], 6912
    %v7218 = vld [vmem:[%s7217] sm:$0xff]
    %v7219 = vld [vmem:[%s7217 + $0x8] sm:$0xff]
    %v7220 = vld [vmem:[%s7217 + $0x10] sm:$0xff]
    %v7221 = vld [vmem:[%s7217 + $0x18] sm:$0xff]
    %v7222 = vld [vmem:[%s7217 + $0x20] sm:$0xff]
    %v7223 = vld [vmem:[%s7217 + $0x28] sm:$0xff]
    %v7224 = vld [vmem:[%s7217 + $0x30] sm:$0xff]
    %v7225 = vld [vmem:[%s7217 + $0x38] sm:$0xff]
    %v7226 = vld [vmem:[%s7217 + $0x40] sm:$0xff]
    %v7227 = vld [vmem:[%s7217 + $0x48] sm:$0xff]
    %v7228 = vld [vmem:[%s7217 + $0x50] sm:$0xff]
    %v7229 = vld [vmem:[%s7217 + $0x58] sm:$0xff]
    %v7230 = vld [vmem:[%s7217 + $0x60] sm:$0xff]
    %v7231 = vld [vmem:[%s7217 + $0x68] sm:$0xff]
    %v7232 = vld [vmem:[%s7217 + $0x70] sm:$0xff]
    %v7233 = vld [vmem:[%s7217 + $0x78] sm:$0xff]
    %v7234 = vld [vmem:[%s7217 + $0x80] sm:$0xff]
    %v7235 = vld [vmem:[%s7217 + $0x88] sm:$0xff]
    %v7236 = vld [vmem:[%s7217 + $0x90] sm:$0xff]
    %v7237 = vld [vmem:[%s7217 + $0x98] sm:$0xff]
    %v7238 = vld [vmem:[%s7217 + $0xa0] sm:$0xff]
    %v7239 = vld [vmem:[%s7217 + $0xa8] sm:$0xff]
    %v7240 = vld [vmem:[%s7217 + $0xb0] sm:$0xff]
    %v7241 = vld [vmem:[%s7217 + $0xb8] sm:$0xff]
    %v7242 = vld [vmem:[%s7217 + $0xc0] sm:$0xff]
    %v7243 = vld [vmem:[%s7217 + $0xc8] sm:$0xff]
    %v7244 = vld [vmem:[%s7217 + $0xd0] sm:$0xff]
    %v7245 = vld [vmem:[%s7217 + $0xd8] sm:$0xff]
    %v7246 = vld [vmem:[%s7217 + $0xe0] sm:$0xff]
    %v7247 = vld [vmem:[%s7217 + $0xe8] sm:$0xff]
    %v7248 = vld [vmem:[%s7217 + $0xf0] sm:$0xff]
    %v7249 = vld [vmem:[%s7217 + $0xf8] sm:$0xff]
    %v7250 = vld [vmem:[%s7217 + $0x100] sm:$0xff]
    %v7251 = vld [vmem:[%s7217 + $0x108] sm:$0xff]
    %v7252 = vld [vmem:[%s7217 + $0x110] sm:$0xff]
    %v7253 = vld [vmem:[%s7217 + $0x118] sm:$0xff]
    %v7254 = vld [vmem:[%s7217 + $0x120] sm:$0xff]
    %v7255 = vld [vmem:[%s7217 + $0x128] sm:$0xff]
    %v7256 = vld [vmem:[%s7217 + $0x130] sm:$0xff]
    %v7257 = vld [vmem:[%s7217 + $0x138] sm:$0xff]
    %v7258 = vld [vmem:[%s7217 + $0x140] sm:$0xff]
    %v7259 = vld [vmem:[%s7217 + $0x148] sm:$0xff]
    %v7260 = vld [vmem:[%s7217 + $0x150] sm:$0xff]
    %v7261 = vld [vmem:[%s7217 + $0x158] sm:$0xff]
    %v7262 = vld [vmem:[%s7217 + $0x160] sm:$0xff]
    %v7263 = vld [vmem:[%s7217 + $0x168] sm:$0xff]
    %v7264 = vld [vmem:[%s7217 + $0x170] sm:$0xff]
    %v7265 = vld [vmem:[%s7217 + $0x178] sm:$0xff]
    %v7266 = vld [vmem:[%s7217 + $0x180] sm:$0xff]
    %v7267 = vld [vmem:[%s7217 + $0x188] sm:$0xff]
    %v7268 = vld [vmem:[%s7217 + $0x190] sm:$0xff]
    %v7269 = vld [vmem:[%s7217 + $0x198] sm:$0xff]
    %v7270 = vld [vmem:[%s7217 + $0x1a0] sm:$0xff]
    %v7271 = vld [vmem:[%s7217 + $0x1a8] sm:$0xff]
    %v7272 = vld [vmem:[%s7217 + $0x1b0] sm:$0xff]
    %v7273 = vld [vmem:[%s7217 + $0x1b8] sm:$0xff]
    %v7274 = vld [vmem:[%s7217 + $0x1c0] sm:$0xff]
    %v7275 = vld [vmem:[%s7217 + $0x1c8] sm:$0xff]
    %v7276 = vld [vmem:[%s7217 + $0x1d0] sm:$0xff]
    %v7277 = vld [vmem:[%s7217 + $0x1d8] sm:$0xff]
    %v7278 = vld [vmem:[%s7217 + $0x1e0] sm:$0xff]
    %v7279 = vld [vmem:[%s7217 + $0x1e8] sm:$0xff]
    %v7280 = vld [vmem:[%s7217 + $0x1f0] sm:$0xff]
    %v7281 = vld [vmem:[%s7217 + $0x1f8] sm:$0xff]
    %v7282 = vld [vmem:[%s7217 + $0x200] sm:$0xff]
    %v7283 = vld [vmem:[%s7217 + $0x208] sm:$0xff]
    %v7284 = vld [vmem:[%s7217 + $0x210] sm:$0xff]
    %v7285 = vld [vmem:[%s7217 + $0x218] sm:$0xff]
    %v7286 = vld [vmem:[%s7217 + $0x220] sm:$0xff]
    %v7287 = vld [vmem:[%s7217 + $0x228] sm:$0xff]
    %v7288 = vld [vmem:[%s7217 + $0x230] sm:$0xff]
    %v7289 = vld [vmem:[%s7217 + $0x238] sm:$0xff]
    %v7290 = vld [vmem:[%s7217 + $0x240] sm:$0xff]
    %v7291 = vld [vmem:[%s7217 + $0x248] sm:$0xff]
    %v7292 = vld [vmem:[%s7217 + $0x250] sm:$0xff]
    %v7293 = vld [vmem:[%s7217 + $0x258] sm:$0xff]
    %v7294 = vld [vmem:[%s7217 + $0x260] sm:$0xff]
    %v7295 = vld [vmem:[%s7217 + $0x268] sm:$0xff]
    %v7296 = vld [vmem:[%s7217 + $0x270] sm:$0xff]
    %v7297 = vld [vmem:[%s7217 + $0x278] sm:$0xff]
    %v7298 = vld [vmem:[%s7217 + $0x280] sm:$0xff]
    %v7299 = vld [vmem:[%s7217 + $0x288] sm:$0xff]
    %v7300 = vld [vmem:[%s7217 + $0x290] sm:$0xff]
    %v7301 = vld [vmem:[%s7217 + $0x298] sm:$0xff]
    %v7302 = vld [vmem:[%s7217 + $0x2a0] sm:$0xff]
    %v7303 = vld [vmem:[%s7217 + $0x2a8] sm:$0xff]
    %v7304 = vld [vmem:[%s7217 + $0x2b0] sm:$0xff]
    %v7305 = vld [vmem:[%s7217 + $0x2b8] sm:$0xff]
    %v7306 = vld [vmem:[%s7217 + $0x2c0] sm:$0xff]
    %v7307 = vld [vmem:[%s7217 + $0x2c8] sm:$0xff]
    %v7308 = vld [vmem:[%s7217 + $0x2d0] sm:$0xff]
    %v7309 = vld [vmem:[%s7217 + $0x2d8] sm:$0xff]
    %v7310 = vld [vmem:[%s7217 + $0x2e0] sm:$0xff]
    %v7311 = vld [vmem:[%s7217 + $0x2e8] sm:$0xff]
    %v7312 = vld [vmem:[%s7217 + $0x2f0] sm:$0xff]
    %v7313 = vld [vmem:[%s7217 + $0x2f8] sm:$0xff]
    %v7320 = vrot.slane %v5123, 2
    %v7321 = vrot.slane %v5124, 2
    %v7322 = vrot.slane %v5125, 2
    %v7323 = vrot.slane %v5126, 2
    %v7324 = vrot.slane %v5127, 2
    %v7325 = vrot.slane %v5128, 2
    %7332 = vmatprep.subr.bf16.mxu0 %v7219
    %7333 = vmatpush1.bf16.msra.mxu0 %v7218
    %7334 = vmatprep.subr.bf16.mxu0 %v7221
    %7335 = vmatpush1.bf16.msra.mxu0 %v7220
    %7336 = vmatprep.subr.bf16.mxu0 %v7223
    %7337 = vmatpush1.bf16.msra.mxu0 %v7222
    %7338 = vmatprep.subr.bf16.mxu0 %v7225
    %7339 = vmatpush1.bf16.msra.mxu0 %v7224
    %7340 = vmatprep.subr.bf16.mxu0 %v7227
    %7341 = vmatpush1.bf16.msra.mxu0 %v7226
    %7342 = vmatprep.subr.bf16.mxu0 %v7229
    %7343 = vmatpush1.bf16.msra.mxu0 %v7228
    %7344 = vmatprep.subr.bf16.mxu0 %v7231
    %7345 = vmatpush1.bf16.msra.mxu0 %v7230
    %7346 = vmatprep.subr.bf16.mxu0 %v7233
    %7347 = vmatpush1.bf16.msra.mxu0 %v7232
    %7348 = vmatprep.subr.bf16.mxu0 %v7235
    %7349 = vmatpush1.bf16.msra.mxu0 %v7234
    %7350 = vmatprep.subr.bf16.mxu0 %v7237
    %7351 = vmatpush1.bf16.msra.mxu0 %v7236
    %7352 = vmatprep.subr.bf16.mxu0 %v7239
    %7353 = vmatpush1.bf16.msra.mxu0 %v7238
    %7354 = vmatprep.subr.bf16.mxu0 %v7241
    %7355 = vmatpush1.bf16.msra.mxu0 %v7240
    %7356 = vmatprep.subr.bf16.mxu0 %v7243
    %7357 = vmatpush1.bf16.msra.mxu0 %v7242
    %7358 = vmatprep.subr.bf16.mxu0 %v7245
    %7359 = vmatpush1.bf16.msra.mxu0 %v7244
    %7360 = vmatprep.subr.bf16.mxu0 %v7247
    %7361 = vmatpush1.bf16.msra.mxu0 %v7246
    %7362 = vmatprep.subr.bf16.mxu0 %v7249
    %7363 = vmatpush1.bf16.msra.mxu0 %v7248
    %7364 = vmatprep.mubr.bf16.mxu0 %v7321
    %7365 = vmatmul.mubr.bf16.gmra.mrb[0].mxu0 %v7320
    %v7366 = vpop.f32.mrb[0].mxu0
    %v7367 = vadd.f32 0.0, %v7366
    %v7368 = vpop.f32.mrb[0].mxu0
    %v7369 = vadd.f32 0.0, %v7368
    %v7370 = vpop.f32.mrb[0].mxu0
    %v7371 = vpop.f32.mrb[0].mxu0
    %7372 = vdwg.mxu0
    %7373 = vmatprep.subr.bf16.mxu0 %v7251
    %7374 = vmatpush1.bf16.msra.mxu0 %v7250
    %7375 = vmatprep.subr.bf16.mxu0 %v7253
    %7376 = vmatpush1.bf16.msra.mxu0 %v7252
    %7377 = vmatprep.subr.bf16.mxu0 %v7255
    %7378 = vmatpush1.bf16.msra.mxu0 %v7254
    %7379 = vmatprep.subr.bf16.mxu0 %v7257
    %7380 = vmatpush1.bf16.msra.mxu0 %v7256
    %7381 = vmatprep.subr.bf16.mxu0 %v7259
    %7382 = vmatpush1.bf16.msra.mxu0 %v7258
    %7383 = vmatprep.subr.bf16.mxu0 %v7261
    %7384 = vmatpush1.bf16.msra.mxu0 %v7260
    %7385 = vmatprep.subr.bf16.mxu0 %v7263
    %7386 = vmatpush1.bf16.msra.mxu0 %v7262
    %7387 = vmatprep.subr.bf16.mxu0 %v7265
    %7388 = vmatpush1.bf16.msra.mxu0 %v7264
    %7389 = vmatprep.subr.bf16.mxu0 %v7267
    %7390 = vmatpush1.bf16.msra.mxu0 %v7266
    %7391 = vmatprep.subr.bf16.mxu0 %v7269
    %7392 = vmatpush1.bf16.msra.mxu0 %v7268
    %7393 = vmatprep.subr.bf16.mxu0 %v7271
    %7394 = vmatpush1.bf16.msra.mxu0 %v7270
    %7395 = vmatprep.subr.bf16.mxu0 %v7273
    %7396 = vmatpush1.bf16.msra.mxu0 %v7272
    %7397 = vmatprep.subr.bf16.mxu0 %v7275
    %7398 = vmatpush1.bf16.msra.mxu0 %v7274
    %7399 = vmatprep.subr.bf16.mxu0 %v7277
    %7400 = vmatpush1.bf16.msra.mxu0 %v7276
    %7401 = vmatprep.subr.bf16.mxu0 %v7279
    %7402 = vmatpush1.bf16.msra.mxu0 %v7278
    %7403 = vmatprep.subr.bf16.mxu0 %v7281
    %7404 = vmatpush1.bf16.msra.mxu0 %v7280
    %7405 = vmatprep.mubr.bf16.mxu0 %v7323
    %7406 = vmatmul.mubr.bf16.gmra.mrb[0].mxu0 %v7322
    %v7407 = vpop.f32.mrb[0].mxu0
    %v7408 = vadd.f32 %v7367, %v7407
    %v7409 = vpop.f32.mrb[0].mxu0
    %v7410 = vadd.f32 %v7369, %v7409
    %v7411 = vpop.f32.mrb[0].mxu0
    %v7412 = vpop.f32.mrb[0].mxu0
    %7413 = vdwg.mxu0
    %7414 = vmatprep.subr.bf16.mxu0 %v7283
    %7415 = vmatpush1.bf16.msra.mxu0 %v7282
    %7416 = vmatprep.subr.bf16.mxu0 %v7285
    %7417 = vmatpush1.bf16.msra.mxu0 %v7284
    %7418 = vmatprep.subr.bf16.mxu0 %v7287
    %7419 = vmatpush1.bf16.msra.mxu0 %v7286
    %7420 = vmatprep.subr.bf16.mxu0 %v7289
    %7421 = vmatpush1.bf16.msra.mxu0 %v7288
    %7422 = vmatprep.subr.bf16.mxu0 %v7291
    %7423 = vmatpush1.bf16.msra.mxu0 %v7290
    %7424 = vmatprep.subr.bf16.mxu0 %v7293
    %7425 = vmatpush1.bf16.msra.mxu0 %v7292
    %7426 = vmatprep.subr.bf16.mxu0 %v7295
    %7427 = vmatpush1.bf16.msra.mxu0 %v7294
    %7428 = vmatprep.subr.bf16.mxu0 %v7297
    %7429 = vmatpush1.bf16.msra.mxu0 %v7296
    %7430 = vmatprep.subr.bf16.mxu0 %v7299
    %7431 = vmatpush1.bf16.msra.mxu0 %v7298
    %7432 = vmatprep.subr.bf16.mxu0 %v7301
    %7433 = vmatpush1.bf16.msra.mxu0 %v7300
    %7434 = vmatprep.subr.bf16.mxu0 %v7303
    %7435 = vmatpush1.bf16.msra.mxu0 %v7302
    %7436 = vmatprep.subr.bf16.mxu0 %v7305
    %7437 = vmatpush1.bf16.msra.mxu0 %v7304
    %7438 = vmatprep.subr.bf16.mxu0 %v7307
    %7439 = vmatpush1.bf16.msra.mxu0 %v7306
    %7440 = vmatprep.subr.bf16.mxu0 %v7309
    %7441 = vmatpush1.bf16.msra.mxu0 %v7308
    %7442 = vmatprep.subr.bf16.mxu0 %v7311
    %7443 = vmatpush1.bf16.msra.mxu0 %v7310
    %7444 = vmatprep.subr.bf16.mxu0 %v7313
    %7445 = vmatpush1.bf16.msra.mxu0 %v7312
    %7446 = vmatprep.mubr.bf16.mxu0 %v7325
    %7447 = vmatmul.mubr.bf16.gmra.mrb[0].mxu0 %v7324
    %v7448 = vpop.f32.mrb[0].mxu0
    %v7449 = vadd.f32 %v7408, %v7448
    %v7450 = vpop.f32.mrb[0].mxu0
    %v7451 = vadd.f32 %v7410, %v7450
    %v7452 = vpop.f32.mrb[0].mxu0
    %v7453 = vpop.f32.mrb[0].mxu0
    %7454 = vdwg.mxu0
    %v7455 = vadd.f32 %v7215, %v7449
    %v7456 = vadd.f32 %v7216, %v7451
    %s7457 = scalar_lea.vmem [#allocation2], 7680
    %v7458 = vld [vmem:[%s7457] sm:$0xff]
    %v7459 = vld [vmem:[%s7457 + $0x8] sm:$0xff]
    %v7460 = vld [vmem:[%s7457 + $0x10] sm:$0xff]
    %v7461 = vld [vmem:[%s7457 + $0x18] sm:$0xff]
    %v7462 = vld [vmem:[%s7457 + $0x20] sm:$0xff]
    %v7463 = vld [vmem:[%s7457 + $0x28] sm:$0xff]
    %v7464 = vld [vmem:[%s7457 + $0x30] sm:$0xff]
    %v7465 = vld [vmem:[%s7457 + $0x38] sm:$0xff]
    %v7466 = vld [vmem:[%s7457 + $0x40] sm:$0xff]
    %v7467 = vld [vmem:[%s7457 + $0x48] sm:$0xff]
    %v7468 = vld [vmem:[%s7457 + $0x50] sm:$0xff]
    %v7469 = vld [vmem:[%s7457 + $0x58] sm:$0xff]
    %v7470 = vld [vmem:[%s7457 + $0x60] sm:$0xff]
    %v7471 = vld [vmem:[%s7457 + $0x68] sm:$0xff]
    %v7472 = vld [vmem:[%s7457 + $0x70] sm:$0xff]
    %v7473 = vld [vmem:[%s7457 + $0x78] sm:$0xff]
    %v7474 = vld [vmem:[%s7457 + $0x80] sm:$0xff]
    %v7475 = vld [vmem:[%s7457 + $0x88] sm:$0xff]
    %v7476 = vld [vmem:[%s7457 + $0x90] sm:$0xff]
    %v7477 = vld [vmem:[%s7457 + $0x98] sm:$0xff]
    %v7478 = vld [vmem:[%s7457 + $0xa0] sm:$0xff]
    %v7479 = vld [vmem:[%s7457 + $0xa8] sm:$0xff]
    %v7480 = vld [vmem:[%s7457 + $0xb0] sm:$0xff]
    %v7481 = vld [vmem:[%s7457 + $0xb8] sm:$0xff]
    %v7482 = vld [vmem:[%s7457 + $0xc0] sm:$0xff]
    %v7483 = vld [vmem:[%s7457 + $0xc8] sm:$0xff]
    %v7484 = vld [vmem:[%s7457 + $0xd0] sm:$0xff]
    %v7485 = vld [vmem:[%s7457 + $0xd8] sm:$0xff]
    %v7486 = vld [vmem:[%s7457 + $0xe0] sm:$0xff]
    %v7487 = vld [vmem:[%s7457 + $0xe8] sm:$0xff]
    %v7488 = vld [vmem:[%s7457 + $0xf0] sm:$0xff]
    %v7489 = vld [vmem:[%s7457 + $0xf8] sm:$0xff]
    %v7490 = vld [vmem:[%s7457 + $0x100] sm:$0xff]
    %v7491 = vld [vmem:[%s7457 + $0x108] sm:$0xff]
    %v7492 = vld [vmem:[%s7457 + $0x110] sm:$0xff]
    %v7493 = vld [vmem:[%s7457 + $0x118] sm:$0xff]
    %v7494 = vld [vmem:[%s7457 + $0x120] sm:$0xff]
    %v7495 = vld [vmem:[%s7457 + $0x128] sm:$0xff]
    %v7496 = vld [vmem:[%s7457 + $0x130] sm:$0xff]
    %v7497 = vld [vmem:[%s7457 + $0x138] sm:$0xff]
    %v7498 = vld [vmem:[%s7457 + $0x140] sm:$0xff]
    %v7499 = vld [vmem:[%s7457 + $0x148] sm:$0xff]
    %v7500 = vld [vmem:[%s7457 + $0x150] sm:$0xff]
    %v7501 = vld [vmem:[%s7457 + $0x158] sm:$0xff]
    %v7502 = vld [vmem:[%s7457 + $0x160] sm:$0xff]
    %v7503 = vld [vmem:[%s7457 + $0x168] sm:$0xff]
    %v7504 = vld [vmem:[%s7457 + $0x170] sm:$0xff]
    %v7505 = vld [vmem:[%s7457 + $0x178] sm:$0xff]
    %v7506 = vld [vmem:[%s7457 + $0x180] sm:$0xff]
    %v7507 = vld [vmem:[%s7457 + $0x188] sm:$0xff]
    %v7508 = vld [vmem:[%s7457 + $0x190] sm:$0xff]
    %v7509 = vld [vmem:[%s7457 + $0x198] sm:$0xff]
    %v7510 = vld [vmem:[%s7457 + $0x1a0] sm:$0xff]
    %v7511 = vld [vmem:[%s7457 + $0x1a8] sm:$0xff]
    %v7512 = vld [vmem:[%s7457 + $0x1b0] sm:$0xff]
    %v7513 = vld [vmem:[%s7457 + $0x1b8] sm:$0xff]
    %v7514 = vld [vmem:[%s7457 + $0x1c0] sm:$0xff]
    %v7515 = vld [vmem:[%s7457 + $0x1c8] sm:$0xff]
    %v7516 = vld [vmem:[%s7457 + $0x1d0] sm:$0xff]
    %v7517 = vld [vmem:[%s7457 + $0x1d8] sm:$0xff]
    %v7518 = vld [vmem:[%s7457 + $0x1e0] sm:$0xff]
    %v7519 = vld [vmem:[%s7457 + $0x1e8] sm:$0xff]
    %v7520 = vld [vmem:[%s7457 + $0x1f0] sm:$0xff]
    %v7521 = vld [vmem:[%s7457 + $0x1f8] sm:$0xff]
    %v7522 = vld [vmem:[%s7457 + $0x200] sm:$0xff]
    %v7523 = vld [vmem:[%s7457 + $0x208] sm:$0xff]
    %v7524 = vld [vmem:[%s7457 + $0x210] sm:$0xff]
    %v7525 = vld [vmem:[%s7457 + $0x218] sm:$0xff]
    %v7526 = vld [vmem:[%s7457 + $0x220] sm:$0xff]
    %v7527 = vld [vmem:[%s7457 + $0x228] sm:$0xff]
    %v7528 = vld [vmem:[%s7457 + $0x230] sm:$0xff]
    %v7529 = vld [vmem:[%s7457 + $0x238] sm:$0xff]
    %v7530 = vld [vmem:[%s7457 + $0x240] sm:$0xff]
    %v7531 = vld [vmem:[%s7457 + $0x248] sm:$0xff]
    %v7532 = vld [vmem:[%s7457 + $0x250] sm:$0xff]
    %v7533 = vld [vmem:[%s7457 + $0x258] sm:$0xff]
    %v7534 = vld [vmem:[%s7457 + $0x260] sm:$0xff]
    %v7535 = vld [vmem:[%s7457 + $0x268] sm:$0xff]
    %v7536 = vld [vmem:[%s7457 + $0x270] sm:$0xff]
    %v7537 = vld [vmem:[%s7457 + $0x278] sm:$0xff]
    %v7538 = vld [vmem:[%s7457 + $0x280] sm:$0xff]
    %v7539 = vld [vmem:[%s7457 + $0x288] sm:$0xff]
    %v7540 = vld [vmem:[%s7457 + $0x290] sm:$0xff]
    %v7541 = vld [vmem:[%s7457 + $0x298] sm:$0xff]
    %v7542 = vld [vmem:[%s7457 + $0x2a0] sm:$0xff]
    %v7543 = vld [vmem:[%s7457 + $0x2a8] sm:$0xff]
    %v7544 = vld [vmem:[%s7457 + $0x2b0] sm:$0xff]
    %v7545 = vld [vmem:[%s7457 + $0x2b8] sm:$0xff]
    %v7546 = vld [vmem:[%s7457 + $0x2c0] sm:$0xff]
    %v7547 = vld [vmem:[%s7457 + $0x2c8] sm:$0xff]
    %v7548 = vld [vmem:[%s7457 + $0x2d0] sm:$0xff]
    %v7549 = vld [vmem:[%s7457 + $0x2d8] sm:$0xff]
    %v7550 = vld [vmem:[%s7457 + $0x2e0] sm:$0xff]
    %v7551 = vld [vmem:[%s7457 + $0x2e8] sm:$0xff]
    %v7552 = vld [vmem:[%s7457 + $0x2f0] sm:$0xff]
    %v7553 = vld [vmem:[%s7457 + $0x2f8] sm:$0xff]
    %v7554 = vrot.slane %v5123, 4
    %v7555 = vrot.slane %v5124, 4
    %v7556 = vrot.slane %v5125, 4
    %v7557 = vrot.slane %v5126, 4
    %v7558 = vrot.slane %v5127, 4
    %v7559 = vrot.slane %v5128, 4
    %7566 = vmatprep.subr.bf16.mxu0 %v7459
    %7567 = vmatpush1.bf16.msra.mxu0 %v7458
    %7568 = vmatprep.subr.bf16.mxu0 %v7461
    %7569 = vmatpush1.bf16.msra.mxu0 %v7460
    %7570 = vmatprep.subr.bf16.mxu0 %v7463
    %7571 = vmatpush1.bf16.msra.mxu0 %v7462
    %7572 = vmatprep.subr.bf16.mxu0 %v7465
    %7573 = vmatpush1.bf16.msra.mxu0 %v7464
    %7574 = vmatprep.subr.bf16.mxu0 %v7467
    %7575 = vmatpush1.bf16.msra.mxu0 %v7466
    %7576 = vmatprep.subr.bf16.mxu0 %v7469
    %7577 = vmatpush1.bf16.msra.mxu0 %v7468
    %7578 = vmatprep.subr.bf16.mxu0 %v7471
    %7579 = vmatpush1.bf16.msra.mxu0 %v7470
    %7580 = vmatprep.subr.bf16.mxu0 %v7473
    %7581 = vmatpush1.bf16.msra.mxu0 %v7472
    %7582 = vmatprep.subr.bf16.mxu0 %v7475
    %7583 = vmatpush1.bf16.msra.mxu0 %v7474
    %7584 = vmatprep.subr.bf16.mxu0 %v7477
    %7585 = vmatpush1.bf16.msra.mxu0 %v7476
    %7586 = vmatprep.subr.bf16.mxu0 %v7479
    %7587 = vmatpush1.bf16.msra.mxu0 %v7478
    %7588 = vmatprep.subr.bf16.mxu0 %v7481
    %7589 = vmatpush1.bf16.msra.mxu0 %v7480
    %7590 = vmatprep.subr.bf16.mxu0 %v7483
    %7591 = vmatpush1.bf16.msra.mxu0 %v7482
    %7592 = vmatprep.subr.bf16.mxu0 %v7485
    %7593 = vmatpush1.bf16.msra.mxu0 %v7484
    %7594 = vmatprep.subr.bf16.mxu0 %v7487
    %7595 = vmatpush1.bf16.msra.mxu0 %v7486
    %7596 = vmatprep.subr.bf16.mxu0 %v7489
    %7597 = vmatpush1.bf16.msra.mxu0 %v7488
    %7598 = vmatprep.mubr.bf16.mxu0 %v7555
    %7599 = vmatmul.mubr.bf16.gmra.mrb[0].mxu0 %v7554
    %v7600 = vpop.f32.mrb[0].mxu0
    %v7601 = vadd.f32 0.0, %v7600
    %v7602 = vpop.f32.mrb[0].mxu0
    %v7603 = vadd.f32 0.0, %v7602
    %v7604 = vpop.f32.mrb[0].mxu0
    %v7605 = vpop.f32.mrb[0].mxu0
    %7606 = vdwg.mxu0
    %7607 = vmatprep.subr.bf16.mxu0 %v7491
    %7608 = vmatpush1.bf16.msra.mxu0 %v7490
    %7609 = vmatprep.subr.bf16.mxu0 %v7493
    %7610 = vmatpush1.bf16.msra.mxu0 %v7492
    %7611 = vmatprep.subr.bf16.mxu0 %v7495
    %7612 = vmatpush1.bf16.msra.mxu0 %v7494
    %7613 = vmatprep.subr.bf16.mxu0 %v7497
    %7614 = vmatpush1.bf16.msra.mxu0 %v7496
    %7615 = vmatprep.subr.bf16.mxu0 %v7499
    %7616 = vmatpush1.bf16.msra.mxu0 %v7498
    %7617 = vmatprep.subr.bf16.mxu0 %v7501
    %7618 = vmatpush1.bf16.msra.mxu0 %v7500
    %7619 = vmatprep.subr.bf16.mxu0 %v7503
    %7620 = vmatpush1.bf16.msra.mxu0 %v7502
    %7621 = vmatprep.subr.bf16.mxu0 %v7505
    %7622 = vmatpush1.bf16.msra.mxu0 %v7504
    %7623 = vmatprep.subr.bf16.mxu0 %v7507
    %7624 = vmatpush1.bf16.msra.mxu0 %v7506
    %7625 = vmatprep.subr.bf16.mxu0 %v7509
    %7626 = vmatpush1.bf16.msra.mxu0 %v7508
    %7627 = vmatprep.subr.bf16.mxu0 %v7511
    %7628 = vmatpush1.bf16.msra.mxu0 %v7510
    %7629 = vmatprep.subr.bf16.mxu0 %v7513
    %7630 = vmatpush1.bf16.msra.mxu0 %v7512
    %7631 = vmatprep.subr.bf16.mxu0 %v7515
    %7632 = vmatpush1.bf16.msra.mxu0 %v7514
    %7633 = vmatprep.subr.bf16.mxu0 %v7517
    %7634 = vmatpush1.bf16.msra.mxu0 %v7516
    %7635 = vmatprep.subr.bf16.mxu0 %v7519
    %7636 = vmatpush1.bf16.msra.mxu0 %v7518
    %7637 = vmatprep.subr.bf16.mxu0 %v7521
    %7638 = vmatpush1.bf16.msra.mxu0 %v7520
    %7639 = vmatprep.mubr.bf16.mxu0 %v7557
    %7640 = vmatmul.mubr.bf16.gmra.mrb[0].mxu0 %v7556
    %v7641 = vpop.f32.mrb[0].mxu0
    %v7642 = vadd.f32 %v7601, %v7641
    %v7643 = vpop.f32.mrb[0].mxu0
    %v7644 = vadd.f32 %v7603, %v7643
    %v7645 = vpop.f32.mrb[0].mxu0
    %v7646 = vpop.f32.mrb[0].mxu0
    %7647 = vdwg.mxu0
    %7648 = vmatprep.subr.bf16.mxu0 %v7523
    %7649 = vmatpush1.bf16.msra.mxu0 %v7522
    %7650 = vmatprep.subr.bf16.mxu0 %v7525
    %7651 = vmatpush1.bf16.msra.mxu0 %v7524
    %7652 = vmatprep.subr.bf16.mxu0 %v7527
    %7653 = vmatpush1.bf16.msra.mxu0 %v7526
    %7654 = vmatprep.subr.bf16.mxu0 %v7529
    %7655 = vmatpush1.bf16.msra.mxu0 %v7528
    %7656 = vmatprep.subr.bf16.mxu0 %v7531
    %7657 = vmatpush1.bf16.msra.mxu0 %v7530
    %7658 = vmatprep.subr.bf16.mxu0 %v7533
    %7659 = vmatpush1.bf16.msra.mxu0 %v7532
    %7660 = vmatprep.subr.bf16.mxu0 %v7535
    %7661 = vmatpush1.bf16.msra.mxu0 %v7534
    %7662 = vmatprep.subr.bf16.mxu0 %v7537
    %7663 = vmatpush1.bf16.msra.mxu0 %v7536
    %7664 = vmatprep.subr.bf16.mxu0 %v7539
    %7665 = vmatpush1.bf16.msra.mxu0 %v7538
    %7666 = vmatprep.subr.bf16.mxu0 %v7541
    %7667 = vmatpush1.bf16.msra.mxu0 %v7540
    %7668 = vmatprep.subr.bf16.mxu0 %v7543
    %7669 = vmatpush1.bf16.msra.mxu0 %v7542
    %7670 = vmatprep.subr.bf16.mxu0 %v7545
    %7671 = vmatpush1.bf16.msra.mxu0 %v7544
    %7672 = vmatprep.subr.bf16.mxu0 %v7547
    %7673 = vmatpush1.bf16.msra.mxu0 %v7546
    %7674 = vmatprep.subr.bf16.mxu0 %v7549
    %7675 = vmatpush1.bf16.msra.mxu0 %v7548
    %7676 = vmatprep.subr.bf16.mxu0 %v7551
    %7677 = vmatpush1.bf16.msra.mxu0 %v7550
    %7678 = vmatprep.subr.bf16.mxu0 %v7553
    %7679 = vmatpush1.bf16.msra.mxu0 %v7552
    %7680 = vmatprep.mubr.bf16.mxu0 %v7559
    %7681 = vmatmul.mubr.bf16.gmra.mrb[0].mxu0 %v7558
    %v7682 = vpop.f32.mrb[0].mxu0
    %v7683 = vadd.f32 %v7642, %v7682
    %v7684 = vpop.f32.mrb[0].mxu0
    %v7685 = vadd.f32 %v7644, %v7684
    %v7686 = vpop.f32.mrb[0].mxu0
    %v7687 = vpop.f32.mrb[0].mxu0
    %7688 = vdwg.mxu0
    %v7689 = vadd.f32 %v7455, %v7683
    %v7690 = vadd.f32 %v7456, %v7685
    %s7691 = scalar_lea.vmem [#allocation2], 8448
    %v7692 = vld [vmem:[%s7691] sm:$0xff]
    %v7693 = vld [vmem:[%s7691 + $0x8] sm:$0xff]
    %v7694 = vld [vmem:[%s7691 + $0x10] sm:$0xff]
    %v7695 = vld [vmem:[%s7691 + $0x18] sm:$0xff]
    %v7696 = vld [vmem:[%s7691 + $0x20] sm:$0xff]
    %v7697 = vld [vmem:[%s7691 + $0x28] sm:$0xff]
    %v7698 = vld [vmem:[%s7691 + $0x30] sm:$0xff]
    %v7699 = vld [vmem:[%s7691 + $0x38] sm:$0xff]
    %v7700 = vld [vmem:[%s7691 + $0x40] sm:$0xff]
    %v7701 = vld [vmem:[%s7691 + $0x48] sm:$0xff]
    %v7702 = vld [vmem:[%s7691 + $0x50] sm:$0xff]
    %v7703 = vld [vmem:[%s7691 + $0x58] sm:$0xff]
    %v7704 = vld [vmem:[%s7691 + $0x60] sm:$0xff]
    %v7705 = vld [vmem:[%s7691 + $0x68] sm:$0xff]
    %v7706 = vld [vmem:[%s7691 + $0x70] sm:$0xff]
    %v7707 = vld [vmem:[%s7691 + $0x78] sm:$0xff]
    %v7708 = vld [vmem:[%s7691 + $0x80] sm:$0xff]
    %v7709 = vld [vmem:[%s7691 + $0x88] sm:$0xff]
    %v7710 = vld [vmem:[%s7691 + $0x90] sm:$0xff]
    %v7711 = vld [vmem:[%s7691 + $0x98] sm:$0xff]
    %v7712 = vld [vmem:[%s7691 + $0xa0] sm:$0xff]
    %v7713 = vld [vmem:[%s7691 + $0xa8] sm:$0xff]
    %v7714 = vld [vmem:[%s7691 + $0xb0] sm:$0xff]
    %v7715 = vld [vmem:[%s7691 + $0xb8] sm:$0xff]
    %v7716 = vld [vmem:[%s7691 + $0xc0] sm:$0xff]
    %v7717 = vld [vmem:[%s7691 + $0xc8] sm:$0xff]
    %v7718 = vld [vmem:[%s7691 + $0xd0] sm:$0xff]
    %v7719 = vld [vmem:[%s7691 + $0xd8] sm:$0xff]
    %v7720 = vld [vmem:[%s7691 + $0xe0] sm:$0xff]
    %v7721 = vld [vmem:[%s7691 + $0xe8] sm:$0xff]
    %v7722 = vld [vmem:[%s7691 + $0xf0] sm:$0xff]
    %v7723 = vld [vmem:[%s7691 + $0xf8] sm:$0xff]
    %v7724 = vld [vmem:[%s7691 + $0x100] sm:$0xff]
    %v7725 = vld [vmem:[%s7691 + $0x108] sm:$0xff]
    %v7726 = vld [vmem:[%s7691 + $0x110] sm:$0xff]
    %v7727 = vld [vmem:[%s7691 + $0x118] sm:$0xff]
    %v7728 = vld [vmem:[%s7691 + $0x120] sm:$0xff]
    %v7729 = vld [vmem:[%s7691 + $0x128] sm:$0xff]
    %v7730 = vld [vmem:[%s7691 + $0x130] sm:$0xff]
    %v7731 = vld [vmem:[%s7691 + $0x138] sm:$0xff]
    %v7732 = vld [vmem:[%s7691 + $0x140] sm:$0xff]
    %v7733 = vld [vmem:[%s7691 + $0x148] sm:$0xff]
    %v7734 = vld [vmem:[%s7691 + $0x150] sm:$0xff]
    %v7735 = vld [vmem:[%s7691 + $0x158] sm:$0xff]
    %v7736 = vld [vmem:[%s7691 + $0x160] sm:$0xff]
    %v7737 = vld [vmem:[%s7691 + $0x168] sm:$0xff]
    %v7738 = vld [vmem:[%s7691 + $0x170] sm:$0xff]
    %v7739 = vld [vmem:[%s7691 + $0x178] sm:$0xff]
    %v7740 = vld [vmem:[%s7691 + $0x180] sm:$0xff]
    %v7741 = vld [vmem:[%s7691 + $0x188] sm:$0xff]
    %v7742 = vld [vmem:[%s7691 + $0x190] sm:$0xff]
    %v7743 = vld [vmem:[%s7691 + $0x198] sm:$0xff]
    %v7744 = vld [vmem:[%s7691 + $0x1a0] sm:$0xff]
    %v7745 = vld [vmem:[%s7691 + $0x1a8] sm:$0xff]
    %v7746 = vld [vmem:[%s7691 + $0x1b0] sm:$0xff]
    %v7747 = vld [vmem:[%s7691 + $0x1b8] sm:$0xff]
    %v7748 = vld [vmem:[%s7691 + $0x1c0] sm:$0xff]
    %v7749 = vld [vmem:[%s7691 + $0x1c8] sm:$0xff]
    %v7750 = vld [vmem:[%s7691 + $0x1d0] sm:$0xff]
    %v7751 = vld [vmem:[%s7691 + $0x1d8] sm:$0xff]
    %v7752 = vld [vmem:[%s7691 + $0x1e0] sm:$0xff]
    %v7753 = vld [vmem:[%s7691 + $0x1e8] sm:$0xff]
    %v7754 = vld [vmem:[%s7691 + $0x1f0] sm:$0xff]
    %v7755 = vld [vmem:[%s7691 + $0x1f8] sm:$0xff]
    %v7756 = vld [vmem:[%s7691 + $0x200] sm:$0xff]
    %v7757 = vld [vmem:[%s7691 + $0x208] sm:$0xff]
    %v7758 = vld [vmem:[%s7691 + $0x210] sm:$0xff]
    %v7759 = vld [vmem:[%s7691 + $0x218] sm:$0xff]
    %v7760 = vld [vmem:[%s7691 + $0x220] sm:$0xff]
    %v7761 = vld [vmem:[%s7691 + $0x228] sm:$0xff]
    %v7762 = vld [vmem:[%s7691 + $0x230] sm:$0xff]
    %v7763 = vld [vmem:[%s7691 + $0x238] sm:$0xff]
    %v7764 = vld [vmem:[%s7691 + $0x240] sm:$0xff]
    %v7765 = vld [vmem:[%s7691 + $0x248] sm:$0xff]
    %v7766 = vld [vmem:[%s7691 + $0x250] sm:$0xff]
    %v7767 = vld [vmem:[%s7691 + $0x258] sm:$0xff]
    %v7768 = vld [vmem:[%s7691 + $0x260] sm:$0xff]
    %v7769 = vld [vmem:[%s7691 + $0x268] sm:$0xff]
    %v7770 = vld [vmem:[%s7691 + $0x270] sm:$0xff]
    %v7771 = vld [vmem:[%s7691 + $0x278] sm:$0xff]
    %v7772 = vld [vmem:[%s7691 + $0x280] sm:$0xff]
    %v7773 = vld [vmem:[%s7691 + $0x288] sm:$0xff]
    %v7774 = vld [vmem:[%s7691 + $0x290] sm:$0xff]
    %v7775 = vld [vmem:[%s7691 + $0x298] sm:$0xff]
    %v7776 = vld [vmem:[%s7691 + $0x2a0] sm:$0xff]
    %v7777 = vld [vmem:[%s7691 + $0x2a8] sm:$0xff]
    %v7778 = vld [vmem:[%s7691 + $0x2b0] sm:$0xff]
    %v7779 = vld [vmem:[%s7691 + $0x2b8] sm:$0xff]
    %v7780 = vld [vmem:[%s7691 + $0x2c0] sm:$0xff]
    %v7781 = vld [vmem:[%s7691 + $0x2c8] sm:$0xff]
    %v7782 = vld [vmem:[%s7691 + $0x2d0] sm:$0xff]
    %v7783 = vld [vmem:[%s7691 + $0x2d8] sm:$0xff]
    %v7784 = vld [vmem:[%s7691 + $0x2e0] sm:$0xff]
    %v7785 = vld [vmem:[%s7691 + $0x2e8] sm:$0xff]
    %v7786 = vld [vmem:[%s7691 + $0x2f0] sm:$0xff]
    %v7787 = vld [vmem:[%s7691 + $0x2f8] sm:$0xff]
    %v7788 = vrot.slane %v5123, 6
    %v7789 = vrot.slane %v5124, 6
    %v7790 = vrot.slane %v5125, 6
    %v7791 = vrot.slane %v5126, 6
    %v7792 = vrot.slane %v5127, 6
    %v7793 = vrot.slane %v5128, 6
    %7800 = vmatprep.subr.bf16.mxu0 %v7693
    %7801 = vmatpush1.bf16.msra.mxu0 %v7692
    %7802 = vmatprep.subr.bf16.mxu0 %v7695
    %7803 = vmatpush1.bf16.msra.mxu0 %v7694
    %7804 = vmatprep.subr.bf16.mxu0 %v7697
    %7805 = vmatpush1.bf16.msra.mxu0 %v7696
    %7806 = vmatprep.subr.bf16.mxu0 %v7699
    %7807 = vmatpush1.bf16.msra.mxu0 %v7698
    %7808 = vmatprep.subr.bf16.mxu0 %v7701
    %7809 = vmatpush1.bf16.msra.mxu0 %v7700
    %7810 = vmatprep.subr.bf16.mxu0 %v7703
    %7811 = vmatpush1.bf16.msra.mxu0 %v7702
    %7812 = vmatprep.subr.bf16.mxu0 %v7705
    %7813 = vmatpush1.bf16.msra.mxu0 %v7704
    %7814 = vmatprep.subr.bf16.mxu0 %v7707
    %7815 = vmatpush1.bf16.msra.mxu0 %v7706
    %7816 = vmatprep.subr.bf16.mxu0 %v7709
    %7817 = vmatpush1.bf16.msra.mxu0 %v7708
    %7818 = vmatprep.subr.bf16.mxu0 %v7711
    %7819 = vmatpush1.bf16.msra.mxu0 %v7710
    %7820 = vmatprep.subr.bf16.mxu0 %v7713
    %7821 = vmatpush1.bf16.msra.mxu0 %v7712
    %7822 = vmatprep.subr.bf16.mxu0 %v7715
    %7823 = vmatpush1.bf16.msra.mxu0 %v7714
    %7824 = vmatprep.subr.bf16.mxu0 %v7717
    %7825 = vmatpush1.bf16.msra.mxu0 %v7716
    %7826 = vmatprep.subr.bf16.mxu0 %v7719
    %7827 = vmatpush1.bf16.msra.mxu0 %v7718
    %7828 = vmatprep.subr.bf16.mxu0 %v7721
    %7829 = vmatpush1.bf16.msra.mxu0 %v7720
    %7830 = vmatprep.subr.bf16.mxu0 %v7723
    %7831 = vmatpush1.bf16.msra.mxu0 %v7722
    %7832 = vmatprep.mubr.bf16.mxu0 %v7789
    %7833 = vmatmul.mubr.bf16.gmra.mrb[0].mxu0 %v7788
    %v7834 = vpop.f32.mrb[0].mxu0
    %v7835 = vadd.f32 0.0, %v7834
    %v7836 = vpop.f32.mrb[0].mxu0
    %v7837 = vadd.f32 0.0, %v7836
    %v7838 = vpop.f32.mrb[0].mxu0
    %v7839 = vpop.f32.mrb[0].mxu0
    %7840 = vdwg.mxu0
    %7841 = vmatprep.subr.bf16.mxu0 %v7725
    %7842 = vmatpush1.bf16.msra.mxu0 %v7724
    %7843 = vmatprep.subr.bf16.mxu0 %v7727
    %7844 = vmatpush1.bf16.msra.mxu0 %v7726
    %7845 = vmatprep.subr.bf16.mxu0 %v7729
    %7846 = vmatpush1.bf16.msra.mxu0 %v7728
    %7847 = vmatprep.subr.bf16.mxu0 %v7731
    %7848 = vmatpush1.bf16.msra.mxu0 %v7730
    %7849 = vmatprep.subr.bf16.mxu0 %v7733
    %7850 = vmatpush1.bf16.msra.mxu0 %v7732
    %7851 = vmatprep.subr.bf16.mxu0 %v7735
    %7852 = vmatpush1.bf16.msra.mxu0 %v7734
    %7853 = vmatprep.subr.bf16.mxu0 %v7737
    %7854 = vmatpush1.bf16.msra.mxu0 %v7736
    %7855 = vmatprep.subr.bf16.mxu0 %v7739
    %7856 = vmatpush1.bf16.msra.mxu0 %v7738
    %7857 = vmatprep.subr.bf16.mxu0 %v7741
    %7858 = vmatpush1.bf16.msra.mxu0 %v7740
    %7859 = vmatprep.subr.bf16.mxu0 %v7743
    %7860 = vmatpush1.bf16.msra.mxu0 %v7742
    %7861 = vmatprep.subr.bf16.mxu0 %v7745
    %7862 = vmatpush1.bf16.msra.mxu0 %v7744
    %7863 = vmatprep.subr.bf16.mxu0 %v7747
    %7864 = vmatpush1.bf16.msra.mxu0 %v7746
    %7865 = vmatprep.subr.bf16.mxu0 %v7749
    %7866 = vmatpush1.bf16.msra.mxu0 %v7748
    %7867 = vmatprep.subr.bf16.mxu0 %v7751
    %7868 = vmatpush1.bf16.msra.mxu0 %v7750
    %7869 = vmatprep.subr.bf16.mxu0 %v7753
    %7870 = vmatpush1.bf16.msra.mxu0 %v7752
    %7871 = vmatprep.subr.bf16.mxu0 %v7755
    %7872 = vmatpush1.bf16.msra.mxu0 %v7754
    %7873 = vmatprep.mubr.bf16.mxu0 %v7791
    %7874 = vmatmul.mubr.bf16.gmra.mrb[0].mxu0 %v7790
    %v7875 = vpop.f32.mrb[0].mxu0
    %v7876 = vadd.f32 %v7835, %v7875
    %v7877 = vpop.f32.mrb[0].mxu0
    %v7878 = vadd.f32 %v7837, %v7877
    %v7879 = vpop.f32.mrb[0].mxu0
    %v7880 = vpop.f32.mrb[0].mxu0
    %7881 = vdwg.mxu0
    %7882 = vmatprep.subr.bf16.mxu0 %v7757
    %7883 = vmatpush1.bf16.msra.mxu0 %v7756
    %7884 = vmatprep.subr.bf16.mxu0 %v7759
    %7885 = vmatpush1.bf16.msra.mxu0 %v7758
    %7886 = vmatprep.subr.bf16.mxu0 %v7761
    %7887 = vmatpush1.bf16.msra.mxu0 %v7760
    %7888 = vmatprep.subr.bf16.mxu0 %v7763
    %7889 = vmatpush1.bf16.msra.mxu0 %v7762
    %7890 = vmatprep.subr.bf16.mxu0 %v7765
    %7891 = vmatpush1.bf16.msra.mxu0 %v7764
    %7892 = vmatprep.subr.bf16.mxu0 %v7767
    %7893 = vmatpush1.bf16.msra.mxu0 %v7766
    %7894 = vmatprep.subr.bf16.mxu0 %v7769
    %7895 = vmatpush1.bf16.msra.mxu0 %v7768
    %7896 = vmatprep.subr.bf16.mxu0 %v7771
    %7897 = vmatpush1.bf16.msra.mxu0 %v7770
    %7898 = vmatprep.subr.bf16.mxu0 %v7773
    %7899 = vmatpush1.bf16.msra.mxu0 %v7772
    %7900 = vmatprep.subr.bf16.mxu0 %v7775
    %7901 = vmatpush1.bf16.msra.mxu0 %v7774
    %7902 = vmatprep.subr.bf16.mxu0 %v7777
    %7903 = vmatpush1.bf16.msra.mxu0 %v7776
    %7904 = vmatprep.subr.bf16.mxu0 %v7779
    %7905 = vmatpush1.bf16.msra.mxu0 %v7778
    %7906 = vmatprep.subr.bf16.mxu0 %v7781
    %7907 = vmatpush1.bf16.msra.mxu0 %v7780
    %7908 = vmatprep.subr.bf16.mxu0 %v7783
    %7909 = vmatpush1.bf16.msra.mxu0 %v7782
    %7910 = vmatprep.subr.bf16.mxu0 %v7785
    %7911 = vmatpush1.bf16.msra.mxu0 %v7784
    %7912 = vmatprep.subr.bf16.mxu0 %v7787
    %7913 = vmatpush1.bf16.msra.mxu0 %v7786
    %7914 = vmatprep.mubr.bf16.mxu0 %v7793
    %7915 = vmatmul.mubr.bf16.gmra.mrb[0].mxu0 %v7792
    %v7916 = vpop.f32.mrb[0].mxu0
    %v7917 = vadd.f32 %v7876, %v7916
    %v7918 = vpop.f32.mrb[0].mxu0
    %v7919 = vadd.f32 %v7878, %v7918
    %v7920 = vpop.f32.mrb[0].mxu0
    %v7921 = vpop.f32.mrb[0].mxu0
    %7922 = vdwg.mxu0
    %v7923 = vadd.f32 %v7689, %v7917
    %v7924 = vadd.f32 %v7690, %v7919
    %s7925 = scalar_lea.vmem [#allocation2], 9216
    %v7926 = vld [vmem:[%s7925] sm:$0xff]
    %v7927 = vld [vmem:[%s7925 + $0x8] sm:$0xff]
    %v7928 = vld [vmem:[%s7925 + $0x10] sm:$0xff]
    %v7929 = vld [vmem:[%s7925 + $0x18] sm:$0xff]
    %v7930 = vld [vmem:[%s7925 + $0x20] sm:$0xff]
    %v7931 = vld [vmem:[%s7925 + $0x28] sm:$0xff]
    %v7932 = vld [vmem:[%s7925 + $0x30] sm:$0xff]
    %v7933 = vld [vmem:[%s7925 + $0x38] sm:$0xff]
    %v7934 = vld [vmem:[%s7925 + $0x40] sm:$0xff]
    %v7935 = vld [vmem:[%s7925 + $0x48] sm:$0xff]
    %v7936 = vld [vmem:[%s7925 + $0x50] sm:$0xff]
    %v7937 = vld [vmem:[%s7925 + $0x58] sm:$0xff]
    %v7938 = vld [vmem:[%s7925 + $0x60] sm:$0xff]
    %v7939 = vld [vmem:[%s7925 + $0x68] sm:$0xff]
    %v7940 = vld [vmem:[%s7925 + $0x70] sm:$0xff]
    %v7941 = vld [vmem:[%s7925 + $0x78] sm:$0xff]
    %v7942 = vld [vmem:[%s7925 + $0x80] sm:$0xff]
    %v7943 = vld [vmem:[%s7925 + $0x88] sm:$0xff]
    %v7944 = vld [vmem:[%s7925 + $0x90] sm:$0xff]
    %v7945 = vld [vmem:[%s7925 + $0x98] sm:$0xff]
    %v7946 = vld [vmem:[%s7925 + $0xa0] sm:$0xff]
    %v7947 = vld [vmem:[%s7925 + $0xa8] sm:$0xff]
    %v7948 = vld [vmem:[%s7925 + $0xb0] sm:$0xff]
    %v7949 = vld [vmem:[%s7925 + $0xb8] sm:$0xff]
    %v7950 = vld [vmem:[%s7925 + $0xc0] sm:$0xff]
    %v7951 = vld [vmem:[%s7925 + $0xc8] sm:$0xff]
    %v7952 = vld [vmem:[%s7925 + $0xd0] sm:$0xff]
    %v7953 = vld [vmem:[%s7925 + $0xd8] sm:$0xff]
    %v7954 = vld [vmem:[%s7925 + $0xe0] sm:$0xff]
    %v7955 = vld [vmem:[%s7925 + $0xe8] sm:$0xff]
    %v7956 = vld [vmem:[%s7925 + $0xf0] sm:$0xff]
    %v7957 = vld [vmem:[%s7925 + $0xf8] sm:$0xff]
    %v7958 = vld [vmem:[%s7925 + $0x100] sm:$0xff]
    %v7959 = vld [vmem:[%s7925 + $0x108] sm:$0xff]
    %v7960 = vld [vmem:[%s7925 + $0x110] sm:$0xff]
    %v7961 = vld [vmem:[%s7925 + $0x118] sm:$0xff]
    %v7962 = vld [vmem:[%s7925 + $0x120] sm:$0xff]
    %v7963 = vld [vmem:[%s7925 + $0x128] sm:$0xff]
    %v7964 = vld [vmem:[%s7925 + $0x130] sm:$0xff]
    %v7965 = vld [vmem:[%s7925 + $0x138] sm:$0xff]
    %v7966 = vld [vmem:[%s7925 + $0x140] sm:$0xff]
    %v7967 = vld [vmem:[%s7925 + $0x148] sm:$0xff]
    %v7968 = vld [vmem:[%s7925 + $0x150] sm:$0xff]
    %v7969 = vld [vmem:[%s7925 + $0x158] sm:$0xff]
    %v7970 = vld [vmem:[%s7925 + $0x160] sm:$0xff]
    %v7971 = vld [vmem:[%s7925 + $0x168] sm:$0xff]
    %v7972 = vld [vmem:[%s7925 + $0x170] sm:$0xff]
    %v7973 = vld [vmem:[%s7925 + $0x178] sm:$0xff]
    %v7974 = vld [vmem:[%s7925 + $0x180] sm:$0xff]
    %v7975 = vld [vmem:[%s7925 + $0x188] sm:$0xff]
    %v7976 = vld [vmem:[%s7925 + $0x190] sm:$0xff]
    %v7977 = vld [vmem:[%s7925 + $0x198] sm:$0xff]
    %v7978 = vld [vmem:[%s7925 + $0x1a0] sm:$0xff]
    %v7979 = vld [vmem:[%s7925 + $0x1a8] sm:$0xff]
    %v7980 = vld [vmem:[%s7925 + $0x1b0] sm:$0xff]
    %v7981 = vld [vmem:[%s7925 + $0x1b8] sm:$0xff]
    %v7982 = vld [vmem:[%s7925 + $0x1c0] sm:$0xff]
    %v7983 = vld [vmem:[%s7925 + $0x1c8] sm:$0xff]
    %v7984 = vld [vmem:[%s7925 + $0x1d0] sm:$0xff]
    %v7985 = vld [vmem:[%s7925 + $0x1d8] sm:$0xff]
    %v7986 = vld [vmem:[%s7925 + $0x1e0] sm:$0xff]
    %v7987 = vld [vmem:[%s7925 + $0x1e8] sm:$0xff]
    %v7988 = vld [vmem:[%s7925 + $0x1f0] sm:$0xff]
    %v7989 = vld [vmem:[%s7925 + $0x1f8] sm:$0xff]
    %v7990 = vld [vmem:[%s7925 + $0x200] sm:$0xff]
    %v7991 = vld [vmem:[%s7925 + $0x208] sm:$0xff]
    %v7992 = vld [vmem:[%s7925 + $0x210] sm:$0xff]
    %v7993 = vld [vmem:[%s7925 + $0x218] sm:$0xff]
    %v7994 = vld [vmem:[%s7925 + $0x220] sm:$0xff]
    %v7995 = vld [vmem:[%s7925 + $0x228] sm:$0xff]
    %v7996 = vld [vmem:[%s7925 + $0x230] sm:$0xff]
    %v7997 = vld [vmem:[%s7925 + $0x238] sm:$0xff]
    %v7998 = vld [vmem:[%s7925 + $0x240] sm:$0xff]
    %v7999 = vld [vmem:[%s7925 + $0x248] sm:$0xff]
    %v8000 = vld [vmem:[%s7925 + $0x250] sm:$0xff]
    %v8001 = vld [vmem:[%s7925 + $0x258] sm:$0xff]
    %v8002 = vld [vmem:[%s7925 + $0x260] sm:$0xff]
    %v8003 = vld [vmem:[%s7925 + $0x268] sm:$0xff]
    %v8004 = vld [vmem:[%s7925 + $0x270] sm:$0xff]
    %v8005 = vld [vmem:[%s7925 + $0x278] sm:$0xff]
    %v8006 = vld [vmem:[%s7925 + $0x280] sm:$0xff]
    %v8007 = vld [vmem:[%s7925 + $0x288] sm:$0xff]
    %v8008 = vld [vmem:[%s7925 + $0x290] sm:$0xff]
    %v8009 = vld [vmem:[%s7925 + $0x298] sm:$0xff]
    %v8010 = vld [vmem:[%s7925 + $0x2a0] sm:$0xff]
    %v8011 = vld [vmem:[%s7925 + $0x2a8] sm:$0xff]
    %v8012 = vld [vmem:[%s7925 + $0x2b0] sm:$0xff]
    %v8013 = vld [vmem:[%s7925 + $0x2b8] sm:$0xff]
    %v8014 = vld [vmem:[%s7925 + $0x2c0] sm:$0xff]
    %v8015 = vld [vmem:[%s7925 + $0x2c8] sm:$0xff]
    %v8016 = vld [vmem:[%s7925 + $0x2d0] sm:$0xff]
    %v8017 = vld [vmem:[%s7925 + $0x2d8] sm:$0xff]
    %v8018 = vld [vmem:[%s7925 + $0x2e0] sm:$0xff]
    %v8019 = vld [vmem:[%s7925 + $0x2e8] sm:$0xff]
    %v8020 = vld [vmem:[%s7925 + $0x2f0] sm:$0xff]
    %v8021 = vld [vmem:[%s7925 + $0x2f8] sm:$0xff]
    %8022 = vmatprep.subr.bf16.mxu0 %v7927
    %8023 = vmatpush1.bf16.msra.mxu0 %v7926
    %8024 = vmatprep.subr.bf16.mxu0 %v7929
    %8025 = vmatpush1.bf16.msra.mxu0 %v7928
    %8026 = vmatprep.subr.bf16.mxu0 %v7931
    %8027 = vmatpush1.bf16.msra.mxu0 %v7930
    %8028 = vmatprep.subr.bf16.mxu0 %v7933
    %8029 = vmatpush1.bf16.msra.mxu0 %v7932
    %8030 = vmatprep.subr.bf16.mxu0 %v7935
    %8031 = vmatpush1.bf16.msra.mxu0 %v7934
    %8032 = vmatprep.subr.bf16.mxu0 %v7937
    %8033 = vmatpush1.bf16.msra.mxu0 %v7936
    %8034 = vmatprep.subr.bf16.mxu0 %v7939
    %8035 = vmatpush1.bf16.msra.mxu0 %v7938
    %8036 = vmatprep.subr.bf16.mxu0 %v7941
    %8037 = vmatpush1.bf16.msra.mxu0 %v7940
    %8038 = vmatprep.subr.bf16.mxu0 %v7943
    %8039 = vmatpush1.bf16.msra.mxu0 %v7942
    %8040 = vmatprep.subr.bf16.mxu0 %v7945
    %8041 = vmatpush1.bf16.msra.mxu0 %v7944
    %8042 = vmatprep.subr.bf16.mxu0 %v7947
    %8043 = vmatpush1.bf16.msra.mxu0 %v7946
    %8044 = vmatprep.subr.bf16.mxu0 %v7949
    %8045 = vmatpush1.bf16.msra.mxu0 %v7948
    %8046 = vmatprep.subr.bf16.mxu0 %v7951
    %8047 = vmatpush1.bf16.msra.mxu0 %v7950
    %8048 = vmatprep.subr.bf16.mxu0 %v7953
    %8049 = vmatpush1.bf16.msra.mxu0 %v7952
    %8050 = vmatprep.subr.bf16.mxu0 %v7955
    %8051 = vmatpush1.bf16.msra.mxu0 %v7954
    %8052 = vmatprep.subr.bf16.mxu0 %v7957
    %8053 = vmatpush1.bf16.msra.mxu0 %v7956
    %8054 = vmatprep.mubr.bf16.mxu0 %v5130
    %8055 = vmatmul.mubr.bf16.gmra.mrb[0].mxu0 %v5129
    %v8056 = vpop.f32.mrb[0].mxu0
    %v8057 = vadd.f32 0.0, %v8056
    %v8058 = vpop.f32.mrb[0].mxu0
    %v8059 = vadd.f32 0.0, %v8058
    %v8060 = vpop.f32.mrb[0].mxu0
    %v8061 = vpop.f32.mrb[0].mxu0
    %8062 = vdwg.mxu0
    %8063 = vmatprep.subr.bf16.mxu0 %v7959
    %8064 = vmatpush1.bf16.msra.mxu0 %v7958
    %8065 = vmatprep.subr.bf16.mxu0 %v7961
    %8066 = vmatpush1.bf16.msra.mxu0 %v7960
    %8067 = vmatprep.subr.bf16.mxu0 %v7963
    %8068 = vmatpush1.bf16.msra.mxu0 %v7962
    %8069 = vmatprep.subr.bf16.mxu0 %v7965
    %8070 = vmatpush1.bf16.msra.mxu0 %v7964
    %8071 = vmatprep.subr.bf16.mxu0 %v7967
    %8072 = vmatpush1.bf16.msra.mxu0 %v7966
    %8073 = vmatprep.subr.bf16.mxu0 %v7969
    %8074 = vmatpush1.bf16.msra.mxu0 %v7968
    %8075 = vmatprep.subr.bf16.mxu0 %v7971
    %8076 = vmatpush1.bf16.msra.mxu0 %v7970
    %8077 = vmatprep.subr.bf16.mxu0 %v7973
    %8078 = vmatpush1.bf16.msra.mxu0 %v7972
    %8079 = vmatprep.subr.bf16.mxu0 %v7975
    %8080 = vmatpush1.bf16.msra.mxu0 %v7974
    %8081 = vmatprep.subr.bf16.mxu0 %v7977
    %8082 = vmatpush1.bf16.msra.mxu0 %v7976
    %8083 = vmatprep.subr.bf16.mxu0 %v7979
    %8084 = vmatpush1.bf16.msra.mxu0 %v7978
    %8085 = vmatprep.subr.bf16.mxu0 %v7981
    %8086 = vmatpush1.bf16.msra.mxu0 %v7980
    %8087 = vmatprep.subr.bf16.mxu0 %v7983
    %8088 = vmatpush1.bf16.msra.mxu0 %v7982
    %8089 = vmatprep.subr.bf16.mxu0 %v7985
    %8090 = vmatpush1.bf16.msra.mxu0 %v7984
    %8091 = vmatprep.subr.bf16.mxu0 %v7987
    %8092 = vmatpush1.bf16.msra.mxu0 %v7986
    %8093 = vmatprep.subr.bf16.mxu0 %v7989
    %8094 = vmatpush1.bf16.msra.mxu0 %v7988
    %8095 = vmatprep.mubr.bf16.mxu0 %v5132
    %8096 = vmatmul.mubr.bf16.gmra.mrb[0].mxu0 %v5131
    %v8097 = vpop.f32.mrb[0].mxu0
    %v8098 = vadd.f32 %v8057, %v8097
    %v8099 = vpop.f32.mrb[0].mxu0
    %v8100 = vadd.f32 %v8059, %v8099
    %v8101 = vpop.f32.mrb[0].mxu0
    %v8102 = vpop.f32.mrb[0].mxu0
    %8103 = vdwg.mxu0
    %8104 = vmatprep.subr.bf16.mxu0 %v7991
    %8105 = vmatpush1.bf16.msra.mxu0 %v7990
    %8106 = vmatprep.subr.bf16.mxu0 %v7993
    %8107 = vmatpush1.bf16.msra.mxu0 %v7992
    %8108 = vmatprep.subr.bf16.mxu0 %v7995
    %8109 = vmatpush1.bf16.msra.mxu0 %v7994
    %8110 = vmatprep.subr.bf16.mxu0 %v7997
    %8111 = vmatpush1.bf16.msra.mxu0 %v7996
    %8112 = vmatprep.subr.bf16.mxu0 %v7999
    %8113 = vmatpush1.bf16.msra.mxu0 %v7998
    %8114 = vmatprep.subr.bf16.mxu0 %v8001
    %8115 = vmatpush1.bf16.msra.mxu0 %v8000
    %8116 = vmatprep.subr.bf16.mxu0 %v8003
    %8117 = vmatpush1.bf16.msra.mxu0 %v8002
    %8118 = vmatprep.subr.bf16.mxu0 %v8005
    %8119 = vmatpush1.bf16.msra.mxu0 %v8004
    %8120 = vmatprep.subr.bf16.mxu0 %v8007
    %8121 = vmatpush1.bf16.msra.mxu0 %v8006
    %8122 = vmatprep.subr.bf16.mxu0 %v8009
    %8123 = vmatpush1.bf16.msra.mxu0 %v8008
    %8124 = vmatprep.subr.bf16.mxu0 %v8011
    %8125 = vmatpush1.bf16.msra.mxu0 %v8010
    %8126 = vmatprep.subr.bf16.mxu0 %v8013
    %8127 = vmatpush1.bf16.msra.mxu0 %v8012
    %8128 = vmatprep.subr.bf16.mxu0 %v8015
    %8129 = vmatpush1.bf16.msra.mxu0 %v8014
    %8130 = vmatprep.subr.bf16.mxu0 %v8017
    %8131 = vmatpush1.bf16.msra.mxu0 %v8016
    %8132 = vmatprep.subr.bf16.mxu0 %v8019
    %8133 = vmatpush1.bf16.msra.mxu0 %v8018
    %8134 = vmatprep.subr.bf16.mxu0 %v8021
    %8135 = vmatpush1.bf16.msra.mxu0 %v8020
    %8136 = vmatprep.mubr.bf16.mxu0 %v5134
    %8137 = vmatmul.mubr.bf16.gmra.mrb[0].mxu0 %v5133
    %v8138 = vpop.f32.mrb[0].mxu0
    %v8139 = vadd.f32 %v8098, %v8138
    %v8140 = vpop.f32.mrb[0].mxu0
    %v8141 = vadd.f32 %v8100, %v8140
    %v8142 = vpop.f32.mrb[0].mxu0
    %v8143 = vpop.f32.mrb[0].mxu0
    %8144 = vdwg.mxu0
    %v8145 = vadd.f32 %v7923, %v8139
    %v8146 = vadd.f32 %v7924, %v8141
    %s8147 = scalar_lea.vmem [#allocation2], 9984
    %v8148 = vld [vmem:[%s8147] sm:$0xff]
    %v8149 = vld [vmem:[%s8147 + $0x8] sm:$0xff]
    %v8150 = vld [vmem:[%s8147 + $0x10] sm:$0xff]
    %v8151 = vld [vmem:[%s8147 + $0x18] sm:$0xff]
    %v8152 = vld [vmem:[%s8147 + $0x20] sm:$0xff]
    %v8153 = vld [vmem:[%s8147 + $0x28] sm:$0xff]
    %v8154 = vld [vmem:[%s8147 + $0x30] sm:$0xff]
    %v8155 = vld [vmem:[%s8147 + $0x38] sm:$0xff]
    %v8156 = vld [vmem:[%s8147 + $0x40] sm:$0xff]
    %v8157 = vld [vmem:[%s8147 + $0x48] sm:$0xff]
    %v8158 = vld [vmem:[%s8147 + $0x50] sm:$0xff]
    %v8159 = vld [vmem:[%s8147 + $0x58] sm:$0xff]
    %v8160 = vld [vmem:[%s8147 + $0x60] sm:$0xff]
    %v8161 = vld [vmem:[%s8147 + $0x68] sm:$0xff]
    %v8162 = vld [vmem:[%s8147 + $0x70] sm:$0xff]
    %v8163 = vld [vmem:[%s8147 + $0x78] sm:$0xff]
    %v8164 = vld [vmem:[%s8147 + $0x80] sm:$0xff]
    %v8165 = vld [vmem:[%s8147 + $0x88] sm:$0xff]
    %v8166 = vld [vmem:[%s8147 + $0x90] sm:$0xff]
    %v8167 = vld [vmem:[%s8147 + $0x98] sm:$0xff]
    %v8168 = vld [vmem:[%s8147 + $0xa0] sm:$0xff]
    %v8169 = vld [vmem:[%s8147 + $0xa8] sm:$0xff]
    %v8170 = vld [vmem:[%s8147 + $0xb0] sm:$0xff]
    %v8171 = vld [vmem:[%s8147 + $0xb8] sm:$0xff]
    %v8172 = vld [vmem:[%s8147 + $0xc0] sm:$0xff]
    %v8173 = vld [vmem:[%s8147 + $0xc8] sm:$0xff]
    %v8174 = vld [vmem:[%s8147 + $0xd0] sm:$0xff]
    %v8175 = vld [vmem:[%s8147 + $0xd8] sm:$0xff]
    %v8176 = vld [vmem:[%s8147 + $0xe0] sm:$0xff]
    %v8177 = vld [vmem:[%s8147 + $0xe8] sm:$0xff]
    %v8178 = vld [vmem:[%s8147 + $0xf0] sm:$0xff]
    %v8179 = vld [vmem:[%s8147 + $0xf8] sm:$0xff]
    %v8180 = vld [vmem:[%s8147 + $0x100] sm:$0xff]
    %v8181 = vld [vmem:[%s8147 + $0x108] sm:$0xff]
    %v8182 = vld [vmem:[%s8147 + $0x110] sm:$0xff]
    %v8183 = vld [vmem:[%s8147 + $0x118] sm:$0xff]
    %v8184 = vld [vmem:[%s8147 + $0x120] sm:$0xff]
    %v8185 = vld [vmem:[%s8147 + $0x128] sm:$0xff]
    %v8186 = vld [vmem:[%s8147 + $0x130] sm:$0xff]
    %v8187 = vld [vmem:[%s8147 + $0x138] sm:$0xff]
    %v8188 = vld [vmem:[%s8147 + $0x140] sm:$0xff]
    %v8189 = vld [vmem:[%s8147 + $0x148] sm:$0xff]
    %v8190 = vld [vmem:[%s8147 + $0x150] sm:$0xff]
    %v8191 = vld [vmem:[%s8147 + $0x158] sm:$0xff]
    %v8192 = vld [vmem:[%s8147 + $0x160] sm:$0xff]
    %v8193 = vld [vmem:[%s8147 + $0x168] sm:$0xff]
    %v8194 = vld [vmem:[%s8147 + $0x170] sm:$0xff]
    %v8195 = vld [vmem:[%s8147 + $0x178] sm:$0xff]
    %v8196 = vld [vmem:[%s8147 + $0x180] sm:$0xff]
    %v8197 = vld [vmem:[%s8147 + $0x188] sm:$0xff]
    %v8198 = vld [vmem:[%s8147 + $0x190] sm:$0xff]
    %v8199 = vld [vmem:[%s8147 + $0x198] sm:$0xff]
    %v8200 = vld [vmem:[%s8147 + $0x1a0] sm:$0xff]
    %v8201 = vld [vmem:[%s8147 + $0x1a8] sm:$0xff]
    %v8202 = vld [vmem:[%s8147 + $0x1b0] sm:$0xff]
    %v8203 = vld [vmem:[%s8147 + $0x1b8] sm:$0xff]
    %v8204 = vld [vmem:[%s8147 + $0x1c0] sm:$0xff]
    %v8205 = vld [vmem:[%s8147 + $0x1c8] sm:$0xff]
    %v8206 = vld [vmem:[%s8147 + $0x1d0] sm:$0xff]
    %v8207 = vld [vmem:[%s8147 + $0x1d8] sm:$0xff]
    %v8208 = vld [vmem:[%s8147 + $0x1e0] sm:$0xff]
    %v8209 = vld [vmem:[%s8147 + $0x1e8] sm:$0xff]
    %v8210 = vld [vmem:[%s8147 + $0x1f0] sm:$0xff]
    %v8211 = vld [vmem:[%s8147 + $0x1f8] sm:$0xff]
    %v8212 = vld [vmem:[%s8147 + $0x200] sm:$0xff]
    %v8213 = vld [vmem:[%s8147 + $0x208] sm:$0xff]
    %v8214 = vld [vmem:[%s8147 + $0x210] sm:$0xff]
    %v8215 = vld [vmem:[%s8147 + $0x218] sm:$0xff]
    %v8216 = vld [vmem:[%s8147 + $0x220] sm:$0xff]
    %v8217 = vld [vmem:[%s8147 + $0x228] sm:$0xff]
    %v8218 = vld [vmem:[%s8147 + $0x230] sm:$0xff]
    %v8219 = vld [vmem:[%s8147 + $0x238] sm:$0xff]
    %v8220 = vld [vmem:[%s8147 + $0x240] sm:$0xff]
    %v8221 = vld [vmem:[%s8147 + $0x248] sm:$0xff]
    %v8222 = vld [vmem:[%s8147 + $0x250] sm:$0xff]
    %v8223 = vld [vmem:[%s8147 + $0x258] sm:$0xff]
    %v8224 = vld [vmem:[%s8147 + $0x260] sm:$0xff]
    %v8225 = vld [vmem:[%s8147 + $0x268] sm:$0xff]
    %v8226 = vld [vmem:[%s8147 + $0x270] sm:$0xff]
    %v8227 = vld [vmem:[%s8147 + $0x278] sm:$0xff]
    %v8228 = vld [vmem:[%s8147 + $0x280] sm:$0xff]
    %v8229 = vld [vmem:[%s8147 + $0x288] sm:$0xff]
    %v8230 = vld [vmem:[%s8147 + $0x290] sm:$0xff]
    %v8231 = vld [vmem:[%s8147 + $0x298] sm:$0xff]
    %v8232 = vld [vmem:[%s8147 + $0x2a0] sm:$0xff]
    %v8233 = vld [vmem:[%s8147 + $0x2a8] sm:$0xff]
    %v8234 = vld [vmem:[%s8147 + $0x2b0] sm:$0xff]
    %v8235 = vld [vmem:[%s8147 + $0x2b8] sm:$0xff]
    %v8236 = vld [vmem:[%s8147 + $0x2c0] sm:$0xff]
    %v8237 = vld [vmem:[%s8147 + $0x2c8] sm:$0xff]
    %v8238 = vld [vmem:[%s8147 + $0x2d0] sm:$0xff]
    %v8239 = vld [vmem:[%s8147 + $0x2d8] sm:$0xff]
    %v8240 = vld [vmem:[%s8147 + $0x2e0] sm:$0xff]
    %v8241 = vld [vmem:[%s8147 + $0x2e8] sm:$0xff]
    %v8242 = vld [vmem:[%s8147 + $0x2f0] sm:$0xff]
    %v8243 = vld [vmem:[%s8147 + $0x2f8] sm:$0xff]
    %v8250 = vrot.slane %v5129, 2
    %v8251 = vrot.slane %v5130, 2
    %v8252 = vrot.slane %v5131, 2
    %v8253 = vrot.slane %v5132, 2
    %v8254 = vrot.slane %v5133, 2
    %v8255 = vrot.slane %v5134, 2
    %8262 = vmatprep.subr.bf16.mxu0 %v8149
    %8263 = vmatpush1.bf16.msra.mxu0 %v8148
    %8264 = vmatprep.subr.bf16.mxu0 %v8151
    %8265 = vmatpush1.bf16.msra.mxu0 %v8150
    %8266 = vmatprep.subr.bf16.mxu0 %v8153
    %8267 = vmatpush1.bf16.msra.mxu0 %v8152
    %8268 = vmatprep.subr.bf16.mxu0 %v8155
    %8269 = vmatpush1.bf16.msra.mxu0 %v8154
    %8270 = vmatprep.subr.bf16.mxu0 %v8157
    %8271 = vmatpush1.bf16.msra.mxu0 %v8156
    %8272 = vmatprep.subr.bf16.mxu0 %v8159
    %8273 = vmatpush1.bf16.msra.mxu0 %v8158
    %8274 = vmatprep.subr.bf16.mxu0 %v8161
    %8275 = vmatpush1.bf16.msra.mxu0 %v8160
    %8276 = vmatprep.subr.bf16.mxu0 %v8163
    %8277 = vmatpush1.bf16.msra.mxu0 %v8162
    %8278 = vmatprep.subr.bf16.mxu0 %v8165
    %8279 = vmatpush1.bf16.msra.mxu0 %v8164
    %8280 = vmatprep.subr.bf16.mxu0 %v8167
    %8281 = vmatpush1.bf16.msra.mxu0 %v8166
    %8282 = vmatprep.subr.bf16.mxu0 %v8169
    %8283 = vmatpush1.bf16.msra.mxu0 %v8168
    %8284 = vmatprep.subr.bf16.mxu0 %v8171
    %8285 = vmatpush1.bf16.msra.mxu0 %v8170
    %8286 = vmatprep.subr.bf16.mxu0 %v8173
    %8287 = vmatpush1.bf16.msra.mxu0 %v8172
    %8288 = vmatprep.subr.bf16.mxu0 %v8175
    %8289 = vmatpush1.bf16.msra.mxu0 %v8174
    %8290 = vmatprep.subr.bf16.mxu0 %v8177
    %8291 = vmatpush1.bf16.msra.mxu0 %v8176
    %8292 = vmatprep.subr.bf16.mxu0 %v8179
    %8293 = vmatpush1.bf16.msra.mxu0 %v8178
    %8294 = vmatprep.mubr.bf16.mxu0 %v8251
    %8295 = vmatmul.mubr.bf16.gmra.mrb[0].mxu0 %v8250
    %v8296 = vpop.f32.mrb[0].mxu0
    %v8297 = vadd.f32 0.0, %v8296
    %v8298 = vpop.f32.mrb[0].mxu0
    %v8299 = vadd.f32 0.0, %v8298
    %v8300 = vpop.f32.mrb[0].mxu0
    %v8301 = vpop.f32.mrb[0].mxu0
    %8302 = vdwg.mxu0
    %8303 = vmatprep.subr.bf16.mxu0 %v8181
    %8304 = vmatpush1.bf16.msra.mxu0 %v8180
    %8305 = vmatprep.subr.bf16.mxu0 %v8183
    %8306 = vmatpush1.bf16.msra.mxu0 %v8182
    %8307 = vmatprep.subr.bf16.mxu0 %v8185
    %8308 = vmatpush1.bf16.msra.mxu0 %v8184
    %8309 = vmatprep.subr.bf16.mxu0 %v8187
    %8310 = vmatpush1.bf16.msra.mxu0 %v8186
    %8311 = vmatprep.subr.bf16.mxu0 %v8189
    %8312 = vmatpush1.bf16.msra.mxu0 %v8188
    %8313 = vmatprep.subr.bf16.mxu0 %v8191
    %8314 = vmatpush1.bf16.msra.mxu0 %v8190
    %8315 = vmatprep.subr.bf16.mxu0 %v8193
    %8316 = vmatpush1.bf16.msra.mxu0 %v8192
    %8317 = vmatprep.subr.bf16.mxu0 %v8195
    %8318 = vmatpush1.bf16.msra.mxu0 %v8194
    %8319 = vmatprep.subr.bf16.mxu0 %v8197
    %8320 = vmatpush1.bf16.msra.mxu0 %v8196
    %8321 = vmatprep.subr.bf16.mxu0 %v8199
    %8322 = vmatpush1.bf16.msra.mxu0 %v8198
    %8323 = vmatprep.subr.bf16.mxu0 %v8201
    %8324 = vmatpush1.bf16.msra.mxu0 %v8200
    %8325 = vmatprep.subr.bf16.mxu0 %v8203
    %8326 = vmatpush1.bf16.msra.mxu0 %v8202
    %8327 = vmatprep.subr.bf16.mxu0 %v8205
    %8328 = vmatpush1.bf16.msra.mxu0 %v8204
    %8329 = vmatprep.subr.bf16.mxu0 %v8207
    %8330 = vmatpush1.bf16.msra.mxu0 %v8206
    %8331 = vmatprep.subr.bf16.mxu0 %v8209
    %8332 = vmatpush1.bf16.msra.mxu0 %v8208
    %8333 = vmatprep.subr.bf16.mxu0 %v8211
    %8334 = vmatpush1.bf16.msra.mxu0 %v8210
    %8335 = vmatprep.mubr.bf16.mxu0 %v8253
    %8336 = vmatmul.mubr.bf16.gmra.mrb[0].mxu0 %v8252
    %v8337 = vpop.f32.mrb[0].mxu0
    %v8338 = vadd.f32 %v8297, %v8337
    %v8339 = vpop.f32.mrb[0].mxu0
    %v8340 = vadd.f32 %v8299, %v8339
    %v8341 = vpop.f32.mrb[0].mxu0
    %v8342 = vpop.f32.mrb[0].mxu0
    %8343 = vdwg.mxu0
    %8344 = vmatprep.subr.bf16.mxu0 %v8213
    %8345 = vmatpush1.bf16.msra.mxu0 %v8212
    %8346 = vmatprep.subr.bf16.mxu0 %v8215
    %8347 = vmatpush1.bf16.msra.mxu0 %v8214
    %8348 = vmatprep.subr.bf16.mxu0 %v8217
    %8349 = vmatpush1.bf16.msra.mxu0 %v8216
    %8350 = vmatprep.subr.bf16.mxu0 %v8219
    %8351 = vmatpush1.bf16.msra.mxu0 %v8218
    %8352 = vmatprep.subr.bf16.mxu0 %v8221
    %8353 = vmatpush1.bf16.msra.mxu0 %v8220
    %8354 = vmatprep.subr.bf16.mxu0 %v8223
    %8355 = vmatpush1.bf16.msra.mxu0 %v8222
    %8356 = vmatprep.subr.bf16.mxu0 %v8225
    %8357 = vmatpush1.bf16.msra.mxu0 %v8224
    %8358 = vmatprep.subr.bf16.mxu0 %v8227
    %8359 = vmatpush1.bf16.msra.mxu0 %v8226
    %8360 = vmatprep.subr.bf16.mxu0 %v8229
    %8361 = vmatpush1.bf16.msra.mxu0 %v8228
    %8362 = vmatprep.subr.bf16.mxu0 %v8231
    %8363 = vmatpush1.bf16.msra.mxu0 %v8230
    %8364 = vmatprep.subr.bf16.mxu0 %v8233
    %8365 = vmatpush1.bf16.msra.mxu0 %v8232
    %8366 = vmatprep.subr.bf16.mxu0 %v8235
    %8367 = vmatpush1.bf16.msra.mxu0 %v8234
    %8368 = vmatprep.subr.bf16.mxu0 %v8237
    %8369 = vmatpush1.bf16.msra.mxu0 %v8236
    %8370 = vmatprep.subr.bf16.mxu0 %v8239
    %8371 = vmatpush1.bf16.msra.mxu0 %v8238
    %8372 = vmatprep.subr.bf16.mxu0 %v8241
    %8373 = vmatpush1.bf16.msra.mxu0 %v8240
    %8374 = vmatprep.subr.bf16.mxu0 %v8243
    %8375 = vmatpush1.bf16.msra.mxu0 %v8242
    %8376 = vmatprep.mubr.bf16.mxu0 %v8255
    %8377 = vmatmul.mubr.bf16.gmra.mrb[0].mxu0 %v8254
    %v8378 = vpop.f32.mrb[0].mxu0
    %v8379 = vadd.f32 %v8338, %v8378
    %v8380 = vpop.f32.mrb[0].mxu0
    %v8381 = vadd.f32 %v8340, %v8380
    %v8382 = vpop.f32.mrb[0].mxu0
    %v8383 = vpop.f32.mrb[0].mxu0
    %8384 = vdwg.mxu0
    %v8385 = vadd.f32 %v8145, %v8379
    %v8386 = vadd.f32 %v8146, %v8381
    %v8387 = vld [vmem:[#allocation12] sm:$0x3]
    %v8389 = vlaneseq
    %v8390 = vshrl.u32 %v8389, 7
    %v8391 = vsub.s32 0, %v8390
    %v8392 = vrot.slane %v8387, %v8391
    %v8393 = vlaneseq
    %v8394 = vshrl.u32 %v8393, 7
    %v8395 = vsub.s32 1, %v8394
    %v8396 = vrot.slane %v8387, %v8395
    %v8399 = vadd.f32 %v8385, %v8392
    %v8400 = vadd.f32 %v8386, %v8396
    %v8401 = vmax.f32 %v8399, 0.0
    %v8402 = vmax.f32 %v8400, 0.0
    %v8403 = vpack.c.bf16 %v8401, %v8401
    %v8404 = vpack.c.bf16 %v8402, %v8402
    %v8405 = vld [vmem:[#allocation13] sm:$0xf]
    %v8406 = vld [vmem:[#allocation13 + $0x4] sm:$0xf]
    %v8407 = vld [vmem:[#allocation13 + $0x8] sm:$0xf]
    %v8408 = vld [vmem:[#allocation13 + $0xc] sm:$0xf]
    %v8409 = vld [vmem:[#allocation13 + $0x10] sm:$0xf]
    %v8410 = vld [vmem:[#allocation13 + $0x14] sm:$0xf]
    %v8411 = vld [vmem:[#allocation13 + $0x18] sm:$0xf]
    %v8412 = vld [vmem:[#allocation13 + $0x1c] sm:$0xf]
    %v8413 = vld [vmem:[#allocation13 + $0x20] sm:$0xf]
    %v8414 = vld [vmem:[#allocation13 + $0x24] sm:$0xf]
    %v8415 = vld [vmem:[#allocation13 + $0x28] sm:$0xf]
    %v8416 = vld [vmem:[#allocation13 + $0x2c] sm:$0xf]
    %v8417 = vld [vmem:[#allocation13 + $0x30] sm:$0xf]
    %v8418 = vld [vmem:[#allocation13 + $0x34] sm:$0xf]
    %v8419 = vld [vmem:[#allocation13 + $0x38] sm:$0xf]
    %v8420 = vld [vmem:[#allocation13 + $0x3c] sm:$0xf]
    %v8421 = vld [vmem:[#allocation13 + $0x40] sm:$0xf]
    %v8422 = vld [vmem:[#allocation13 + $0x44] sm:$0xf]
    %v8423 = vld [vmem:[#allocation13 + $0x48] sm:$0xf]
    %v8424 = vld [vmem:[#allocation13 + $0x4c] sm:$0xf]
    %v8425 = vld [vmem:[#allocation13 + $0x50] sm:$0xf]
    %v8426 = vld [vmem:[#allocation13 + $0x54] sm:$0xf]
    %v8427 = vld [vmem:[#allocation13 + $0x58] sm:$0xf]
    %v8428 = vld [vmem:[#allocation13 + $0x5c] sm:$0xf]
    %v8429 = vld [vmem:[#allocation13 + $0x60] sm:$0xf]
    %v8430 = vld [vmem:[#allocation13 + $0x64] sm:$0xf]
    %v8431 = vld [vmem:[#allocation13 + $0x68] sm:$0xf]
    %v8432 = vld [vmem:[#allocation13 + $0x6c] sm:$0xf]
    %v8433 = vld [vmem:[#allocation13 + $0x70] sm:$0xf]
    %v8434 = vld [vmem:[#allocation13 + $0x74] sm:$0xf]
    %v8435 = vld [vmem:[#allocation13 + $0x78] sm:$0xf]
    %v8436 = vld [vmem:[#allocation13 + $0x7c] sm:$0xf]
    %v8437 = vld [vmem:[#allocation15] sm:$0x1]
    %v8439 = vlaneseq
    %v8440 = vshrl.u32 %v8439, 7
    %v8441 = vsub.s32 0, %v8440
    %v8442 = vrot.slane %v8437, %v8441
    %v8476 = vunpack.c.l.b16 %v8405
    %v8477 = vunpack.c.l.b16 %v8406
    %v8478 = vunpack.c.l.b16 %v8407
    %v8479 = vunpack.c.l.b16 %v8408
    %v8480 = vunpack.c.l.b16 %v8409
    %v8481 = vunpack.c.l.b16 %v8410
    %v8482 = vunpack.c.l.b16 %v8411
    %v8483 = vunpack.c.l.b16 %v8412
    %v8484 = vunpack.c.l.b16 %v8413
    %v8485 = vunpack.c.l.b16 %v8414
    %v8486 = vunpack.c.l.b16 %v8415
    %v8487 = vunpack.c.l.b16 %v8416
    %v8488 = vunpack.c.l.b16 %v8417
    %v8489 = vunpack.c.l.b16 %v8418
    %v8490 = vunpack.c.l.b16 %v8419
    %v8491 = vunpack.c.l.b16 %v8420
    %v8492 = vunpack.c.l.b16 %v8421
    %v8493 = vunpack.c.l.b16 %v8422
    %v8494 = vunpack.c.l.b16 %v8423
    %v8495 = vunpack.c.l.b16 %v8424
    %v8496 = vunpack.c.l.b16 %v8425
    %v8497 = vunpack.c.l.b16 %v8426
    %v8498 = vunpack.c.l.b16 %v8427
    %v8499 = vunpack.c.l.b16 %v8428
    %v8500 = vunpack.c.l.b16 %v8429
    %v8501 = vunpack.c.l.b16 %v8430
    %v8502 = vunpack.c.l.b16 %v8431
    %v8503 = vunpack.c.l.b16 %v8432
    %v8504 = vunpack.c.l.b16 %v8433
    %v8505 = vunpack.c.l.b16 %v8434
    %v8506 = vunpack.c.l.b16 %v8435
    %v8507 = vunpack.c.l.b16 %v8436
    %v8508 = vpack.c.b16 %v8477, %v8476
    %v8509 = vpack.c.b16 %v8479, %v8478
    %v8510 = vpack.c.b16 %v8481, %v8480
    %v8511 = vpack.c.b16 %v8483, %v8482
    %v8512 = vpack.c.b16 %v8485, %v8484
    %v8513 = vpack.c.b16 %v8487, %v8486
    %v8514 = vpack.c.b16 %v8489, %v8488
    %v8515 = vpack.c.b16 %v8491, %v8490
    %v8516 = vpack.c.b16 %v8493, %v8492
    %v8517 = vpack.c.b16 %v8495, %v8494
    %v8518 = vpack.c.b16 %v8497, %v8496
    %v8519 = vpack.c.b16 %v8499, %v8498
    %v8520 = vpack.c.b16 %v8501, %v8500
    %v8521 = vpack.c.b16 %v8503, %v8502
    %v8522 = vpack.c.b16 %v8505, %v8504
    %v8523 = vpack.c.b16 %v8507, %v8506
    %8540 = vmatprep.subr.bf16.mxu0 0
    %8541 = vmatpush1.bf16.msra.mxu0 %v8508
    %8542 = vmatprep.subr.bf16.mxu0 0
    %8543 = vmatpush1.bf16.msra.mxu0 %v8509
    %8544 = vmatprep.subr.bf16.mxu0 0
    %8545 = vmatpush1.bf16.msra.mxu0 %v8510
    %8546 = vmatprep.subr.bf16.mxu0 0
    %8547 = vmatpush1.bf16.msra.mxu0 %v8511
    %8548 = vmatprep.subr.bf16.mxu0 0
    %8549 = vmatpush1.bf16.msra.mxu0 %v8512
    %8550 = vmatprep.subr.bf16.mxu0 0
    %8551 = vmatpush1.bf16.msra.mxu0 %v8513
    %8552 = vmatprep.subr.bf16.mxu0 0
    %8553 = vmatpush1.bf16.msra.mxu0 %v8514
    %8554 = vmatprep.subr.bf16.mxu0 0
    %8555 = vmatpush1.bf16.msra.mxu0 %v8515
    %8556 = vmatprep.subr.bf16.mxu0 0
    %8557 = vmatpush1.bf16.msra.mxu0 %v8516
    %8558 = vmatprep.subr.bf16.mxu0 0
    %8559 = vmatpush1.bf16.msra.mxu0 %v8517
    %8560 = vmatprep.subr.bf16.mxu0 0
    %8561 = vmatpush1.bf16.msra.mxu0 %v8518
    %8562 = vmatprep.subr.bf16.mxu0 0
    %8563 = vmatpush1.bf16.msra.mxu0 %v8519
    %8564 = vmatprep.subr.bf16.mxu0 0
    %8565 = vmatpush1.bf16.msra.mxu0 %v8520
    %8566 = vmatprep.subr.bf16.mxu0 0
    %8567 = vmatpush1.bf16.msra.mxu0 %v8521
    %8568 = vmatprep.subr.bf16.mxu0 0
    %8569 = vmatpush1.bf16.msra.mxu0 %v8522
    %8570 = vmatprep.subr.bf16.mxu0 0
    %8571 = vmatpush1.bf16.msra.mxu0 %v8523
    %8572 = vmatprep.mubr.bf16.mxu0 %v8404
    %8573 = vmatmul.mubr.bf16.gmra.mrb[0].mxu0 %v8403
    %v8574 = vpop.f32.mrb[0].mxu0
    %v8575 = vadd.f32 %v8442, %v8574
    %v8576 = vpop.f32.mrb[0].mxu0
    %v8577 = vpop.f32.mrb[0].mxu0
    %v8578 = vpop.f32.mrb[0].mxu0
    %8579 = vdwg.mxu0
    %8580 = vst [vmem:[#allocation16] sm:$0x3] %v8575
    // Predicated region
    $region62: #{net_forward.1} parent=1 // pred_check
      _
    $region63: #{net_forward.1} parent=1 // pred_check_branch
      %8582 = sbr.rel (0) target = $region65
    $region64: #{net_forward.1} parent=1 // pred_region
      %s8584 = ssub.s32 32, 32
      %8585 = vsyncadd [#allocation6], %s8584
      %s8587 = sshll.u32 [#allocation16], 4
      %s8588 = int_to_ptr.vmem [resolvable:$true] %s8587
      %8590 = dma.vmem_to_hbm [thread:$0]  %s8588, 32, %s9, [#allocation6]
    $region65: #{net_forward.1} parent=1 // pred_fallthru
      _
    // Predicated region
    $region66: #{net_forward.1} parent=1 // pred_check
      _
    $region67: #{net_forward.1} parent=1 // pred_check_branch
      %8592 = sbr.rel (0) target = $region69
    $region68: #{net_forward.1} parent=1 // pred_region
      %8593 = dma.done [#allocation6], 32
    $region69: #{net_forward.1} parent=1 // pred_fallthru
      _
    %8594 = vsyncpa [#allocation5], 1
    %8595 = vsyncpa [#allocation8], 1
    %8596 = vsyncpa [#allocation11], 1
    %8597 = vsyncpa [#allocation14], 1
    %8598 = vsyncpa [#allocation6], 1
  %8599 = vsyncmov [#allocation3]
  %s8600 = vpop.sfrf %8599
  %p8601 = scmp.eq.s32.totalorder %s8600, 0
  %p8602 = pneg %p8601
  %8604 = shalt.err (%p8602)

</llo_original>
